<compile_context>
chip_gen: v7x
topology: tpu7x:2x2x1
jax: 0.10.0
libtpu: 0.0.40
codegen_flags: <defaults>
</compile_context>

<pallas_src>
import numpy as np
import jax
import jax.numpy as jnp
from jax.experimental import pallas as pl
from jax.experimental.pallas import tpu as pltpu

B = 2
IMG_SZ = 16                                   # must be a power of two (lane index bit tricks)
NGF = 8
NZ_ENC = 32
INPUT_NC = 3
N_PIXEL_SOURCES = 2
N_MASKS = 1 + 2 * N_PIXEL_SOURCES             # 5
HEAD_COUT = INPUT_NC + N_MASKS + 2 * N_PIXEL_SOURCES   # 3 + 5 + 2 + 2 = 12
LEAKY_SLOPE = 0.2
P = IMG_SZ * IMG_SZ                           # 256
P8 = 8 * 8                                    # 64
C0 = 2 * NGF                                  # 16

# output slab row layout (single (B, OUT_ROWS, 256) lane-dense output)
FEAT_OFF = 0                                  # 8 rows
IMG_OFF = FEAT_OFF + NGF                      # 3 rows
FLOW_OFF = IMG_OFF + INPUT_NC                 # 2*2 rows
WARP_OFF = FLOW_OFF + 2 * N_PIXEL_SOURCES     # 2*3 rows
OUT_ROWS = 24                                 # 21 used, padded to a multiple of 8


# ------------------------- host-side constant matrices ------------------------ #

def _upsample_mat(src_hw, dst_hw):
    """One-hot (src_hw^2, dst_hw^2): nearest-neighbour 2x upsample as a matmul."""
    m = np.zeros((src_hw * src_hw, dst_hw * dst_hw), np.float32)
    for y in range(dst_hw):
        for x in range(dst_hw):
            m[(y // 2) * src_hw + (x // 2), y * dst_hw + x] = 1.0
    return m


def _tap_mats(hw):
    """(9, hw^2, hw^2) one-hot gather matrices for a 3x3 conv, zero padding baked in."""
    mats = np.zeros((9, hw * hw, hw * hw), np.float32)
    for ky in range(3):
        for kx in range(3):
            t = ky * 3 + kx
            for y in range(hw):
                for x in range(hw):
                    sy, sx = y + ky - 1, x + kx - 1
                    if 0 <= sy < hw and 0 <= sx < hw:
                        mats[t, sy * hw + sx, y * hw + x] = 1.0
    return mats


# --------------------------------- the kernel --------------------------------- #

def _leaky(x):
    return jnp.where(x >= 0.0, x, LEAKY_SLOPE * x)


def _fill_shift_taps(x, valid_masks, g_scr):
    """Write the 9 shifted (3x3, zero-padded) copies of the channel-major (Cin, 256)
    map `x` into g_scr rows [t*Cin:(t+1)*Cin] via pltpu.roll lane rotations + masks."""
    cin = x.shape[0]
    for ky in range(3):
        for kx in range(3):
            t = ky * 3 + kx
            off = (ky - 1) * IMG_SZ + (kx - 1)          # flat lane offset of this tap
            g = x if off == 0 else pltpu.roll(x, (-off) % P, 1)
            g_scr[t * cin:(t + 1) * cin, :] = jnp.where(valid_masks[t], g, 0.0)


def _decoder_kernel(z_ref, srccm_ref, src48_ref,
                    w0_ref, b0_ref, s1_ref,
                    wc1_ref, bc1_ref, wc2_ref, bc2_ref, wh_ref, bh_ref,
                    out_ref, g_scr):
    # lane index -> (row, col) of the 16x16 image (p = row*16 + col); computed once.
    lane = jax.lax.broadcasted_iota(jnp.int32, (1, P), 1)
    col_i = lane & (IMG_SZ - 1)
    row_i = lane >> 4
    col_f = col_i.astype(jnp.float32)
    row_f = row_i.astype(jnp.float32)
    sub_iota = jax.lax.broadcasted_iota(jnp.int32, (IMG_SZ, P), 0)   # (16, 256)

    # precompute the 9 per-tap border masks (zero padding + row-wrap kill) once.
    valid_masks = []
    for ky in range(3):
        dy = ky - 1
        for kx in range(3):
            dx = kx - 1
            valid_masks.append((col_i + dx >= 0) & (col_i + dx < IMG_SZ) &
                               (row_i + dy >= 0) & (row_i + dy < IMG_SZ))

    for b in range(z_ref.shape[0]):
        # --- ConvBlockFirstDec: dense nz -> (2*ngf, 4, 4) (+bias, LeakyReLU); the 2x
        #     nearest upsample opening pyramid-0 is folded into w0/b0 host-side, so this
        #     directly yields the (16, 64) 8x8 map.  32 scalar-broadcast VPU MACs,
        #     4 independent accumulators to break the dependence chain.
        accs = [b0_ref[...],
                jnp.zeros((C0, P8), jnp.float32),
                jnp.zeros((C0, P8), jnp.float32),
                jnp.zeros((C0, P8), jnp.float32)]
        for k in range(NZ_ENC):
            accs[k & 3] = accs[k & 3] + z_ref[b, k] * w0_ref[k]
        h8 = _leaky((accs[0] + accs[1]) + (accs[2] + accs[3]))          # (16, 64)

        # --- pyramid-0: 3x3 conv 16->8 at 8x8 + LeakyReLU.  The next block's 2x
        #     upsample is folded into s1 (commutes with the pointwise LeakyReLU), so
        #     the 9 gathered taps land directly at 16x16; the channel mix is ONE matmul.
        for t in range(9):
            g_scr[t * C0:(t + 1) * C0, :] = jnp.dot(
                h8, s1_ref[t].astype(jnp.float32),
                preferred_element_type=jnp.float32)                    # (16, 256)
        h16 = _leaky(jnp.dot(wc1_ref[...], g_scr[...],
                             preferred_element_type=jnp.float32)
                     + bc1_ref[...])                                    # (8, 256)

        # --- additional_conv_layer: 3x3 conv 8->8 at 16x16 + tanh -> feat.
        #     Taps = pltpu.roll lane shifts (XLU) + masks; mix = one (8,72)x(72,256) matmul.
        _fill_shift_taps(h16, valid_masks, g_scr)
        feat = jnp.tanh(jnp.dot(wc2_ref[...], g_scr[0:9 * NGF, :],
                                preferred_element_type=jnp.float32)
                        + bc2_ref[...])                                 # (8, 256)
        out_ref[b, FEAT_OFF:FEAT_OFF + NGF, :] = feat

        # --- gen / mask / flow0 / flow1 heads merged into ONE 3x3 conv (Cout = 12).
        _fill_shift_taps(feat, valid_masks, g_scr)
        heads = (jnp.dot(wh_ref[...], g_scr[0:9 * NGF, :],
                         preferred_element_type=jnp.float32)
                 + bh_ref[...])                                         # (12, 256)

        gen = jnp.tanh(heads[0:INPUT_NC, :])                            # (3, 256)
        mlog = heads[INPUT_NC:INPUT_NC + N_MASKS, :]                    # (5, 256)
        mexp = jnp.exp(mlog - jnp.max(mlog, axis=0, keepdims=True))
        mask = mexp / jnp.sum(mexp, axis=0, keepdims=True)              # exact softmax

        # candidate order (torch): [src0, src1, warped0, warped1, gen_images]
        merged = [mask[N_MASKS - 1:N_MASKS, :] * gen[c:c + 1, :]
                  for c in range(INPUT_NC)]

        fo = INPUT_NC + N_MASKS                                         # 8
        for s in range(N_PIXEL_SOURCES):
            fl = heads[fo + 2 * s: fo + 2 * s + 2, :]                   # (2, 256)
            out_ref[b, FLOW_OFF + 2 * s:FLOW_OFF + 2 * s + 2, :] = fl

            # grid_sample(align_corners=False, padding_mode='zeros') with the identity
            # affine grid: sample pixel = (col, row) + flow * (W/2, H/2); separable
            # bilinear gather (two (16,256) weight maps, no 256x256 one-hot).
            xp = col_f + fl[0:1, :] * (IMG_SZ * 0.5)                    # flow ch0 = x
            yp = row_f + fl[1:2, :] * (IMG_SZ * 0.5)                    # flow ch1 = y
            x0 = jnp.floor(xp)
            y0 = jnp.floor(yp)
            wx1 = xp - x0
            wy1 = yp - y0
            x0i = x0.astype(jnp.int32)
            y0i = y0.astype(jnp.int32)
            wxt = (jnp.where(sub_iota == x0i, 1.0 - wx1, 0.0)
                   + jnp.where(sub_iota == x0i + 1, wx1, 0.0))          # (16, 256)
            wyt = (jnp.where(sub_iota == y0i, 1.0 - wy1, 0.0)
                   + jnp.where(sub_iota == y0i + 1, wy1, 0.0))          # (16, 256)

            src_cm = srccm_ref[b, s]                                    # (3, 256)
            for c in range(INPUT_NC):
                # stage 1: gather along x (rows of channel c); stage 2: weighted y-sum.
                t1 = jnp.dot(src48_ref[b, s, c * IMG_SZ:(c + 1) * IMG_SZ, :], wxt,
                             preferred_element_type=jnp.float32)        # (16, 256)
                wr = jnp.sum(wyt * t1, axis=0, keepdims=True)           # (1, 256)
                out_ref[b, WARP_OFF + INPUT_NC * s + c, :] = wr[0]
                merged[c] = (merged[c]
                             + mask[s:s + 1, :] * src_cm[c:c + 1, :]
                             + mask[N_PIXEL_SOURCES + s:N_PIXEL_SOURCES + s + 1, :] * wr)

        for c in range(INPUT_NC):
            out_ref[b, IMG_OFF + c, :] = merged[c][0]


# --------------------------------- parameters --------------------------------- #

def init_params(key):
    ks = jax.random.split(key, 8)

    def xavier(k, shape, fan_in, fan_out):
        lim = float(np.sqrt(6.0 / (fan_in + fan_out)))
        return jax.random.uniform(k, shape, jnp.float32, -lim, lim)

    def xavier_conv(k, cout, cin):
        lim = float(np.sqrt(6.0 / (9 * cin + 9 * cout)))
        return jax.random.uniform(k, (9, cout, cin), jnp.float32, -lim, lim)

    m1 = jnp.asarray(_upsample_mat(4, 8))                      # (16, 64)   4x4 -> 8x8
    m2 = _upsample_mat(8, 16)                                  # (64, 256)  8x8 -> 16x16

    # dense weight per output channel: (2*ngf, nz, 4*4); fold the 2x upsample that opens
    # pyramid-0 (LeakyReLU is pointwise, nearest upsample is duplication -> they commute).
    # Layout (nz, 2*ngf, 64) so the kernel accumulates sum_k z[k] * W0[k] on the VPU.
    w0 = xavier(ks[0], (C0, NZ_ENC, 16), NZ_ENC, C0 * 16)
    w0up = jnp.einsum("ckp,pq->kcq", w0, m1)                   # (32, 16, 64)
    b0up = jnp.zeros((C0, P8), jnp.float32)                    # dense bias, upsampled

    # pyramid-0 3x3 tap gathers at 8x8 with the next 2x upsample folded in; entries are
    # exactly 0/1 -> stored bf16 to halve the constant DMA, converted to f32 in vregs.
    s8 = _tap_mats(8)                                          # (9, 64, 64)
    s1 = jnp.asarray(np.einsum("tsq,qr->tsr", s8, m2)).astype(jnp.bfloat16)   # (9, 64, 256)

    def flat(w):  # (9, cout, cin) -> (cout, 9*cin), matching the g_scr row order
        return jnp.transpose(w, (1, 0, 2)).reshape(w.shape[1], 9 * w.shape[2])

    wc1 = xavier_conv(ks[1], NGF, C0)                          # pyramid-0
    wc2 = xavier_conv(ks[2], NGF, NGF)                         # additional_conv_layer
    wg = xavier_conv(ks[3], INPUT_NC, NGF)                     # gen_head
    wm = xavier_conv(ks[4], N_MASKS, NGF)                      # mask_head
    wf0 = xavier_conv(ks[5], 2, NGF)                           # flow head 0
    wf1 = xavier_conv(ks[6], 2, NGF)                           # flow head 1
    wh = jnp.concatenate([wg, wm, wf0, wf1], axis=1)           # (9, 12, 8)

    return {
        "w0": w0up, "b0": b0up, "s1": s1,
        "wc1": flat(wc1), "bc1": jnp.zeros((NGF, 1), jnp.float32),
        "wc2": flat(wc2), "bc2": jnp.zeros((NGF, 1), jnp.float32),
        "wh": flat(wh), "bh": jnp.zeros((HEAD_COUT, 1), jnp.float32),
    }


# ---------------------------------- forward ----------------------------------- #

def pixel_shift_decoder_forward(params, z, pixel_source):
    """z: [B, nz_enc]; pixel_source: list of N_PIXEL_SOURCES NCHW images."""
    Bn = z.shape[0]
    src = jnp.stack(pixel_source, axis=1)                      # (B, S, C, H, W)
    src_cm = src.reshape(Bn, N_PIXEL_SOURCES, INPUT_NC, P)     # channel-major, lane-dense
    src48 = src.reshape(Bn, N_PIXEL_SOURCES, INPUT_NC * IMG_SZ, IMG_SZ)  # rows-in-sublanes
    # (src48 duplicates src_cm's data in a rows-in-sublanes layout for the separable
    #  x-gather; ~12 KiB of redundant input DMA, kept for layout simplicity.)

    weights = (params["w0"], params["b0"], params["s1"],
               params["wc1"], params["bc1"], params["wc2"], params["bc2"],
               params["wh"], params["bh"])

    vmem = pl.BlockSpec(memory_space=pltpu.MemorySpace.VMEM)
    smem = pl.BlockSpec(memory_space=pltpu.MemorySpace.SMEM)
    in_specs = [smem] + [vmem] * (2 + len(weights))

    slab = pl.pallas_call(
        _decoder_kernel,
        out_shape=jax.ShapeDtypeStruct((Bn, OUT_ROWS, P), jnp.float32),
        in_specs=in_specs,
        out_specs=vmem,
        scratch_shapes=[pltpu.VMEM((9 * C0, P), jnp.float32)],
    )(z, src_cm, src48, *weights)

    # lane-dense channel-major slab reshapes straight to NCHW (no transposes)
    return {
        "feat": slab[:, FEAT_OFF:FEAT_OFF + NGF].reshape(Bn, NGF, IMG_SZ, IMG_SZ),
        "images": slab[:, IMG_OFF:IMG_OFF + INPUT_NC].reshape(Bn, INPUT_NC, IMG_SZ, IMG_SZ),
        "flow_fields": [
            slab[:, FLOW_OFF + 2 * i:FLOW_OFF + 2 * i + 2].reshape(Bn, 2, IMG_SZ, IMG_SZ)
            for i in range(N_PIXEL_SOURCES)],
        "warped_sources": [
            slab[:, WARP_OFF + INPUT_NC * i:WARP_OFF + INPUT_NC * (i + 1)]
            .reshape(Bn, INPUT_NC, IMG_SZ, IMG_SZ)
            for i in range(N_PIXEL_SOURCES)],
    }


if __name__ == "__main__":
    key = jax.random.PRNGKey(0)
    kp, kz, ks0, ks1 = jax.random.split(key, 4)
    params = init_params(kp)
    z = jax.random.normal(kz, (B, NZ_ENC), jnp.float32)
    pixel_source = [
        jnp.tanh(jax.random.normal(ks0, (B, INPUT_NC, IMG_SZ, IMG_SZ), jnp.float32)),
        jnp.tanh(jax.random.normal(ks1, (B, INPUT_NC, IMG_SZ, IMG_SZ), jnp.float32)),
    ]
    fwd = jax.jit(pixel_shift_decoder_forward)
    out = fwd(params, z, pixel_source)
    jax.block_until_ready(out)
    assert out["images"].shape == (B, INPUT_NC, IMG_SZ, IMG_SZ)
    assert out["feat"].shape == (B, NGF, IMG_SZ, IMG_SZ)
    assert all(f.shape == (B, 2, IMG_SZ, IMG_SZ) for f in out["flow_fields"])
    assert all(w.shape == (B, INPUT_NC, IMG_SZ, IMG_SZ) for w in out["warped_sources"])
    assert bool(jnp.all(jnp.isfinite(out["images"])))
    assert bool(jnp.all(jnp.isfinite(out["feat"])))
    print("KERNEL_OK")
</pallas_src>

<mosaic_0001>
module attributes {stable_mosaic.version = 11 : i64} {
  func.func @_decoder_kernel(%arg0: memref<2x32xf32, #tpu.memory_space<smem>>, %arg1: memref<2x2x3x256xf32, #tpu.memory_space<vmem>>, %arg2: memref<2x2x48x16xf32, #tpu.memory_space<vmem>>, %arg3: memref<32x16x64xf32, #tpu.memory_space<vmem>>, %arg4: memref<16x64xf32, #tpu.memory_space<vmem>>, %arg5: memref<9x64x256xbf16, #tpu.memory_space<vmem>>, %arg6: memref<8x144xf32, #tpu.memory_space<vmem>>, %arg7: memref<8x1xf32, #tpu.memory_space<vmem>>, %arg8: memref<8x72xf32, #tpu.memory_space<vmem>>, %arg9: memref<8x1xf32, #tpu.memory_space<vmem>>, %arg10: memref<12x72xf32, #tpu.memory_space<vmem>>, %arg11: memref<12x1xf32, #tpu.memory_space<vmem>>, %arg12: memref<2x24x256xf32, #tpu.memory_space<vmem>>, %arg13: memref<144x256xf32, #tpu.memory_space<vmem>>) attributes {dimension_semantics = [], scalar_prefetch = 0 : i64, scratch_operands = 1 : i64, tpu.core_type = #tpu.core_type<tc>} {
    %0 = tpu.iota {dimensions = array<i32: 1>} : vector<1x256xi32>
    %c15_i32 = arith.constant 15 : i32
    %1 = vector.broadcast %c15_i32 : i32 to vector<1x256xi32>
    %2 = arith.andi %0, %1 : vector<1x256xi32>
    %c4_i32 = arith.constant 4 : i32
    %3 = vector.broadcast %c4_i32 : i32 to vector<1x256xi32>
    %4 = arith.shrsi %0, %3 : vector<1x256xi32>
    %5 = arith.sitofp %2 : vector<1x256xi32> to vector<1x256xf32>
    %6 = arith.sitofp %4 : vector<1x256xi32> to vector<1x256xf32>
    %7 = tpu.iota {dimensions = array<i32: 0>} : vector<16x256xi32>
    %c-1_i32 = arith.constant -1 : i32
    %8 = vector.broadcast %c-1_i32 : i32 to vector<1x256xi32>
    %9 = arith.addi %2, %8 : vector<1x256xi32>
    %c0_i32 = arith.constant 0 : i32
    %10 = vector.broadcast %c0_i32 : i32 to vector<1x256xi32>
    %11 = arith.cmpi sge, %9, %10 : vector<1x256xi32>
    %c-1_i32_0 = arith.constant -1 : i32
    %12 = vector.broadcast %c-1_i32_0 : i32 to vector<1x256xi32>
    %13 = arith.addi %2, %12 : vector<1x256xi32>
    %c16_i32 = arith.constant 16 : i32
    %14 = vector.broadcast %c16_i32 : i32 to vector<1x256xi32>
    %15 = arith.cmpi slt, %13, %14 : vector<1x256xi32>
    %16 = arith.andi %11, %15 : vector<1x256xi1>
    %c-1_i32_1 = arith.constant -1 : i32
    %17 = vector.broadcast %c-1_i32_1 : i32 to vector<1x256xi32>
    %18 = arith.addi %4, %17 : vector<1x256xi32>
    %c0_i32_2 = arith.constant 0 : i32
    %19 = vector.broadcast %c0_i32_2 : i32 to vector<1x256xi32>
    %20 = arith.cmpi sge, %18, %19 : vector<1x256xi32>
    %21 = arith.andi %16, %20 : vector<1x256xi1>
    %c-1_i32_3 = arith.constant -1 : i32
    %22 = vector.broadcast %c-1_i32_3 : i32 to vector<1x256xi32>
    %23 = arith.addi %4, %22 : vector<1x256xi32>
    %c16_i32_4 = arith.constant 16 : i32
    %24 = vector.broadcast %c16_i32_4 : i32 to vector<1x256xi32>
    %25 = arith.cmpi slt, %23, %24 : vector<1x256xi32>
    %26 = arith.andi %21, %25 : vector<1x256xi1>
    %c0_i32_5 = arith.constant 0 : i32
    %27 = vector.broadcast %c0_i32_5 : i32 to vector<1x256xi32>
    %28 = arith.addi %2, %27 : vector<1x256xi32>
    %c0_i32_6 = arith.constant 0 : i32
    %29 = vector.broadcast %c0_i32_6 : i32 to vector<1x256xi32>
    %30 = arith.cmpi sge, %28, %29 : vector<1x256xi32>
    %c0_i32_7 = arith.constant 0 : i32
    %31 = vector.broadcast %c0_i32_7 : i32 to vector<1x256xi32>
    %32 = arith.addi %2, %31 : vector<1x256xi32>
    %c16_i32_8 = arith.constant 16 : i32
    %33 = vector.broadcast %c16_i32_8 : i32 to vector<1x256xi32>
    %34 = arith.cmpi slt, %32, %33 : vector<1x256xi32>
    %35 = arith.andi %30, %34 : vector<1x256xi1>
    %c-1_i32_9 = arith.constant -1 : i32
    %36 = vector.broadcast %c-1_i32_9 : i32 to vector<1x256xi32>
    %37 = arith.addi %4, %36 : vector<1x256xi32>
    %c0_i32_10 = arith.constant 0 : i32
    %38 = vector.broadcast %c0_i32_10 : i32 to vector<1x256xi32>
    %39 = arith.cmpi sge, %37, %38 : vector<1x256xi32>
    %40 = arith.andi %35, %39 : vector<1x256xi1>
    %c-1_i32_11 = arith.constant -1 : i32
    %41 = vector.broadcast %c-1_i32_11 : i32 to vector<1x256xi32>
    %42 = arith.addi %4, %41 : vector<1x256xi32>
    %c16_i32_12 = arith.constant 16 : i32
    %43 = vector.broadcast %c16_i32_12 : i32 to vector<1x256xi32>
    %44 = arith.cmpi slt, %42, %43 : vector<1x256xi32>
    %45 = arith.andi %40, %44 : vector<1x256xi1>
    %c1_i32 = arith.constant 1 : i32
    %46 = vector.broadcast %c1_i32 : i32 to vector<1x256xi32>
    %47 = arith.addi %2, %46 : vector<1x256xi32>
    %c0_i32_13 = arith.constant 0 : i32
    %48 = vector.broadcast %c0_i32_13 : i32 to vector<1x256xi32>
    %49 = arith.cmpi sge, %47, %48 : vector<1x256xi32>
    %c1_i32_14 = arith.constant 1 : i32
    %50 = vector.broadcast %c1_i32_14 : i32 to vector<1x256xi32>
    %51 = arith.addi %2, %50 : vector<1x256xi32>
    %c16_i32_15 = arith.constant 16 : i32
    %52 = vector.broadcast %c16_i32_15 : i32 to vector<1x256xi32>
    %53 = arith.cmpi slt, %51, %52 : vector<1x256xi32>
    %54 = arith.andi %49, %53 : vector<1x256xi1>
    %c-1_i32_16 = arith.constant -1 : i32
    %55 = vector.broadcast %c-1_i32_16 : i32 to vector<1x256xi32>
    %56 = arith.addi %4, %55 : vector<1x256xi32>
    %c0_i32_17 = arith.constant 0 : i32
    %57 = vector.broadcast %c0_i32_17 : i32 to vector<1x256xi32>
    %58 = arith.cmpi sge, %56, %57 : vector<1x256xi32>
    %59 = arith.andi %54, %58 : vector<1x256xi1>
    %c-1_i32_18 = arith.constant -1 : i32
    %60 = vector.broadcast %c-1_i32_18 : i32 to vector<1x256xi32>
    %61 = arith.addi %4, %60 : vector<1x256xi32>
    %c16_i32_19 = arith.constant 16 : i32
    %62 = vector.broadcast %c16_i32_19 : i32 to vector<1x256xi32>
    %63 = arith.cmpi slt, %61, %62 : vector<1x256xi32>
    %64 = arith.andi %59, %63 : vector<1x256xi1>
    %c-1_i32_20 = arith.constant -1 : i32
    %65 = vector.broadcast %c-1_i32_20 : i32 to vector<1x256xi32>
    %66 = arith.addi %2, %65 : vector<1x256xi32>
    %c0_i32_21 = arith.constant 0 : i32
    %67 = vector.broadcast %c0_i32_21 : i32 to vector<1x256xi32>
    %68 = arith.cmpi sge, %66, %67 : vector<1x256xi32>
    %c-1_i32_22 = arith.constant -1 : i32
    %69 = vector.broadcast %c-1_i32_22 : i32 to vector<1x256xi32>
    %70 = arith.addi %2, %69 : vector<1x256xi32>
    %c16_i32_23 = arith.constant 16 : i32
    %71 = vector.broadcast %c16_i32_23 : i32 to vector<1x256xi32>
    %72 = arith.cmpi slt, %70, %71 : vector<1x256xi32>
    %73 = arith.andi %68, %72 : vector<1x256xi1>
    %c0_i32_24 = arith.constant 0 : i32
    %74 = vector.broadcast %c0_i32_24 : i32 to vector<1x256xi32>
    %75 = arith.addi %4, %74 : vector<1x256xi32>
    %c0_i32_25 = arith.constant 0 : i32
    %76 = vector.broadcast %c0_i32_25 : i32 to vector<1x256xi32>
    %77 = arith.cmpi sge, %75, %76 : vector<1x256xi32>
    %78 = arith.andi %73, %77 : vector<1x256xi1>
    %c0_i32_26 = arith.constant 0 : i32
    %79 = vector.broadcast %c0_i32_26 : i32 to vector<1x256xi32>
    %80 = arith.addi %4, %79 : vector<1x256xi32>
    %c16_i32_27 = arith.constant 16 : i32
    %81 = vector.broadcast %c16_i32_27 : i32 to vector<1x256xi32>
    %82 = arith.cmpi slt, %80, %81 : vector<1x256xi32>
    %83 = arith.andi %78, %82 : vector<1x256xi1>
    %c0_i32_28 = arith.constant 0 : i32
    %84 = vector.broadcast %c0_i32_28 : i32 to vector<1x256xi32>
    %85 = arith.addi %2, %84 : vector<1x256xi32>
    %c0_i32_29 = arith.constant 0 : i32
    %86 = vector.broadcast %c0_i32_29 : i32 to vector<1x256xi32>
    %87 = arith.cmpi sge, %85, %86 : vector<1x256xi32>
    %c0_i32_30 = arith.constant 0 : i32
    %88 = vector.broadcast %c0_i32_30 : i32 to vector<1x256xi32>
    %89 = arith.addi %2, %88 : vector<1x256xi32>
    %c16_i32_31 = arith.constant 16 : i32
    %90 = vector.broadcast %c16_i32_31 : i32 to vector<1x256xi32>
    %91 = arith.cmpi slt, %89, %90 : vector<1x256xi32>
    %92 = arith.andi %87, %91 : vector<1x256xi1>
    %c0_i32_32 = arith.constant 0 : i32
    %93 = vector.broadcast %c0_i32_32 : i32 to vector<1x256xi32>
    %94 = arith.addi %4, %93 : vector<1x256xi32>
    %c0_i32_33 = arith.constant 0 : i32
    %95 = vector.broadcast %c0_i32_33 : i32 to vector<1x256xi32>
    %96 = arith.cmpi sge, %94, %95 : vector<1x256xi32>
    %97 = arith.andi %92, %96 : vector<1x256xi1>
    %c0_i32_34 = arith.constant 0 : i32
    %98 = vector.broadcast %c0_i32_34 : i32 to vector<1x256xi32>
    %99 = arith.addi %4, %98 : vector<1x256xi32>
    %c16_i32_35 = arith.constant 16 : i32
    %100 = vector.broadcast %c16_i32_35 : i32 to vector<1x256xi32>
    %101 = arith.cmpi slt, %99, %100 : vector<1x256xi32>
    %102 = arith.andi %97, %101 : vector<1x256xi1>
    %c1_i32_36 = arith.constant 1 : i32
    %103 = vector.broadcast %c1_i32_36 : i32 to vector<1x256xi32>
    %104 = arith.addi %2, %103 : vector<1x256xi32>
    %c0_i32_37 = arith.constant 0 : i32
    %105 = vector.broadcast %c0_i32_37 : i32 to vector<1x256xi32>
    %106 = arith.cmpi sge, %104, %105 : vector<1x256xi32>
    %c1_i32_38 = arith.constant 1 : i32
    %107 = vector.broadcast %c1_i32_38 : i32 to vector<1x256xi32>
    %108 = arith.addi %2, %107 : vector<1x256xi32>
    %c16_i32_39 = arith.constant 16 : i32
    %109 = vector.broadcast %c16_i32_39 : i32 to vector<1x256xi32>
    %110 = arith.cmpi slt, %108, %109 : vector<1x256xi32>
    %111 = arith.andi %106, %110 : vector<1x256xi1>
    %c0_i32_40 = arith.constant 0 : i32
    %112 = vector.broadcast %c0_i32_40 : i32 to vector<1x256xi32>
    %113 = arith.addi %4, %112 : vector<1x256xi32>
    %c0_i32_41 = arith.constant 0 : i32
    %114 = vector.broadcast %c0_i32_41 : i32 to vector<1x256xi32>
    %115 = arith.cmpi sge, %113, %114 : vector<1x256xi32>
    %116 = arith.andi %111, %115 : vector<1x256xi1>
    %c0_i32_42 = arith.constant 0 : i32
    %117 = vector.broadcast %c0_i32_42 : i32 to vector<1x256xi32>
    %118 = arith.addi %4, %117 : vector<1x256xi32>
    %c16_i32_43 = arith.constant 16 : i32
    %119 = vector.broadcast %c16_i32_43 : i32 to vector<1x256xi32>
    %120 = arith.cmpi slt, %118, %119 : vector<1x256xi32>
    %121 = arith.andi %116, %120 : vector<1x256xi1>
    %c-1_i32_44 = arith.constant -1 : i32
    %122 = vector.broadcast %c-1_i32_44 : i32 to vector<1x256xi32>
    %123 = arith.addi %2, %122 : vector<1x256xi32>
    %c0_i32_45 = arith.constant 0 : i32
    %124 = vector.broadcast %c0_i32_45 : i32 to vector<1x256xi32>
    %125 = arith.cmpi sge, %123, %124 : vector<1x256xi32>
    %c-1_i32_46 = arith.constant -1 : i32
    %126 = vector.broadcast %c-1_i32_46 : i32 to vector<1x256xi32>
    %127 = arith.addi %2, %126 : vector<1x256xi32>
    %c16_i32_47 = arith.constant 16 : i32
    %128 = vector.broadcast %c16_i32_47 : i32 to vector<1x256xi32>
    %129 = arith.cmpi slt, %127, %128 : vector<1x256xi32>
    %130 = arith.andi %125, %129 : vector<1x256xi1>
    %c1_i32_48 = arith.constant 1 : i32
    %131 = vector.broadcast %c1_i32_48 : i32 to vector<1x256xi32>
    %132 = arith.addi %4, %131 : vector<1x256xi32>
    %c0_i32_49 = arith.constant 0 : i32
    %133 = vector.broadcast %c0_i32_49 : i32 to vector<1x256xi32>
    %134 = arith.cmpi sge, %132, %133 : vector<1x256xi32>
    %135 = arith.andi %130, %134 : vector<1x256xi1>
    %c1_i32_50 = arith.constant 1 : i32
    %136 = vector.broadcast %c1_i32_50 : i32 to vector<1x256xi32>
    %137 = arith.addi %4, %136 : vector<1x256xi32>
    %c16_i32_51 = arith.constant 16 : i32
    %138 = vector.broadcast %c16_i32_51 : i32 to vector<1x256xi32>
    %139 = arith.cmpi slt, %137, %138 : vector<1x256xi32>
    %140 = arith.andi %135, %139 : vector<1x256xi1>
    %c0_i32_52 = arith.constant 0 : i32
    %141 = vector.broadcast %c0_i32_52 : i32 to vector<1x256xi32>
    %142 = arith.addi %2, %141 : vector<1x256xi32>
    %c0_i32_53 = arith.constant 0 : i32
    %143 = vector.broadcast %c0_i32_53 : i32 to vector<1x256xi32>
    %144 = arith.cmpi sge, %142, %143 : vector<1x256xi32>
    %c0_i32_54 = arith.constant 0 : i32
    %145 = vector.broadcast %c0_i32_54 : i32 to vector<1x256xi32>
    %146 = arith.addi %2, %145 : vector<1x256xi32>
    %c16_i32_55 = arith.constant 16 : i32
    %147 = vector.broadcast %c16_i32_55 : i32 to vector<1x256xi32>
    %148 = arith.cmpi slt, %146, %147 : vector<1x256xi32>
    %149 = arith.andi %144, %148 : vector<1x256xi1>
    %c1_i32_56 = arith.constant 1 : i32
    %150 = vector.broadcast %c1_i32_56 : i32 to vector<1x256xi32>
    %151 = arith.addi %4, %150 : vector<1x256xi32>
    %c0_i32_57 = arith.constant 0 : i32
    %152 = vector.broadcast %c0_i32_57 : i32 to vector<1x256xi32>
    %153 = arith.cmpi sge, %151, %152 : vector<1x256xi32>
    %154 = arith.andi %149, %153 : vector<1x256xi1>
    %c1_i32_58 = arith.constant 1 : i32
    %155 = vector.broadcast %c1_i32_58 : i32 to vector<1x256xi32>
    %156 = arith.addi %4, %155 : vector<1x256xi32>
    %c16_i32_59 = arith.constant 16 : i32
    %157 = vector.broadcast %c16_i32_59 : i32 to vector<1x256xi32>
    %158 = arith.cmpi slt, %156, %157 : vector<1x256xi32>
    %159 = arith.andi %154, %158 : vector<1x256xi1>
    %c1_i32_60 = arith.constant 1 : i32
    %160 = vector.broadcast %c1_i32_60 : i32 to vector<1x256xi32>
    %161 = arith.addi %2, %160 : vector<1x256xi32>
    %c0_i32_61 = arith.constant 0 : i32
    %162 = vector.broadcast %c0_i32_61 : i32 to vector<1x256xi32>
    %163 = arith.cmpi sge, %161, %162 : vector<1x256xi32>
    %c1_i32_62 = arith.constant 1 : i32
    %164 = vector.broadcast %c1_i32_62 : i32 to vector<1x256xi32>
    %165 = arith.addi %2, %164 : vector<1x256xi32>
    %c16_i32_63 = arith.constant 16 : i32
    %166 = vector.broadcast %c16_i32_63 : i32 to vector<1x256xi32>
    %167 = arith.cmpi slt, %165, %166 : vector<1x256xi32>
    %168 = arith.andi %163, %167 : vector<1x256xi1>
    %c1_i32_64 = arith.constant 1 : i32
    %169 = vector.broadcast %c1_i32_64 : i32 to vector<1x256xi32>
    %170 = arith.addi %4, %169 : vector<1x256xi32>
    %c0_i32_65 = arith.constant 0 : i32
    %171 = vector.broadcast %c0_i32_65 : i32 to vector<1x256xi32>
    %172 = arith.cmpi sge, %170, %171 : vector<1x256xi32>
    %173 = arith.andi %168, %172 : vector<1x256xi1>
    %c1_i32_66 = arith.constant 1 : i32
    %174 = vector.broadcast %c1_i32_66 : i32 to vector<1x256xi32>
    %175 = arith.addi %4, %174 : vector<1x256xi32>
    %c16_i32_67 = arith.constant 16 : i32
    %176 = vector.broadcast %c16_i32_67 : i32 to vector<1x256xi32>
    %177 = arith.cmpi slt, %175, %176 : vector<1x256xi32>
    %178 = arith.andi %173, %177 : vector<1x256xi1>
    %c0 = arith.constant 0 : index
    %c0_68 = arith.constant 0 : index
    %179 = vector.load %arg4[%c0, %c0_68] : memref<16x64xf32, #tpu.memory_space<vmem>>, vector<16x64xf32>
    %cst = arith.constant 0.000000e+00 : f32
    %180 = vector.broadcast %cst : f32 to vector<16x64xf32>
    %cst_69 = arith.constant 0.000000e+00 : f32
    %181 = vector.broadcast %cst_69 : f32 to vector<16x64xf32>
    %cst_70 = arith.constant 0.000000e+00 : f32
    %182 = vector.broadcast %cst_70 : f32 to vector<16x64xf32>
    %c0_71 = arith.constant 0 : index
    %c0_72 = arith.constant 0 : index
    %183 = memref.load %arg0[%c0_71, %c0_72] : memref<2x32xf32, #tpu.memory_space<smem>>
    %c0_73 = arith.constant 0 : index
    %c0_74 = arith.constant 0 : index
    %c0_75 = arith.constant 0 : index
    %184 = vector.load %arg3[%c0_73, %c0_74, %c0_75] : memref<32x16x64xf32, #tpu.memory_space<vmem>>, vector<1x16x64xf32>
    %185 = vector.shape_cast %184 : vector<1x16x64xf32> to vector<16x64xf32>
    %186 = vector.broadcast %183 : f32 to vector<16x64xf32>
    %187 = arith.mulf %186, %185 : vector<16x64xf32>
    %188 = arith.addf %179, %187 : vector<16x64xf32>
    %c0_76 = arith.constant 0 : index
    %c1 = arith.constant 1 : index
    %189 = memref.load %arg0[%c0_76, %c1] : memref<2x32xf32, #tpu.memory_space<smem>>
    %c1_77 = arith.constant 1 : index
    %c0_78 = arith.constant 0 : index
    %c0_79 = arith.constant 0 : index
    %190 = vector.load %arg3[%c1_77, %c0_78, %c0_79] : memref<32x16x64xf32, #tpu.memory_space<vmem>>, vector<1x16x64xf32>
    %191 = vector.shape_cast %190 : vector<1x16x64xf32> to vector<16x64xf32>
    %192 = vector.broadcast %189 : f32 to vector<16x64xf32>
    %193 = arith.mulf %192, %191 : vector<16x64xf32>
    %194 = arith.addf %180, %193 : vector<16x64xf32>
    %c0_80 = arith.constant 0 : index
    %c2 = arith.constant 2 : index
    %195 = memref.load %arg0[%c0_80, %c2] : memref<2x32xf32, #tpu.memory_space<smem>>
    %c2_81 = arith.constant 2 : index
    %c0_82 = arith.constant 0 : index
    %c0_83 = arith.constant 0 : index
    %196 = vector.load %arg3[%c2_81, %c0_82, %c0_83] : memref<32x16x64xf32, #tpu.memory_space<vmem>>, vector<1x16x64xf32>
    %197 = vector.shape_cast %196 : vector<1x16x64xf32> to vector<16x64xf32>
    %198 = vector.broadcast %195 : f32 to vector<16x64xf32>
    %199 = arith.mulf %198, %197 : vector<16x64xf32>
    %200 = arith.addf %181, %199 : vector<16x64xf32>
    %c0_84 = arith.constant 0 : index
    %c3 = arith.constant 3 : index
    %201 = memref.load %arg0[%c0_84, %c3] : memref<2x32xf32, #tpu.memory_space<smem>>
    %c3_85 = arith.constant 3 : index
    %c0_86 = arith.constant 0 : index
    %c0_87 = arith.constant 0 : index
    %202 = vector.load %arg3[%c3_85, %c0_86, %c0_87] : memref<32x16x64xf32, #tpu.memory_space<vmem>>, vector<1x16x64xf32>
    %203 = vector.shape_cast %202 : vector<1x16x64xf32> to vector<16x64xf32>
    %204 = vector.broadcast %201 : f32 to vector<16x64xf32>
    %205 = arith.mulf %204, %203 : vector<16x64xf32>
    %206 = arith.addf %182, %205 : vector<16x64xf32>
    %c0_88 = arith.constant 0 : index
    %c4 = arith.constant 4 : index
    %207 = memref.load %arg0[%c0_88, %c4] : memref<2x32xf32, #tpu.memory_space<smem>>
    %c4_89 = arith.constant 4 : index
    %c0_90 = arith.constant 0 : index
    %c0_91 = arith.constant 0 : index
    %208 = vector.load %arg3[%c4_89, %c0_90, %c0_91] : memref<32x16x64xf32, #tpu.memory_space<vmem>>, vector<1x16x64xf32>
    %209 = vector.shape_cast %208 : vector<1x16x64xf32> to vector<16x64xf32>
    %210 = vector.broadcast %207 : f32 to vector<16x64xf32>
    %211 = arith.mulf %210, %209 : vector<16x64xf32>
    %212 = arith.addf %188, %211 : vector<16x64xf32>
    %c0_92 = arith.constant 0 : index
    %c5 = arith.constant 5 : index
    %213 = memref.load %arg0[%c0_92, %c5] : memref<2x32xf32, #tpu.memory_space<smem>>
    %c5_93 = arith.constant 5 : index
    %c0_94 = arith.constant 0 : index
    %c0_95 = arith.constant 0 : index
    %214 = vector.load %arg3[%c5_93, %c0_94, %c0_95] : memref<32x16x64xf32, #tpu.memory_space<vmem>>, vector<1x16x64xf32>
    %215 = vector.shape_cast %214 : vector<1x16x64xf32> to vector<16x64xf32>
    %216 = vector.broadcast %213 : f32 to vector<16x64xf32>
    %217 = arith.mulf %216, %215 : vector<16x64xf32>
    %218 = arith.addf %194, %217 : vector<16x64xf32>
    %c0_96 = arith.constant 0 : index
    %c6 = arith.constant 6 : index
    %219 = memref.load %arg0[%c0_96, %c6] : memref<2x32xf32, #tpu.memory_space<smem>>
    %c6_97 = arith.constant 6 : index
    %c0_98 = arith.constant 0 : index
    %c0_99 = arith.constant 0 : index
    %220 = vector.load %arg3[%c6_97, %c0_98, %c0_99] : memref<32x16x64xf32, #tpu.memory_space<vmem>>, vector<1x16x64xf32>
    %221 = vector.shape_cast %220 : vector<1x16x64xf32> to vector<16x64xf32>
    %222 = vector.broadcast %219 : f32 to vector<16x64xf32>
    %223 = arith.mulf %222, %221 : vector<16x64xf32>
    %224 = arith.addf %200, %223 : vector<16x64xf32>
    %c0_100 = arith.constant 0 : index
    %c7 = arith.constant 7 : index
    %225 = memref.load %arg0[%c0_100, %c7] : memref<2x32xf32, #tpu.memory_space<smem>>
    %c7_101 = arith.constant 7 : index
    %c0_102 = arith.constant 0 : index
    %c0_103 = arith.constant 0 : index
    %226 = vector.load %arg3[%c7_101, %c0_102, %c0_103] : memref<32x16x64xf32, #tpu.memory_space<vmem>>, vector<1x16x64xf32>
    %227 = vector.shape_cast %226 : vector<1x16x64xf32> to vector<16x64xf32>
    %228 = vector.broadcast %225 : f32 to vector<16x64xf32>
    %229 = arith.mulf %228, %227 : vector<16x64xf32>
    %230 = arith.addf %206, %229 : vector<16x64xf32>
    %c0_104 = arith.constant 0 : index
    %c8 = arith.constant 8 : index
    %231 = memref.load %arg0[%c0_104, %c8] : memref<2x32xf32, #tpu.memory_space<smem>>
    %c8_105 = arith.constant 8 : index
    %c0_106 = arith.constant 0 : index
    %c0_107 = arith.constant 0 : index
    %232 = vector.load %arg3[%c8_105, %c0_106, %c0_107] : memref<32x16x64xf32, #tpu.memory_space<vmem>>, vector<1x16x64xf32>
    %233 = vector.shape_cast %232 : vector<1x16x64xf32> to vector<16x64xf32>
    %234 = vector.broadcast %231 : f32 to vector<16x64xf32>
    %235 = arith.mulf %234, %233 : vector<16x64xf32>
    %236 = arith.addf %212, %235 : vector<16x64xf32>
    %c0_108 = arith.constant 0 : index
    %c9 = arith.constant 9 : index
    %237 = memref.load %arg0[%c0_108, %c9] : memref<2x32xf32, #tpu.memory_space<smem>>
    %c9_109 = arith.constant 9 : index
    %c0_110 = arith.constant 0 : index
    %c0_111 = arith.constant 0 : index
    %238 = vector.load %arg3[%c9_109, %c0_110, %c0_111] : memref<32x16x64xf32, #tpu.memory_space<vmem>>, vector<1x16x64xf32>
    %239 = vector.shape_cast %238 : vector<1x16x64xf32> to vector<16x64xf32>
    %240 = vector.broadcast %237 : f32 to vector<16x64xf32>
    %241 = arith.mulf %240, %239 : vector<16x64xf32>
    %242 = arith.addf %218, %241 : vector<16x64xf32>
    %c0_112 = arith.constant 0 : index
    %c10 = arith.constant 10 : index
    %243 = memref.load %arg0[%c0_112, %c10] : memref<2x32xf32, #tpu.memory_space<smem>>
    %c10_113 = arith.constant 10 : index
    %c0_114 = arith.constant 0 : index
    %c0_115 = arith.constant 0 : index
    %244 = vector.load %arg3[%c10_113, %c0_114, %c0_115] : memref<32x16x64xf32, #tpu.memory_space<vmem>>, vector<1x16x64xf32>
    %245 = vector.shape_cast %244 : vector<1x16x64xf32> to vector<16x64xf32>
    %246 = vector.broadcast %243 : f32 to vector<16x64xf32>
    %247 = arith.mulf %246, %245 : vector<16x64xf32>
    %248 = arith.addf %224, %247 : vector<16x64xf32>
    %c0_116 = arith.constant 0 : index
    %c11 = arith.constant 11 : index
    %249 = memref.load %arg0[%c0_116, %c11] : memref<2x32xf32, #tpu.memory_space<smem>>
    %c11_117 = arith.constant 11 : index
    %c0_118 = arith.constant 0 : index
    %c0_119 = arith.constant 0 : index
    %250 = vector.load %arg3[%c11_117, %c0_118, %c0_119] : memref<32x16x64xf32, #tpu.memory_space<vmem>>, vector<1x16x64xf32>
    %251 = vector.shape_cast %250 : vector<1x16x64xf32> to vector<16x64xf32>
    %252 = vector.broadcast %249 : f32 to vector<16x64xf32>
    %253 = arith.mulf %252, %251 : vector<16x64xf32>
    %254 = arith.addf %230, %253 : vector<16x64xf32>
    %c0_120 = arith.constant 0 : index
    %c12 = arith.constant 12 : index
    %255 = memref.load %arg0[%c0_120, %c12] : memref<2x32xf32, #tpu.memory_space<smem>>
    %c12_121 = arith.constant 12 : index
    %c0_122 = arith.constant 0 : index
    %c0_123 = arith.constant 0 : index
    %256 = vector.load %arg3[%c12_121, %c0_122, %c0_123] : memref<32x16x64xf32, #tpu.memory_space<vmem>>, vector<1x16x64xf32>
    %257 = vector.shape_cast %256 : vector<1x16x64xf32> to vector<16x64xf32>
    %258 = vector.broadcast %255 : f32 to vector<16x64xf32>
    %259 = arith.mulf %258, %257 : vector<16x64xf32>
    %260 = arith.addf %236, %259 : vector<16x64xf32>
    %c0_124 = arith.constant 0 : index
    %c13 = arith.constant 13 : index
    %261 = memref.load %arg0[%c0_124, %c13] : memref<2x32xf32, #tpu.memory_space<smem>>
    %c13_125 = arith.constant 13 : index
    %c0_126 = arith.constant 0 : index
    %c0_127 = arith.constant 0 : index
    %262 = vector.load %arg3[%c13_125, %c0_126, %c0_127] : memref<32x16x64xf32, #tpu.memory_space<vmem>>, vector<1x16x64xf32>
    %263 = vector.shape_cast %262 : vector<1x16x64xf32> to vector<16x64xf32>
    %264 = vector.broadcast %261 : f32 to vector<16x64xf32>
    %265 = arith.mulf %264, %263 : vector<16x64xf32>
    %266 = arith.addf %242, %265 : vector<16x64xf32>
    %c0_128 = arith.constant 0 : index
    %c14 = arith.constant 14 : index
    %267 = memref.load %arg0[%c0_128, %c14] : memref<2x32xf32, #tpu.memory_space<smem>>
    %c14_129 = arith.constant 14 : index
    %c0_130 = arith.constant 0 : index
    %c0_131 = arith.constant 0 : index
    %268 = vector.load %arg3[%c14_129, %c0_130, %c0_131] : memref<32x16x64xf32, #tpu.memory_space<vmem>>, vector<1x16x64xf32>
    %269 = vector.shape_cast %268 : vector<1x16x64xf32> to vector<16x64xf32>
    %270 = vector.broadcast %267 : f32 to vector<16x64xf32>
    %271 = arith.mulf %270, %269 : vector<16x64xf32>
    %272 = arith.addf %248, %271 : vector<16x64xf32>
    %c0_132 = arith.constant 0 : index
    %c15 = arith.constant 15 : index
    %273 = memref.load %arg0[%c0_132, %c15] : memref<2x32xf32, #tpu.memory_space<smem>>
    %c15_133 = arith.constant 15 : index
    %c0_134 = arith.constant 0 : index
    %c0_135 = arith.constant 0 : index
    %274 = vector.load %arg3[%c15_133, %c0_134, %c0_135] : memref<32x16x64xf32, #tpu.memory_space<vmem>>, vector<1x16x64xf32>
    %275 = vector.shape_cast %274 : vector<1x16x64xf32> to vector<16x64xf32>
    %276 = vector.broadcast %273 : f32 to vector<16x64xf32>
    %277 = arith.mulf %276, %275 : vector<16x64xf32>
    %278 = arith.addf %254, %277 : vector<16x64xf32>
    %c0_136 = arith.constant 0 : index
    %c16 = arith.constant 16 : index
    %279 = memref.load %arg0[%c0_136, %c16] : memref<2x32xf32, #tpu.memory_space<smem>>
    %c16_137 = arith.constant 16 : index
    %c0_138 = arith.constant 0 : index
    %c0_139 = arith.constant 0 : index
    %280 = vector.load %arg3[%c16_137, %c0_138, %c0_139] : memref<32x16x64xf32, #tpu.memory_space<vmem>>, vector<1x16x64xf32>
    %281 = vector.shape_cast %280 : vector<1x16x64xf32> to vector<16x64xf32>
    %282 = vector.broadcast %279 : f32 to vector<16x64xf32>
    %283 = arith.mulf %282, %281 : vector<16x64xf32>
    %284 = arith.addf %260, %283 : vector<16x64xf32>
    %c0_140 = arith.constant 0 : index
    %c17 = arith.constant 17 : index
    %285 = memref.load %arg0[%c0_140, %c17] : memref<2x32xf32, #tpu.memory_space<smem>>
    %c17_141 = arith.constant 17 : index
    %c0_142 = arith.constant 0 : index
    %c0_143 = arith.constant 0 : index
    %286 = vector.load %arg3[%c17_141, %c0_142, %c0_143] : memref<32x16x64xf32, #tpu.memory_space<vmem>>, vector<1x16x64xf32>
    %287 = vector.shape_cast %286 : vector<1x16x64xf32> to vector<16x64xf32>
    %288 = vector.broadcast %285 : f32 to vector<16x64xf32>
    %289 = arith.mulf %288, %287 : vector<16x64xf32>
    %290 = arith.addf %266, %289 : vector<16x64xf32>
    %c0_144 = arith.constant 0 : index
    %c18 = arith.constant 18 : index
    %291 = memref.load %arg0[%c0_144, %c18] : memref<2x32xf32, #tpu.memory_space<smem>>
    %c18_145 = arith.constant 18 : index
    %c0_146 = arith.constant 0 : index
    %c0_147 = arith.constant 0 : index
    %292 = vector.load %arg3[%c18_145, %c0_146, %c0_147] : memref<32x16x64xf32, #tpu.memory_space<vmem>>, vector<1x16x64xf32>
    %293 = vector.shape_cast %292 : vector<1x16x64xf32> to vector<16x64xf32>
    %294 = vector.broadcast %291 : f32 to vector<16x64xf32>
    %295 = arith.mulf %294, %293 : vector<16x64xf32>
    %296 = arith.addf %272, %295 : vector<16x64xf32>
    %c0_148 = arith.constant 0 : index
    %c19 = arith.constant 19 : index
    %297 = memref.load %arg0[%c0_148, %c19] : memref<2x32xf32, #tpu.memory_space<smem>>
    %c19_149 = arith.constant 19 : index
    %c0_150 = arith.constant 0 : index
    %c0_151 = arith.constant 0 : index
    %298 = vector.load %arg3[%c19_149, %c0_150, %c0_151] : memref<32x16x64xf32, #tpu.memory_space<vmem>>, vector<1x16x64xf32>
    %299 = vector.shape_cast %298 : vector<1x16x64xf32> to vector<16x64xf32>
    %300 = vector.broadcast %297 : f32 to vector<16x64xf32>
    %301 = arith.mulf %300, %299 : vector<16x64xf32>
    %302 = arith.addf %278, %301 : vector<16x64xf32>
    %c0_152 = arith.constant 0 : index
    %c20 = arith.constant 20 : index
    %303 = memref.load %arg0[%c0_152, %c20] : memref<2x32xf32, #tpu.memory_space<smem>>
    %c20_153 = arith.constant 20 : index
    %c0_154 = arith.constant 0 : index
    %c0_155 = arith.constant 0 : index
    %304 = vector.load %arg3[%c20_153, %c0_154, %c0_155] : memref<32x16x64xf32, #tpu.memory_space<vmem>>, vector<1x16x64xf32>
    %305 = vector.shape_cast %304 : vector<1x16x64xf32> to vector<16x64xf32>
    %306 = vector.broadcast %303 : f32 to vector<16x64xf32>
    %307 = arith.mulf %306, %305 : vector<16x64xf32>
    %308 = arith.addf %284, %307 : vector<16x64xf32>
    %c0_156 = arith.constant 0 : index
    %c21 = arith.constant 21 : index
    %309 = memref.load %arg0[%c0_156, %c21] : memref<2x32xf32, #tpu.memory_space<smem>>
    %c21_157 = arith.constant 21 : index
    %c0_158 = arith.constant 0 : index
    %c0_159 = arith.constant 0 : index
    %310 = vector.load %arg3[%c21_157, %c0_158, %c0_159] : memref<32x16x64xf32, #tpu.memory_space<vmem>>, vector<1x16x64xf32>
    %311 = vector.shape_cast %310 : vector<1x16x64xf32> to vector<16x64xf32>
    %312 = vector.broadcast %309 : f32 to vector<16x64xf32>
    %313 = arith.mulf %312, %311 : vector<16x64xf32>
    %314 = arith.addf %290, %313 : vector<16x64xf32>
    %c0_160 = arith.constant 0 : index
    %c22 = arith.constant 22 : index
    %315 = memref.load %arg0[%c0_160, %c22] : memref<2x32xf32, #tpu.memory_space<smem>>
    %c22_161 = arith.constant 22 : index
    %c0_162 = arith.constant 0 : index
    %c0_163 = arith.constant 0 : index
    %316 = vector.load %arg3[%c22_161, %c0_162, %c0_163] : memref<32x16x64xf32, #tpu.memory_space<vmem>>, vector<1x16x64xf32>
    %317 = vector.shape_cast %316 : vector<1x16x64xf32> to vector<16x64xf32>
    %318 = vector.broadcast %315 : f32 to vector<16x64xf32>
    %319 = arith.mulf %318, %317 : vector<16x64xf32>
    %320 = arith.addf %296, %319 : vector<16x64xf32>
    %c0_164 = arith.constant 0 : index
    %c23 = arith.constant 23 : index
    %321 = memref.load %arg0[%c0_164, %c23] : memref<2x32xf32, #tpu.memory_space<smem>>
    %c23_165 = arith.constant 23 : index
    %c0_166 = arith.constant 0 : index
    %c0_167 = arith.constant 0 : index
    %322 = vector.load %arg3[%c23_165, %c0_166, %c0_167] : memref<32x16x64xf32, #tpu.memory_space<vmem>>, vector<1x16x64xf32>
    %323 = vector.shape_cast %322 : vector<1x16x64xf32> to vector<16x64xf32>
    %324 = vector.broadcast %321 : f32 to vector<16x64xf32>
    %325 = arith.mulf %324, %323 : vector<16x64xf32>
    %326 = arith.addf %302, %325 : vector<16x64xf32>
    %c0_168 = arith.constant 0 : index
    %c24 = arith.constant 24 : index
    %327 = memref.load %arg0[%c0_168, %c24] : memref<2x32xf32, #tpu.memory_space<smem>>
    %c24_169 = arith.constant 24 : index
    %c0_170 = arith.constant 0 : index
    %c0_171 = arith.constant 0 : index
    %328 = vector.load %arg3[%c24_169, %c0_170, %c0_171] : memref<32x16x64xf32, #tpu.memory_space<vmem>>, vector<1x16x64xf32>
    %329 = vector.shape_cast %328 : vector<1x16x64xf32> to vector<16x64xf32>
    %330 = vector.broadcast %327 : f32 to vector<16x64xf32>
    %331 = arith.mulf %330, %329 : vector<16x64xf32>
    %332 = arith.addf %308, %331 : vector<16x64xf32>
    %c0_172 = arith.constant 0 : index
    %c25 = arith.constant 25 : index
    %333 = memref.load %arg0[%c0_172, %c25] : memref<2x32xf32, #tpu.memory_space<smem>>
    %c25_173 = arith.constant 25 : index
    %c0_174 = arith.constant 0 : index
    %c0_175 = arith.constant 0 : index
    %334 = vector.load %arg3[%c25_173, %c0_174, %c0_175] : memref<32x16x64xf32, #tpu.memory_space<vmem>>, vector<1x16x64xf32>
    %335 = vector.shape_cast %334 : vector<1x16x64xf32> to vector<16x64xf32>
    %336 = vector.broadcast %333 : f32 to vector<16x64xf32>
    %337 = arith.mulf %336, %335 : vector<16x64xf32>
    %338 = arith.addf %314, %337 : vector<16x64xf32>
    %c0_176 = arith.constant 0 : index
    %c26 = arith.constant 26 : index
    %339 = memref.load %arg0[%c0_176, %c26] : memref<2x32xf32, #tpu.memory_space<smem>>
    %c26_177 = arith.constant 26 : index
    %c0_178 = arith.constant 0 : index
    %c0_179 = arith.constant 0 : index
    %340 = vector.load %arg3[%c26_177, %c0_178, %c0_179] : memref<32x16x64xf32, #tpu.memory_space<vmem>>, vector<1x16x64xf32>
    %341 = vector.shape_cast %340 : vector<1x16x64xf32> to vector<16x64xf32>
    %342 = vector.broadcast %339 : f32 to vector<16x64xf32>
    %343 = arith.mulf %342, %341 : vector<16x64xf32>
    %344 = arith.addf %320, %343 : vector<16x64xf32>
    %c0_180 = arith.constant 0 : index
    %c27 = arith.constant 27 : index
    %345 = memref.load %arg0[%c0_180, %c27] : memref<2x32xf32, #tpu.memory_space<smem>>
    %c27_181 = arith.constant 27 : index
    %c0_182 = arith.constant 0 : index
    %c0_183 = arith.constant 0 : index
    %346 = vector.load %arg3[%c27_181, %c0_182, %c0_183] : memref<32x16x64xf32, #tpu.memory_space<vmem>>, vector<1x16x64xf32>
    %347 = vector.shape_cast %346 : vector<1x16x64xf32> to vector<16x64xf32>
    %348 = vector.broadcast %345 : f32 to vector<16x64xf32>
    %349 = arith.mulf %348, %347 : vector<16x64xf32>
    %350 = arith.addf %326, %349 : vector<16x64xf32>
    %c0_184 = arith.constant 0 : index
    %c28 = arith.constant 28 : index
    %351 = memref.load %arg0[%c0_184, %c28] : memref<2x32xf32, #tpu.memory_space<smem>>
    %c28_185 = arith.constant 28 : index
    %c0_186 = arith.constant 0 : index
    %c0_187 = arith.constant 0 : index
    %352 = vector.load %arg3[%c28_185, %c0_186, %c0_187] : memref<32x16x64xf32, #tpu.memory_space<vmem>>, vector<1x16x64xf32>
    %353 = vector.shape_cast %352 : vector<1x16x64xf32> to vector<16x64xf32>
    %354 = vector.broadcast %351 : f32 to vector<16x64xf32>
    %355 = arith.mulf %354, %353 : vector<16x64xf32>
    %356 = arith.addf %332, %355 : vector<16x64xf32>
    %c0_188 = arith.constant 0 : index
    %c29 = arith.constant 29 : index
    %357 = memref.load %arg0[%c0_188, %c29] : memref<2x32xf32, #tpu.memory_space<smem>>
    %c29_189 = arith.constant 29 : index
    %c0_190 = arith.constant 0 : index
    %c0_191 = arith.constant 0 : index
    %358 = vector.load %arg3[%c29_189, %c0_190, %c0_191] : memref<32x16x64xf32, #tpu.memory_space<vmem>>, vector<1x16x64xf32>
    %359 = vector.shape_cast %358 : vector<1x16x64xf32> to vector<16x64xf32>
    %360 = vector.broadcast %357 : f32 to vector<16x64xf32>
    %361 = arith.mulf %360, %359 : vector<16x64xf32>
    %362 = arith.addf %338, %361 : vector<16x64xf32>
    %c0_192 = arith.constant 0 : index
    %c30 = arith.constant 30 : index
    %363 = memref.load %arg0[%c0_192, %c30] : memref<2x32xf32, #tpu.memory_space<smem>>
    %c30_193 = arith.constant 30 : index
    %c0_194 = arith.constant 0 : index
    %c0_195 = arith.constant 0 : index
    %364 = vector.load %arg3[%c30_193, %c0_194, %c0_195] : memref<32x16x64xf32, #tpu.memory_space<vmem>>, vector<1x16x64xf32>
    %365 = vector.shape_cast %364 : vector<1x16x64xf32> to vector<16x64xf32>
    %366 = vector.broadcast %363 : f32 to vector<16x64xf32>
    %367 = arith.mulf %366, %365 : vector<16x64xf32>
    %368 = arith.addf %344, %367 : vector<16x64xf32>
    %c0_196 = arith.constant 0 : index
    %c31 = arith.constant 31 : index
    %369 = memref.load %arg0[%c0_196, %c31] : memref<2x32xf32, #tpu.memory_space<smem>>
    %c31_197 = arith.constant 31 : index
    %c0_198 = arith.constant 0 : index
    %c0_199 = arith.constant 0 : index
    %370 = vector.load %arg3[%c31_197, %c0_198, %c0_199] : memref<32x16x64xf32, #tpu.memory_space<vmem>>, vector<1x16x64xf32>
    %371 = vector.shape_cast %370 : vector<1x16x64xf32> to vector<16x64xf32>
    %372 = vector.broadcast %369 : f32 to vector<16x64xf32>
    %373 = arith.mulf %372, %371 : vector<16x64xf32>
    %374 = arith.addf %350, %373 : vector<16x64xf32>
    %375 = arith.addf %356, %362 : vector<16x64xf32>
    %376 = arith.addf %368, %374 : vector<16x64xf32>
    %377 = arith.addf %375, %376 : vector<16x64xf32>
    %cst_200 = arith.constant 0.000000e+00 : f32
    %378 = vector.broadcast %cst_200 : f32 to vector<16x64xf32>
    %379 = arith.cmpf oge, %377, %378 : vector<16x64xf32>
    %cst_201 = arith.constant 2.000000e-01 : f32
    %380 = vector.broadcast %cst_201 : f32 to vector<16x64xf32>
    %381 = arith.mulf %380, %377 : vector<16x64xf32>
    %382 = arith.select %379, %377, %381 : vector<16x64xi1>, vector<16x64xf32>
    %c0_202 = arith.constant 0 : index
    %c0_203 = arith.constant 0 : index
    %c0_204 = arith.constant 0 : index
    %383 = vector.load %arg5[%c0_202, %c0_203, %c0_204] : memref<9x64x256xbf16, #tpu.memory_space<vmem>>, vector<1x64x256xbf16>
    %384 = vector.shape_cast %383 : vector<1x64x256xbf16> to vector<64x256xbf16>
    %385 = arith.extf %384 : vector<64x256xbf16> to vector<64x256xf32>
    %cst_205 = arith.constant dense<0.000000e+00> : vector<16x256xf32>
    %386 = tpu.matmul %382, %385, %cst_205 {dimension_numbers = #tpu.dot_dimension_numbers<[1], [0], [0], [1], [0, 0, 1, 1], [], []>} : vector<16x64xf32>, vector<64x256xf32>, vector<16x256xf32> -> vector<16x256xf32>
    %c0_206 = arith.constant 0 : index
    %c0_207 = arith.constant 0 : index
    %387 = vector.load %arg13[%c0_206, %c0_207] : memref<144x256xf32, #tpu.memory_space<vmem>>, vector<16x256xf32>
    tpu.vector_store %arg13[%c0_206, %c0_207], %386 {strides = array<i32>} : memref<144x256xf32, #tpu.memory_space<vmem>>, vector<16x256xf32>,
    %c1_208 = arith.constant 1 : index
    %c0_209 = arith.constant 0 : index
    %c0_210 = arith.constant 0 : index
    %388 = vector.load %arg5[%c1_208, %c0_209, %c0_210] : memref<9x64x256xbf16, #tpu.memory_space<vmem>>, vector<1x64x256xbf16>
    %389 = vector.shape_cast %388 : vector<1x64x256xbf16> to vector<64x256xbf16>
    %390 = arith.extf %389 : vector<64x256xbf16> to vector<64x256xf32>
    %cst_211 = arith.constant dense<0.000000e+00> : vector<16x256xf32>
    %391 = tpu.matmul %382, %390, %cst_211 {dimension_numbers = #tpu.dot_dimension_numbers<[1], [0], [0], [1], [0, 0, 1, 1], [], []>} : vector<16x64xf32>, vector<64x256xf32>, vector<16x256xf32> -> vector<16x256xf32>
    %c16_212 = arith.constant 16 : index
    %c0_213 = arith.constant 0 : index
    %392 = vector.load %arg13[%c16_212, %c0_213] : memref<144x256xf32, #tpu.memory_space<vmem>>, vector<16x256xf32>
    tpu.vector_store %arg13[%c16_212, %c0_213], %391 {strides = array<i32>} : memref<144x256xf32, #tpu.memory_space<vmem>>, vector<16x256xf32>,
    %c2_214 = arith.constant 2 : index
    %c0_215 = arith.constant 0 : index
    %c0_216 = arith.constant 0 : index
    %393 = vector.load %arg5[%c2_214, %c0_215, %c0_216] : memref<9x64x256xbf16, #tpu.memory_space<vmem>>, vector<1x64x256xbf16>
    %394 = vector.shape_cast %393 : vector<1x64x256xbf16> to vector<64x256xbf16>
    %395 = arith.extf %394 : vector<64x256xbf16> to vector<64x256xf32>
    %cst_217 = arith.constant dense<0.000000e+00> : vector<16x256xf32>
    %396 = tpu.matmul %382, %395, %cst_217 {dimension_numbers = #tpu.dot_dimension_numbers<[1], [0], [0], [1], [0, 0, 1, 1], [], []>} : vector<16x64xf32>, vector<64x256xf32>, vector<16x256xf32> -> vector<16x256xf32>
    %c32 = arith.constant 32 : index
    %c0_218 = arith.constant 0 : index
    %397 = vector.load %arg13[%c32, %c0_218] : memref<144x256xf32, #tpu.memory_space<vmem>>, vector<16x256xf32>
    tpu.vector_store %arg13[%c32, %c0_218], %396 {strides = array<i32>} : memref<144x256xf32, #tpu.memory_space<vmem>>, vector<16x256xf32>,
    %c3_219 = arith.constant 3 : index
    %c0_220 = arith.constant 0 : index
    %c0_221 = arith.constant 0 : index
    %398 = vector.load %arg5[%c3_219, %c0_220, %c0_221] : memref<9x64x256xbf16, #tpu.memory_space<vmem>>, vector<1x64x256xbf16>
    %399 = vector.shape_cast %398 : vector<1x64x256xbf16> to vector<64x256xbf16>
    %400 = arith.extf %399 : vector<64x256xbf16> to vector<64x256xf32>
    %cst_222 = arith.constant dense<0.000000e+00> : vector<16x256xf32>
    %401 = tpu.matmul %382, %400, %cst_222 {dimension_numbers = #tpu.dot_dimension_numbers<[1], [0], [0], [1], [0, 0, 1, 1], [], []>} : vector<16x64xf32>, vector<64x256xf32>, vector<16x256xf32> -> vector<16x256xf32>
    %c48 = arith.constant 48 : index
    %c0_223 = arith.constant 0 : index
    %402 = vector.load %arg13[%c48, %c0_223] : memref<144x256xf32, #tpu.memory_space<vmem>>, vector<16x256xf32>
    tpu.vector_store %arg13[%c48, %c0_223], %401 {strides = array<i32>} : memref<144x256xf32, #tpu.memory_space<vmem>>, vector<16x256xf32>,
    %c4_224 = arith.constant 4 : index
    %c0_225 = arith.constant 0 : index
    %c0_226 = arith.constant 0 : index
    %403 = vector.load %arg5[%c4_224, %c0_225, %c0_226] : memref<9x64x256xbf16, #tpu.memory_space<vmem>>, vector<1x64x256xbf16>
    %404 = vector.shape_cast %403 : vector<1x64x256xbf16> to vector<64x256xbf16>
    %405 = arith.extf %404 : vector<64x256xbf16> to vector<64x256xf32>
    %cst_227 = arith.constant dense<0.000000e+00> : vector<16x256xf32>
    %406 = tpu.matmul %382, %405, %cst_227 {dimension_numbers = #tpu.dot_dimension_numbers<[1], [0], [0], [1], [0, 0, 1, 1], [], []>} : vector<16x64xf32>, vector<64x256xf32>, vector<16x256xf32> -> vector<16x256xf32>
    %c64 = arith.constant 64 : index
    %c0_228 = arith.constant 0 : index
    %407 = vector.load %arg13[%c64, %c0_228] : memref<144x256xf32, #tpu.memory_space<vmem>>, vector<16x256xf32>
    tpu.vector_store %arg13[%c64, %c0_228], %406 {strides = array<i32>} : memref<144x256xf32, #tpu.memory_space<vmem>>, vector<16x256xf32>,
    %c5_229 = arith.constant 5 : index
    %c0_230 = arith.constant 0 : index
    %c0_231 = arith.constant 0 : index
    %408 = vector.load %arg5[%c5_229, %c0_230, %c0_231] : memref<9x64x256xbf16, #tpu.memory_space<vmem>>, vector<1x64x256xbf16>
    %409 = vector.shape_cast %408 : vector<1x64x256xbf16> to vector<64x256xbf16>
    %410 = arith.extf %409 : vector<64x256xbf16> to vector<64x256xf32>
    %cst_232 = arith.constant dense<0.000000e+00> : vector<16x256xf32>
    %411 = tpu.matmul %382, %410, %cst_232 {dimension_numbers = #tpu.dot_dimension_numbers<[1], [0], [0], [1], [0, 0, 1, 1], [], []>} : vector<16x64xf32>, vector<64x256xf32>, vector<16x256xf32> -> vector<16x256xf32>
    %c80 = arith.constant 80 : index
    %c0_233 = arith.constant 0 : index
    %412 = vector.load %arg13[%c80, %c0_233] : memref<144x256xf32, #tpu.memory_space<vmem>>, vector<16x256xf32>
    tpu.vector_store %arg13[%c80, %c0_233], %411 {strides = array<i32>} : memref<144x256xf32, #tpu.memory_space<vmem>>, vector<16x256xf32>,
    %c6_234 = arith.constant 6 : index
    %c0_235 = arith.constant 0 : index
    %c0_236 = arith.constant 0 : index
    %413 = vector.load %arg5[%c6_234, %c0_235, %c0_236] : memref<9x64x256xbf16, #tpu.memory_space<vmem>>, vector<1x64x256xbf16>
    %414 = vector.shape_cast %413 : vector<1x64x256xbf16> to vector<64x256xbf16>
    %415 = arith.extf %414 : vector<64x256xbf16> to vector<64x256xf32>
    %cst_237 = arith.constant dense<0.000000e+00> : vector<16x256xf32>
    %416 = tpu.matmul %382, %415, %cst_237 {dimension_numbers = #tpu.dot_dimension_numbers<[1], [0], [0], [1], [0, 0, 1, 1], [], []>} : vector<16x64xf32>, vector<64x256xf32>, vector<16x256xf32> -> vector<16x256xf32>
    %c96 = arith.constant 96 : index
    %c0_238 = arith.constant 0 : index
    %417 = vector.load %arg13[%c96, %c0_238] : memref<144x256xf32, #tpu.memory_space<vmem>>, vector<16x256xf32>
    tpu.vector_store %arg13[%c96, %c0_238], %416 {strides = array<i32>} : memref<144x256xf32, #tpu.memory_space<vmem>>, vector<16x256xf32>,
    %c7_239 = arith.constant 7 : index
    %c0_240 = arith.constant 0 : index
    %c0_241 = arith.constant 0 : index
    %418 = vector.load %arg5[%c7_239, %c0_240, %c0_241] : memref<9x64x256xbf16, #tpu.memory_space<vmem>>, vector<1x64x256xbf16>
    %419 = vector.shape_cast %418 : vector<1x64x256xbf16> to vector<64x256xbf16>
    %420 = arith.extf %419 : vector<64x256xbf16> to vector<64x256xf32>
    %cst_242 = arith.constant dense<0.000000e+00> : vector<16x256xf32>
    %421 = tpu.matmul %382, %420, %cst_242 {dimension_numbers = #tpu.dot_dimension_numbers<[1], [0], [0], [1], [0, 0, 1, 1], [], []>} : vector<16x64xf32>, vector<64x256xf32>, vector<16x256xf32> -> vector<16x256xf32>
    %c112 = arith.constant 112 : index
    %c0_243 = arith.constant 0 : index
    %422 = vector.load %arg13[%c112, %c0_243] : memref<144x256xf32, #tpu.memory_space<vmem>>, vector<16x256xf32>
    tpu.vector_store %arg13[%c112, %c0_243], %421 {strides = array<i32>} : memref<144x256xf32, #tpu.memory_space<vmem>>, vector<16x256xf32>,
    %c8_244 = arith.constant 8 : index
    %c0_245 = arith.constant 0 : index
    %c0_246 = arith.constant 0 : index
    %423 = vector.load %arg5[%c8_244, %c0_245, %c0_246] : memref<9x64x256xbf16, #tpu.memory_space<vmem>>, vector<1x64x256xbf16>
    %424 = vector.shape_cast %423 : vector<1x64x256xbf16> to vector<64x256xbf16>
    %425 = arith.extf %424 : vector<64x256xbf16> to vector<64x256xf32>
    %cst_247 = arith.constant dense<0.000000e+00> : vector<16x256xf32>
    %426 = tpu.matmul %382, %425, %cst_247 {dimension_numbers = #tpu.dot_dimension_numbers<[1], [0], [0], [1], [0, 0, 1, 1], [], []>} : vector<16x64xf32>, vector<64x256xf32>, vector<16x256xf32> -> vector<16x256xf32>
    %c128 = arith.constant 128 : index
    %c0_248 = arith.constant 0 : index
    %427 = vector.load %arg13[%c128, %c0_248] : memref<144x256xf32, #tpu.memory_space<vmem>>, vector<16x256xf32>
    tpu.vector_store %arg13[%c128, %c0_248], %426 {strides = array<i32>} : memref<144x256xf32, #tpu.memory_space<vmem>>, vector<16x256xf32>,
    %c0_249 = arith.constant 0 : index
    %c0_250 = arith.constant 0 : index
    %428 = vector.load %arg6[%c0_249, %c0_250] : memref<8x144xf32, #tpu.memory_space<vmem>>, vector<8x144xf32>
    %c0_251 = arith.constant 0 : index
    %c0_252 = arith.constant 0 : index
    %429 = vector.load %arg13[%c0_251, %c0_252] : memref<144x256xf32, #tpu.memory_space<vmem>>, vector<144x256xf32>
    %cst_253 = arith.constant dense<0.000000e+00> : vector<8x256xf32>
    %430 = tpu.matmul %428, %429, %cst_253 {dimension_numbers = #tpu.dot_dimension_numbers<[1], [0], [0], [1], [0, 0, 1, 1], [], []>} : vector<8x144xf32>, vector<144x256xf32>, vector<8x256xf32> -> vector<8x256xf32>
    %c0_254 = arith.constant 0 : index
    %c0_255 = arith.constant 0 : index
    %431 = vector.load %arg7[%c0_254, %c0_255] : memref<8x1xf32, #tpu.memory_space<vmem>>, vector<8x1xf32>
    %432 = vector.broadcast %431 : vector<8x1xf32> to vector<8x256xf32>
    %433 = arith.addf %430, %432 : vector<8x256xf32>
    %cst_256 = arith.constant 0.000000e+00 : f32
    %434 = vector.broadcast %cst_256 : f32 to vector<8x256xf32>
    %435 = arith.cmpf oge, %433, %434 : vector<8x256xf32>
    %cst_257 = arith.constant 2.000000e-01 : f32
    %436 = vector.broadcast %cst_257 : f32 to vector<8x256xf32>
    %437 = arith.mulf %436, %433 : vector<8x256xf32>
    %438 = arith.select %435, %433, %437 : vector<8x256xi1>, vector<8x256xf32>
    %c17_i32 = arith.constant 17 : i32
    %439 = tpu.dynamic_rotate %438 by %c17_i32 dim 1 : vector<8x256xf32>, i32 -> vector<8x256xf32>
    %cst_258 = arith.constant 0.000000e+00 : f32
    %440 = vector.shape_cast %26 : vector<1x256xi1> to vector<1x256xi1>
    %441 = vector.broadcast %440 : vector<1x256xi1> to vector<8x256xi1>
    %442 = vector.broadcast %cst_258 : f32 to vector<8x256xf32>
    %443 = arith.select %441, %439, %442 : vector<8x256xi1>, vector<8x256xf32>
    %c0_259 = arith.constant 0 : index
    %c0_260 = arith.constant 0 : index
    %444 = vector.load %arg13[%c0_259, %c0_260] : memref<144x256xf32, #tpu.memory_space<vmem>>, vector<8x256xf32>
    tpu.vector_store %arg13[%c0_259, %c0_260], %443 {strides = array<i32>} : memref<144x256xf32, #tpu.memory_space<vmem>>, vector<8x256xf32>,
    %c16_i32_261 = arith.constant 16 : i32
    %445 = tpu.dynamic_rotate %438 by %c16_i32_261 dim 1 : vector<8x256xf32>, i32 -> vector<8x256xf32>
    %cst_262 = arith.constant 0.000000e+00 : f32
    %446 = vector.shape_cast %45 : vector<1x256xi1> to vector<1x256xi1>
    %447 = vector.broadcast %446 : vector<1x256xi1> to vector<8x256xi1>
    %448 = vector.broadcast %cst_262 : f32 to vector<8x256xf32>
    %449 = arith.select %447, %445, %448 : vector<8x256xi1>, vector<8x256xf32>
    %c8_263 = arith.constant 8 : index
    %c0_264 = arith.constant 0 : index
    %450 = vector.load %arg13[%c8_263, %c0_264] : memref<144x256xf32, #tpu.memory_space<vmem>>, vector<8x256xf32>
    tpu.vector_store %arg13[%c8_263, %c0_264], %449 {strides = array<i32>} : memref<144x256xf32, #tpu.memory_space<vmem>>, vector<8x256xf32>,
    %c15_i32_265 = arith.constant 15 : i32
    %451 = tpu.dynamic_rotate %438 by %c15_i32_265 dim 1 : vector<8x256xf32>, i32 -> vector<8x256xf32>
    %cst_266 = arith.constant 0.000000e+00 : f32
    %452 = vector.shape_cast %64 : vector<1x256xi1> to vector<1x256xi1>
    %453 = vector.broadcast %452 : vector<1x256xi1> to vector<8x256xi1>
    %454 = vector.broadcast %cst_266 : f32 to vector<8x256xf32>
    %455 = arith.select %453, %451, %454 : vector<8x256xi1>, vector<8x256xf32>
    %c16_267 = arith.constant 16 : index
    %c0_268 = arith.constant 0 : index
    %456 = vector.load %arg13[%c16_267, %c0_268] : memref<144x256xf32, #tpu.memory_space<vmem>>, vector<8x256xf32>
    tpu.vector_store %arg13[%c16_267, %c0_268], %455 {strides = array<i32>} : memref<144x256xf32, #tpu.memory_space<vmem>>, vector<8x256xf32>,
    %c1_i32_269 = arith.constant 1 : i32
    %457 = tpu.dynamic_rotate %438 by %c1_i32_269 dim 1 : vector<8x256xf32>, i32 -> vector<8x256xf32>
    %cst_270 = arith.constant 0.000000e+00 : f32
    %458 = vector.shape_cast %83 : vector<1x256xi1> to vector<1x256xi1>
    %459 = vector.broadcast %458 : vector<1x256xi1> to vector<8x256xi1>
    %460 = vector.broadcast %cst_270 : f32 to vector<8x256xf32>
    %461 = arith.select %459, %457, %460 : vector<8x256xi1>, vector<8x256xf32>
    %c24_271 = arith.constant 24 : index
    %c0_272 = arith.constant 0 : index
    %462 = vector.load %arg13[%c24_271, %c0_272] : memref<144x256xf32, #tpu.memory_space<vmem>>, vector<8x256xf32>
    tpu.vector_store %arg13[%c24_271, %c0_272], %461 {strides = array<i32>} : memref<144x256xf32, #tpu.memory_space<vmem>>, vector<8x256xf32>,
    %cst_273 = arith.constant 0.000000e+00 : f32
    %463 = vector.shape_cast %102 : vector<1x256xi1> to vector<1x256xi1>
    %464 = vector.broadcast %463 : vector<1x256xi1> to vector<8x256xi1>
    %465 = vector.broadcast %cst_273 : f32 to vector<8x256xf32>
    %466 = arith.select %464, %438, %465 : vector<8x256xi1>, vector<8x256xf32>
    %c32_274 = arith.constant 32 : index
    %c0_275 = arith.constant 0 : index
    %467 = vector.load %arg13[%c32_274, %c0_275] : memref<144x256xf32, #tpu.memory_space<vmem>>, vector<8x256xf32>
    tpu.vector_store %arg13[%c32_274, %c0_275], %466 {strides = array<i32>} : memref<144x256xf32, #tpu.memory_space<vmem>>, vector<8x256xf32>,
    %c255_i32 = arith.constant 255 : i32
    %468 = tpu.dynamic_rotate %438 by %c255_i32 dim 1 : vector<8x256xf32>, i32 -> vector<8x256xf32>
    %cst_276 = arith.constant 0.000000e+00 : f32
    %469 = vector.shape_cast %121 : vector<1x256xi1> to vector<1x256xi1>
    %470 = vector.broadcast %469 : vector<1x256xi1> to vector<8x256xi1>
    %471 = vector.broadcast %cst_276 : f32 to vector<8x256xf32>
    %472 = arith.select %470, %468, %471 : vector<8x256xi1>, vector<8x256xf32>
    %c40 = arith.constant 40 : index
    %c0_277 = arith.constant 0 : index
    %473 = vector.load %arg13[%c40, %c0_277] : memref<144x256xf32, #tpu.memory_space<vmem>>, vector<8x256xf32>
    tpu.vector_store %arg13[%c40, %c0_277], %472 {strides = array<i32>} : memref<144x256xf32, #tpu.memory_space<vmem>>, vector<8x256xf32>,
    %c241_i32 = arith.constant 241 : i32
    %474 = tpu.dynamic_rotate %438 by %c241_i32 dim 1 : vector<8x256xf32>, i32 -> vector<8x256xf32>
    %cst_278 = arith.constant 0.000000e+00 : f32
    %475 = vector.shape_cast %140 : vector<1x256xi1> to vector<1x256xi1>
    %476 = vector.broadcast %475 : vector<1x256xi1> to vector<8x256xi1>
    %477 = vector.broadcast %cst_278 : f32 to vector<8x256xf32>
    %478 = arith.select %476, %474, %477 : vector<8x256xi1>, vector<8x256xf32>
    %c48_279 = arith.constant 48 : index
    %c0_280 = arith.constant 0 : index
    %479 = vector.load %arg13[%c48_279, %c0_280] : memref<144x256xf32, #tpu.memory_space<vmem>>, vector<8x256xf32>
    tpu.vector_store %arg13[%c48_279, %c0_280], %478 {strides = array<i32>} : memref<144x256xf32, #tpu.memory_space<vmem>>, vector<8x256xf32>,
    %c240_i32 = arith.constant 240 : i32
    %480 = tpu.dynamic_rotate %438 by %c240_i32 dim 1 : vector<8x256xf32>, i32 -> vector<8x256xf32>
    %cst_281 = arith.constant 0.000000e+00 : f32
    %481 = vector.shape_cast %159 : vector<1x256xi1> to vector<1x256xi1>
    %482 = vector.broadcast %481 : vector<1x256xi1> to vector<8x256xi1>
    %483 = vector.broadcast %cst_281 : f32 to vector<8x256xf32>
    %484 = arith.select %482, %480, %483 : vector<8x256xi1>, vector<8x256xf32>
    %c56 = arith.constant 56 : index
    %c0_282 = arith.constant 0 : index
    %485 = vector.load %arg13[%c56, %c0_282] : memref<144x256xf32, #tpu.memory_space<vmem>>, vector<8x256xf32>
    tpu.vector_store %arg13[%c56, %c0_282], %484 {strides = array<i32>} : memref<144x256xf32, #tpu.memory_space<vmem>>, vector<8x256xf32>,
    %c239_i32 = arith.constant 239 : i32
    %486 = tpu.dynamic_rotate %438 by %c239_i32 dim 1 : vector<8x256xf32>, i32 -> vector<8x256xf32>
    %cst_283 = arith.constant 0.000000e+00 : f32
    %487 = vector.shape_cast %178 : vector<1x256xi1> to vector<1x256xi1>
    %488 = vector.broadcast %487 : vector<1x256xi1> to vector<8x256xi1>
    %489 = vector.broadcast %cst_283 : f32 to vector<8x256xf32>
    %490 = arith.select %488, %486, %489 : vector<8x256xi1>, vector<8x256xf32>
    %c64_284 = arith.constant 64 : index
    %c0_285 = arith.constant 0 : index
    %491 = vector.load %arg13[%c64_284, %c0_285] : memref<144x256xf32, #tpu.memory_space<vmem>>, vector<8x256xf32>
    tpu.vector_store %arg13[%c64_284, %c0_285], %490 {strides = array<i32>} : memref<144x256xf32, #tpu.memory_space<vmem>>, vector<8x256xf32>,
    %c0_286 = arith.constant 0 : index
    %c0_287 = arith.constant 0 : index
    %492 = vector.load %arg8[%c0_286, %c0_287] : memref<8x72xf32, #tpu.memory_space<vmem>>, vector<8x72xf32>
    %c0_288 = arith.constant 0 : index
    %c0_289 = arith.constant 0 : index
    %493 = vector.load %arg13[%c0_288, %c0_289] : memref<144x256xf32, #tpu.memory_space<vmem>>, vector<72x256xf32>
    %cst_290 = arith.constant dense<0.000000e+00> : vector<8x256xf32>
    %494 = tpu.matmul %492, %493, %cst_290 {dimension_numbers = #tpu.dot_dimension_numbers<[1], [0], [0], [1], [0, 0, 1, 1], [], []>} : vector<8x72xf32>, vector<72x256xf32>, vector<8x256xf32> -> vector<8x256xf32>
    %c0_291 = arith.constant 0 : index
    %c0_292 = arith.constant 0 : index
    %495 = vector.load %arg9[%c0_291, %c0_292] : memref<8x1xf32, #tpu.memory_space<vmem>>, vector<8x1xf32>
    %496 = vector.broadcast %495 : vector<8x1xf32> to vector<8x256xf32>
    %497 = arith.addf %494, %496 : vector<8x256xf32>
    %498 = math.tanh %497 : vector<8x256xf32>
    %c0_293 = arith.constant 0 : index
    %c0_294 = arith.constant 0 : index
    %c0_295 = arith.constant 0 : index
    %499 = vector.load %arg12[%c0_293, %c0_294, %c0_295] : memref<2x24x256xf32, #tpu.memory_space<vmem>>, vector<1x8x256xf32>
    %500 = vector.shape_cast %499 : vector<1x8x256xf32> to vector<8x256xf32>
    %501 = vector.shape_cast %498 : vector<8x256xf32> to vector<1x8x256xf32>
    tpu.vector_store %arg12[%c0_293, %c0_294, %c0_295], %501 {strides = array<i32>} : memref<2x24x256xf32, #tpu.memory_space<vmem>>, vector<1x8x256xf32>,
    %c17_i32_296 = arith.constant 17 : i32
    %502 = tpu.dynamic_rotate %498 by %c17_i32_296 dim 1 : vector<8x256xf32>, i32 -> vector<8x256xf32>
    %cst_297 = arith.constant 0.000000e+00 : f32
    %503 = vector.shape_cast %26 : vector<1x256xi1> to vector<1x256xi1>
    %504 = vector.broadcast %503 : vector<1x256xi1> to vector<8x256xi1>
    %505 = vector.broadcast %cst_297 : f32 to vector<8x256xf32>
    %506 = arith.select %504, %502, %505 : vector<8x256xi1>, vector<8x256xf32>
    %c0_298 = arith.constant 0 : index
    %c0_299 = arith.constant 0 : index
    %507 = vector.load %arg13[%c0_298, %c0_299] : memref<144x256xf32, #tpu.memory_space<vmem>>, vector<8x256xf32>
    tpu.vector_store %arg13[%c0_298, %c0_299], %506 {strides = array<i32>} : memref<144x256xf32, #tpu.memory_space<vmem>>, vector<8x256xf32>,
    %c16_i32_300 = arith.constant 16 : i32
    %508 = tpu.dynamic_rotate %498 by %c16_i32_300 dim 1 : vector<8x256xf32>, i32 -> vector<8x256xf32>
    %cst_301 = arith.constant 0.000000e+00 : f32
    %509 = vector.shape_cast %45 : vector<1x256xi1> to vector<1x256xi1>
    %510 = vector.broadcast %509 : vector<1x256xi1> to vector<8x256xi1>
    %511 = vector.broadcast %cst_301 : f32 to vector<8x256xf32>
    %512 = arith.select %510, %508, %511 : vector<8x256xi1>, vector<8x256xf32>
    %c8_302 = arith.constant 8 : index
    %c0_303 = arith.constant 0 : index
    %513 = vector.load %arg13[%c8_302, %c0_303] : memref<144x256xf32, #tpu.memory_space<vmem>>, vector<8x256xf32>
    tpu.vector_store %arg13[%c8_302, %c0_303], %512 {strides = array<i32>} : memref<144x256xf32, #tpu.memory_space<vmem>>, vector<8x256xf32>,
    %c15_i32_304 = arith.constant 15 : i32
    %514 = tpu.dynamic_rotate %498 by %c15_i32_304 dim 1 : vector<8x256xf32>, i32 -> vector<8x256xf32>
    %cst_305 = arith.constant 0.000000e+00 : f32
    %515 = vector.shape_cast %64 : vector<1x256xi1> to vector<1x256xi1>
    %516 = vector.broadcast %515 : vector<1x256xi1> to vector<8x256xi1>
    %517 = vector.broadcast %cst_305 : f32 to vector<8x256xf32>
    %518 = arith.select %516, %514, %517 : vector<8x256xi1>, vector<8x256xf32>
    %c16_306 = arith.constant 16 : index
    %c0_307 = arith.constant 0 : index
    %519 = vector.load %arg13[%c16_306, %c0_307] : memref<144x256xf32, #tpu.memory_space<vmem>>, vector<8x256xf32>
    tpu.vector_store %arg13[%c16_306, %c0_307], %518 {strides = array<i32>} : memref<144x256xf32, #tpu.memory_space<vmem>>, vector<8x256xf32>,
    %c1_i32_308 = arith.constant 1 : i32
    %520 = tpu.dynamic_rotate %498 by %c1_i32_308 dim 1 : vector<8x256xf32>, i32 -> vector<8x256xf32>
    %cst_309 = arith.constant 0.000000e+00 : f32
    %521 = vector.shape_cast %83 : vector<1x256xi1> to vector<1x256xi1>
    %522 = vector.broadcast %521 : vector<1x256xi1> to vector<8x256xi1>
    %523 = vector.broadcast %cst_309 : f32 to vector<8x256xf32>
    %524 = arith.select %522, %520, %523 : vector<8x256xi1>, vector<8x256xf32>
    %c24_310 = arith.constant 24 : index
    %c0_311 = arith.constant 0 : index
    %525 = vector.load %arg13[%c24_310, %c0_311] : memref<144x256xf32, #tpu.memory_space<vmem>>, vector<8x256xf32>
    tpu.vector_store %arg13[%c24_310, %c0_311], %524 {strides = array<i32>} : memref<144x256xf32, #tpu.memory_space<vmem>>, vector<8x256xf32>,
    %cst_312 = arith.constant 0.000000e+00 : f32
    %526 = vector.shape_cast %102 : vector<1x256xi1> to vector<1x256xi1>
    %527 = vector.broadcast %526 : vector<1x256xi1> to vector<8x256xi1>
    %528 = vector.broadcast %cst_312 : f32 to vector<8x256xf32>
    %529 = arith.select %527, %498, %528 : vector<8x256xi1>, vector<8x256xf32>
    %c32_313 = arith.constant 32 : index
    %c0_314 = arith.constant 0 : index
    %530 = vector.load %arg13[%c32_313, %c0_314] : memref<144x256xf32, #tpu.memory_space<vmem>>, vector<8x256xf32>
    tpu.vector_store %arg13[%c32_313, %c0_314], %529 {strides = array<i32>} : memref<144x256xf32, #tpu.memory_space<vmem>>, vector<8x256xf32>,
    %c255_i32_315 = arith.constant 255 : i32
    %531 = tpu.dynamic_rotate %498 by %c255_i32_315 dim 1 : vector<8x256xf32>, i32 -> vector<8x256xf32>
    %cst_316 = arith.constant 0.000000e+00 : f32
    %532 = vector.shape_cast %121 : vector<1x256xi1> to vector<1x256xi1>
    %533 = vector.broadcast %532 : vector<1x256xi1> to vector<8x256xi1>
    %534 = vector.broadcast %cst_316 : f32 to vector<8x256xf32>
    %535 = arith.select %533, %531, %534 : vector<8x256xi1>, vector<8x256xf32>
    %c40_317 = arith.constant 40 : index
    %c0_318 = arith.constant 0 : index
    %536 = vector.load %arg13[%c40_317, %c0_318] : memref<144x256xf32, #tpu.memory_space<vmem>>, vector<8x256xf32>
    tpu.vector_store %arg13[%c40_317, %c0_318], %535 {strides = array<i32>} : memref<144x256xf32, #tpu.memory_space<vmem>>, vector<8x256xf32>,
    %c241_i32_319 = arith.constant 241 : i32
    %537 = tpu.dynamic_rotate %498 by %c241_i32_319 dim 1 : vector<8x256xf32>, i32 -> vector<8x256xf32>
    %cst_320 = arith.constant 0.000000e+00 : f32
    %538 = vector.shape_cast %140 : vector<1x256xi1> to vector<1x256xi1>
    %539 = vector.broadcast %538 : vector<1x256xi1> to vector<8x256xi1>
    %540 = vector.broadcast %cst_320 : f32 to vector<8x256xf32>
    %541 = arith.select %539, %537, %540 : vector<8x256xi1>, vector<8x256xf32>
    %c48_321 = arith.constant 48 : index
    %c0_322 = arith.constant 0 : index
    %542 = vector.load %arg13[%c48_321, %c0_322] : memref<144x256xf32, #tpu.memory_space<vmem>>, vector<8x256xf32>
    tpu.vector_store %arg13[%c48_321, %c0_322], %541 {strides = array<i32>} : memref<144x256xf32, #tpu.memory_space<vmem>>, vector<8x256xf32>,
    %c240_i32_323 = arith.constant 240 : i32
    %543 = tpu.dynamic_rotate %498 by %c240_i32_323 dim 1 : vector<8x256xf32>, i32 -> vector<8x256xf32>
    %cst_324 = arith.constant 0.000000e+00 : f32
    %544 = vector.shape_cast %159 : vector<1x256xi1> to vector<1x256xi1>
    %545 = vector.broadcast %544 : vector<1x256xi1> to vector<8x256xi1>
    %546 = vector.broadcast %cst_324 : f32 to vector<8x256xf32>
    %547 = arith.select %545, %543, %546 : vector<8x256xi1>, vector<8x256xf32>
    %c56_325 = arith.constant 56 : index
    %c0_326 = arith.constant 0 : index
    %548 = vector.load %arg13[%c56_325, %c0_326] : memref<144x256xf32, #tpu.memory_space<vmem>>, vector<8x256xf32>
    tpu.vector_store %arg13[%c56_325, %c0_326], %547 {strides = array<i32>} : memref<144x256xf32, #tpu.memory_space<vmem>>, vector<8x256xf32>,
    %c239_i32_327 = arith.constant 239 : i32
    %549 = tpu.dynamic_rotate %498 by %c239_i32_327 dim 1 : vector<8x256xf32>, i32 -> vector<8x256xf32>
    %cst_328 = arith.constant 0.000000e+00 : f32
    %550 = vector.shape_cast %178 : vector<1x256xi1> to vector<1x256xi1>
    %551 = vector.broadcast %550 : vector<1x256xi1> to vector<8x256xi1>
    %552 = vector.broadcast %cst_328 : f32 to vector<8x256xf32>
    %553 = arith.select %551, %549, %552 : vector<8x256xi1>, vector<8x256xf32>
    %c64_329 = arith.constant 64 : index
    %c0_330 = arith.constant 0 : index
    %554 = vector.load %arg13[%c64_329, %c0_330] : memref<144x256xf32, #tpu.memory_space<vmem>>, vector<8x256xf32>
    tpu.vector_store %arg13[%c64_329, %c0_330], %553 {strides = array<i32>} : memref<144x256xf32, #tpu.memory_space<vmem>>, vector<8x256xf32>,
    %c0_331 = arith.constant 0 : index
    %c0_332 = arith.constant 0 : index
    %555 = vector.load %arg10[%c0_331, %c0_332] : memref<12x72xf32, #tpu.memory_space<vmem>>, vector<12x72xf32>
    %c0_333 = arith.constant 0 : index
    %c0_334 = arith.constant 0 : index
    %556 = vector.load %arg13[%c0_333, %c0_334] : memref<144x256xf32, #tpu.memory_space<vmem>>, vector<72x256xf32>
    %cst_335 = arith.constant dense<0.000000e+00> : vector<12x256xf32>
    %557 = tpu.matmul %555, %556, %cst_335 {dimension_numbers = #tpu.dot_dimension_numbers<[1], [0], [0], [1], [0, 0, 1, 1], [], []>} : vector<12x72xf32>, vector<72x256xf32>, vector<12x256xf32> -> vector<12x256xf32>
    %c0_336 = arith.constant 0 : index
    %c0_337 = arith.constant 0 : index
    %558 = vector.load %arg11[%c0_336, %c0_337] : memref<12x1xf32, #tpu.memory_space<vmem>>, vector<12x1xf32>
    %559 = vector.broadcast %558 : vector<12x1xf32> to vector<12x256xf32>
    %560 = arith.addf %557, %559 : vector<12x256xf32>
    %561 = vector.extract_strided_slice %560 {offsets = [0, 0], sizes = [3, 256], strides = [1, 1]} : vector<12x256xf32> to vector<3x256xf32>
    %562 = math.tanh %561 : vector<3x256xf32>
    %563 = vector.extract_strided_slice %560 {offsets = [3, 0], sizes = [5, 256], strides = [1, 1]} : vector<12x256xf32> to vector<5x256xf32>
    %cst_338 = arith.constant dense<0xFF800000> : vector<256xf32>
    %564 = vector.multi_reduction <maximumf>, %563, %cst_338 [0] : vector<5x256xf32> to vector<256xf32>
    %565 = vector.shape_cast %564 : vector<256xf32> to vector<1x256xf32>
    %566 = vector.broadcast %565 : vector<1x256xf32> to vector<5x256xf32>
    %567 = arith.subf %563, %566 : vector<5x256xf32>
    %568 = math.exp %567 : vector<5x256xf32>
    %cst_339 = arith.constant dense<0.000000e+00> : vector<256xf32>
    %569 = vector.multi_reduction <add>, %568, %cst_339 [0] : vector<5x256xf32> to vector<256xf32>
    %570 = vector.shape_cast %569 : vector<256xf32> to vector<1x256xf32>
    %571 = vector.broadcast %570 : vector<1x256xf32> to vector<5x256xf32>
    %572 = arith.divf %568, %571 : vector<5x256xf32>
    %573 = vector.extract_strided_slice %572 {offsets = [4, 0], sizes = [1, 256], strides = [1, 1]} : vector<5x256xf32> to vector<1x256xf32>
    %574 = vector.extract_strided_slice %562 {offsets = [0, 0], sizes = [1, 256], strides = [1, 1]} : vector<3x256xf32> to vector<1x256xf32>
    %575 = arith.mulf %573, %574 : vector<1x256xf32>
    %576 = vector.extract_strided_slice %572 {offsets = [4, 0], sizes = [1, 256], strides = [1, 1]} : vector<5x256xf32> to vector<1x256xf32>
    %577 = vector.extract_strided_slice %562 {offsets = [1, 0], sizes = [1, 256], strides = [1, 1]} : vector<3x256xf32> to vector<1x256xf32>
    %578 = arith.mulf %576, %577 : vector<1x256xf32>
    %579 = vector.extract_strided_slice %572 {offsets = [4, 0], sizes = [1, 256], strides = [1, 1]} : vector<5x256xf32> to vector<1x256xf32>
    %580 = vector.extract_strided_slice %562 {offsets = [2, 0], sizes = [1, 256], strides = [1, 1]} : vector<3x256xf32> to vector<1x256xf32>
    %581 = arith.mulf %579, %580 : vector<1x256xf32>
    %582 = vector.extract_strided_slice %560 {offsets = [8, 0], sizes = [2, 256], strides = [1, 1]} : vector<12x256xf32> to vector<2x256xf32>
    %c0_340 = arith.constant 0 : index
    %c11_341 = arith.constant 11 : index
    %c0_342 = arith.constant 0 : index
    %583 = vector.load %arg12[%c0_340, %c11_341, %c0_342] : memref<2x24x256xf32, #tpu.memory_space<vmem>>, vector<1x2x256xf32>
    %584 = vector.shape_cast %583 : vector<1x2x256xf32> to vector<2x256xf32>
    %585 = vector.shape_cast %582 : vector<2x256xf32> to vector<1x2x256xf32>
    tpu.vector_store %arg12[%c0_340, %c11_341, %c0_342], %585 {strides = array<i32>} : memref<2x24x256xf32, #tpu.memory_space<vmem>>, vector<1x2x256xf32>,
    %586 = vector.extract_strided_slice %582 {offsets = [0, 0], sizes = [1, 256], strides = [1, 1]} : vector<2x256xf32> to vector<1x256xf32>
    %cst_343 = arith.constant 8.000000e+00 : f32
    %587 = vector.broadcast %cst_343 : f32 to vector<1x256xf32>
    %588 = arith.mulf %586, %587 : vector<1x256xf32>
    %589 = arith.addf %5, %588 : vector<1x256xf32>
    %590 = vector.extract_strided_slice %582 {offsets = [1, 0], sizes = [1, 256], strides = [1, 1]} : vector<2x256xf32> to vector<1x256xf32>
    %cst_344 = arith.constant 8.000000e+00 : f32
    %591 = vector.broadcast %cst_344 : f32 to vector<1x256xf32>
    %592 = arith.mulf %590, %591 : vector<1x256xf32>
    %593 = arith.addf %6, %592 : vector<1x256xf32>
    %594 = math.floor %589 : vector<1x256xf32>
    %595 = math.floor %593 : vector<1x256xf32>
    %596 = arith.subf %589, %594 : vector<1x256xf32>
    %597 = arith.subf %593, %595 : vector<1x256xf32>
    %598 = arith.fptosi %594 : vector<1x256xf32> to vector<1x256xi32>
    %599 = arith.fptosi %595 : vector<1x256xf32> to vector<1x256xi32>
    %600 = vector.broadcast %598 : vector<1x256xi32> to vector<16x256xi32>
    %601 = arith.cmpi eq, %7, %600 : vector<16x256xi32>
    %cst_345 = arith.constant 1.000000e+00 : f32
    %602 = vector.broadcast %cst_345 : f32 to vector<1x256xf32>
    %603 = arith.subf %602, %596 : vector<1x256xf32>
    %cst_346 = arith.constant 0.000000e+00 : f32
    %604 = vector.shape_cast %603 : vector<1x256xf32> to vector<1x256xf32>
    %605 = vector.broadcast %604 : vector<1x256xf32> to vector<16x256xf32>
    %606 = vector.broadcast %cst_346 : f32 to vector<16x256xf32>
    %607 = arith.select %601, %605, %606 : vector<16x256xi1>, vector<16x256xf32>
    %c1_i32_347 = arith.constant 1 : i32
    %608 = vector.broadcast %c1_i32_347 : i32 to vector<1x256xi32>
    %609 = arith.addi %598, %608 : vector<1x256xi32>
    %610 = vector.broadcast %609 : vector<1x256xi32> to vector<16x256xi32>
    %611 = arith.cmpi eq, %7, %610 : vector<16x256xi32>
    %cst_348 = arith.constant 0.000000e+00 : f32
    %612 = vector.shape_cast %596 : vector<1x256xf32> to vector<1x256xf32>
    %613 = vector.broadcast %612 : vector<1x256xf32> to vector<16x256xf32>
    %614 = vector.broadcast %cst_348 : f32 to vector<16x256xf32>
    %615 = arith.select %611, %613, %614 : vector<16x256xi1>, vector<16x256xf32>
    %616 = arith.addf %607, %615 : vector<16x256xf32>
    %617 = vector.broadcast %599 : vector<1x256xi32> to vector<16x256xi32>
    %618 = arith.cmpi eq, %7, %617 : vector<16x256xi32>
    %cst_349 = arith.constant 1.000000e+00 : f32
    %619 = vector.broadcast %cst_349 : f32 to vector<1x256xf32>
    %620 = arith.subf %619, %597 : vector<1x256xf32>
    %cst_350 = arith.constant 0.000000e+00 : f32
    %621 = vector.shape_cast %620 : vector<1x256xf32> to vector<1x256xf32>
    %622 = vector.broadcast %621 : vector<1x256xf32> to vector<16x256xf32>
    %623 = vector.broadcast %cst_350 : f32 to vector<16x256xf32>
    %624 = arith.select %618, %622, %623 : vector<16x256xi1>, vector<16x256xf32>
    %c1_i32_351 = arith.constant 1 : i32
    %625 = vector.broadcast %c1_i32_351 : i32 to vector<1x256xi32>
    %626 = arith.addi %599, %625 : vector<1x256xi32>
    %627 = vector.broadcast %626 : vector<1x256xi32> to vector<16x256xi32>
    %628 = arith.cmpi eq, %7, %627 : vector<16x256xi32>
    %cst_352 = arith.constant 0.000000e+00 : f32
    %629 = vector.shape_cast %597 : vector<1x256xf32> to vector<1x256xf32>
    %630 = vector.broadcast %629 : vector<1x256xf32> to vector<16x256xf32>
    %631 = vector.broadcast %cst_352 : f32 to vector<16x256xf32>
    %632 = arith.select %628, %630, %631 : vector<16x256xi1>, vector<16x256xf32>
    %633 = arith.addf %624, %632 : vector<16x256xf32>
    %c0_353 = arith.constant 0 : index
    %c0_354 = arith.constant 0 : index
    %c0_355 = arith.constant 0 : index
    %c0_356 = arith.constant 0 : index
    %634 = vector.load %arg1[%c0_353, %c0_354, %c0_355, %c0_356] : memref<2x2x3x256xf32, #tpu.memory_space<vmem>>, vector<1x1x3x256xf32>
    %635 = vector.shape_cast %634 : vector<1x1x3x256xf32> to vector<3x256xf32>
    %c0_357 = arith.constant 0 : index
    %c0_358 = arith.constant 0 : index
    %c0_359 = arith.constant 0 : index
    %c0_360 = arith.constant 0 : index
    %636 = vector.load %arg2[%c0_357, %c0_358, %c0_359, %c0_360] : memref<2x2x48x16xf32, #tpu.memory_space<vmem>>, vector<1x1x16x16xf32>
    %637 = vector.shape_cast %636 : vector<1x1x16x16xf32> to vector<16x16xf32>
    %cst_361 = arith.constant dense<0.000000e+00> : vector<16x256xf32>
    %638 = tpu.matmul %637, %616, %cst_361 {dimension_numbers = #tpu.dot_dimension_numbers<[1], [0], [0], [1], [0, 0, 1, 1], [], []>} : vector<16x16xf32>, vector<16x256xf32>, vector<16x256xf32> -> vector<16x256xf32>
    %639 = arith.mulf %633, %638 : vector<16x256xf32>
    %cst_362 = arith.constant dense<0.000000e+00> : vector<256xf32>
    %640 = vector.multi_reduction <add>, %639, %cst_362 [0] : vector<16x256xf32> to vector<256xf32>
    %641 = vector.shape_cast %640 : vector<256xf32> to vector<1x256xf32>
    %642 = vector.shape_cast %641 : vector<1x256xf32> to vector<256xf32>
    %c0_363 = arith.constant 0 : index
    %c15_364 = arith.constant 15 : index
    %c0_365 = arith.constant 0 : index
    %643 = vector.load %arg12[%c0_363, %c15_364, %c0_365] : memref<2x24x256xf32, #tpu.memory_space<vmem>>, vector<1x1x256xf32>
    %644 = vector.shape_cast %643 : vector<1x1x256xf32> to vector<256xf32>
    %645 = vector.shape_cast %642 : vector<256xf32> to vector<1x1x256xf32>
    tpu.vector_store %arg12[%c0_363, %c15_364, %c0_365], %645 {strides = array<i32>} : memref<2x24x256xf32, #tpu.memory_space<vmem>>, vector<1x1x256xf32>,
    %646 = vector.extract_strided_slice %572 {offsets = [0, 0], sizes = [1, 256], strides = [1, 1]} : vector<5x256xf32> to vector<1x256xf32>
    %647 = vector.extract_strided_slice %635 {offsets = [0, 0], sizes = [1, 256], strides = [1, 1]} : vector<3x256xf32> to vector<1x256xf32>
    %648 = arith.mulf %646, %647 : vector<1x256xf32>
    %649 = arith.addf %575, %648 : vector<1x256xf32>
    %650 = vector.extract_strided_slice %572 {offsets = [2, 0], sizes = [1, 256], strides = [1, 1]} : vector<5x256xf32> to vector<1x256xf32>
    %651 = arith.mulf %650, %641 : vector<1x256xf32>
    %652 = arith.addf %649, %651 : vector<1x256xf32>
    %c0_366 = arith.constant 0 : index
    %c0_367 = arith.constant 0 : index
    %c16_368 = arith.constant 16 : index
    %c0_369 = arith.constant 0 : index
    %653 = vector.load %arg2[%c0_366, %c0_367, %c16_368, %c0_369] : memref<2x2x48x16xf32, #tpu.memory_space<vmem>>, vector<1x1x16x16xf32>
    %654 = vector.shape_cast %653 : vector<1x1x16x16xf32> to vector<16x16xf32>
    %cst_370 = arith.constant dense<0.000000e+00> : vector<16x256xf32>
    %655 = tpu.matmul %654, %616, %cst_370 {dimension_numbers = #tpu.dot_dimension_numbers<[1], [0], [0], [1], [0, 0, 1, 1], [], []>} : vector<16x16xf32>, vector<16x256xf32>, vector<16x256xf32> -> vector<16x256xf32>
    %656 = arith.mulf %633, %655 : vector<16x256xf32>
    %cst_371 = arith.constant dense<0.000000e+00> : vector<256xf32>
    %657 = vector.multi_reduction <add>, %656, %cst_371 [0] : vector<16x256xf32> to vector<256xf32>
    %658 = vector.shape_cast %657 : vector<256xf32> to vector<1x256xf32>
    %659 = vector.shape_cast %658 : vector<1x256xf32> to vector<256xf32>
    %c0_372 = arith.constant 0 : index
    %c16_373 = arith.constant 16 : index
    %c0_374 = arith.constant 0 : index
    %660 = vector.load %arg12[%c0_372, %c16_373, %c0_374] : memref<2x24x256xf32, #tpu.memory_space<vmem>>, vector<1x1x256xf32>
    %661 = vector.shape_cast %660 : vector<1x1x256xf32> to vector<256xf32>
    %662 = vector.shape_cast %659 : vector<256xf32> to vector<1x1x256xf32>
    tpu.vector_store %arg12[%c0_372, %c16_373, %c0_374], %662 {strides = array<i32>} : memref<2x24x256xf32, #tpu.memory_space<vmem>>, vector<1x1x256xf32>,
    %663 = vector.extract_strided_slice %572 {offsets = [0, 0], sizes = [1, 256], strides = [1, 1]} : vector<5x256xf32> to vector<1x256xf32>
    %664 = vector.extract_strided_slice %635 {offsets = [1, 0], sizes = [1, 256], strides = [1, 1]} : vector<3x256xf32> to vector<1x256xf32>
    %665 = arith.mulf %663, %664 : vector<1x256xf32>
    %666 = arith.addf %578, %665 : vector<1x256xf32>
    %667 = vector.extract_strided_slice %572 {offsets = [2, 0], sizes = [1, 256], strides = [1, 1]} : vector<5x256xf32> to vector<1x256xf32>
    %668 = arith.mulf %667, %658 : vector<1x256xf32>
    %669 = arith.addf %666, %668 : vector<1x256xf32>
    %c0_375 = arith.constant 0 : index
    %c0_376 = arith.constant 0 : index
    %c32_377 = arith.constant 32 : index
    %c0_378 = arith.constant 0 : index
    %670 = vector.load %arg2[%c0_375, %c0_376, %c32_377, %c0_378] : memref<2x2x48x16xf32, #tpu.memory_space<vmem>>, vector<1x1x16x16xf32>
    %671 = vector.shape_cast %670 : vector<1x1x16x16xf32> to vector<16x16xf32>
    %cst_379 = arith.constant dense<0.000000e+00> : vector<16x256xf32>
    %672 = tpu.matmul %671, %616, %cst_379 {dimension_numbers = #tpu.dot_dimension_numbers<[1], [0], [0], [1], [0, 0, 1, 1], [], []>} : vector<16x16xf32>, vector<16x256xf32>, vector<16x256xf32> -> vector<16x256xf32>
    %673 = arith.mulf %633, %672 : vector<16x256xf32>
    %cst_380 = arith.constant dense<0.000000e+00> : vector<256xf32>
    %674 = vector.multi_reduction <add>, %673, %cst_380 [0] : vector<16x256xf32> to vector<256xf32>
    %675 = vector.shape_cast %674 : vector<256xf32> to vector<1x256xf32>
    %676 = vector.shape_cast %675 : vector<1x256xf32> to vector<256xf32>
    %c0_381 = arith.constant 0 : index
    %c17_382 = arith.constant 17 : index
    %c0_383 = arith.constant 0 : index
    %677 = vector.load %arg12[%c0_381, %c17_382, %c0_383] : memref<2x24x256xf32, #tpu.memory_space<vmem>>, vector<1x1x256xf32>
    %678 = vector.shape_cast %677 : vector<1x1x256xf32> to vector<256xf32>
    %679 = vector.shape_cast %676 : vector<256xf32> to vector<1x1x256xf32>
    tpu.vector_store %arg12[%c0_381, %c17_382, %c0_383], %679 {strides = array<i32>} : memref<2x24x256xf32, #tpu.memory_space<vmem>>, vector<1x1x256xf32>,
    %680 = vector.extract_strided_slice %572 {offsets = [0, 0], sizes = [1, 256], strides = [1, 1]} : vector<5x256xf32> to vector<1x256xf32>
    %681 = vector.extract_strided_slice %635 {offsets = [2, 0], sizes = [1, 256], strides = [1, 1]} : vector<3x256xf32> to vector<1x256xf32>
    %682 = arith.mulf %680, %681 : vector<1x256xf32>
    %683 = arith.addf %581, %682 : vector<1x256xf32>
    %684 = vector.extract_strided_slice %572 {offsets = [2, 0], sizes = [1, 256], strides = [1, 1]} : vector<5x256xf32> to vector<1x256xf32>
    %685 = arith.mulf %684, %675 : vector<1x256xf32>
    %686 = arith.addf %683, %685 : vector<1x256xf32>
    %687 = vector.extract_strided_slice %560 {offsets = [10, 0], sizes = [2, 256], strides = [1, 1]} : vector<12x256xf32> to vector<2x256xf32>
    %c0_384 = arith.constant 0 : index
    %c13_385 = arith.constant 13 : index
    %c0_386 = arith.constant 0 : index
    %688 = vector.load %arg12[%c0_384, %c13_385, %c0_386] : memref<2x24x256xf32, #tpu.memory_space<vmem>>, vector<1x2x256xf32>
    %689 = vector.shape_cast %688 : vector<1x2x256xf32> to vector<2x256xf32>
    %690 = vector.shape_cast %687 : vector<2x256xf32> to vector<1x2x256xf32>
    tpu.vector_store %arg12[%c0_384, %c13_385, %c0_386], %690 {strides = array<i32>} : memref<2x24x256xf32, #tpu.memory_space<vmem>>, vector<1x2x256xf32>,
    %691 = vector.extract_strided_slice %687 {offsets = [0, 0], sizes = [1, 256], strides = [1, 1]} : vector<2x256xf32> to vector<1x256xf32>
    %cst_387 = arith.constant 8.000000e+00 : f32
    %692 = vector.broadcast %cst_387 : f32 to vector<1x256xf32>
    %693 = arith.mulf %691, %692 : vector<1x256xf32>
    %694 = arith.addf %5, %693 : vector<1x256xf32>
    %695 = vector.extract_strided_slice %687 {offsets = [1, 0], sizes = [1, 256], strides = [1, 1]} : vector<2x256xf32> to vector<1x256xf32>
    %cst_388 = arith.constant 8.000000e+00 : f32
    %696 = vector.broadcast %cst_388 : f32 to vector<1x256xf32>
    %697 = arith.mulf %695, %696 : vector<1x256xf32>
    %698 = arith.addf %6, %697 : vector<1x256xf32>
    %699 = math.floor %694 : vector<1x256xf32>
    %700 = math.floor %698 : vector<1x256xf32>
    %701 = arith.subf %694, %699 : vector<1x256xf32>
    %702 = arith.subf %698, %700 : vector<1x256xf32>
    %703 = arith.fptosi %699 : vector<1x256xf32> to vector<1x256xi32>
    %704 = arith.fptosi %700 : vector<1x256xf32> to vector<1x256xi32>
    %705 = vector.broadcast %703 : vector<1x256xi32> to vector<16x256xi32>
    %706 = arith.cmpi eq, %7, %705 : vector<16x256xi32>
    %cst_389 = arith.constant 1.000000e+00 : f32
    %707 = vector.broadcast %cst_389 : f32 to vector<1x256xf32>
    %708 = arith.subf %707, %701 : vector<1x256xf32>
    %cst_390 = arith.constant 0.000000e+00 : f32
    %709 = vector.shape_cast %708 : vector<1x256xf32> to vector<1x256xf32>
    %710 = vector.broadcast %709 : vector<1x256xf32> to vector<16x256xf32>
    %711 = vector.broadcast %cst_390 : f32 to vector<16x256xf32>
    %712 = arith.select %706, %710, %711 : vector<16x256xi1>, vector<16x256xf32>
    %c1_i32_391 = arith.constant 1 : i32
    %713 = vector.broadcast %c1_i32_391 : i32 to vector<1x256xi32>
    %714 = arith.addi %703, %713 : vector<1x256xi32>
    %715 = vector.broadcast %714 : vector<1x256xi32> to vector<16x256xi32>
    %716 = arith.cmpi eq, %7, %715 : vector<16x256xi32>
    %cst_392 = arith.constant 0.000000e+00 : f32
    %717 = vector.shape_cast %701 : vector<1x256xf32> to vector<1x256xf32>
    %718 = vector.broadcast %717 : vector<1x256xf32> to vector<16x256xf32>
    %719 = vector.broadcast %cst_392 : f32 to vector<16x256xf32>
    %720 = arith.select %716, %718, %719 : vector<16x256xi1>, vector<16x256xf32>
    %721 = arith.addf %712, %720 : vector<16x256xf32>
    %722 = vector.broadcast %704 : vector<1x256xi32> to vector<16x256xi32>
    %723 = arith.cmpi eq, %7, %722 : vector<16x256xi32>
    %cst_393 = arith.constant 1.000000e+00 : f32
    %724 = vector.broadcast %cst_393 : f32 to vector<1x256xf32>
    %725 = arith.subf %724, %702 : vector<1x256xf32>
    %cst_394 = arith.constant 0.000000e+00 : f32
    %726 = vector.shape_cast %725 : vector<1x256xf32> to vector<1x256xf32>
    %727 = vector.broadcast %726 : vector<1x256xf32> to vector<16x256xf32>
    %728 = vector.broadcast %cst_394 : f32 to vector<16x256xf32>
    %729 = arith.select %723, %727, %728 : vector<16x256xi1>, vector<16x256xf32>
    %c1_i32_395 = arith.constant 1 : i32
    %730 = vector.broadcast %c1_i32_395 : i32 to vector<1x256xi32>
    %731 = arith.addi %704, %730 : vector<1x256xi32>
    %732 = vector.broadcast %731 : vector<1x256xi32> to vector<16x256xi32>
    %733 = arith.cmpi eq, %7, %732 : vector<16x256xi32>
    %cst_396 = arith.constant 0.000000e+00 : f32
    %734 = vector.shape_cast %702 : vector<1x256xf32> to vector<1x256xf32>
    %735 = vector.broadcast %734 : vector<1x256xf32> to vector<16x256xf32>
    %736 = vector.broadcast %cst_396 : f32 to vector<16x256xf32>
    %737 = arith.select %733, %735, %736 : vector<16x256xi1>, vector<16x256xf32>
    %738 = arith.addf %729, %737 : vector<16x256xf32>
    %c0_397 = arith.constant 0 : index
    %c1_398 = arith.constant 1 : index
    %c0_399 = arith.constant 0 : index
    %c0_400 = arith.constant 0 : index
    %739 = vector.load %arg1[%c0_397, %c1_398, %c0_399, %c0_400] : memref<2x2x3x256xf32, #tpu.memory_space<vmem>>, vector<1x1x3x256xf32>
    %740 = vector.shape_cast %739 : vector<1x1x3x256xf32> to vector<3x256xf32>
    %c0_401 = arith.constant 0 : index
    %c1_402 = arith.constant 1 : index
    %c0_403 = arith.constant 0 : index
    %c0_404 = arith.constant 0 : index
    %741 = vector.load %arg2[%c0_401, %c1_402, %c0_403, %c0_404] : memref<2x2x48x16xf32, #tpu.memory_space<vmem>>, vector<1x1x16x16xf32>
    %742 = vector.shape_cast %741 : vector<1x1x16x16xf32> to vector<16x16xf32>
    %cst_405 = arith.constant dense<0.000000e+00> : vector<16x256xf32>
    %743 = tpu.matmul %742, %721, %cst_405 {dimension_numbers = #tpu.dot_dimension_numbers<[1], [0], [0], [1], [0, 0, 1, 1], [], []>} : vector<16x16xf32>, vector<16x256xf32>, vector<16x256xf32> -> vector<16x256xf32>
    %744 = arith.mulf %738, %743 : vector<16x256xf32>
    %cst_406 = arith.constant dense<0.000000e+00> : vector<256xf32>
    %745 = vector.multi_reduction <add>, %744, %cst_406 [0] : vector<16x256xf32> to vector<256xf32>
    %746 = vector.shape_cast %745 : vector<256xf32> to vector<1x256xf32>
    %747 = vector.shape_cast %746 : vector<1x256xf32> to vector<256xf32>
    %c0_407 = arith.constant 0 : index
    %c18_408 = arith.constant 18 : index
    %c0_409 = arith.constant 0 : index
    %748 = vector.load %arg12[%c0_407, %c18_408, %c0_409] : memref<2x24x256xf32, #tpu.memory_space<vmem>>, vector<1x1x256xf32>
    %749 = vector.shape_cast %748 : vector<1x1x256xf32> to vector<256xf32>
    %750 = vector.shape_cast %747 : vector<256xf32> to vector<1x1x256xf32>
    tpu.vector_store %arg12[%c0_407, %c18_408, %c0_409], %750 {strides = array<i32>} : memref<2x24x256xf32, #tpu.memory_space<vmem>>, vector<1x1x256xf32>,
    %751 = vector.extract_strided_slice %572 {offsets = [1, 0], sizes = [1, 256], strides = [1, 1]} : vector<5x256xf32> to vector<1x256xf32>
    %752 = vector.extract_strided_slice %740 {offsets = [0, 0], sizes = [1, 256], strides = [1, 1]} : vector<3x256xf32> to vector<1x256xf32>
    %753 = arith.mulf %751, %752 : vector<1x256xf32>
    %754 = arith.addf %652, %753 : vector<1x256xf32>
    %755 = vector.extract_strided_slice %572 {offsets = [3, 0], sizes = [1, 256], strides = [1, 1]} : vector<5x256xf32> to vector<1x256xf32>
    %756 = arith.mulf %755, %746 : vector<1x256xf32>
    %757 = arith.addf %754, %756 : vector<1x256xf32>
    %c0_410 = arith.constant 0 : index
    %c1_411 = arith.constant 1 : index
    %c16_412 = arith.constant 16 : index
    %c0_413 = arith.constant 0 : index
    %758 = vector.load %arg2[%c0_410, %c1_411, %c16_412, %c0_413] : memref<2x2x48x16xf32, #tpu.memory_space<vmem>>, vector<1x1x16x16xf32>
    %759 = vector.shape_cast %758 : vector<1x1x16x16xf32> to vector<16x16xf32>
    %cst_414 = arith.constant dense<0.000000e+00> : vector<16x256xf32>
    %760 = tpu.matmul %759, %721, %cst_414 {dimension_numbers = #tpu.dot_dimension_numbers<[1], [0], [0], [1], [0, 0, 1, 1], [], []>} : vector<16x16xf32>, vector<16x256xf32>, vector<16x256xf32> -> vector<16x256xf32>
    %761 = arith.mulf %738, %760 : vector<16x256xf32>
    %cst_415 = arith.constant dense<0.000000e+00> : vector<256xf32>
    %762 = vector.multi_reduction <add>, %761, %cst_415 [0] : vector<16x256xf32> to vector<256xf32>
    %763 = vector.shape_cast %762 : vector<256xf32> to vector<1x256xf32>
    %764 = vector.shape_cast %763 : vector<1x256xf32> to vector<256xf32>
    %c0_416 = arith.constant 0 : index
    %c19_417 = arith.constant 19 : index
    %c0_418 = arith.constant 0 : index
    %765 = vector.load %arg12[%c0_416, %c19_417, %c0_418] : memref<2x24x256xf32, #tpu.memory_space<vmem>>, vector<1x1x256xf32>
    %766 = vector.shape_cast %765 : vector<1x1x256xf32> to vector<256xf32>
    %767 = vector.shape_cast %764 : vector<256xf32> to vector<1x1x256xf32>
    tpu.vector_store %arg12[%c0_416, %c19_417, %c0_418], %767 {strides = array<i32>} : memref<2x24x256xf32, #tpu.memory_space<vmem>>, vector<1x1x256xf32>,
    %768 = vector.extract_strided_slice %572 {offsets = [1, 0], sizes = [1, 256], strides = [1, 1]} : vector<5x256xf32> to vector<1x256xf32>
    %769 = vector.extract_strided_slice %740 {offsets = [1, 0], sizes = [1, 256], strides = [1, 1]} : vector<3x256xf32> to vector<1x256xf32>
    %770 = arith.mulf %768, %769 : vector<1x256xf32>
    %771 = arith.addf %669, %770 : vector<1x256xf32>
    %772 = vector.extract_strided_slice %572 {offsets = [3, 0], sizes = [1, 256], strides = [1, 1]} : vector<5x256xf32> to vector<1x256xf32>
    %773 = arith.mulf %772, %763 : vector<1x256xf32>
    %774 = arith.addf %771, %773 : vector<1x256xf32>
    %c0_419 = arith.constant 0 : index
    %c1_420 = arith.constant 1 : index
    %c32_421 = arith.constant 32 : index
    %c0_422 = arith.constant 0 : index
    %775 = vector.load %arg2[%c0_419, %c1_420, %c32_421, %c0_422] : memref<2x2x48x16xf32, #tpu.memory_space<vmem>>, vector<1x1x16x16xf32>
    %776 = vector.shape_cast %775 : vector<1x1x16x16xf32> to vector<16x16xf32>
    %cst_423 = arith.constant dense<0.000000e+00> : vector<16x256xf32>
    %777 = tpu.matmul %776, %721, %cst_423 {dimension_numbers = #tpu.dot_dimension_numbers<[1], [0], [0], [1], [0, 0, 1, 1], [], []>} : vector<16x16xf32>, vector<16x256xf32>, vector<16x256xf32> -> vector<16x256xf32>
    %778 = arith.mulf %738, %777 : vector<16x256xf32>
    %cst_424 = arith.constant dense<0.000000e+00> : vector<256xf32>
    %779 = vector.multi_reduction <add>, %778, %cst_424 [0] : vector<16x256xf32> to vector<256xf32>
    %780 = vector.shape_cast %779 : vector<256xf32> to vector<1x256xf32>
    %781 = vector.shape_cast %780 : vector<1x256xf32> to vector<256xf32>
    %c0_425 = arith.constant 0 : index
    %c20_426 = arith.constant 20 : index
    %c0_427 = arith.constant 0 : index
    %782 = vector.load %arg12[%c0_425, %c20_426, %c0_427] : memref<2x24x256xf32, #tpu.memory_space<vmem>>, vector<1x1x256xf32>
    %783 = vector.shape_cast %782 : vector<1x1x256xf32> to vector<256xf32>
    %784 = vector.shape_cast %781 : vector<256xf32> to vector<1x1x256xf32>
    tpu.vector_store %arg12[%c0_425, %c20_426, %c0_427], %784 {strides = array<i32>} : memref<2x24x256xf32, #tpu.memory_space<vmem>>, vector<1x1x256xf32>,
    %785 = vector.extract_strided_slice %572 {offsets = [1, 0], sizes = [1, 256], strides = [1, 1]} : vector<5x256xf32> to vector<1x256xf32>
    %786 = vector.extract_strided_slice %740 {offsets = [2, 0], sizes = [1, 256], strides = [1, 1]} : vector<3x256xf32> to vector<1x256xf32>
    %787 = arith.mulf %785, %786 : vector<1x256xf32>
    %788 = arith.addf %686, %787 : vector<1x256xf32>
    %789 = vector.extract_strided_slice %572 {offsets = [3, 0], sizes = [1, 256], strides = [1, 1]} : vector<5x256xf32> to vector<1x256xf32>
    %790 = arith.mulf %789, %780 : vector<1x256xf32>
    %791 = arith.addf %788, %790 : vector<1x256xf32>
    %792 = vector.shape_cast %757 : vector<1x256xf32> to vector<256xf32>
    %c0_428 = arith.constant 0 : index
    %c8_429 = arith.constant 8 : index
    %c0_430 = arith.constant 0 : index
    %793 = vector.load %arg12[%c0_428, %c8_429, %c0_430] : memref<2x24x256xf32, #tpu.memory_space<vmem>>, vector<1x1x256xf32>
    %794 = vector.shape_cast %793 : vector<1x1x256xf32> to vector<256xf32>
    %795 = vector.shape_cast %792 : vector<256xf32> to vector<1x1x256xf32>
    tpu.vector_store %arg12[%c0_428, %c8_429, %c0_430], %795 {strides = array<i32>} : memref<2x24x256xf32, #tpu.memory_space<vmem>>, vector<1x1x256xf32>,
    %796 = vector.shape_cast %774 : vector<1x256xf32> to vector<256xf32>
    %c0_431 = arith.constant 0 : index
    %c9_432 = arith.constant 9 : index
    %c0_433 = arith.constant 0 : index
    %797 = vector.load %arg12[%c0_431, %c9_432, %c0_433] : memref<2x24x256xf32, #tpu.memory_space<vmem>>, vector<1x1x256xf32>
    %798 = vector.shape_cast %797 : vector<1x1x256xf32> to vector<256xf32>
    %799 = vector.shape_cast %796 : vector<256xf32> to vector<1x1x256xf32>
    tpu.vector_store %arg12[%c0_431, %c9_432, %c0_433], %799 {strides = array<i32>} : memref<2x24x256xf32, #tpu.memory_space<vmem>>, vector<1x1x256xf32>,
    %800 = vector.shape_cast %791 : vector<1x256xf32> to vector<256xf32>
    %c0_434 = arith.constant 0 : index
    %c10_435 = arith.constant 10 : index
    %c0_436 = arith.constant 0 : index
    %801 = vector.load %arg12[%c0_434, %c10_435, %c0_436] : memref<2x24x256xf32, #tpu.memory_space<vmem>>, vector<1x1x256xf32>
    %802 = vector.shape_cast %801 : vector<1x1x256xf32> to vector<256xf32>
    %803 = vector.shape_cast %800 : vector<256xf32> to vector<1x1x256xf32>
    tpu.vector_store %arg12[%c0_434, %c10_435, %c0_436], %803 {strides = array<i32>} : memref<2x24x256xf32, #tpu.memory_space<vmem>>, vector<1x1x256xf32>,
    %c0_437 = arith.constant 0 : index
    %c0_438 = arith.constant 0 : index
    %804 = vector.load %arg4[%c0_437, %c0_438] : memref<16x64xf32, #tpu.memory_space<vmem>>, vector<16x64xf32>
    %cst_439 = arith.constant 0.000000e+00 : f32
    %805 = vector.broadcast %cst_439 : f32 to vector<16x64xf32>
    %cst_440 = arith.constant 0.000000e+00 : f32
    %806 = vector.broadcast %cst_440 : f32 to vector<16x64xf32>
    %cst_441 = arith.constant 0.000000e+00 : f32
    %807 = vector.broadcast %cst_441 : f32 to vector<16x64xf32>
    %c1_442 = arith.constant 1 : index
    %c0_443 = arith.constant 0 : index
    %808 = memref.load %arg0[%c1_442, %c0_443] : memref<2x32xf32, #tpu.memory_space<smem>>
    %c0_444 = arith.constant 0 : index
    %c0_445 = arith.constant 0 : index
    %c0_446 = arith.constant 0 : index
    %809 = vector.load %arg3[%c0_444, %c0_445, %c0_446] : memref<32x16x64xf32, #tpu.memory_space<vmem>>, vector<1x16x64xf32>
    %810 = vector.shape_cast %809 : vector<1x16x64xf32> to vector<16x64xf32>
    %811 = vector.broadcast %808 : f32 to vector<16x64xf32>
    %812 = arith.mulf %811, %810 : vector<16x64xf32>
    %813 = arith.addf %804, %812 : vector<16x64xf32>
    %c1_447 = arith.constant 1 : index
    %c1_448 = arith.constant 1 : index
    %814 = memref.load %arg0[%c1_447, %c1_448] : memref<2x32xf32, #tpu.memory_space<smem>>
    %c1_449 = arith.constant 1 : index
    %c0_450 = arith.constant 0 : index
    %c0_451 = arith.constant 0 : index
    %815 = vector.load %arg3[%c1_449, %c0_450, %c0_451] : memref<32x16x64xf32, #tpu.memory_space<vmem>>, vector<1x16x64xf32>
    %816 = vector.shape_cast %815 : vector<1x16x64xf32> to vector<16x64xf32>
    %817 = vector.broadcast %814 : f32 to vector<16x64xf32>
    %818 = arith.mulf %817, %816 : vector<16x64xf32>
    %819 = arith.addf %805, %818 : vector<16x64xf32>
    %c1_452 = arith.constant 1 : index
    %c2_453 = arith.constant 2 : index
    %820 = memref.load %arg0[%c1_452, %c2_453] : memref<2x32xf32, #tpu.memory_space<smem>>
    %c2_454 = arith.constant 2 : index
    %c0_455 = arith.constant 0 : index
    %c0_456 = arith.constant 0 : index
    %821 = vector.load %arg3[%c2_454, %c0_455, %c0_456] : memref<32x16x64xf32, #tpu.memory_space<vmem>>, vector<1x16x64xf32>
    %822 = vector.shape_cast %821 : vector<1x16x64xf32> to vector<16x64xf32>
    %823 = vector.broadcast %820 : f32 to vector<16x64xf32>
    %824 = arith.mulf %823, %822 : vector<16x64xf32>
    %825 = arith.addf %806, %824 : vector<16x64xf32>
    %c1_457 = arith.constant 1 : index
    %c3_458 = arith.constant 3 : index
    %826 = memref.load %arg0[%c1_457, %c3_458] : memref<2x32xf32, #tpu.memory_space<smem>>
    %c3_459 = arith.constant 3 : index
    %c0_460 = arith.constant 0 : index
    %c0_461 = arith.constant 0 : index
    %827 = vector.load %arg3[%c3_459, %c0_460, %c0_461] : memref<32x16x64xf32, #tpu.memory_space<vmem>>, vector<1x16x64xf32>
    %828 = vector.shape_cast %827 : vector<1x16x64xf32> to vector<16x64xf32>
    %829 = vector.broadcast %826 : f32 to vector<16x64xf32>
    %830 = arith.mulf %829, %828 : vector<16x64xf32>
    %831 = arith.addf %807, %830 : vector<16x64xf32>
    %c1_462 = arith.constant 1 : index
    %c4_463 = arith.constant 4 : index
    %832 = memref.load %arg0[%c1_462, %c4_463] : memref<2x32xf32, #tpu.memory_space<smem>>
    %c4_464 = arith.constant 4 : index
    %c0_465 = arith.constant 0 : index
    %c0_466 = arith.constant 0 : index
    %833 = vector.load %arg3[%c4_464, %c0_465, %c0_466] : memref<32x16x64xf32, #tpu.memory_space<vmem>>, vector<1x16x64xf32>
    %834 = vector.shape_cast %833 : vector<1x16x64xf32> to vector<16x64xf32>
    %835 = vector.broadcast %832 : f32 to vector<16x64xf32>
    %836 = arith.mulf %835, %834 : vector<16x64xf32>
    %837 = arith.addf %813, %836 : vector<16x64xf32>
    %c1_467 = arith.constant 1 : index
    %c5_468 = arith.constant 5 : index
    %838 = memref.load %arg0[%c1_467, %c5_468] : memref<2x32xf32, #tpu.memory_space<smem>>
    %c5_469 = arith.constant 5 : index
    %c0_470 = arith.constant 0 : index
    %c0_471 = arith.constant 0 : index
    %839 = vector.load %arg3[%c5_469, %c0_470, %c0_471] : memref<32x16x64xf32, #tpu.memory_space<vmem>>, vector<1x16x64xf32>
    %840 = vector.shape_cast %839 : vector<1x16x64xf32> to vector<16x64xf32>
    %841 = vector.broadcast %838 : f32 to vector<16x64xf32>
    %842 = arith.mulf %841, %840 : vector<16x64xf32>
    %843 = arith.addf %819, %842 : vector<16x64xf32>
    %c1_472 = arith.constant 1 : index
    %c6_473 = arith.constant 6 : index
    %844 = memref.load %arg0[%c1_472, %c6_473] : memref<2x32xf32, #tpu.memory_space<smem>>
    %c6_474 = arith.constant 6 : index
    %c0_475 = arith.constant 0 : index
    %c0_476 = arith.constant 0 : index
    %845 = vector.load %arg3[%c6_474, %c0_475, %c0_476] : memref<32x16x64xf32, #tpu.memory_space<vmem>>, vector<1x16x64xf32>
    %846 = vector.shape_cast %845 : vector<1x16x64xf32> to vector<16x64xf32>
    %847 = vector.broadcast %844 : f32 to vector<16x64xf32>
    %848 = arith.mulf %847, %846 : vector<16x64xf32>
    %849 = arith.addf %825, %848 : vector<16x64xf32>
    %c1_477 = arith.constant 1 : index
    %c7_478 = arith.constant 7 : index
    %850 = memref.load %arg0[%c1_477, %c7_478] : memref<2x32xf32, #tpu.memory_space<smem>>
    %c7_479 = arith.constant 7 : index
    %c0_480 = arith.constant 0 : index
    %c0_481 = arith.constant 0 : index
    %851 = vector.load %arg3[%c7_479, %c0_480, %c0_481] : memref<32x16x64xf32, #tpu.memory_space<vmem>>, vector<1x16x64xf32>
    %852 = vector.shape_cast %851 : vector<1x16x64xf32> to vector<16x64xf32>
    %853 = vector.broadcast %850 : f32 to vector<16x64xf32>
    %854 = arith.mulf %853, %852 : vector<16x64xf32>
    %855 = arith.addf %831, %854 : vector<16x64xf32>
    %c1_482 = arith.constant 1 : index
    %c8_483 = arith.constant 8 : index
    %856 = memref.load %arg0[%c1_482, %c8_483] : memref<2x32xf32, #tpu.memory_space<smem>>
    %c8_484 = arith.constant 8 : index
    %c0_485 = arith.constant 0 : index
    %c0_486 = arith.constant 0 : index
    %857 = vector.load %arg3[%c8_484, %c0_485, %c0_486] : memref<32x16x64xf32, #tpu.memory_space<vmem>>, vector<1x16x64xf32>
    %858 = vector.shape_cast %857 : vector<1x16x64xf32> to vector<16x64xf32>
    %859 = vector.broadcast %856 : f32 to vector<16x64xf32>
    %860 = arith.mulf %859, %858 : vector<16x64xf32>
    %861 = arith.addf %837, %860 : vector<16x64xf32>
    %c1_487 = arith.constant 1 : index
    %c9_488 = arith.constant 9 : index
    %862 = memref.load %arg0[%c1_487, %c9_488] : memref<2x32xf32, #tpu.memory_space<smem>>
    %c9_489 = arith.constant 9 : index
    %c0_490 = arith.constant 0 : index
    %c0_491 = arith.constant 0 : index
    %863 = vector.load %arg3[%c9_489, %c0_490, %c0_491] : memref<32x16x64xf32, #tpu.memory_space<vmem>>, vector<1x16x64xf32>
    %864 = vector.shape_cast %863 : vector<1x16x64xf32> to vector<16x64xf32>
    %865 = vector.broadcast %862 : f32 to vector<16x64xf32>
    %866 = arith.mulf %865, %864 : vector<16x64xf32>
    %867 = arith.addf %843, %866 : vector<16x64xf32>
    %c1_492 = arith.constant 1 : index
    %c10_493 = arith.constant 10 : index
    %868 = memref.load %arg0[%c1_492, %c10_493] : memref<2x32xf32, #tpu.memory_space<smem>>
    %c10_494 = arith.constant 10 : index
    %c0_495 = arith.constant 0 : index
    %c0_496 = arith.constant 0 : index
    %869 = vector.load %arg3[%c10_494, %c0_495, %c0_496] : memref<32x16x64xf32, #tpu.memory_space<vmem>>, vector<1x16x64xf32>
    %870 = vector.shape_cast %869 : vector<1x16x64xf32> to vector<16x64xf32>
    %871 = vector.broadcast %868 : f32 to vector<16x64xf32>
    %872 = arith.mulf %871, %870 : vector<16x64xf32>
    %873 = arith.addf %849, %872 : vector<16x64xf32>
    %c1_497 = arith.constant 1 : index
    %c11_498 = arith.constant 11 : index
    %874 = memref.load %arg0[%c1_497, %c11_498] : memref<2x32xf32, #tpu.memory_space<smem>>
    %c11_499 = arith.constant 11 : index
    %c0_500 = arith.constant 0 : index
    %c0_501 = arith.constant 0 : index
    %875 = vector.load %arg3[%c11_499, %c0_500, %c0_501] : memref<32x16x64xf32, #tpu.memory_space<vmem>>, vector<1x16x64xf32>
    %876 = vector.shape_cast %875 : vector<1x16x64xf32> to vector<16x64xf32>
    %877 = vector.broadcast %874 : f32 to vector<16x64xf32>
    %878 = arith.mulf %877, %876 : vector<16x64xf32>
    %879 = arith.addf %855, %878 : vector<16x64xf32>
    %c1_502 = arith.constant 1 : index
    %c12_503 = arith.constant 12 : index
    %880 = memref.load %arg0[%c1_502, %c12_503] : memref<2x32xf32, #tpu.memory_space<smem>>
    %c12_504 = arith.constant 12 : index
    %c0_505 = arith.constant 0 : index
    %c0_506 = arith.constant 0 : index
    %881 = vector.load %arg3[%c12_504, %c0_505, %c0_506] : memref<32x16x64xf32, #tpu.memory_space<vmem>>, vector<1x16x64xf32>
    %882 = vector.shape_cast %881 : vector<1x16x64xf32> to vector<16x64xf32>
    %883 = vector.broadcast %880 : f32 to vector<16x64xf32>
    %884 = arith.mulf %883, %882 : vector<16x64xf32>
    %885 = arith.addf %861, %884 : vector<16x64xf32>
    %c1_507 = arith.constant 1 : index
    %c13_508 = arith.constant 13 : index
    %886 = memref.load %arg0[%c1_507, %c13_508] : memref<2x32xf32, #tpu.memory_space<smem>>
    %c13_509 = arith.constant 13 : index
    %c0_510 = arith.constant 0 : index
    %c0_511 = arith.constant 0 : index
    %887 = vector.load %arg3[%c13_509, %c0_510, %c0_511] : memref<32x16x64xf32, #tpu.memory_space<vmem>>, vector<1x16x64xf32>
    %888 = vector.shape_cast %887 : vector<1x16x64xf32> to vector<16x64xf32>
    %889 = vector.broadcast %886 : f32 to vector<16x64xf32>
    %890 = arith.mulf %889, %888 : vector<16x64xf32>
    %891 = arith.addf %867, %890 : vector<16x64xf32>
    %c1_512 = arith.constant 1 : index
    %c14_513 = arith.constant 14 : index
    %892 = memref.load %arg0[%c1_512, %c14_513] : memref<2x32xf32, #tpu.memory_space<smem>>
    %c14_514 = arith.constant 14 : index
    %c0_515 = arith.constant 0 : index
    %c0_516 = arith.constant 0 : index
    %893 = vector.load %arg3[%c14_514, %c0_515, %c0_516] : memref<32x16x64xf32, #tpu.memory_space<vmem>>, vector<1x16x64xf32>
    %894 = vector.shape_cast %893 : vector<1x16x64xf32> to vector<16x64xf32>
    %895 = vector.broadcast %892 : f32 to vector<16x64xf32>
    %896 = arith.mulf %895, %894 : vector<16x64xf32>
    %897 = arith.addf %873, %896 : vector<16x64xf32>
    %c1_517 = arith.constant 1 : index
    %c15_518 = arith.constant 15 : index
    %898 = memref.load %arg0[%c1_517, %c15_518] : memref<2x32xf32, #tpu.memory_space<smem>>
    %c15_519 = arith.constant 15 : index
    %c0_520 = arith.constant 0 : index
    %c0_521 = arith.constant 0 : index
    %899 = vector.load %arg3[%c15_519, %c0_520, %c0_521] : memref<32x16x64xf32, #tpu.memory_space<vmem>>, vector<1x16x64xf32>
    %900 = vector.shape_cast %899 : vector<1x16x64xf32> to vector<16x64xf32>
    %901 = vector.broadcast %898 : f32 to vector<16x64xf32>
    %902 = arith.mulf %901, %900 : vector<16x64xf32>
    %903 = arith.addf %879, %902 : vector<16x64xf32>
    %c1_522 = arith.constant 1 : index
    %c16_523 = arith.constant 16 : index
    %904 = memref.load %arg0[%c1_522, %c16_523] : memref<2x32xf32, #tpu.memory_space<smem>>
    %c16_524 = arith.constant 16 : index
    %c0_525 = arith.constant 0 : index
    %c0_526 = arith.constant 0 : index
    %905 = vector.load %arg3[%c16_524, %c0_525, %c0_526] : memref<32x16x64xf32, #tpu.memory_space<vmem>>, vector<1x16x64xf32>
    %906 = vector.shape_cast %905 : vector<1x16x64xf32> to vector<16x64xf32>
    %907 = vector.broadcast %904 : f32 to vector<16x64xf32>
    %908 = arith.mulf %907, %906 : vector<16x64xf32>
    %909 = arith.addf %885, %908 : vector<16x64xf32>
    %c1_527 = arith.constant 1 : index
    %c17_528 = arith.constant 17 : index
    %910 = memref.load %arg0[%c1_527, %c17_528] : memref<2x32xf32, #tpu.memory_space<smem>>
    %c17_529 = arith.constant 17 : index
    %c0_530 = arith.constant 0 : index
    %c0_531 = arith.constant 0 : index
    %911 = vector.load %arg3[%c17_529, %c0_530, %c0_531] : memref<32x16x64xf32, #tpu.memory_space<vmem>>, vector<1x16x64xf32>
    %912 = vector.shape_cast %911 : vector<1x16x64xf32> to vector<16x64xf32>
    %913 = vector.broadcast %910 : f32 to vector<16x64xf32>
    %914 = arith.mulf %913, %912 : vector<16x64xf32>
    %915 = arith.addf %891, %914 : vector<16x64xf32>
    %c1_532 = arith.constant 1 : index
    %c18_533 = arith.constant 18 : index
    %916 = memref.load %arg0[%c1_532, %c18_533] : memref<2x32xf32, #tpu.memory_space<smem>>
    %c18_534 = arith.constant 18 : index
    %c0_535 = arith.constant 0 : index
    %c0_536 = arith.constant 0 : index
    %917 = vector.load %arg3[%c18_534, %c0_535, %c0_536] : memref<32x16x64xf32, #tpu.memory_space<vmem>>, vector<1x16x64xf32>
    %918 = vector.shape_cast %917 : vector<1x16x64xf32> to vector<16x64xf32>
    %919 = vector.broadcast %916 : f32 to vector<16x64xf32>
    %920 = arith.mulf %919, %918 : vector<16x64xf32>
    %921 = arith.addf %897, %920 : vector<16x64xf32>
    %c1_537 = arith.constant 1 : index
    %c19_538 = arith.constant 19 : index
    %922 = memref.load %arg0[%c1_537, %c19_538] : memref<2x32xf32, #tpu.memory_space<smem>>
    %c19_539 = arith.constant 19 : index
    %c0_540 = arith.constant 0 : index
    %c0_541 = arith.constant 0 : index
    %923 = vector.load %arg3[%c19_539, %c0_540, %c0_541] : memref<32x16x64xf32, #tpu.memory_space<vmem>>, vector<1x16x64xf32>
    %924 = vector.shape_cast %923 : vector<1x16x64xf32> to vector<16x64xf32>
    %925 = vector.broadcast %922 : f32 to vector<16x64xf32>
    %926 = arith.mulf %925, %924 : vector<16x64xf32>
    %927 = arith.addf %903, %926 : vector<16x64xf32>
    %c1_542 = arith.constant 1 : index
    %c20_543 = arith.constant 20 : index
    %928 = memref.load %arg0[%c1_542, %c20_543] : memref<2x32xf32, #tpu.memory_space<smem>>
    %c20_544 = arith.constant 20 : index
    %c0_545 = arith.constant 0 : index
    %c0_546 = arith.constant 0 : index
    %929 = vector.load %arg3[%c20_544, %c0_545, %c0_546] : memref<32x16x64xf32, #tpu.memory_space<vmem>>, vector<1x16x64xf32>
    %930 = vector.shape_cast %929 : vector<1x16x64xf32> to vector<16x64xf32>
    %931 = vector.broadcast %928 : f32 to vector<16x64xf32>
    %932 = arith.mulf %931, %930 : vector<16x64xf32>
    %933 = arith.addf %909, %932 : vector<16x64xf32>
    %c1_547 = arith.constant 1 : index
    %c21_548 = arith.constant 21 : index
    %934 = memref.load %arg0[%c1_547, %c21_548] : memref<2x32xf32, #tpu.memory_space<smem>>
    %c21_549 = arith.constant 21 : index
    %c0_550 = arith.constant 0 : index
    %c0_551 = arith.constant 0 : index
    %935 = vector.load %arg3[%c21_549, %c0_550, %c0_551] : memref<32x16x64xf32, #tpu.memory_space<vmem>>, vector<1x16x64xf32>
    %936 = vector.shape_cast %935 : vector<1x16x64xf32> to vector<16x64xf32>
    %937 = vector.broadcast %934 : f32 to vector<16x64xf32>
    %938 = arith.mulf %937, %936 : vector<16x64xf32>
    %939 = arith.addf %915, %938 : vector<16x64xf32>
    %c1_552 = arith.constant 1 : index
    %c22_553 = arith.constant 22 : index
    %940 = memref.load %arg0[%c1_552, %c22_553] : memref<2x32xf32, #tpu.memory_space<smem>>
    %c22_554 = arith.constant 22 : index
    %c0_555 = arith.constant 0 : index
    %c0_556 = arith.constant 0 : index
    %941 = vector.load %arg3[%c22_554, %c0_555, %c0_556] : memref<32x16x64xf32, #tpu.memory_space<vmem>>, vector<1x16x64xf32>
    %942 = vector.shape_cast %941 : vector<1x16x64xf32> to vector<16x64xf32>
    %943 = vector.broadcast %940 : f32 to vector<16x64xf32>
    %944 = arith.mulf %943, %942 : vector<16x64xf32>
    %945 = arith.addf %921, %944 : vector<16x64xf32>
    %c1_557 = arith.constant 1 : index
    %c23_558 = arith.constant 23 : index
    %946 = memref.load %arg0[%c1_557, %c23_558] : memref<2x32xf32, #tpu.memory_space<smem>>
    %c23_559 = arith.constant 23 : index
    %c0_560 = arith.constant 0 : index
    %c0_561 = arith.constant 0 : index
    %947 = vector.load %arg3[%c23_559, %c0_560, %c0_561] : memref<32x16x64xf32, #tpu.memory_space<vmem>>, vector<1x16x64xf32>
    %948 = vector.shape_cast %947 : vector<1x16x64xf32> to vector<16x64xf32>
    %949 = vector.broadcast %946 : f32 to vector<16x64xf32>
    %950 = arith.mulf %949, %948 : vector<16x64xf32>
    %951 = arith.addf %927, %950 : vector<16x64xf32>
    %c1_562 = arith.constant 1 : index
    %c24_563 = arith.constant 24 : index
    %952 = memref.load %arg0[%c1_562, %c24_563] : memref<2x32xf32, #tpu.memory_space<smem>>
    %c24_564 = arith.constant 24 : index
    %c0_565 = arith.constant 0 : index
    %c0_566 = arith.constant 0 : index
    %953 = vector.load %arg3[%c24_564, %c0_565, %c0_566] : memref<32x16x64xf32, #tpu.memory_space<vmem>>, vector<1x16x64xf32>
    %954 = vector.shape_cast %953 : vector<1x16x64xf32> to vector<16x64xf32>
    %955 = vector.broadcast %952 : f32 to vector<16x64xf32>
    %956 = arith.mulf %955, %954 : vector<16x64xf32>
    %957 = arith.addf %933, %956 : vector<16x64xf32>
    %c1_567 = arith.constant 1 : index
    %c25_568 = arith.constant 25 : index
    %958 = memref.load %arg0[%c1_567, %c25_568] : memref<2x32xf32, #tpu.memory_space<smem>>
    %c25_569 = arith.constant 25 : index
    %c0_570 = arith.constant 0 : index
    %c0_571 = arith.constant 0 : index
    %959 = vector.load %arg3[%c25_569, %c0_570, %c0_571] : memref<32x16x64xf32, #tpu.memory_space<vmem>>, vector<1x16x64xf32>
    %960 = vector.shape_cast %959 : vector<1x16x64xf32> to vector<16x64xf32>
    %961 = vector.broadcast %958 : f32 to vector<16x64xf32>
    %962 = arith.mulf %961, %960 : vector<16x64xf32>
    %963 = arith.addf %939, %962 : vector<16x64xf32>
    %c1_572 = arith.constant 1 : index
    %c26_573 = arith.constant 26 : index
    %964 = memref.load %arg0[%c1_572, %c26_573] : memref<2x32xf32, #tpu.memory_space<smem>>
    %c26_574 = arith.constant 26 : index
    %c0_575 = arith.constant 0 : index
    %c0_576 = arith.constant 0 : index
    %965 = vector.load %arg3[%c26_574, %c0_575, %c0_576] : memref<32x16x64xf32, #tpu.memory_space<vmem>>, vector<1x16x64xf32>
    %966 = vector.shape_cast %965 : vector<1x16x64xf32> to vector<16x64xf32>
    %967 = vector.broadcast %964 : f32 to vector<16x64xf32>
    %968 = arith.mulf %967, %966 : vector<16x64xf32>
    %969 = arith.addf %945, %968 : vector<16x64xf32>
    %c1_577 = arith.constant 1 : index
    %c27_578 = arith.constant 27 : index
    %970 = memref.load %arg0[%c1_577, %c27_578] : memref<2x32xf32, #tpu.memory_space<smem>>
    %c27_579 = arith.constant 27 : index
    %c0_580 = arith.constant 0 : index
    %c0_581 = arith.constant 0 : index
    %971 = vector.load %arg3[%c27_579, %c0_580, %c0_581] : memref<32x16x64xf32, #tpu.memory_space<vmem>>, vector<1x16x64xf32>
    %972 = vector.shape_cast %971 : vector<1x16x64xf32> to vector<16x64xf32>
    %973 = vector.broadcast %970 : f32 to vector<16x64xf32>
    %974 = arith.mulf %973, %972 : vector<16x64xf32>
    %975 = arith.addf %951, %974 : vector<16x64xf32>
    %c1_582 = arith.constant 1 : index
    %c28_583 = arith.constant 28 : index
    %976 = memref.load %arg0[%c1_582, %c28_583] : memref<2x32xf32, #tpu.memory_space<smem>>
    %c28_584 = arith.constant 28 : index
    %c0_585 = arith.constant 0 : index
    %c0_586 = arith.constant 0 : index
    %977 = vector.load %arg3[%c28_584, %c0_585, %c0_586] : memref<32x16x64xf32, #tpu.memory_space<vmem>>, vector<1x16x64xf32>
    %978 = vector.shape_cast %977 : vector<1x16x64xf32> to vector<16x64xf32>
    %979 = vector.broadcast %976 : f32 to vector<16x64xf32>
    %980 = arith.mulf %979, %978 : vector<16x64xf32>
    %981 = arith.addf %957, %980 : vector<16x64xf32>
    %c1_587 = arith.constant 1 : index
    %c29_588 = arith.constant 29 : index
    %982 = memref.load %arg0[%c1_587, %c29_588] : memref<2x32xf32, #tpu.memory_space<smem>>
    %c29_589 = arith.constant 29 : index
    %c0_590 = arith.constant 0 : index
    %c0_591 = arith.constant 0 : index
    %983 = vector.load %arg3[%c29_589, %c0_590, %c0_591] : memref<32x16x64xf32, #tpu.memory_space<vmem>>, vector<1x16x64xf32>
    %984 = vector.shape_cast %983 : vector<1x16x64xf32> to vector<16x64xf32>
    %985 = vector.broadcast %982 : f32 to vector<16x64xf32>
    %986 = arith.mulf %985, %984 : vector<16x64xf32>
    %987 = arith.addf %963, %986 : vector<16x64xf32>
    %c1_592 = arith.constant 1 : index
    %c30_593 = arith.constant 30 : index
    %988 = memref.load %arg0[%c1_592, %c30_593] : memref<2x32xf32, #tpu.memory_space<smem>>
    %c30_594 = arith.constant 30 : index
    %c0_595 = arith.constant 0 : index
    %c0_596 = arith.constant 0 : index
    %989 = vector.load %arg3[%c30_594, %c0_595, %c0_596] : memref<32x16x64xf32, #tpu.memory_space<vmem>>, vector<1x16x64xf32>
    %990 = vector.shape_cast %989 : vector<1x16x64xf32> to vector<16x64xf32>
    %991 = vector.broadcast %988 : f32 to vector<16x64xf32>
    %992 = arith.mulf %991, %990 : vector<16x64xf32>
    %993 = arith.addf %969, %992 : vector<16x64xf32>
    %c1_597 = arith.constant 1 : index
    %c31_598 = arith.constant 31 : index
    %994 = memref.load %arg0[%c1_597, %c31_598] : memref<2x32xf32, #tpu.memory_space<smem>>
    %c31_599 = arith.constant 31 : index
    %c0_600 = arith.constant 0 : index
    %c0_601 = arith.constant 0 : index
    %995 = vector.load %arg3[%c31_599, %c0_600, %c0_601] : memref<32x16x64xf32, #tpu.memory_space<vmem>>, vector<1x16x64xf32>
    %996 = vector.shape_cast %995 : vector<1x16x64xf32> to vector<16x64xf32>
    %997 = vector.broadcast %994 : f32 to vector<16x64xf32>
    %998 = arith.mulf %997, %996 : vector<16x64xf32>
    %999 = arith.addf %975, %998 : vector<16x64xf32>
    %1000 = arith.addf %981, %987 : vector<16x64xf32>
    %1001 = arith.addf %993, %999 : vector<16x64xf32>
    %1002 = arith.addf %1000, %1001 : vector<16x64xf32>
    %cst_602 = arith.constant 0.000000e+00 : f32
    %1003 = vector.broadcast %cst_602 : f32 to vector<16x64xf32>
    %1004 = arith.cmpf oge, %1002, %1003 : vector<16x64xf32>
    %cst_603 = arith.constant 2.000000e-01 : f32
    %1005 = vector.broadcast %cst_603 : f32 to vector<16x64xf32>
    %1006 = arith.mulf %1005, %1002 : vector<16x64xf32>
    %1007 = arith.select %1004, %1002, %1006 : vector<16x64xi1>, vector<16x64xf32>
    %c0_604 = arith.constant 0 : index
    %c0_605 = arith.constant 0 : index
    %c0_606 = arith.constant 0 : index
    %1008 = vector.load %arg5[%c0_604, %c0_605, %c0_606] : memref<9x64x256xbf16, #tpu.memory_space<vmem>>, vector<1x64x256xbf16>
    %1009 = vector.shape_cast %1008 : vector<1x64x256xbf16> to vector<64x256xbf16>
    %1010 = arith.extf %1009 : vector<64x256xbf16> to vector<64x256xf32>
    %cst_607 = arith.constant dense<0.000000e+00> : vector<16x256xf32>
    %1011 = tpu.matmul %1007, %1010, %cst_607 {dimension_numbers = #tpu.dot_dimension_numbers<[1], [0], [0], [1], [0, 0, 1, 1], [], []>} : vector<16x64xf32>, vector<64x256xf32>, vector<16x256xf32> -> vector<16x256xf32>
    %c0_608 = arith.constant 0 : index
    %c0_609 = arith.constant 0 : index
    %1012 = vector.load %arg13[%c0_608, %c0_609] : memref<144x256xf32, #tpu.memory_space<vmem>>, vector<16x256xf32>
    tpu.vector_store %arg13[%c0_608, %c0_609], %1011 {strides = array<i32>} : memref<144x256xf32, #tpu.memory_space<vmem>>, vector<16x256xf32>,
    %c1_610 = arith.constant 1 : index
    %c0_611 = arith.constant 0 : index
    %c0_612 = arith.constant 0 : index
    %1013 = vector.load %arg5[%c1_610, %c0_611, %c0_612] : memref<9x64x256xbf16, #tpu.memory_space<vmem>>, vector<1x64x256xbf16>
    %1014 = vector.shape_cast %1013 : vector<1x64x256xbf16> to vector<64x256xbf16>
    %1015 = arith.extf %1014 : vector<64x256xbf16> to vector<64x256xf32>
    %cst_613 = arith.constant dense<0.000000e+00> : vector<16x256xf32>
    %1016 = tpu.matmul %1007, %1015, %cst_613 {dimension_numbers = #tpu.dot_dimension_numbers<[1], [0], [0], [1], [0, 0, 1, 1], [], []>} : vector<16x64xf32>, vector<64x256xf32>, vector<16x256xf32> -> vector<16x256xf32>
    %c16_614 = arith.constant 16 : index
    %c0_615 = arith.constant 0 : index
    %1017 = vector.load %arg13[%c16_614, %c0_615] : memref<144x256xf32, #tpu.memory_space<vmem>>, vector<16x256xf32>
    tpu.vector_store %arg13[%c16_614, %c0_615], %1016 {strides = array<i32>} : memref<144x256xf32, #tpu.memory_space<vmem>>, vector<16x256xf32>,
    %c2_616 = arith.constant 2 : index
    %c0_617 = arith.constant 0 : index
    %c0_618 = arith.constant 0 : index
    %1018 = vector.load %arg5[%c2_616, %c0_617, %c0_618] : memref<9x64x256xbf16, #tpu.memory_space<vmem>>, vector<1x64x256xbf16>
    %1019 = vector.shape_cast %1018 : vector<1x64x256xbf16> to vector<64x256xbf16>
    %1020 = arith.extf %1019 : vector<64x256xbf16> to vector<64x256xf32>
    %cst_619 = arith.constant dense<0.000000e+00> : vector<16x256xf32>
    %1021 = tpu.matmul %1007, %1020, %cst_619 {dimension_numbers = #tpu.dot_dimension_numbers<[1], [0], [0], [1], [0, 0, 1, 1], [], []>} : vector<16x64xf32>, vector<64x256xf32>, vector<16x256xf32> -> vector<16x256xf32>
    %c32_620 = arith.constant 32 : index
    %c0_621 = arith.constant 0 : index
    %1022 = vector.load %arg13[%c32_620, %c0_621] : memref<144x256xf32, #tpu.memory_space<vmem>>, vector<16x256xf32>
    tpu.vector_store %arg13[%c32_620, %c0_621], %1021 {strides = array<i32>} : memref<144x256xf32, #tpu.memory_space<vmem>>, vector<16x256xf32>,
    %c3_622 = arith.constant 3 : index
    %c0_623 = arith.constant 0 : index
    %c0_624 = arith.constant 0 : index
    %1023 = vector.load %arg5[%c3_622, %c0_623, %c0_624] : memref<9x64x256xbf16, #tpu.memory_space<vmem>>, vector<1x64x256xbf16>
    %1024 = vector.shape_cast %1023 : vector<1x64x256xbf16> to vector<64x256xbf16>
    %1025 = arith.extf %1024 : vector<64x256xbf16> to vector<64x256xf32>
    %cst_625 = arith.constant dense<0.000000e+00> : vector<16x256xf32>
    %1026 = tpu.matmul %1007, %1025, %cst_625 {dimension_numbers = #tpu.dot_dimension_numbers<[1], [0], [0], [1], [0, 0, 1, 1], [], []>} : vector<16x64xf32>, vector<64x256xf32>, vector<16x256xf32> -> vector<16x256xf32>
    %c48_626 = arith.constant 48 : index
    %c0_627 = arith.constant 0 : index
    %1027 = vector.load %arg13[%c48_626, %c0_627] : memref<144x256xf32, #tpu.memory_space<vmem>>, vector<16x256xf32>
    tpu.vector_store %arg13[%c48_626, %c0_627], %1026 {strides = array<i32>} : memref<144x256xf32, #tpu.memory_space<vmem>>, vector<16x256xf32>,
    %c4_628 = arith.constant 4 : index
    %c0_629 = arith.constant 0 : index
    %c0_630 = arith.constant 0 : index
    %1028 = vector.load %arg5[%c4_628, %c0_629, %c0_630] : memref<9x64x256xbf16, #tpu.memory_space<vmem>>, vector<1x64x256xbf16>
    %1029 = vector.shape_cast %1028 : vector<1x64x256xbf16> to vector<64x256xbf16>
    %1030 = arith.extf %1029 : vector<64x256xbf16> to vector<64x256xf32>
    %cst_631 = arith.constant dense<0.000000e+00> : vector<16x256xf32>
    %1031 = tpu.matmul %1007, %1030, %cst_631 {dimension_numbers = #tpu.dot_dimension_numbers<[1], [0], [0], [1], [0, 0, 1, 1], [], []>} : vector<16x64xf32>, vector<64x256xf32>, vector<16x256xf32> -> vector<16x256xf32>
    %c64_632 = arith.constant 64 : index
    %c0_633 = arith.constant 0 : index
    %1032 = vector.load %arg13[%c64_632, %c0_633] : memref<144x256xf32, #tpu.memory_space<vmem>>, vector<16x256xf32>
    tpu.vector_store %arg13[%c64_632, %c0_633], %1031 {strides = array<i32>} : memref<144x256xf32, #tpu.memory_space<vmem>>, vector<16x256xf32>,
    %c5_634 = arith.constant 5 : index
    %c0_635 = arith.constant 0 : index
    %c0_636 = arith.constant 0 : index
    %1033 = vector.load %arg5[%c5_634, %c0_635, %c0_636] : memref<9x64x256xbf16, #tpu.memory_space<vmem>>, vector<1x64x256xbf16>
    %1034 = vector.shape_cast %1033 : vector<1x64x256xbf16> to vector<64x256xbf16>
    %1035 = arith.extf %1034 : vector<64x256xbf16> to vector<64x256xf32>
    %cst_637 = arith.constant dense<0.000000e+00> : vector<16x256xf32>
    %1036 = tpu.matmul %1007, %1035, %cst_637 {dimension_numbers = #tpu.dot_dimension_numbers<[1], [0], [0], [1], [0, 0, 1, 1], [], []>} : vector<16x64xf32>, vector<64x256xf32>, vector<16x256xf32> -> vector<16x256xf32>
    %c80_638 = arith.constant 80 : index
    %c0_639 = arith.constant 0 : index
    %1037 = vector.load %arg13[%c80_638, %c0_639] : memref<144x256xf32, #tpu.memory_space<vmem>>, vector<16x256xf32>
    tpu.vector_store %arg13[%c80_638, %c0_639], %1036 {strides = array<i32>} : memref<144x256xf32, #tpu.memory_space<vmem>>, vector<16x256xf32>,
    %c6_640 = arith.constant 6 : index
    %c0_641 = arith.constant 0 : index
    %c0_642 = arith.constant 0 : index
    %1038 = vector.load %arg5[%c6_640, %c0_641, %c0_642] : memref<9x64x256xbf16, #tpu.memory_space<vmem>>, vector<1x64x256xbf16>
    %1039 = vector.shape_cast %1038 : vector<1x64x256xbf16> to vector<64x256xbf16>
    %1040 = arith.extf %1039 : vector<64x256xbf16> to vector<64x256xf32>
    %cst_643 = arith.constant dense<0.000000e+00> : vector<16x256xf32>
    %1041 = tpu.matmul %1007, %1040, %cst_643 {dimension_numbers = #tpu.dot_dimension_numbers<[1], [0], [0], [1], [0, 0, 1, 1], [], []>} : vector<16x64xf32>, vector<64x256xf32>, vector<16x256xf32> -> vector<16x256xf32>
    %c96_644 = arith.constant 96 : index
    %c0_645 = arith.constant 0 : index
    %1042 = vector.load %arg13[%c96_644, %c0_645] : memref<144x256xf32, #tpu.memory_space<vmem>>, vector<16x256xf32>
    tpu.vector_store %arg13[%c96_644, %c0_645], %1041 {strides = array<i32>} : memref<144x256xf32, #tpu.memory_space<vmem>>, vector<16x256xf32>,
    %c7_646 = arith.constant 7 : index
    %c0_647 = arith.constant 0 : index
    %c0_648 = arith.constant 0 : index
    %1043 = vector.load %arg5[%c7_646, %c0_647, %c0_648] : memref<9x64x256xbf16, #tpu.memory_space<vmem>>, vector<1x64x256xbf16>
    %1044 = vector.shape_cast %1043 : vector<1x64x256xbf16> to vector<64x256xbf16>
    %1045 = arith.extf %1044 : vector<64x256xbf16> to vector<64x256xf32>
    %cst_649 = arith.constant dense<0.000000e+00> : vector<16x256xf32>
    %1046 = tpu.matmul %1007, %1045, %cst_649 {dimension_numbers = #tpu.dot_dimension_numbers<[1], [0], [0], [1], [0, 0, 1, 1], [], []>} : vector<16x64xf32>, vector<64x256xf32>, vector<16x256xf32> -> vector<16x256xf32>
    %c112_650 = arith.constant 112 : index
    %c0_651 = arith.constant 0 : index
    %1047 = vector.load %arg13[%c112_650, %c0_651] : memref<144x256xf32, #tpu.memory_space<vmem>>, vector<16x256xf32>
    tpu.vector_store %arg13[%c112_650, %c0_651], %1046 {strides = array<i32>} : memref<144x256xf32, #tpu.memory_space<vmem>>, vector<16x256xf32>,
    %c8_652 = arith.constant 8 : index
    %c0_653 = arith.constant 0 : index
    %c0_654 = arith.constant 0 : index
    %1048 = vector.load %arg5[%c8_652, %c0_653, %c0_654] : memref<9x64x256xbf16, #tpu.memory_space<vmem>>, vector<1x64x256xbf16>
    %1049 = vector.shape_cast %1048 : vector<1x64x256xbf16> to vector<64x256xbf16>
    %1050 = arith.extf %1049 : vector<64x256xbf16> to vector<64x256xf32>
    %cst_655 = arith.constant dense<0.000000e+00> : vector<16x256xf32>
    %1051 = tpu.matmul %1007, %1050, %cst_655 {dimension_numbers = #tpu.dot_dimension_numbers<[1], [0], [0], [1], [0, 0, 1, 1], [], []>} : vector<16x64xf32>, vector<64x256xf32>, vector<16x256xf32> -> vector<16x256xf32>
    %c128_656 = arith.constant 128 : index
    %c0_657 = arith.constant 0 : index
    %1052 = vector.load %arg13[%c128_656, %c0_657] : memref<144x256xf32, #tpu.memory_space<vmem>>, vector<16x256xf32>
    tpu.vector_store %arg13[%c128_656, %c0_657], %1051 {strides = array<i32>} : memref<144x256xf32, #tpu.memory_space<vmem>>, vector<16x256xf32>,
    %c0_658 = arith.constant 0 : index
    %c0_659 = arith.constant 0 : index
    %1053 = vector.load %arg6[%c0_658, %c0_659] : memref<8x144xf32, #tpu.memory_space<vmem>>, vector<8x144xf32>
    %c0_660 = arith.constant 0 : index
    %c0_661 = arith.constant 0 : index
    %1054 = vector.load %arg13[%c0_660, %c0_661] : memref<144x256xf32, #tpu.memory_space<vmem>>, vector<144x256xf32>
    %cst_662 = arith.constant dense<0.000000e+00> : vector<8x256xf32>
    %1055 = tpu.matmul %1053, %1054, %cst_662 {dimension_numbers = #tpu.dot_dimension_numbers<[1], [0], [0], [1], [0, 0, 1, 1], [], []>} : vector<8x144xf32>, vector<144x256xf32>, vector<8x256xf32> -> vector<8x256xf32>
    %c0_663 = arith.constant 0 : index
    %c0_664 = arith.constant 0 : index
    %1056 = vector.load %arg7[%c0_663, %c0_664] : memref<8x1xf32, #tpu.memory_space<vmem>>, vector<8x1xf32>
    %1057 = vector.broadcast %1056 : vector<8x1xf32> to vector<8x256xf32>
    %1058 = arith.addf %1055, %1057 : vector<8x256xf32>
    %cst_665 = arith.constant 0.000000e+00 : f32
    %1059 = vector.broadcast %cst_665 : f32 to vector<8x256xf32>
    %1060 = arith.cmpf oge, %1058, %1059 : vector<8x256xf32>
    %cst_666 = arith.constant 2.000000e-01 : f32
    %1061 = vector.broadcast %cst_666 : f32 to vector<8x256xf32>
    %1062 = arith.mulf %1061, %1058 : vector<8x256xf32>
    %1063 = arith.select %1060, %1058, %1062 : vector<8x256xi1>, vector<8x256xf32>
    %c17_i32_667 = arith.constant 17 : i32
    %1064 = tpu.dynamic_rotate %1063 by %c17_i32_667 dim 1 : vector<8x256xf32>, i32 -> vector<8x256xf32>
    %cst_668 = arith.constant 0.000000e+00 : f32
    %1065 = vector.shape_cast %26 : vector<1x256xi1> to vector<1x256xi1>
    %1066 = vector.broadcast %1065 : vector<1x256xi1> to vector<8x256xi1>
    %1067 = vector.broadcast %cst_668 : f32 to vector<8x256xf32>
    %1068 = arith.select %1066, %1064, %1067 : vector<8x256xi1>, vector<8x256xf32>
    %c0_669 = arith.constant 0 : index
    %c0_670 = arith.constant 0 : index
    %1069 = vector.load %arg13[%c0_669, %c0_670] : memref<144x256xf32, #tpu.memory_space<vmem>>, vector<8x256xf32>
    tpu.vector_store %arg13[%c0_669, %c0_670], %1068 {strides = array<i32>} : memref<144x256xf32, #tpu.memory_space<vmem>>, vector<8x256xf32>,
    %c16_i32_671 = arith.constant 16 : i32
    %1070 = tpu.dynamic_rotate %1063 by %c16_i32_671 dim 1 : vector<8x256xf32>, i32 -> vector<8x256xf32>
    %cst_672 = arith.constant 0.000000e+00 : f32
    %1071 = vector.shape_cast %45 : vector<1x256xi1> to vector<1x256xi1>
    %1072 = vector.broadcast %1071 : vector<1x256xi1> to vector<8x256xi1>
    %1073 = vector.broadcast %cst_672 : f32 to vector<8x256xf32>
    %1074 = arith.select %1072, %1070, %1073 : vector<8x256xi1>, vector<8x256xf32>
    %c8_673 = arith.constant 8 : index
    %c0_674 = arith.constant 0 : index
    %1075 = vector.load %arg13[%c8_673, %c0_674] : memref<144x256xf32, #tpu.memory_space<vmem>>, vector<8x256xf32>
    tpu.vector_store %arg13[%c8_673, %c0_674], %1074 {strides = array<i32>} : memref<144x256xf32, #tpu.memory_space<vmem>>, vector<8x256xf32>,
    %c15_i32_675 = arith.constant 15 : i32
    %1076 = tpu.dynamic_rotate %1063 by %c15_i32_675 dim 1 : vector<8x256xf32>, i32 -> vector<8x256xf32>
    %cst_676 = arith.constant 0.000000e+00 : f32
    %1077 = vector.shape_cast %64 : vector<1x256xi1> to vector<1x256xi1>
    %1078 = vector.broadcast %1077 : vector<1x256xi1> to vector<8x256xi1>
    %1079 = vector.broadcast %cst_676 : f32 to vector<8x256xf32>
    %1080 = arith.select %1078, %1076, %1079 : vector<8x256xi1>, vector<8x256xf32>
    %c16_677 = arith.constant 16 : index
    %c0_678 = arith.constant 0 : index
    %1081 = vector.load %arg13[%c16_677, %c0_678] : memref<144x256xf32, #tpu.memory_space<vmem>>, vector<8x256xf32>
    tpu.vector_store %arg13[%c16_677, %c0_678], %1080 {strides = array<i32>} : memref<144x256xf32, #tpu.memory_space<vmem>>, vector<8x256xf32>,
    %c1_i32_679 = arith.constant 1 : i32
    %1082 = tpu.dynamic_rotate %1063 by %c1_i32_679 dim 1 : vector<8x256xf32>, i32 -> vector<8x256xf32>
    %cst_680 = arith.constant 0.000000e+00 : f32
    %1083 = vector.shape_cast %83 : vector<1x256xi1> to vector<1x256xi1>
    %1084 = vector.broadcast %1083 : vector<1x256xi1> to vector<8x256xi1>
    %1085 = vector.broadcast %cst_680 : f32 to vector<8x256xf32>
    %1086 = arith.select %1084, %1082, %1085 : vector<8x256xi1>, vector<8x256xf32>
    %c24_681 = arith.constant 24 : index
    %c0_682 = arith.constant 0 : index
    %1087 = vector.load %arg13[%c24_681, %c0_682] : memref<144x256xf32, #tpu.memory_space<vmem>>, vector<8x256xf32>
    tpu.vector_store %arg13[%c24_681, %c0_682], %1086 {strides = array<i32>} : memref<144x256xf32, #tpu.memory_space<vmem>>, vector<8x256xf32>,
    %cst_683 = arith.constant 0.000000e+00 : f32
    %1088 = vector.shape_cast %102 : vector<1x256xi1> to vector<1x256xi1>
    %1089 = vector.broadcast %1088 : vector<1x256xi1> to vector<8x256xi1>
    %1090 = vector.broadcast %cst_683 : f32 to vector<8x256xf32>
    %1091 = arith.select %1089, %1063, %1090 : vector<8x256xi1>, vector<8x256xf32>
    %c32_684 = arith.constant 32 : index
    %c0_685 = arith.constant 0 : index
    %1092 = vector.load %arg13[%c32_684, %c0_685] : memref<144x256xf32, #tpu.memory_space<vmem>>, vector<8x256xf32>
    tpu.vector_store %arg13[%c32_684, %c0_685], %1091 {strides = array<i32>} : memref<144x256xf32, #tpu.memory_space<vmem>>, vector<8x256xf32>,
    %c255_i32_686 = arith.constant 255 : i32
    %1093 = tpu.dynamic_rotate %1063 by %c255_i32_686 dim 1 : vector<8x256xf32>, i32 -> vector<8x256xf32>
    %cst_687 = arith.constant 0.000000e+00 : f32
    %1094 = vector.shape_cast %121 : vector<1x256xi1> to vector<1x256xi1>
    %1095 = vector.broadcast %1094 : vector<1x256xi1> to vector<8x256xi1>
    %1096 = vector.broadcast %cst_687 : f32 to vector<8x256xf32>
    %1097 = arith.select %1095, %1093, %1096 : vector<8x256xi1>, vector<8x256xf32>
    %c40_688 = arith.constant 40 : index
    %c0_689 = arith.constant 0 : index
    %1098 = vector.load %arg13[%c40_688, %c0_689] : memref<144x256xf32, #tpu.memory_space<vmem>>, vector<8x256xf32>
    tpu.vector_store %arg13[%c40_688, %c0_689], %1097 {strides = array<i32>} : memref<144x256xf32, #tpu.memory_space<vmem>>, vector<8x256xf32>,
    %c241_i32_690 = arith.constant 241 : i32
    %1099 = tpu.dynamic_rotate %1063 by %c241_i32_690 dim 1 : vector<8x256xf32>, i32 -> vector<8x256xf32>
    %cst_691 = arith.constant 0.000000e+00 : f32
    %1100 = vector.shape_cast %140 : vector<1x256xi1> to vector<1x256xi1>
    %1101 = vector.broadcast %1100 : vector<1x256xi1> to vector<8x256xi1>
    %1102 = vector.broadcast %cst_691 : f32 to vector<8x256xf32>
    %1103 = arith.select %1101, %1099, %1102 : vector<8x256xi1>, vector<8x256xf32>
    %c48_692 = arith.constant 48 : index
    %c0_693 = arith.constant 0 : index
    %1104 = vector.load %arg13[%c48_692, %c0_693] : memref<144x256xf32, #tpu.memory_space<vmem>>, vector<8x256xf32>
    tpu.vector_store %arg13[%c48_692, %c0_693], %1103 {strides = array<i32>} : memref<144x256xf32, #tpu.memory_space<vmem>>, vector<8x256xf32>,
    %c240_i32_694 = arith.constant 240 : i32
    %1105 = tpu.dynamic_rotate %1063 by %c240_i32_694 dim 1 : vector<8x256xf32>, i32 -> vector<8x256xf32>
    %cst_695 = arith.constant 0.000000e+00 : f32
    %1106 = vector.shape_cast %159 : vector<1x256xi1> to vector<1x256xi1>
    %1107 = vector.broadcast %1106 : vector<1x256xi1> to vector<8x256xi1>
    %1108 = vector.broadcast %cst_695 : f32 to vector<8x256xf32>
    %1109 = arith.select %1107, %1105, %1108 : vector<8x256xi1>, vector<8x256xf32>
    %c56_696 = arith.constant 56 : index
    %c0_697 = arith.constant 0 : index
    %1110 = vector.load %arg13[%c56_696, %c0_697] : memref<144x256xf32, #tpu.memory_space<vmem>>, vector<8x256xf32>
    tpu.vector_store %arg13[%c56_696, %c0_697], %1109 {strides = array<i32>} : memref<144x256xf32, #tpu.memory_space<vmem>>, vector<8x256xf32>,
    %c239_i32_698 = arith.constant 239 : i32
    %1111 = tpu.dynamic_rotate %1063 by %c239_i32_698 dim 1 : vector<8x256xf32>, i32 -> vector<8x256xf32>
    %cst_699 = arith.constant 0.000000e+00 : f32
    %1112 = vector.shape_cast %178 : vector<1x256xi1> to vector<1x256xi1>
    %1113 = vector.broadcast %1112 : vector<1x256xi1> to vector<8x256xi1>
    %1114 = vector.broadcast %cst_699 : f32 to vector<8x256xf32>
    %1115 = arith.select %1113, %1111, %1114 : vector<8x256xi1>, vector<8x256xf32>
    %c64_700 = arith.constant 64 : index
    %c0_701 = arith.constant 0 : index
    %1116 = vector.load %arg13[%c64_700, %c0_701] : memref<144x256xf32, #tpu.memory_space<vmem>>, vector<8x256xf32>
    tpu.vector_store %arg13[%c64_700, %c0_701], %1115 {strides = array<i32>} : memref<144x256xf32, #tpu.memory_space<vmem>>, vector<8x256xf32>,
    %c0_702 = arith.constant 0 : index
    %c0_703 = arith.constant 0 : index
    %1117 = vector.load %arg8[%c0_702, %c0_703] : memref<8x72xf32, #tpu.memory_space<vmem>>, vector<8x72xf32>
    %c0_704 = arith.constant 0 : index
    %c0_705 = arith.constant 0 : index
    %1118 = vector.load %arg13[%c0_704, %c0_705] : memref<144x256xf32, #tpu.memory_space<vmem>>, vector<72x256xf32>
    %cst_706 = arith.constant dense<0.000000e+00> : vector<8x256xf32>
    %1119 = tpu.matmul %1117, %1118, %cst_706 {dimension_numbers = #tpu.dot_dimension_numbers<[1], [0], [0], [1], [0, 0, 1, 1], [], []>} : vector<8x72xf32>, vector<72x256xf32>, vector<8x256xf32> -> vector<8x256xf32>
    %c0_707 = arith.constant 0 : index
    %c0_708 = arith.constant 0 : index
    %1120 = vector.load %arg9[%c0_707, %c0_708] : memref<8x1xf32, #tpu.memory_space<vmem>>, vector<8x1xf32>
    %1121 = vector.broadcast %1120 : vector<8x1xf32> to vector<8x256xf32>
    %1122 = arith.addf %1119, %1121 : vector<8x256xf32>
    %1123 = math.tanh %1122 : vector<8x256xf32>
    %c1_709 = arith.constant 1 : index
    %c0_710 = arith.constant 0 : index
    %c0_711 = arith.constant 0 : index
    %1124 = vector.load %arg12[%c1_709, %c0_710, %c0_711] : memref<2x24x256xf32, #tpu.memory_space<vmem>>, vector<1x8x256xf32>
    %1125 = vector.shape_cast %1124 : vector<1x8x256xf32> to vector<8x256xf32>
    %1126 = vector.shape_cast %1123 : vector<8x256xf32> to vector<1x8x256xf32>
    tpu.vector_store %arg12[%c1_709, %c0_710, %c0_711], %1126 {strides = array<i32>} : memref<2x24x256xf32, #tpu.memory_space<vmem>>, vector<1x8x256xf32>,
    %c17_i32_712 = arith.constant 17 : i32
    %1127 = tpu.dynamic_rotate %1123 by %c17_i32_712 dim 1 : vector<8x256xf32>, i32 -> vector<8x256xf32>
    %cst_713 = arith.constant 0.000000e+00 : f32
    %1128 = vector.shape_cast %26 : vector<1x256xi1> to vector<1x256xi1>
    %1129 = vector.broadcast %1128 : vector<1x256xi1> to vector<8x256xi1>
    %1130 = vector.broadcast %cst_713 : f32 to vector<8x256xf32>
    %1131 = arith.select %1129, %1127, %1130 : vector<8x256xi1>, vector<8x256xf32>
    %c0_714 = arith.constant 0 : index
    %c0_715 = arith.constant 0 : index
    %1132 = vector.load %arg13[%c0_714, %c0_715] : memref<144x256xf32, #tpu.memory_space<vmem>>, vector<8x256xf32>
    tpu.vector_store %arg13[%c0_714, %c0_715], %1131 {strides = array<i32>} : memref<144x256xf32, #tpu.memory_space<vmem>>, vector<8x256xf32>,
    %c16_i32_716 = arith.constant 16 : i32
    %1133 = tpu.dynamic_rotate %1123 by %c16_i32_716 dim 1 : vector<8x256xf32>, i32 -> vector<8x256xf32>
    %cst_717 = arith.constant 0.000000e+00 : f32
    %1134 = vector.shape_cast %45 : vector<1x256xi1> to vector<1x256xi1>
    %1135 = vector.broadcast %1134 : vector<1x256xi1> to vector<8x256xi1>
    %1136 = vector.broadcast %cst_717 : f32 to vector<8x256xf32>
    %1137 = arith.select %1135, %1133, %1136 : vector<8x256xi1>, vector<8x256xf32>
    %c8_718 = arith.constant 8 : index
    %c0_719 = arith.constant 0 : index
    %1138 = vector.load %arg13[%c8_718, %c0_719] : memref<144x256xf32, #tpu.memory_space<vmem>>, vector<8x256xf32>
    tpu.vector_store %arg13[%c8_718, %c0_719], %1137 {strides = array<i32>} : memref<144x256xf32, #tpu.memory_space<vmem>>, vector<8x256xf32>,
    %c15_i32_720 = arith.constant 15 : i32
    %1139 = tpu.dynamic_rotate %1123 by %c15_i32_720 dim 1 : vector<8x256xf32>, i32 -> vector<8x256xf32>
    %cst_721 = arith.constant 0.000000e+00 : f32
    %1140 = vector.shape_cast %64 : vector<1x256xi1> to vector<1x256xi1>
    %1141 = vector.broadcast %1140 : vector<1x256xi1> to vector<8x256xi1>
    %1142 = vector.broadcast %cst_721 : f32 to vector<8x256xf32>
    %1143 = arith.select %1141, %1139, %1142 : vector<8x256xi1>, vector<8x256xf32>
    %c16_722 = arith.constant 16 : index
    %c0_723 = arith.constant 0 : index
    %1144 = vector.load %arg13[%c16_722, %c0_723] : memref<144x256xf32, #tpu.memory_space<vmem>>, vector<8x256xf32>
    tpu.vector_store %arg13[%c16_722, %c0_723], %1143 {strides = array<i32>} : memref<144x256xf32, #tpu.memory_space<vmem>>, vector<8x256xf32>,
    %c1_i32_724 = arith.constant 1 : i32
    %1145 = tpu.dynamic_rotate %1123 by %c1_i32_724 dim 1 : vector<8x256xf32>, i32 -> vector<8x256xf32>
    %cst_725 = arith.constant 0.000000e+00 : f32
    %1146 = vector.shape_cast %83 : vector<1x256xi1> to vector<1x256xi1>
    %1147 = vector.broadcast %1146 : vector<1x256xi1> to vector<8x256xi1>
    %1148 = vector.broadcast %cst_725 : f32 to vector<8x256xf32>
    %1149 = arith.select %1147, %1145, %1148 : vector<8x256xi1>, vector<8x256xf32>
    %c24_726 = arith.constant 24 : index
    %c0_727 = arith.constant 0 : index
    %1150 = vector.load %arg13[%c24_726, %c0_727] : memref<144x256xf32, #tpu.memory_space<vmem>>, vector<8x256xf32>
    tpu.vector_store %arg13[%c24_726, %c0_727], %1149 {strides = array<i32>} : memref<144x256xf32, #tpu.memory_space<vmem>>, vector<8x256xf32>,
    %cst_728 = arith.constant 0.000000e+00 : f32
    %1151 = vector.shape_cast %102 : vector<1x256xi1> to vector<1x256xi1>
    %1152 = vector.broadcast %1151 : vector<1x256xi1> to vector<8x256xi1>
    %1153 = vector.broadcast %cst_728 : f32 to vector<8x256xf32>
    %1154 = arith.select %1152, %1123, %1153 : vector<8x256xi1>, vector<8x256xf32>
    %c32_729 = arith.constant 32 : index
    %c0_730 = arith.constant 0 : index
    %1155 = vector.load %arg13[%c32_729, %c0_730] : memref<144x256xf32, #tpu.memory_space<vmem>>, vector<8x256xf32>
    tpu.vector_store %arg13[%c32_729, %c0_730], %1154 {strides = array<i32>} : memref<144x256xf32, #tpu.memory_space<vmem>>, vector<8x256xf32>,
    %c255_i32_731 = arith.constant 255 : i32
    %1156 = tpu.dynamic_rotate %1123 by %c255_i32_731 dim 1 : vector<8x256xf32>, i32 -> vector<8x256xf32>
    %cst_732 = arith.constant 0.000000e+00 : f32
    %1157 = vector.shape_cast %121 : vector<1x256xi1> to vector<1x256xi1>
    %1158 = vector.broadcast %1157 : vector<1x256xi1> to vector<8x256xi1>
    %1159 = vector.broadcast %cst_732 : f32 to vector<8x256xf32>
    %1160 = arith.select %1158, %1156, %1159 : vector<8x256xi1>, vector<8x256xf32>
    %c40_733 = arith.constant 40 : index
    %c0_734 = arith.constant 0 : index
    %1161 = vector.load %arg13[%c40_733, %c0_734] : memref<144x256xf32, #tpu.memory_space<vmem>>, vector<8x256xf32>
    tpu.vector_store %arg13[%c40_733, %c0_734], %1160 {strides = array<i32>} : memref<144x256xf32, #tpu.memory_space<vmem>>, vector<8x256xf32>,
    %c241_i32_735 = arith.constant 241 : i32
    %1162 = tpu.dynamic_rotate %1123 by %c241_i32_735 dim 1 : vector<8x256xf32>, i32 -> vector<8x256xf32>
    %cst_736 = arith.constant 0.000000e+00 : f32
    %1163 = vector.shape_cast %140 : vector<1x256xi1> to vector<1x256xi1>
    %1164 = vector.broadcast %1163 : vector<1x256xi1> to vector<8x256xi1>
    %1165 = vector.broadcast %cst_736 : f32 to vector<8x256xf32>
    %1166 = arith.select %1164, %1162, %1165 : vector<8x256xi1>, vector<8x256xf32>
    %c48_737 = arith.constant 48 : index
    %c0_738 = arith.constant 0 : index
    %1167 = vector.load %arg13[%c48_737, %c0_738] : memref<144x256xf32, #tpu.memory_space<vmem>>, vector<8x256xf32>
    tpu.vector_store %arg13[%c48_737, %c0_738], %1166 {strides = array<i32>} : memref<144x256xf32, #tpu.memory_space<vmem>>, vector<8x256xf32>,
    %c240_i32_739 = arith.constant 240 : i32
    %1168 = tpu.dynamic_rotate %1123 by %c240_i32_739 dim 1 : vector<8x256xf32>, i32 -> vector<8x256xf32>
    %cst_740 = arith.constant 0.000000e+00 : f32
    %1169 = vector.shape_cast %159 : vector<1x256xi1> to vector<1x256xi1>
    %1170 = vector.broadcast %1169 : vector<1x256xi1> to vector<8x256xi1>
    %1171 = vector.broadcast %cst_740 : f32 to vector<8x256xf32>
    %1172 = arith.select %1170, %1168, %1171 : vector<8x256xi1>, vector<8x256xf32>
    %c56_741 = arith.constant 56 : index
    %c0_742 = arith.constant 0 : index
    %1173 = vector.load %arg13[%c56_741, %c0_742] : memref<144x256xf32, #tpu.memory_space<vmem>>, vector<8x256xf32>
    tpu.vector_store %arg13[%c56_741, %c0_742], %1172 {strides = array<i32>} : memref<144x256xf32, #tpu.memory_space<vmem>>, vector<8x256xf32>,
    %c239_i32_743 = arith.constant 239 : i32
    %1174 = tpu.dynamic_rotate %1123 by %c239_i32_743 dim 1 : vector<8x256xf32>, i32 -> vector<8x256xf32>
    %cst_744 = arith.constant 0.000000e+00 : f32
    %1175 = vector.shape_cast %178 : vector<1x256xi1> to vector<1x256xi1>
    %1176 = vector.broadcast %1175 : vector<1x256xi1> to vector<8x256xi1>
    %1177 = vector.broadcast %cst_744 : f32 to vector<8x256xf32>
    %1178 = arith.select %1176, %1174, %1177 : vector<8x256xi1>, vector<8x256xf32>
    %c64_745 = arith.constant 64 : index
    %c0_746 = arith.constant 0 : index
    %1179 = vector.load %arg13[%c64_745, %c0_746] : memref<144x256xf32, #tpu.memory_space<vmem>>, vector<8x256xf32>
    tpu.vector_store %arg13[%c64_745, %c0_746], %1178 {strides = array<i32>} : memref<144x256xf32, #tpu.memory_space<vmem>>, vector<8x256xf32>,
    %c0_747 = arith.constant 0 : index
    %c0_748 = arith.constant 0 : index
    %1180 = vector.load %arg10[%c0_747, %c0_748] : memref<12x72xf32, #tpu.memory_space<vmem>>, vector<12x72xf32>
    %c0_749 = arith.constant 0 : index
    %c0_750 = arith.constant 0 : index
    %1181 = vector.load %arg13[%c0_749, %c0_750] : memref<144x256xf32, #tpu.memory_space<vmem>>, vector<72x256xf32>
    %cst_751 = arith.constant dense<0.000000e+00> : vector<12x256xf32>
    %1182 = tpu.matmul %1180, %1181, %cst_751 {dimension_numbers = #tpu.dot_dimension_numbers<[1], [0], [0], [1], [0, 0, 1, 1], [], []>} : vector<12x72xf32>, vector<72x256xf32>, vector<12x256xf32> -> vector<12x256xf32>
    %c0_752 = arith.constant 0 : index
    %c0_753 = arith.constant 0 : index
    %1183 = vector.load %arg11[%c0_752, %c0_753] : memref<12x1xf32, #tpu.memory_space<vmem>>, vector<12x1xf32>
    %1184 = vector.broadcast %1183 : vector<12x1xf32> to vector<12x256xf32>
    %1185 = arith.addf %1182, %1184 : vector<12x256xf32>
    %1186 = vector.extract_strided_slice %1185 {offsets = [0, 0], sizes = [3, 256], strides = [1, 1]} : vector<12x256xf32> to vector<3x256xf32>
    %1187 = math.tanh %1186 : vector<3x256xf32>
    %1188 = vector.extract_strided_slice %1185 {offsets = [3, 0], sizes = [5, 256], strides = [1, 1]} : vector<12x256xf32> to vector<5x256xf32>
    %cst_754 = arith.constant dense<0xFF800000> : vector<256xf32>
    %1189 = vector.multi_reduction <maximumf>, %1188, %cst_754 [0] : vector<5x256xf32> to vector<256xf32>
    %1190 = vector.shape_cast %1189 : vector<256xf32> to vector<1x256xf32>
    %1191 = vector.broadcast %1190 : vector<1x256xf32> to vector<5x256xf32>
    %1192 = arith.subf %1188, %1191 : vector<5x256xf32>
    %1193 = math.exp %1192 : vector<5x256xf32>
    %cst_755 = arith.constant dense<0.000000e+00> : vector<256xf32>
    %1194 = vector.multi_reduction <add>, %1193, %cst_755 [0] : vector<5x256xf32> to vector<256xf32>
    %1195 = vector.shape_cast %1194 : vector<256xf32> to vector<1x256xf32>
    %1196 = vector.broadcast %1195 : vector<1x256xf32> to vector<5x256xf32>
    %1197 = arith.divf %1193, %1196 : vector<5x256xf32>
    %1198 = vector.extract_strided_slice %1197 {offsets = [4, 0], sizes = [1, 256], strides = [1, 1]} : vector<5x256xf32> to vector<1x256xf32>
    %1199 = vector.extract_strided_slice %1187 {offsets = [0, 0], sizes = [1, 256], strides = [1, 1]} : vector<3x256xf32> to vector<1x256xf32>
    %1200 = arith.mulf %1198, %1199 : vector<1x256xf32>
    %1201 = vector.extract_strided_slice %1197 {offsets = [4, 0], sizes = [1, 256], strides = [1, 1]} : vector<5x256xf32> to vector<1x256xf32>
    %1202 = vector.extract_strided_slice %1187 {offsets = [1, 0], sizes = [1, 256], strides = [1, 1]} : vector<3x256xf32> to vector<1x256xf32>
    %1203 = arith.mulf %1201, %1202 : vector<1x256xf32>
    %1204 = vector.extract_strided_slice %1197 {offsets = [4, 0], sizes = [1, 256], strides = [1, 1]} : vector<5x256xf32> to vector<1x256xf32>
    %1205 = vector.extract_strided_slice %1187 {offsets = [2, 0], sizes = [1, 256], strides = [1, 1]} : vector<3x256xf32> to vector<1x256xf32>
    %1206 = arith.mulf %1204, %1205 : vector<1x256xf32>
    %1207 = vector.extract_strided_slice %1185 {offsets = [8, 0], sizes = [2, 256], strides = [1, 1]} : vector<12x256xf32> to vector<2x256xf32>
    %c1_756 = arith.constant 1 : index
    %c11_757 = arith.constant 11 : index
    %c0_758 = arith.constant 0 : index
    %1208 = vector.load %arg12[%c1_756, %c11_757, %c0_758] : memref<2x24x256xf32, #tpu.memory_space<vmem>>, vector<1x2x256xf32>
    %1209 = vector.shape_cast %1208 : vector<1x2x256xf32> to vector<2x256xf32>
    %1210 = vector.shape_cast %1207 : vector<2x256xf32> to vector<1x2x256xf32>
    tpu.vector_store %arg12[%c1_756, %c11_757, %c0_758], %1210 {strides = array<i32>} : memref<2x24x256xf32, #tpu.memory_space<vmem>>, vector<1x2x256xf32>,
    %1211 = vector.extract_strided_slice %1207 {offsets = [0, 0], sizes = [1, 256], strides = [1, 1]} : vector<2x256xf32> to vector<1x256xf32>
    %cst_759 = arith.constant 8.000000e+00 : f32
    %1212 = vector.broadcast %cst_759 : f32 to vector<1x256xf32>
    %1213 = arith.mulf %1211, %1212 : vector<1x256xf32>
    %1214 = arith.addf %5, %1213 : vector<1x256xf32>
    %1215 = vector.extract_strided_slice %1207 {offsets = [1, 0], sizes = [1, 256], strides = [1, 1]} : vector<2x256xf32> to vector<1x256xf32>
    %cst_760 = arith.constant 8.000000e+00 : f32
    %1216 = vector.broadcast %cst_760 : f32 to vector<1x256xf32>
    %1217 = arith.mulf %1215, %1216 : vector<1x256xf32>
    %1218 = arith.addf %6, %1217 : vector<1x256xf32>
    %1219 = math.floor %1214 : vector<1x256xf32>
    %1220 = math.floor %1218 : vector<1x256xf32>
    %1221 = arith.subf %1214, %1219 : vector<1x256xf32>
    %1222 = arith.subf %1218, %1220 : vector<1x256xf32>
    %1223 = arith.fptosi %1219 : vector<1x256xf32> to vector<1x256xi32>
    %1224 = arith.fptosi %1220 : vector<1x256xf32> to vector<1x256xi32>
    %1225 = vector.broadcast %1223 : vector<1x256xi32> to vector<16x256xi32>
    %1226 = arith.cmpi eq, %7, %1225 : vector<16x256xi32>
    %cst_761 = arith.constant 1.000000e+00 : f32
    %1227 = vector.broadcast %cst_761 : f32 to vector<1x256xf32>
    %1228 = arith.subf %1227, %1221 : vector<1x256xf32>
    %cst_762 = arith.constant 0.000000e+00 : f32
    %1229 = vector.shape_cast %1228 : vector<1x256xf32> to vector<1x256xf32>
    %1230 = vector.broadcast %1229 : vector<1x256xf32> to vector<16x256xf32>
    %1231 = vector.broadcast %cst_762 : f32 to vector<16x256xf32>
    %1232 = arith.select %1226, %1230, %1231 : vector<16x256xi1>, vector<16x256xf32>
    %c1_i32_763 = arith.constant 1 : i32
    %1233 = vector.broadcast %c1_i32_763 : i32 to vector<1x256xi32>
    %1234 = arith.addi %1223, %1233 : vector<1x256xi32>
    %1235 = vector.broadcast %1234 : vector<1x256xi32> to vector<16x256xi32>
    %1236 = arith.cmpi eq, %7, %1235 : vector<16x256xi32>
    %cst_764 = arith.constant 0.000000e+00 : f32
    %1237 = vector.shape_cast %1221 : vector<1x256xf32> to vector<1x256xf32>
    %1238 = vector.broadcast %1237 : vector<1x256xf32> to vector<16x256xf32>
    %1239 = vector.broadcast %cst_764 : f32 to vector<16x256xf32>
    %1240 = arith.select %1236, %1238, %1239 : vector<16x256xi1>, vector<16x256xf32>
    %1241 = arith.addf %1232, %1240 : vector<16x256xf32>
    %1242 = vector.broadcast %1224 : vector<1x256xi32> to vector<16x256xi32>
    %1243 = arith.cmpi eq, %7, %1242 : vector<16x256xi32>
    %cst_765 = arith.constant 1.000000e+00 : f32
    %1244 = vector.broadcast %cst_765 : f32 to vector<1x256xf32>
    %1245 = arith.subf %1244, %1222 : vector<1x256xf32>
    %cst_766 = arith.constant 0.000000e+00 : f32
    %1246 = vector.shape_cast %1245 : vector<1x256xf32> to vector<1x256xf32>
    %1247 = vector.broadcast %1246 : vector<1x256xf32> to vector<16x256xf32>
    %1248 = vector.broadcast %cst_766 : f32 to vector<16x256xf32>
    %1249 = arith.select %1243, %1247, %1248 : vector<16x256xi1>, vector<16x256xf32>
    %c1_i32_767 = arith.constant 1 : i32
    %1250 = vector.broadcast %c1_i32_767 : i32 to vector<1x256xi32>
    %1251 = arith.addi %1224, %1250 : vector<1x256xi32>
    %1252 = vector.broadcast %1251 : vector<1x256xi32> to vector<16x256xi32>
    %1253 = arith.cmpi eq, %7, %1252 : vector<16x256xi32>
    %cst_768 = arith.constant 0.000000e+00 : f32
    %1254 = vector.shape_cast %1222 : vector<1x256xf32> to vector<1x256xf32>
    %1255 = vector.broadcast %1254 : vector<1x256xf32> to vector<16x256xf32>
    %1256 = vector.broadcast %cst_768 : f32 to vector<16x256xf32>
    %1257 = arith.select %1253, %1255, %1256 : vector<16x256xi1>, vector<16x256xf32>
    %1258 = arith.addf %1249, %1257 : vector<16x256xf32>
    %c1_769 = arith.constant 1 : index
    %c0_770 = arith.constant 0 : index
    %c0_771 = arith.constant 0 : index
    %c0_772 = arith.constant 0 : index
    %1259 = vector.load %arg1[%c1_769, %c0_770, %c0_771, %c0_772] : memref<2x2x3x256xf32, #tpu.memory_space<vmem>>, vector<1x1x3x256xf32>
    %1260 = vector.shape_cast %1259 : vector<1x1x3x256xf32> to vector<3x256xf32>
    %c1_773 = arith.constant 1 : index
    %c0_774 = arith.constant 0 : index
    %c0_775 = arith.constant 0 : index
    %c0_776 = arith.constant 0 : index
    %1261 = vector.load %arg2[%c1_773, %c0_774, %c0_775, %c0_776] : memref<2x2x48x16xf32, #tpu.memory_space<vmem>>, vector<1x1x16x16xf32>
    %1262 = vector.shape_cast %1261 : vector<1x1x16x16xf32> to vector<16x16xf32>
    %cst_777 = arith.constant dense<0.000000e+00> : vector<16x256xf32>
    %1263 = tpu.matmul %1262, %1241, %cst_777 {dimension_numbers = #tpu.dot_dimension_numbers<[1], [0], [0], [1], [0, 0, 1, 1], [], []>} : vector<16x16xf32>, vector<16x256xf32>, vector<16x256xf32> -> vector<16x256xf32>
    %1264 = arith.mulf %1258, %1263 : vector<16x256xf32>
    %cst_778 = arith.constant dense<0.000000e+00> : vector<256xf32>
    %1265 = vector.multi_reduction <add>, %1264, %cst_778 [0] : vector<16x256xf32> to vector<256xf32>
    %1266 = vector.shape_cast %1265 : vector<256xf32> to vector<1x256xf32>
    %1267 = vector.shape_cast %1266 : vector<1x256xf32> to vector<256xf32>
    %c1_779 = arith.constant 1 : index
    %c15_780 = arith.constant 15 : index
    %c0_781 = arith.constant 0 : index
    %1268 = vector.load %arg12[%c1_779, %c15_780, %c0_781] : memref<2x24x256xf32, #tpu.memory_space<vmem>>, vector<1x1x256xf32>
    %1269 = vector.shape_cast %1268 : vector<1x1x256xf32> to vector<256xf32>
    %1270 = vector.shape_cast %1267 : vector<256xf32> to vector<1x1x256xf32>
    tpu.vector_store %arg12[%c1_779, %c15_780, %c0_781], %1270 {strides = array<i32>} : memref<2x24x256xf32, #tpu.memory_space<vmem>>, vector<1x1x256xf32>,
    %1271 = vector.extract_strided_slice %1197 {offsets = [0, 0], sizes = [1, 256], strides = [1, 1]} : vector<5x256xf32> to vector<1x256xf32>
    %1272 = vector.extract_strided_slice %1260 {offsets = [0, 0], sizes = [1, 256], strides = [1, 1]} : vector<3x256xf32> to vector<1x256xf32>
    %1273 = arith.mulf %1271, %1272 : vector<1x256xf32>
    %1274 = arith.addf %1200, %1273 : vector<1x256xf32>
    %1275 = vector.extract_strided_slice %1197 {offsets = [2, 0], sizes = [1, 256], strides = [1, 1]} : vector<5x256xf32> to vector<1x256xf32>
    %1276 = arith.mulf %1275, %1266 : vector<1x256xf32>
    %1277 = arith.addf %1274, %1276 : vector<1x256xf32>
    %c1_782 = arith.constant 1 : index
    %c0_783 = arith.constant 0 : index
    %c16_784 = arith.constant 16 : index
    %c0_785 = arith.constant 0 : index
    %1278 = vector.load %arg2[%c1_782, %c0_783, %c16_784, %c0_785] : memref<2x2x48x16xf32, #tpu.memory_space<vmem>>, vector<1x1x16x16xf32>
    %1279 = vector.shape_cast %1278 : vector<1x1x16x16xf32> to vector<16x16xf32>
    %cst_786 = arith.constant dense<0.000000e+00> : vector<16x256xf32>
    %1280 = tpu.matmul %1279, %1241, %cst_786 {dimension_numbers = #tpu.dot_dimension_numbers<[1], [0], [0], [1], [0, 0, 1, 1], [], []>} : vector<16x16xf32>, vector<16x256xf32>, vector<16x256xf32> -> vector<16x256xf32>
    %1281 = arith.mulf %1258, %1280 : vector<16x256xf32>
    %cst_787 = arith.constant dense<0.000000e+00> : vector<256xf32>
    %1282 = vector.multi_reduction <add>, %1281, %cst_787 [0] : vector<16x256xf32> to vector<256xf32>
    %1283 = vector.shape_cast %1282 : vector<256xf32> to vector<1x256xf32>
    %1284 = vector.shape_cast %1283 : vector<1x256xf32> to vector<256xf32>
    %c1_788 = arith.constant 1 : index
    %c16_789 = arith.constant 16 : index
    %c0_790 = arith.constant 0 : index
    %1285 = vector.load %arg12[%c1_788, %c16_789, %c0_790] : memref<2x24x256xf32, #tpu.memory_space<vmem>>, vector<1x1x256xf32>
    %1286 = vector.shape_cast %1285 : vector<1x1x256xf32> to vector<256xf32>
    %1287 = vector.shape_cast %1284 : vector<256xf32> to vector<1x1x256xf32>
    tpu.vector_store %arg12[%c1_788, %c16_789, %c0_790], %1287 {strides = array<i32>} : memref<2x24x256xf32, #tpu.memory_space<vmem>>, vector<1x1x256xf32>,
    %1288 = vector.extract_strided_slice %1197 {offsets = [0, 0], sizes = [1, 256], strides = [1, 1]} : vector<5x256xf32> to vector<1x256xf32>
    %1289 = vector.extract_strided_slice %1260 {offsets = [1, 0], sizes = [1, 256], strides = [1, 1]} : vector<3x256xf32> to vector<1x256xf32>
    %1290 = arith.mulf %1288, %1289 : vector<1x256xf32>
    %1291 = arith.addf %1203, %1290 : vector<1x256xf32>
    %1292 = vector.extract_strided_slice %1197 {offsets = [2, 0], sizes = [1, 256], strides = [1, 1]} : vector<5x256xf32> to vector<1x256xf32>
    %1293 = arith.mulf %1292, %1283 : vector<1x256xf32>
    %1294 = arith.addf %1291, %1293 : vector<1x256xf32>
    %c1_791 = arith.constant 1 : index
    %c0_792 = arith.constant 0 : index
    %c32_793 = arith.constant 32 : index
    %c0_794 = arith.constant 0 : index
    %1295 = vector.load %arg2[%c1_791, %c0_792, %c32_793, %c0_794] : memref<2x2x48x16xf32, #tpu.memory_space<vmem>>, vector<1x1x16x16xf32>
    %1296 = vector.shape_cast %1295 : vector<1x1x16x16xf32> to vector<16x16xf32>
    %cst_795 = arith.constant dense<0.000000e+00> : vector<16x256xf32>
    %1297 = tpu.matmul %1296, %1241, %cst_795 {dimension_numbers = #tpu.dot_dimension_numbers<[1], [0], [0], [1], [0, 0, 1, 1], [], []>} : vector<16x16xf32>, vector<16x256xf32>, vector<16x256xf32> -> vector<16x256xf32>
    %1298 = arith.mulf %1258, %1297 : vector<16x256xf32>
    %cst_796 = arith.constant dense<0.000000e+00> : vector<256xf32>
    %1299 = vector.multi_reduction <add>, %1298, %cst_796 [0] : vector<16x256xf32> to vector<256xf32>
    %1300 = vector.shape_cast %1299 : vector<256xf32> to vector<1x256xf32>
    %1301 = vector.shape_cast %1300 : vector<1x256xf32> to vector<256xf32>
    %c1_797 = arith.constant 1 : index
    %c17_798 = arith.constant 17 : index
    %c0_799 = arith.constant 0 : index
    %1302 = vector.load %arg12[%c1_797, %c17_798, %c0_799] : memref<2x24x256xf32, #tpu.memory_space<vmem>>, vector<1x1x256xf32>
    %1303 = vector.shape_cast %1302 : vector<1x1x256xf32> to vector<256xf32>
    %1304 = vector.shape_cast %1301 : vector<256xf32> to vector<1x1x256xf32>
    tpu.vector_store %arg12[%c1_797, %c17_798, %c0_799], %1304 {strides = array<i32>} : memref<2x24x256xf32, #tpu.memory_space<vmem>>, vector<1x1x256xf32>,
    %1305 = vector.extract_strided_slice %1197 {offsets = [0, 0], sizes = [1, 256], strides = [1, 1]} : vector<5x256xf32> to vector<1x256xf32>
    %1306 = vector.extract_strided_slice %1260 {offsets = [2, 0], sizes = [1, 256], strides = [1, 1]} : vector<3x256xf32> to vector<1x256xf32>
    %1307 = arith.mulf %1305, %1306 : vector<1x256xf32>
    %1308 = arith.addf %1206, %1307 : vector<1x256xf32>
    %1309 = vector.extract_strided_slice %1197 {offsets = [2, 0], sizes = [1, 256], strides = [1, 1]} : vector<5x256xf32> to vector<1x256xf32>
    %1310 = arith.mulf %1309, %1300 : vector<1x256xf32>
    %1311 = arith.addf %1308, %1310 : vector<1x256xf32>
    %1312 = vector.extract_strided_slice %1185 {offsets = [10, 0], sizes = [2, 256], strides = [1, 1]} : vector<12x256xf32> to vector<2x256xf32>
    %c1_800 = arith.constant 1 : index
    %c13_801 = arith.constant 13 : index
    %c0_802 = arith.constant 0 : index
    %1313 = vector.load %arg12[%c1_800, %c13_801, %c0_802] : memref<2x24x256xf32, #tpu.memory_space<vmem>>, vector<1x2x256xf32>
    %1314 = vector.shape_cast %1313 : vector<1x2x256xf32> to vector<2x256xf32>
    %1315 = vector.shape_cast %1312 : vector<2x256xf32> to vector<1x2x256xf32>
    tpu.vector_store %arg12[%c1_800, %c13_801, %c0_802], %1315 {strides = array<i32>} : memref<2x24x256xf32, #tpu.memory_space<vmem>>, vector<1x2x256xf32>,
    %1316 = vector.extract_strided_slice %1312 {offsets = [0, 0], sizes = [1, 256], strides = [1, 1]} : vector<2x256xf32> to vector<1x256xf32>
    %cst_803 = arith.constant 8.000000e+00 : f32
    %1317 = vector.broadcast %cst_803 : f32 to vector<1x256xf32>
    %1318 = arith.mulf %1316, %1317 : vector<1x256xf32>
    %1319 = arith.addf %5, %1318 : vector<1x256xf32>
    %1320 = vector.extract_strided_slice %1312 {offsets = [1, 0], sizes = [1, 256], strides = [1, 1]} : vector<2x256xf32> to vector<1x256xf32>
    %cst_804 = arith.constant 8.000000e+00 : f32
    %1321 = vector.broadcast %cst_804 : f32 to vector<1x256xf32>
    %1322 = arith.mulf %1320, %1321 : vector<1x256xf32>
    %1323 = arith.addf %6, %1322 : vector<1x256xf32>
    %1324 = math.floor %1319 : vector<1x256xf32>
    %1325 = math.floor %1323 : vector<1x256xf32>
    %1326 = arith.subf %1319, %1324 : vector<1x256xf32>
    %1327 = arith.subf %1323, %1325 : vector<1x256xf32>
    %1328 = arith.fptosi %1324 : vector<1x256xf32> to vector<1x256xi32>
    %1329 = arith.fptosi %1325 : vector<1x256xf32> to vector<1x256xi32>
    %1330 = vector.broadcast %1328 : vector<1x256xi32> to vector<16x256xi32>
    %1331 = arith.cmpi eq, %7, %1330 : vector<16x256xi32>
    %cst_805 = arith.constant 1.000000e+00 : f32
    %1332 = vector.broadcast %cst_805 : f32 to vector<1x256xf32>
    %1333 = arith.subf %1332, %1326 : vector<1x256xf32>
    %cst_806 = arith.constant 0.000000e+00 : f32
    %1334 = vector.shape_cast %1333 : vector<1x256xf32> to vector<1x256xf32>
    %1335 = vector.broadcast %1334 : vector<1x256xf32> to vector<16x256xf32>
    %1336 = vector.broadcast %cst_806 : f32 to vector<16x256xf32>
    %1337 = arith.select %1331, %1335, %1336 : vector<16x256xi1>, vector<16x256xf32>
    %c1_i32_807 = arith.constant 1 : i32
    %1338 = vector.broadcast %c1_i32_807 : i32 to vector<1x256xi32>
    %1339 = arith.addi %1328, %1338 : vector<1x256xi32>
    %1340 = vector.broadcast %1339 : vector<1x256xi32> to vector<16x256xi32>
    %1341 = arith.cmpi eq, %7, %1340 : vector<16x256xi32>
    %cst_808 = arith.constant 0.000000e+00 : f32
    %1342 = vector.shape_cast %1326 : vector<1x256xf32> to vector<1x256xf32>
    %1343 = vector.broadcast %1342 : vector<1x256xf32> to vector<16x256xf32>
    %1344 = vector.broadcast %cst_808 : f32 to vector<16x256xf32>
    %1345 = arith.select %1341, %1343, %1344 : vector<16x256xi1>, vector<16x256xf32>
    %1346 = arith.addf %1337, %1345 : vector<16x256xf32>
    %1347 = vector.broadcast %1329 : vector<1x256xi32> to vector<16x256xi32>
    %1348 = arith.cmpi eq, %7, %1347 : vector<16x256xi32>
    %cst_809 = arith.constant 1.000000e+00 : f32
    %1349 = vector.broadcast %cst_809 : f32 to vector<1x256xf32>
    %1350 = arith.subf %1349, %1327 : vector<1x256xf32>
    %cst_810 = arith.constant 0.000000e+00 : f32
    %1351 = vector.shape_cast %1350 : vector<1x256xf32> to vector<1x256xf32>
    %1352 = vector.broadcast %1351 : vector<1x256xf32> to vector<16x256xf32>
    %1353 = vector.broadcast %cst_810 : f32 to vector<16x256xf32>
    %1354 = arith.select %1348, %1352, %1353 : vector<16x256xi1>, vector<16x256xf32>
    %c1_i32_811 = arith.constant 1 : i32
    %1355 = vector.broadcast %c1_i32_811 : i32 to vector<1x256xi32>
    %1356 = arith.addi %1329, %1355 : vector<1x256xi32>
    %1357 = vector.broadcast %1356 : vector<1x256xi32> to vector<16x256xi32>
    %1358 = arith.cmpi eq, %7, %1357 : vector<16x256xi32>
    %cst_812 = arith.constant 0.000000e+00 : f32
    %1359 = vector.shape_cast %1327 : vector<1x256xf32> to vector<1x256xf32>
    %1360 = vector.broadcast %1359 : vector<1x256xf32> to vector<16x256xf32>
    %1361 = vector.broadcast %cst_812 : f32 to vector<16x256xf32>
    %1362 = arith.select %1358, %1360, %1361 : vector<16x256xi1>, vector<16x256xf32>
    %1363 = arith.addf %1354, %1362 : vector<16x256xf32>
    %c1_813 = arith.constant 1 : index
    %c1_814 = arith.constant 1 : index
    %c0_815 = arith.constant 0 : index
    %c0_816 = arith.constant 0 : index
    %1364 = vector.load %arg1[%c1_813, %c1_814, %c0_815, %c0_816] : memref<2x2x3x256xf32, #tpu.memory_space<vmem>>, vector<1x1x3x256xf32>
    %1365 = vector.shape_cast %1364 : vector<1x1x3x256xf32> to vector<3x256xf32>
    %c1_817 = arith.constant 1 : index
    %c1_818 = arith.constant 1 : index
    %c0_819 = arith.constant 0 : index
    %c0_820 = arith.constant 0 : index
    %1366 = vector.load %arg2[%c1_817, %c1_818, %c0_819, %c0_820] : memref<2x2x48x16xf32, #tpu.memory_space<vmem>>, vector<1x1x16x16xf32>
    %1367 = vector.shape_cast %1366 : vector<1x1x16x16xf32> to vector<16x16xf32>
    %cst_821 = arith.constant dense<0.000000e+00> : vector<16x256xf32>
    %1368 = tpu.matmul %1367, %1346, %cst_821 {dimension_numbers = #tpu.dot_dimension_numbers<[1], [0], [0], [1], [0, 0, 1, 1], [], []>} : vector<16x16xf32>, vector<16x256xf32>, vector<16x256xf32> -> vector<16x256xf32>
    %1369 = arith.mulf %1363, %1368 : vector<16x256xf32>
    %cst_822 = arith.constant dense<0.000000e+00> : vector<256xf32>
    %1370 = vector.multi_reduction <add>, %1369, %cst_822 [0] : vector<16x256xf32> to vector<256xf32>
    %1371 = vector.shape_cast %1370 : vector<256xf32> to vector<1x256xf32>
    %1372 = vector.shape_cast %1371 : vector<1x256xf32> to vector<256xf32>
    %c1_823 = arith.constant 1 : index
    %c18_824 = arith.constant 18 : index
    %c0_825 = arith.constant 0 : index
    %1373 = vector.load %arg12[%c1_823, %c18_824, %c0_825] : memref<2x24x256xf32, #tpu.memory_space<vmem>>, vector<1x1x256xf32>
    %1374 = vector.shape_cast %1373 : vector<1x1x256xf32> to vector<256xf32>
    %1375 = vector.shape_cast %1372 : vector<256xf32> to vector<1x1x256xf32>
    tpu.vector_store %arg12[%c1_823, %c18_824, %c0_825], %1375 {strides = array<i32>} : memref<2x24x256xf32, #tpu.memory_space<vmem>>, vector<1x1x256xf32>,
    %1376 = vector.extract_strided_slice %1197 {offsets = [1, 0], sizes = [1, 256], strides = [1, 1]} : vector<5x256xf32> to vector<1x256xf32>
    %1377 = vector.extract_strided_slice %1365 {offsets = [0, 0], sizes = [1, 256], strides = [1, 1]} : vector<3x256xf32> to vector<1x256xf32>
    %1378 = arith.mulf %1376, %1377 : vector<1x256xf32>
    %1379 = arith.addf %1277, %1378 : vector<1x256xf32>
    %1380 = vector.extract_strided_slice %1197 {offsets = [3, 0], sizes = [1, 256], strides = [1, 1]} : vector<5x256xf32> to vector<1x256xf32>
    %1381 = arith.mulf %1380, %1371 : vector<1x256xf32>
    %1382 = arith.addf %1379, %1381 : vector<1x256xf32>
    %c1_826 = arith.constant 1 : index
    %c1_827 = arith.constant 1 : index
    %c16_828 = arith.constant 16 : index
    %c0_829 = arith.constant 0 : index
    %1383 = vector.load %arg2[%c1_826, %c1_827, %c16_828, %c0_829] : memref<2x2x48x16xf32, #tpu.memory_space<vmem>>, vector<1x1x16x16xf32>
    %1384 = vector.shape_cast %1383 : vector<1x1x16x16xf32> to vector<16x16xf32>
    %cst_830 = arith.constant dense<0.000000e+00> : vector<16x256xf32>
    %1385 = tpu.matmul %1384, %1346, %cst_830 {dimension_numbers = #tpu.dot_dimension_numbers<[1], [0], [0], [1], [0, 0, 1, 1], [], []>} : vector<16x16xf32>, vector<16x256xf32>, vector<16x256xf32> -> vector<16x256xf32>
    %1386 = arith.mulf %1363, %1385 : vector<16x256xf32>
    %cst_831 = arith.constant dense<0.000000e+00> : vector<256xf32>
    %1387 = vector.multi_reduction <add>, %1386, %cst_831 [0] : vector<16x256xf32> to vector<256xf32>
    %1388 = vector.shape_cast %1387 : vector<256xf32> to vector<1x256xf32>
    %1389 = vector.shape_cast %1388 : vector<1x256xf32> to vector<256xf32>
    %c1_832 = arith.constant 1 : index
    %c19_833 = arith.constant 19 : index
    %c0_834 = arith.constant 0 : index
    %1390 = vector.load %arg12[%c1_832, %c19_833, %c0_834] : memref<2x24x256xf32, #tpu.memory_space<vmem>>, vector<1x1x256xf32>
    %1391 = vector.shape_cast %1390 : vector<1x1x256xf32> to vector<256xf32>
    %1392 = vector.shape_cast %1389 : vector<256xf32> to vector<1x1x256xf32>
    tpu.vector_store %arg12[%c1_832, %c19_833, %c0_834], %1392 {strides = array<i32>} : memref<2x24x256xf32, #tpu.memory_space<vmem>>, vector<1x1x256xf32>,
    %1393 = vector.extract_strided_slice %1197 {offsets = [1, 0], sizes = [1, 256], strides = [1, 1]} : vector<5x256xf32> to vector<1x256xf32>
    %1394 = vector.extract_strided_slice %1365 {offsets = [1, 0], sizes = [1, 256], strides = [1, 1]} : vector<3x256xf32> to vector<1x256xf32>
    %1395 = arith.mulf %1393, %1394 : vector<1x256xf32>
    %1396 = arith.addf %1294, %1395 : vector<1x256xf32>
    %1397 = vector.extract_strided_slice %1197 {offsets = [3, 0], sizes = [1, 256], strides = [1, 1]} : vector<5x256xf32> to vector<1x256xf32>
    %1398 = arith.mulf %1397, %1388 : vector<1x256xf32>
    %1399 = arith.addf %1396, %1398 : vector<1x256xf32>
    %c1_835 = arith.constant 1 : index
    %c1_836 = arith.constant 1 : index
    %c32_837 = arith.constant 32 : index
    %c0_838 = arith.constant 0 : index
    %1400 = vector.load %arg2[%c1_835, %c1_836, %c32_837, %c0_838] : memref<2x2x48x16xf32, #tpu.memory_space<vmem>>, vector<1x1x16x16xf32>
    %1401 = vector.shape_cast %1400 : vector<1x1x16x16xf32> to vector<16x16xf32>
    %cst_839 = arith.constant dense<0.000000e+00> : vector<16x256xf32>
    %1402 = tpu.matmul %1401, %1346, %cst_839 {dimension_numbers = #tpu.dot_dimension_numbers<[1], [0], [0], [1], [0, 0, 1, 1], [], []>} : vector<16x16xf32>, vector<16x256xf32>, vector<16x256xf32> -> vector<16x256xf32>
    %1403 = arith.mulf %1363, %1402 : vector<16x256xf32>
    %cst_840 = arith.constant dense<0.000000e+00> : vector<256xf32>
    %1404 = vector.multi_reduction <add>, %1403, %cst_840 [0] : vector<16x256xf32> to vector<256xf32>
    %1405 = vector.shape_cast %1404 : vector<256xf32> to vector<1x256xf32>
    %1406 = vector.shape_cast %1405 : vector<1x256xf32> to vector<256xf32>
    %c1_841 = arith.constant 1 : index
    %c20_842 = arith.constant 20 : index
    %c0_843 = arith.constant 0 : index
    %1407 = vector.load %arg12[%c1_841, %c20_842, %c0_843] : memref<2x24x256xf32, #tpu.memory_space<vmem>>, vector<1x1x256xf32>
    %1408 = vector.shape_cast %1407 : vector<1x1x256xf32> to vector<256xf32>
    %1409 = vector.shape_cast %1406 : vector<256xf32> to vector<1x1x256xf32>
    tpu.vector_store %arg12[%c1_841, %c20_842, %c0_843], %1409 {strides = array<i32>} : memref<2x24x256xf32, #tpu.memory_space<vmem>>, vector<1x1x256xf32>,
    %1410 = vector.extract_strided_slice %1197 {offsets = [1, 0], sizes = [1, 256], strides = [1, 1]} : vector<5x256xf32> to vector<1x256xf32>
    %1411 = vector.extract_strided_slice %1365 {offsets = [2, 0], sizes = [1, 256], strides = [1, 1]} : vector<3x256xf32> to vector<1x256xf32>
    %1412 = arith.mulf %1410, %1411 : vector<1x256xf32>
    %1413 = arith.addf %1311, %1412 : vector<1x256xf32>
    %1414 = vector.extract_strided_slice %1197 {offsets = [3, 0], sizes = [1, 256], strides = [1, 1]} : vector<5x256xf32> to vector<1x256xf32>
    %1415 = arith.mulf %1414, %1405 : vector<1x256xf32>
    %1416 = arith.addf %1413, %1415 : vector<1x256xf32>
    %1417 = vector.shape_cast %1382 : vector<1x256xf32> to vector<256xf32>
    %c1_844 = arith.constant 1 : index
    %c8_845 = arith.constant 8 : index
    %c0_846 = arith.constant 0 : index
    %1418 = vector.load %arg12[%c1_844, %c8_845, %c0_846] : memref<2x24x256xf32, #tpu.memory_space<vmem>>, vector<1x1x256xf32>
    %1419 = vector.shape_cast %1418 : vector<1x1x256xf32> to vector<256xf32>
    %1420 = vector.shape_cast %1417 : vector<256xf32> to vector<1x1x256xf32>
    tpu.vector_store %arg12[%c1_844, %c8_845, %c0_846], %1420 {strides = array<i32>} : memref<2x24x256xf32, #tpu.memory_space<vmem>>, vector<1x1x256xf32>,
    %1421 = vector.shape_cast %1399 : vector<1x256xf32> to vector<256xf32>
    %c1_847 = arith.constant 1 : index
    %c9_848 = arith.constant 9 : index
    %c0_849 = arith.constant 0 : index
    %1422 = vector.load %arg12[%c1_847, %c9_848, %c0_849] : memref<2x24x256xf32, #tpu.memory_space<vmem>>, vector<1x1x256xf32>
    %1423 = vector.shape_cast %1422 : vector<1x1x256xf32> to vector<256xf32>
    %1424 = vector.shape_cast %1421 : vector<256xf32> to vector<1x1x256xf32>
    tpu.vector_store %arg12[%c1_847, %c9_848, %c0_849], %1424 {strides = array<i32>} : memref<2x24x256xf32, #tpu.memory_space<vmem>>, vector<1x1x256xf32>,
    %1425 = vector.shape_cast %1416 : vector<1x256xf32> to vector<256xf32>
    %c1_850 = arith.constant 1 : index
    %c10_851 = arith.constant 10 : index
    %c0_852 = arith.constant 0 : index
    %1426 = vector.load %arg12[%c1_850, %c10_851, %c0_852] : memref<2x24x256xf32, #tpu.memory_space<vmem>>, vector<1x1x256xf32>
    %1427 = vector.shape_cast %1426 : vector<1x1x256xf32> to vector<256xf32>
    %1428 = vector.shape_cast %1425 : vector<256xf32> to vector<1x1x256xf32>
    tpu.vector_store %arg12[%c1_850, %c10_851, %c0_852], %1428 {strides = array<i32>} : memref<2x24x256xf32, #tpu.memory_space<vmem>>, vector<1x1x256xf32>,
    return
  }
}

</mosaic_0001>

<llo_original>
// kernel: pixel_shift_decoder_forward.1
$region0: #{pixel_shift_decoder_forward.1}
  #allocation0 [shape = 'u32[]', space=smem, size = 0x4, offset = 0x4, fixed_abs, tag = 'smem constant byte address 0x4 - core index']
  #allocation1 [shape = 'u32[144,128]{1,0:T(1,128)}', space=vmem, size = 0x12000, scoped, tag = 'internal scratch']
  #allocation2 [shape = 'f32[144,256]{1,0:T(8,128)}', space=vmem, size = 0x24000, scoped, tag = 'scratch operand']
  %s0 = inlined_call_operand.vmem [shape: f32[2,32], index: 0, kind: input, shape index: {}]
  %s1 = inlined_call_operand.vmem [shape: f32[2,2,3,256], index: 1, kind: input, shape index: {}]
  %s2 = inlined_call_operand.vmem [shape: f32[2,2,48,16], index: 2, kind: input, shape index: {}]
  %s3 = inlined_call_operand.vmem [shape: f32[32,16,64], index: 3, kind: input, shape index: {}]
  %s4 = inlined_call_operand.hbm [shape: f32[16,64], index: 4, kind: input, shape index: {}]
  %s5 = inlined_call_operand.vmem [shape: bf16[9,64,256], index: 5, kind: input, shape index: {}]
  %s6 = inlined_call_operand.hbm [shape: f32[8,144], index: 6, kind: input, shape index: {}]
  %s7 = inlined_call_operand.vmem [shape: f32[8,1], index: 7, kind: input, shape index: {}]
  %s8 = inlined_call_operand.hbm [shape: f32[8,72], index: 8, kind: input, shape index: {}]
  %s9 = inlined_call_operand.vmem [shape: f32[8,1], index: 9, kind: input, shape index: {}]
  %s10 = inlined_call_operand.hbm [shape: f32[12,72], index: 10, kind: input, shape index: {}]
  %s11 = inlined_call_operand.vmem [shape: f32[12,1], index: 11, kind: input, shape index: {}]
  %s12 = inlined_call_operand.vmem [shape: f32[2,24,256], index: 12, kind: output, shape index: {}]
  %s13 = sld [smem:[#allocation0]]
  $region78: #{pixel_shift_decoder_forward.1} parent=0
    _
  %s15 = ssub.s32 1, %s13
  %s16 = scalar_select 0, %s15, %s13
  $region1: #{pixel_shift_decoder_forward.1} parent=0
    #allocation3 [shape = 'u8[1024]{0}', space=smem, size = 0x400, scoped, tag = 'input window, operand 0, single buffered']
    #allocation4 [shape = 's32[1]{0}', space=sflag, size = 0x4, scoped, tag = 'scoped memory for pixel_shift_decoder_forward.1']
    #allocation5 [shape = 's32[1]{0}', space=sflag, size = 0x4, scoped, tag = 'scoped memory for pixel_shift_decoder_forward.1']
    #allocation6 [shape = 'u8[8192]{0}', space=vmem, size = 0x2000, scoped, tag = 'input window, operand 4, single buffered']
    #allocation7 [shape = 'u8[8192]{0}', space=vmem, size = 0x2000, scoped, tag = 'input window, operand 6, single buffered']
    #allocation8 [shape = 's32[1]{0}', space=sflag, size = 0x4, scoped, tag = 'scoped memory for pixel_shift_decoder_forward.1']
    #allocation9 [shape = 'u8[4096]{0}', space=vmem, size = 0x1000, scoped, tag = 'input window, operand 8, single buffered']
    #allocation10 [shape = 'u8[8192]{0}', space=vmem, size = 0x2000, scoped, tag = 'input window, operand 10, single buffered']
    #allocation11 [shape = 's32[1]{0}', space=sflag, size = 0x4, scoped, tag = 'scoped memory for pixel_shift_decoder_forward.1']
    %17 = vsyncpa [#allocation5], 0
    %18 = vsyncpa [#allocation4], 0
    %19 = vsyncpa [#allocation8], 0
    %20 = vsyncpa [#allocation11], 0
    // Predicated region
    $region2: #{pixel_shift_decoder_forward.1} parent=1 // pred_check
      _
    $region3: #{pixel_shift_decoder_forward.1} parent=1 // pred_check_branch
      %22 = sbr.rel (0) target = $region5
    $region4: #{pixel_shift_decoder_forward.1} parent=1 // pred_region
      %s24 = ssub.s32 32, 32
      %25 = vsyncadd [#allocation5], %s24
      %s27 = sshll.u32 %s0, 4
      %s28 = int_to_ptr.vmem [resolvable:$true] %s27
      %30 = dma.vmem_to_smem %s28, 32, [#allocation3], [#allocation5]
    $region5: #{pixel_shift_decoder_forward.1} parent=1 // pred_fallthru
      _
    // Predicated region
    $region6: #{pixel_shift_decoder_forward.1} parent=1 // pred_check
      _
    $region7: #{pixel_shift_decoder_forward.1} parent=1 // pred_check_branch
      %32 = sbr.rel (0) target = $region9
    $region8: #{pixel_shift_decoder_forward.1} parent=1 // pred_region
      _
    $region9: #{pixel_shift_decoder_forward.1} parent=1 // pred_fallthru
      _
    // Predicated region
    $region10: #{pixel_shift_decoder_forward.1} parent=1 // pred_check
      _
    $region11: #{pixel_shift_decoder_forward.1} parent=1 // pred_check_branch
      %34 = sbr.rel (0) target = $region13
    $region12: #{pixel_shift_decoder_forward.1} parent=1 // pred_region
      _
    $region13: #{pixel_shift_decoder_forward.1} parent=1 // pred_fallthru
      _
    // Predicated region
    $region14: #{pixel_shift_decoder_forward.1} parent=1 // pred_check
      _
    $region15: #{pixel_shift_decoder_forward.1} parent=1 // pred_check_branch
      %36 = sbr.rel (0) target = $region17
    $region16: #{pixel_shift_decoder_forward.1} parent=1 // pred_region
      _
    $region17: #{pixel_shift_decoder_forward.1} parent=1 // pred_fallthru
      _
    // Predicated region
    $region18: #{pixel_shift_decoder_forward.1} parent=1 // pred_check
      _
    $region19: #{pixel_shift_decoder_forward.1} parent=1 // pred_check_branch
      %38 = sbr.rel (0) target = $region21
    $region20: #{pixel_shift_decoder_forward.1} parent=1 // pred_region
      %s40 = ssub.s32 256, 256
      %41 = vsyncadd [#allocation4], %s40
      %s42 = sshll.u32 [#allocation6], 4
      %s43 = int_to_ptr.vmem [resolvable:$true] %s42
      %48 = dma.hbm_to_vmem [thread:$0]  %s4, 256, %s43, [#allocation4], 128, 128, 8
    $region21: #{pixel_shift_decoder_forward.1} parent=1 // pred_fallthru
      _
    // Predicated region
    $region22: #{pixel_shift_decoder_forward.1} parent=1 // pred_check
      _
    $region23: #{pixel_shift_decoder_forward.1} parent=1 // pred_check_branch
      %50 = sbr.rel (0) target = $region25
    $region24: #{pixel_shift_decoder_forward.1} parent=1 // pred_region
      _
    $region25: #{pixel_shift_decoder_forward.1} parent=1 // pred_fallthru
      _
    // Predicated region
    $region26: #{pixel_shift_decoder_forward.1} parent=1 // pred_check
      _
    $region27: #{pixel_shift_decoder_forward.1} parent=1 // pred_check_branch
      %52 = sbr.rel (0) target = $region29
    $region28: #{pixel_shift_decoder_forward.1} parent=1 // pred_region
      %s54 = ssub.s32 256, 256
      %55 = vsyncadd [#allocation8], %s54
      %s57 = sshll.u32 [#allocation7], 4
      %s58 = int_to_ptr.vmem [resolvable:$true] %s57
      %60 = dma.hbm_to_vmem [thread:$0]  %s6, 256, %s58, [#allocation8]
    $region29: #{pixel_shift_decoder_forward.1} parent=1 // pred_fallthru
      _
    // Predicated region
    $region30: #{pixel_shift_decoder_forward.1} parent=1 // pred_check
      _
    $region31: #{pixel_shift_decoder_forward.1} parent=1 // pred_check_branch
      %62 = sbr.rel (0) target = $region33
    $region32: #{pixel_shift_decoder_forward.1} parent=1 // pred_region
      _
    $region33: #{pixel_shift_decoder_forward.1} parent=1 // pred_fallthru
      _
    // Predicated region
    $region34: #{pixel_shift_decoder_forward.1} parent=1 // pred_check
      _
    $region35: #{pixel_shift_decoder_forward.1} parent=1 // pred_check_branch
      %64 = sbr.rel (0) target = $region37
    $region36: #{pixel_shift_decoder_forward.1} parent=1 // pred_region
      %s66 = ssub.s32 128, 128
      %67 = vsyncadd [#allocation8], %s66
      %s69 = sshll.u32 [#allocation9], 4
      %s70 = int_to_ptr.vmem [resolvable:$true] %s69
      %72 = dma.hbm_to_vmem [thread:$0]  %s8, 128, %s70, [#allocation8]
    $region37: #{pixel_shift_decoder_forward.1} parent=1 // pred_fallthru
      _
    // Predicated region
    $region38: #{pixel_shift_decoder_forward.1} parent=1 // pred_check
      _
    $region39: #{pixel_shift_decoder_forward.1} parent=1 // pred_check_branch
      %74 = sbr.rel (0) target = $region41
    $region40: #{pixel_shift_decoder_forward.1} parent=1 // pred_region
      _
    $region41: #{pixel_shift_decoder_forward.1} parent=1 // pred_fallthru
      _
    // Predicated region
    $region42: #{pixel_shift_decoder_forward.1} parent=1 // pred_check
      _
    $region43: #{pixel_shift_decoder_forward.1} parent=1 // pred_check_branch
      %76 = sbr.rel (0) target = $region45
    $region44: #{pixel_shift_decoder_forward.1} parent=1 // pred_region
      %s78 = ssub.s32 256, 256
      %79 = vsyncadd [#allocation11], %s78
      %s80 = sshll.u32 [#allocation10], 4
      %s81 = int_to_ptr.vmem [resolvable:$true] %s80
      %86 = dma.hbm_to_vmem [thread:$0]  %s10, 256, %s81, [#allocation11], 128, 128, 8
    $region45: #{pixel_shift_decoder_forward.1} parent=1 // pred_fallthru
      _
    // Predicated region
    $region46: #{pixel_shift_decoder_forward.1} parent=1 // pred_check
      _
    $region47: #{pixel_shift_decoder_forward.1} parent=1 // pred_check_branch
      %88 = sbr.rel (0) target = $region49
    $region48: #{pixel_shift_decoder_forward.1} parent=1 // pred_region
      _
    $region49: #{pixel_shift_decoder_forward.1} parent=1 // pred_fallthru
      _
    // Predicated region
    $region50: #{pixel_shift_decoder_forward.1} parent=1 // pred_check
      _
    $region51: #{pixel_shift_decoder_forward.1} parent=1 // pred_check_branch
      %90 = sbr.rel (0) target = $region53
    $region52: #{pixel_shift_decoder_forward.1} parent=1 // pred_region
      %91 = dma.done [#allocation5], 32
    $region53: #{pixel_shift_decoder_forward.1} parent=1 // pred_fallthru
      _
    // Predicated region
    $region54: #{pixel_shift_decoder_forward.1} parent=1 // pred_check
      _
    $region55: #{pixel_shift_decoder_forward.1} parent=1 // pred_check_branch
      %93 = sbr.rel (0) target = $region57
    $region56: #{pixel_shift_decoder_forward.1} parent=1 // pred_region
      %94 = dma.done [#allocation4], 256
    $region57: #{pixel_shift_decoder_forward.1} parent=1 // pred_fallthru
      _
    // Predicated region
    $region58: #{pixel_shift_decoder_forward.1} parent=1 // pred_check
      _
    $region59: #{pixel_shift_decoder_forward.1} parent=1 // pred_check_branch
      %96 = sbr.rel (0) target = $region61
    $region60: #{pixel_shift_decoder_forward.1} parent=1 // pred_region
      %97 = dma.done [#allocation8], 256
    $region61: #{pixel_shift_decoder_forward.1} parent=1 // pred_fallthru
      _
    // Predicated region
    $region62: #{pixel_shift_decoder_forward.1} parent=1 // pred_check
      _
    $region63: #{pixel_shift_decoder_forward.1} parent=1 // pred_check_branch
      %99 = sbr.rel (0) target = $region65
    $region64: #{pixel_shift_decoder_forward.1} parent=1 // pred_region
      %100 = dma.done [#allocation8], 128
    $region65: #{pixel_shift_decoder_forward.1} parent=1 // pred_fallthru
      _
    // Predicated region
    $region66: #{pixel_shift_decoder_forward.1} parent=1 // pred_check
      _
    $region67: #{pixel_shift_decoder_forward.1} parent=1 // pred_check_branch
      %102 = sbr.rel (0) target = $region69
    $region68: #{pixel_shift_decoder_forward.1} parent=1 // pred_region
      %103 = dma.done [#allocation11], 256
    $region69: #{pixel_shift_decoder_forward.1} parent=1 // pred_fallthru
      _
    %104 = sfence
    %v105 = vlaneseq
    %v106 = vand.u32 %v105, 127
    %v107 = vadd.s32 %v106, 128
    %v108 = vand.u32 %v106, 15
    %v109 = vand.u32 %v107, 15
    %v110 = vshra.s32 %v106, 4
    %v111 = vshra.s32 %v107, 4
    %v112 = vcvt.s32.f32 %v108
    %v113 = vcvt.s32.f32 %v109
    %v114 = vcvt.s32.f32 %v110
    %v115 = vcvt.s32.f32 %v111
    %v116 = vlaneseq
    %v117 = vshrl.u32 %v116, 7
    %v118 = vadd.s32 %v117, 8
    %v119 = vadd.s32 %v108, 4294967295
    %v120 = vadd.s32 %v109, 4294967295
    %vm121 = vcmp.ge.s32.totalorder %v119, 0
    %vm122 = vcmp.ge.s32.totalorder %v120, 0
    %vm123 = vcmp.lt.s32.totalorder %v119, 16
    %vm124 = vcmp.lt.s32.totalorder %v120, 16
    %vm125 = vmand %vm121, %vm123
    %vm126 = vmand %vm122, %vm124
    %v127 = vadd.s32 %v110, 4294967295
    %v128 = vadd.s32 %v111, 4294967295
    %vm129 = vcmp.ge.s32.totalorder %v127, 0
    %vm130 = vcmp.ge.s32.totalorder %v128, 0
    %vm131 = vmand %vm125, %vm129
    %vm132 = vmand %vm126, %vm130
    %vm133 = vcmp.lt.s32.totalorder %v127, 16
    %vm134 = vcmp.lt.s32.totalorder %v128, 16
    %vm135 = vmand %vm131, %vm133
    %vm136 = vmand %vm132, %vm134
    %vm137 = vcmp.ge.s32.totalorder %v108, 0
    %vm138 = vcmp.ge.s32.totalorder %v109, 0
    %vm139 = vcmp.lt.s32.totalorder %v108, 16
    %vm140 = vcmp.lt.s32.totalorder %v109, 16
    %vm141 = vmand %vm137, %vm139
    %vm142 = vmand %vm138, %vm140
    %vm143 = vmand %vm141, %vm129
    %vm144 = vmand %vm142, %vm130
    %vm145 = vmand %vm143, %vm133
    %vm146 = vmand %vm144, %vm134
    %v147 = vadd.s32 %v108, 1
    %v148 = vadd.s32 %v109, 1
    %vm149 = vcmp.ge.s32.totalorder %v147, 0
    %vm150 = vcmp.ge.s32.totalorder %v148, 0
    %vm151 = vcmp.lt.s32.totalorder %v147, 16
    %vm152 = vcmp.lt.s32.totalorder %v148, 16
    %vm153 = vmand %vm149, %vm151
    %vm154 = vmand %vm150, %vm152
    %vm155 = vmand %vm153, %vm129
    %vm156 = vmand %vm154, %vm130
    %vm157 = vmand %vm155, %vm133
    %vm158 = vmand %vm156, %vm134
    %vm159 = vcmp.ge.s32.totalorder %v110, 0
    %vm160 = vcmp.ge.s32.totalorder %v111, 0
    %vm161 = vmand %vm125, %vm159
    %vm162 = vmand %vm126, %vm160
    %vm163 = vcmp.lt.s32.totalorder %v110, 16
    %vm164 = vcmp.lt.s32.totalorder %v111, 16
    %vm165 = vmand %vm161, %vm163
    %vm166 = vmand %vm162, %vm164
    %vm167 = vmand %vm141, %vm159
    %vm168 = vmand %vm142, %vm160
    %vm169 = vmand %vm167, %vm163
    %vm170 = vmand %vm168, %vm164
    %vm171 = vmand %vm153, %vm159
    %vm172 = vmand %vm154, %vm160
    %vm173 = vmand %vm171, %vm163
    %vm174 = vmand %vm172, %vm164
    %v175 = vadd.s32 %v110, 1
    %v176 = vadd.s32 %v111, 1
    %vm177 = vcmp.ge.s32.totalorder %v175, 0
    %vm178 = vcmp.ge.s32.totalorder %v176, 0
    %vm179 = vmand %vm125, %vm177
    %vm180 = vmand %vm126, %vm178
    %vm181 = vcmp.lt.s32.totalorder %v175, 16
    %vm182 = vcmp.lt.s32.totalorder %v176, 16
    %vm183 = vmand %vm179, %vm181
    %vm184 = vmand %vm180, %vm182
    %vm185 = vmand %vm141, %vm177
    %vm186 = vmand %vm142, %vm178
    %vm187 = vmand %vm185, %vm181
    %vm188 = vmand %vm186, %vm182
    %vm189 = vmand %vm153, %vm177
    %vm190 = vmand %vm154, %vm178
    %vm191 = vmand %vm189, %vm181
    %vm192 = vmand %vm190, %vm182
    %v193 = vld [vmem:[#allocation6] sm:$0xff]
    %v194 = vld [vmem:[#allocation6 + $0x8] sm:$0xff]
    %s195 = sld [smem:[#allocation3]]
    %v196 = vld [vmem:[%s3] sm:$0xff]
    %v197 = vld [vmem:[%s3 + $0x8] sm:$0xff]
    %v198 = vstv %s195
    %v199 = vmul.f32 %v198, %v196
    %v200 = vmul.f32 %v198, %v197
    %v201 = vadd.f32 %v193, %v199
    %v202 = vadd.f32 %v194, %v200
    %s203 = sld [smem:[#allocation3 + $0x1]]
    %s204 = scalar_lea.vmem %s3, 16
    %v205 = vld [vmem:[%s204] sm:$0xff]
    %v206 = vld [vmem:[%s204 + $0x8] sm:$0xff]
    %v207 = vstv %s203
    %v208 = vmul.f32 %v207, %v205
    %v209 = vmul.f32 %v207, %v206
    %v210 = vadd.f32 %v208, 0.0
    %v211 = vadd.f32 %v209, 0.0
    %s212 = sld [smem:[#allocation3 + $0x2]]
    %s213 = scalar_lea.vmem %s3, 32
    %v214 = vld [vmem:[%s213] sm:$0xff]
    %v215 = vld [vmem:[%s213 + $0x8] sm:$0xff]
    %v216 = vstv %s212
    %v217 = vmul.f32 %v216, %v214
    %v218 = vmul.f32 %v216, %v215
    %v219 = vadd.f32 %v217, 0.0
    %v220 = vadd.f32 %v218, 0.0
    %s221 = sld [smem:[#allocation3 + $0x3]]
    %s222 = scalar_lea.vmem %s3, 48
    %v223 = vld [vmem:[%s222] sm:$0xff]
    %v224 = vld [vmem:[%s222 + $0x8] sm:$0xff]
    %v225 = vstv %s221
    %v226 = vmul.f32 %v225, %v223
    %v227 = vmul.f32 %v225, %v224
    %v228 = vadd.f32 %v226, 0.0
    %v229 = vadd.f32 %v227, 0.0
    %s230 = sld [smem:[#allocation3 + $0x4]]
    %s231 = scalar_lea.vmem %s3, 64
    %v232 = vld [vmem:[%s231] sm:$0xff]
    %v233 = vld [vmem:[%s231 + $0x8] sm:$0xff]
    %v234 = vstv %s230
    %v235 = vmul.f32 %v234, %v232
    %v236 = vmul.f32 %v234, %v233
    %v237 = vadd.f32 %v201, %v235
    %v238 = vadd.f32 %v202, %v236
    %s239 = sld [smem:[#allocation3 + $0x5]]
    %s240 = scalar_lea.vmem %s3, 80
    %v241 = vld [vmem:[%s240] sm:$0xff]
    %v242 = vld [vmem:[%s240 + $0x8] sm:$0xff]
    %v243 = vstv %s239
    %v244 = vmul.f32 %v243, %v241
    %v245 = vmul.f32 %v243, %v242
    %v246 = vadd.f32 %v210, %v244
    %v247 = vadd.f32 %v211, %v245
    %s248 = sld [smem:[#allocation3 + $0x6]]
    %s249 = scalar_lea.vmem %s3, 96
    %v250 = vld [vmem:[%s249] sm:$0xff]
    %v251 = vld [vmem:[%s249 + $0x8] sm:$0xff]
    %v252 = vstv %s248
    %v253 = vmul.f32 %v252, %v250
    %v254 = vmul.f32 %v252, %v251
    %v255 = vadd.f32 %v219, %v253
    %v256 = vadd.f32 %v220, %v254
    %s257 = sld [smem:[#allocation3 + $0x7]]
    %s258 = scalar_lea.vmem %s3, 112
    %v259 = vld [vmem:[%s258] sm:$0xff]
    %v260 = vld [vmem:[%s258 + $0x8] sm:$0xff]
    %v261 = vstv %s257
    %v262 = vmul.f32 %v261, %v259
    %v263 = vmul.f32 %v261, %v260
    %v264 = vadd.f32 %v228, %v262
    %v265 = vadd.f32 %v229, %v263
    %s266 = sld [smem:[#allocation3 + $0x8]]
    %s267 = scalar_lea.vmem %s3, 128
    %v268 = vld [vmem:[%s267] sm:$0xff]
    %v269 = vld [vmem:[%s267 + $0x8] sm:$0xff]
    %v270 = vstv %s266
    %v271 = vmul.f32 %v270, %v268
    %v272 = vmul.f32 %v270, %v269
    %v273 = vadd.f32 %v237, %v271
    %v274 = vadd.f32 %v238, %v272
    %s275 = sld [smem:[#allocation3 + $0x9]]
    %s276 = scalar_lea.vmem %s3, 144
    %v277 = vld [vmem:[%s276] sm:$0xff]
    %v278 = vld [vmem:[%s276 + $0x8] sm:$0xff]
    %v279 = vstv %s275
    %v280 = vmul.f32 %v279, %v277
    %v281 = vmul.f32 %v279, %v278
    %v282 = vadd.f32 %v246, %v280
    %v283 = vadd.f32 %v247, %v281
    %s284 = sld [smem:[#allocation3 + $0xa]]
    %s285 = scalar_lea.vmem %s3, 160
    %v286 = vld [vmem:[%s285] sm:$0xff]
    %v287 = vld [vmem:[%s285 + $0x8] sm:$0xff]
    %v288 = vstv %s284
    %v289 = vmul.f32 %v288, %v286
    %v290 = vmul.f32 %v288, %v287
    %v291 = vadd.f32 %v255, %v289
    %v292 = vadd.f32 %v256, %v290
    %s293 = sld [smem:[#allocation3 + $0xb]]
    %s294 = scalar_lea.vmem %s3, 176
    %v295 = vld [vmem:[%s294] sm:$0xff]
    %v296 = vld [vmem:[%s294 + $0x8] sm:$0xff]
    %v297 = vstv %s293
    %v298 = vmul.f32 %v297, %v295
    %v299 = vmul.f32 %v297, %v296
    %v300 = vadd.f32 %v264, %v298
    %v301 = vadd.f32 %v265, %v299
    %s302 = sld [smem:[#allocation3 + $0xc]]
    %s303 = scalar_lea.vmem %s3, 192
    %v304 = vld [vmem:[%s303] sm:$0xff]
    %v305 = vld [vmem:[%s303 + $0x8] sm:$0xff]
    %v306 = vstv %s302
    %v307 = vmul.f32 %v306, %v304
    %v308 = vmul.f32 %v306, %v305
    %v309 = vadd.f32 %v273, %v307
    %v310 = vadd.f32 %v274, %v308
    %s311 = sld [smem:[#allocation3 + $0xd]]
    %s312 = scalar_lea.vmem %s3, 208
    %v313 = vld [vmem:[%s312] sm:$0xff]
    %v314 = vld [vmem:[%s312 + $0x8] sm:$0xff]
    %v315 = vstv %s311
    %v316 = vmul.f32 %v315, %v313
    %v317 = vmul.f32 %v315, %v314
    %v318 = vadd.f32 %v282, %v316
    %v319 = vadd.f32 %v283, %v317
    %s320 = sld [smem:[#allocation3 + $0xe]]
    %s321 = scalar_lea.vmem %s3, 224
    %v322 = vld [vmem:[%s321] sm:$0xff]
    %v323 = vld [vmem:[%s321 + $0x8] sm:$0xff]
    %v324 = vstv %s320
    %v325 = vmul.f32 %v324, %v322
    %v326 = vmul.f32 %v324, %v323
    %v327 = vadd.f32 %v291, %v325
    %v328 = vadd.f32 %v292, %v326
    %s329 = sld [smem:[#allocation3 + $0xf]]
    %s330 = scalar_lea.vmem %s3, 240
    %v331 = vld [vmem:[%s330] sm:$0xff]
    %v332 = vld [vmem:[%s330 + $0x8] sm:$0xff]
    %v333 = vstv %s329
    %v334 = vmul.f32 %v333, %v331
    %v335 = vmul.f32 %v333, %v332
    %v336 = vadd.f32 %v300, %v334
    %v337 = vadd.f32 %v301, %v335
    %s338 = sld [smem:[#allocation3 + $0x10]]
    %s339 = scalar_lea.vmem %s3, 256
    %v340 = vld [vmem:[%s339] sm:$0xff]
    %v341 = vld [vmem:[%s339 + $0x8] sm:$0xff]
    %v342 = vstv %s338
    %v343 = vmul.f32 %v342, %v340
    %v344 = vmul.f32 %v342, %v341
    %v345 = vadd.f32 %v309, %v343
    %v346 = vadd.f32 %v310, %v344
    %s347 = sld [smem:[#allocation3 + $0x11]]
    %s348 = scalar_lea.vmem %s3, 272
    %v349 = vld [vmem:[%s348] sm:$0xff]
    %v350 = vld [vmem:[%s348 + $0x8] sm:$0xff]
    %v351 = vstv %s347
    %v352 = vmul.f32 %v351, %v349
    %v353 = vmul.f32 %v351, %v350
    %v354 = vadd.f32 %v318, %v352
    %v355 = vadd.f32 %v319, %v353
    %s356 = sld [smem:[#allocation3 + $0x12]]
    %s357 = scalar_lea.vmem %s3, 288
    %v358 = vld [vmem:[%s357] sm:$0xff]
    %v359 = vld [vmem:[%s357 + $0x8] sm:$0xff]
    %v360 = vstv %s356
    %v361 = vmul.f32 %v360, %v358
    %v362 = vmul.f32 %v360, %v359
    %v363 = vadd.f32 %v327, %v361
    %v364 = vadd.f32 %v328, %v362
    %s365 = sld [smem:[#allocation3 + $0x13]]
    %s366 = scalar_lea.vmem %s3, 304
    %v367 = vld [vmem:[%s366] sm:$0xff]
    %v368 = vld [vmem:[%s366 + $0x8] sm:$0xff]
    %v369 = vstv %s365
    %v370 = vmul.f32 %v369, %v367
    %v371 = vmul.f32 %v369, %v368
    %v372 = vadd.f32 %v336, %v370
    %v373 = vadd.f32 %v337, %v371
    %s374 = sld [smem:[#allocation3 + $0x14]]
    %s375 = scalar_lea.vmem %s3, 320
    %v376 = vld [vmem:[%s375] sm:$0xff]
    %v377 = vld [vmem:[%s375 + $0x8] sm:$0xff]
    %v378 = vstv %s374
    %v379 = vmul.f32 %v378, %v376
    %v380 = vmul.f32 %v378, %v377
    %v381 = vadd.f32 %v345, %v379
    %v382 = vadd.f32 %v346, %v380
    %s383 = sld [smem:[#allocation3 + $0x15]]
    %s384 = scalar_lea.vmem %s3, 336
    %v385 = vld [vmem:[%s384] sm:$0xff]
    %v386 = vld [vmem:[%s384 + $0x8] sm:$0xff]
    %v387 = vstv %s383
    %v388 = vmul.f32 %v387, %v385
    %v389 = vmul.f32 %v387, %v386
    %v390 = vadd.f32 %v354, %v388
    %v391 = vadd.f32 %v355, %v389
    %s392 = sld [smem:[#allocation3 + $0x16]]
    %s393 = scalar_lea.vmem %s3, 352
    %v394 = vld [vmem:[%s393] sm:$0xff]
    %v395 = vld [vmem:[%s393 + $0x8] sm:$0xff]
    %v396 = vstv %s392
    %v397 = vmul.f32 %v396, %v394
    %v398 = vmul.f32 %v396, %v395
    %v399 = vadd.f32 %v363, %v397
    %v400 = vadd.f32 %v364, %v398
    %s401 = sld [smem:[#allocation3 + $0x17]]
    %s402 = scalar_lea.vmem %s3, 368
    %v403 = vld [vmem:[%s402] sm:$0xff]
    %v404 = vld [vmem:[%s402 + $0x8] sm:$0xff]
    %v405 = vstv %s401
    %v406 = vmul.f32 %v405, %v403
    %v407 = vmul.f32 %v405, %v404
    %v408 = vadd.f32 %v372, %v406
    %v409 = vadd.f32 %v373, %v407
    %s410 = sld [smem:[#allocation3 + $0x18]]
    %s411 = scalar_lea.vmem %s3, 384
    %v412 = vld [vmem:[%s411] sm:$0xff]
    %v413 = vld [vmem:[%s411 + $0x8] sm:$0xff]
    %v414 = vstv %s410
    %v415 = vmul.f32 %v414, %v412
    %v416 = vmul.f32 %v414, %v413
    %v417 = vadd.f32 %v381, %v415
    %v418 = vadd.f32 %v382, %v416
    %s419 = sld [smem:[#allocation3 + $0x19]]
    %s420 = scalar_lea.vmem %s3, 400
    %v421 = vld [vmem:[%s420] sm:$0xff]
    %v422 = vld [vmem:[%s420 + $0x8] sm:$0xff]
    %v423 = vstv %s419
    %v424 = vmul.f32 %v423, %v421
    %v425 = vmul.f32 %v423, %v422
    %v426 = vadd.f32 %v390, %v424
    %v427 = vadd.f32 %v391, %v425
    %s428 = sld [smem:[#allocation3 + $0x1a]]
    %s429 = scalar_lea.vmem %s3, 416
    %v430 = vld [vmem:[%s429] sm:$0xff]
    %v431 = vld [vmem:[%s429 + $0x8] sm:$0xff]
    %v432 = vstv %s428
    %v433 = vmul.f32 %v432, %v430
    %v434 = vmul.f32 %v432, %v431
    %v435 = vadd.f32 %v399, %v433
    %v436 = vadd.f32 %v400, %v434
    %s437 = sld [smem:[#allocation3 + $0x1b]]
    %s438 = scalar_lea.vmem %s3, 432
    %v439 = vld [vmem:[%s438] sm:$0xff]
    %v440 = vld [vmem:[%s438 + $0x8] sm:$0xff]
    %v441 = vstv %s437
    %v442 = vmul.f32 %v441, %v439
    %v443 = vmul.f32 %v441, %v440
    %v444 = vadd.f32 %v408, %v442
    %v445 = vadd.f32 %v409, %v443
    %s446 = sld [smem:[#allocation3 + $0x1c]]
    %s447 = scalar_lea.vmem %s3, 448
    %v448 = vld [vmem:[%s447] sm:$0xff]
    %v449 = vld [vmem:[%s447 + $0x8] sm:$0xff]
    %v450 = vstv %s446
    %v451 = vmul.f32 %v450, %v448
    %v452 = vmul.f32 %v450, %v449
    %v453 = vadd.f32 %v417, %v451
    %v454 = vadd.f32 %v418, %v452
    %s455 = sld [smem:[#allocation3 + $0x1d]]
    %s456 = scalar_lea.vmem %s3, 464
    %v457 = vld [vmem:[%s456] sm:$0xff]
    %v458 = vld [vmem:[%s456 + $0x8] sm:$0xff]
    %v459 = vstv %s455
    %v460 = vmul.f32 %v459, %v457
    %v461 = vmul.f32 %v459, %v458
    %v462 = vadd.f32 %v426, %v460
    %v463 = vadd.f32 %v427, %v461
    %s464 = sld [smem:[#allocation3 + $0x1e]]
    %s465 = scalar_lea.vmem %s3, 480
    %v466 = vld [vmem:[%s465] sm:$0xff]
    %v467 = vld [vmem:[%s465 + $0x8] sm:$0xff]
    %v468 = vstv %s464
    %v469 = vmul.f32 %v468, %v466
    %v470 = vmul.f32 %v468, %v467
    %v471 = vadd.f32 %v435, %v469
    %v472 = vadd.f32 %v436, %v470
    %s473 = sld [smem:[#allocation3 + $0x1f]]
    %s474 = scalar_lea.vmem %s3, 496
    %v475 = vld [vmem:[%s474] sm:$0xff]
    %v476 = vld [vmem:[%s474 + $0x8] sm:$0xff]
    %v477 = vstv %s473
    %v478 = vmul.f32 %v477, %v475
    %v479 = vmul.f32 %v477, %v476
    %v480 = vadd.f32 %v444, %v478
    %v481 = vadd.f32 %v445, %v479
    %v482 = vadd.f32 %v453, %v462
    %v483 = vadd.f32 %v454, %v463
    %v484 = vadd.f32 %v471, %v480
    %v485 = vadd.f32 %v472, %v481
    %v486 = vadd.f32 %v482, %v484
    %v487 = vadd.f32 %v483, %v485
    %vm488 = vcmp.ge.f32.partialorder %v486, 0.0
    %vm489 = vcmp.ge.f32.partialorder %v487, 0.0
    %v490 = vmul.f32 %v486, 0.2
    %v491 = vmul.f32 %v487, 0.2
    %v492 = vsel %vm488, %v486, %v490
    %v493 = vsel %vm489, %v487, %v491
    %v494 = vld [vmem:[%s5] sm:$0xff]
    %v495 = vld [vmem:[%s5 + $0x8] sm:$0xff]
    %v496 = vld [vmem:[%s5 + $0x10] sm:$0xff]
    %v497 = vld [vmem:[%s5 + $0x18] sm:$0xff]
    %v498 = vld [vmem:[%s5 + $0x20] sm:$0xff]
    %v499 = vld [vmem:[%s5 + $0x28] sm:$0xff]
    %v500 = vld [vmem:[%s5 + $0x30] sm:$0xff]
    %v501 = vld [vmem:[%s5 + $0x38] sm:$0xff]
    %v502 = vunpack.c.l.bf16 %v494
    %v503 = vunpack.c.h.bf16 %v494
    %v504 = vunpack.c.l.bf16 %v495
    %v505 = vunpack.c.h.bf16 %v495
    %v506 = vunpack.c.l.bf16 %v496
    %v507 = vunpack.c.h.bf16 %v496
    %v508 = vunpack.c.l.bf16 %v497
    %v509 = vunpack.c.h.bf16 %v497
    %v510 = vunpack.c.l.bf16 %v498
    %v511 = vunpack.c.h.bf16 %v498
    %v512 = vunpack.c.l.bf16 %v499
    %v513 = vunpack.c.h.bf16 %v499
    %v514 = vunpack.c.l.bf16 %v500
    %v515 = vunpack.c.h.bf16 %v500
    %v516 = vunpack.c.l.bf16 %v501
    %v517 = vunpack.c.h.bf16 %v501
    %vm518 = vcmask 523264
    %v520 = vsel %vm518, %v492, 0
    %v523 = vsel %vm518, %v493, 0
    %525 = vmatprep.subr.mxu0 %v503
    %526 = vmatpush1.msra.mxu0 %v502
    %527 = vmatprep.subr.mxu0 %v505
    %528 = vmatpush1.msra.mxu0 %v504
    %529 = vmatprep.subr.mxu0 %v507
    %530 = vmatpush1.msra.mxu0 %v506
    %531 = vmatprep.subr.mxu0 %v509
    %532 = vmatpush1.msra.mxu0 %v508
    %533 = vmatprep.subr.mxu0 %v511
    %534 = vmatpush1.msra.mxu0 %v510
    %535 = vmatprep.subr.mxu0 %v513
    %536 = vmatpush1.msra.mxu0 %v512
    %537 = vmatprep.subr.mxu0 %v515
    %538 = vmatpush1.msra.mxu0 %v514
    %539 = vmatprep.subr.mxu0 %v517
    %540 = vmatpush1.msra.mxu0 %v516
    %541 = vmatprep.subr.mxu0 0.0
    %542 = vmatpush1.msra.mxu0 0.0
    %543 = vmatprep.subr.mxu0 0.0
    %544 = vmatpush1.msra.mxu0 0.0
    %545 = vmatprep.subr.mxu0 0.0
    %546 = vmatpush1.msra.mxu0 0.0
    %547 = vmatprep.subr.mxu0 0.0
    %548 = vmatpush1.msra.mxu0 0.0
    %549 = vmatprep.subr.mxu0 0.0
    %550 = vmatpush1.msra.mxu0 0.0
    %551 = vmatprep.subr.mxu0 0.0
    %552 = vmatpush1.msra.mxu0 0.0
    %553 = vmatprep.subr.mxu0 0.0
    %554 = vmatpush1.msra.mxu0 0.0
    %555 = vmatprep.subr.mxu0 0.0
    %556 = vmatpush1.msra.mxu0 0.0
    %557 = vmatprep.subr.mxu0 0.0
    %558 = vmatpush1.msra.mxu0 0.0
    %559 = vmatprep.subr.mxu0 0.0
    %560 = vmatpush1.msra.mxu0 0.0
    %561 = vmatprep.subr.mxu0 0.0
    %562 = vmatpush1.msra.mxu0 0.0
    %563 = vmatprep.subr.mxu0 0.0
    %564 = vmatpush1.msra.mxu0 0.0
    %565 = vmatprep.subr.mxu0 0.0
    %566 = vmatpush1.msra.mxu0 0.0
    %567 = vmatprep.subr.mxu0 0.0
    %568 = vmatpush1.msra.mxu0 0.0
    %569 = vmatprep.subr.mxu0 0.0
    %570 = vmatpush1.msra.mxu0 0.0
    %571 = vmatprep.subr.mxu0 0.0
    %572 = vmatpush1.msra.mxu0 0.0
    %573 = vmatprep.subr.mxu0 0.0
    %574 = vmatpush1.msra.mxu0 0.0
    %575 = vmatprep.subr.mxu0 0.0
    %576 = vmatpush1.msra.mxu0 0.0
    %577 = vmatprep.subr.mxu0 0.0
    %578 = vmatpush1.msra.mxu0 0.0
    %579 = vmatprep.subr.mxu0 0.0
    %580 = vmatpush1.msra.mxu0 0.0
    %581 = vmatprep.subr.mxu0 0.0
    %582 = vmatpush1.msra.mxu0 0.0
    %583 = vmatprep.subr.mxu0 0.0
    %584 = vmatpush1.msra.mxu0 0.0
    %585 = vmatprep.subr.mxu0 0.0
    %586 = vmatpush1.msra.mxu0 0.0
    %587 = vmatprep.subr.mxu0 0.0
    %588 = vmatpush1.msra.mxu0 0.0
    %589 = vmatprep.mubr.f32.mxu0 0.0
    %590 = vmatmul.mubr.f32.gmra.mrb[0].mxu0 %v520
    %v591 = vpop.f32.mrb[0].mxu0
    %v592 = vadd.f32 0.0, %v591
    %v593 = vpop.f32.mrb[0].mxu0
    %v594 = vadd.f32 0.0, %v593
    %595 = vmatprep.mubr.f32.mxu0 0.0
    %596 = vmatmul.mubr.f32.gmra.mrb[0].mxu0 %v523
    %v597 = vpop.f32.mrb[0].mxu0
    %v598 = vadd.f32 0.0, %v597
    %v599 = vpop.f32.mrb[0].mxu0
    %v600 = vadd.f32 0.0, %v599
    %601 = vdwg.mxu0
    %602 = vst [vmem:[#allocation2] sm:$0xff] %v592
    %603 = vst [vmem:[#allocation2 + $0x8] sm:$0xff] %v594
    %604 = vst [vmem:[#allocation2 + $0x10] sm:$0xff] %v598
    %605 = vst [vmem:[#allocation2 + $0x18] sm:$0xff] %v600
    %s606 = scalar_lea.vmem %s5, 64
    %v607 = vld [vmem:[%s606] sm:$0xff]
    %v608 = vld [vmem:[%s606 + $0x8] sm:$0xff]
    %v609 = vld [vmem:[%s606 + $0x10] sm:$0xff]
    %v610 = vld [vmem:[%s606 + $0x18] sm:$0xff]
    %v611 = vld [vmem:[%s606 + $0x20] sm:$0xff]
    %v612 = vld [vmem:[%s606 + $0x28] sm:$0xff]
    %v613 = vld [vmem:[%s606 + $0x30] sm:$0xff]
    %v614 = vld [vmem:[%s606 + $0x38] sm:$0xff]
    %v615 = vunpack.c.l.bf16 %v607
    %v616 = vunpack.c.h.bf16 %v607
    %v617 = vunpack.c.l.bf16 %v608
    %v618 = vunpack.c.h.bf16 %v608
    %v619 = vunpack.c.l.bf16 %v609
    %v620 = vunpack.c.h.bf16 %v609
    %v621 = vunpack.c.l.bf16 %v610
    %v622 = vunpack.c.h.bf16 %v610
    %v623 = vunpack.c.l.bf16 %v611
    %v624 = vunpack.c.h.bf16 %v611
    %v625 = vunpack.c.l.bf16 %v612
    %v626 = vunpack.c.h.bf16 %v612
    %v627 = vunpack.c.l.bf16 %v613
    %v628 = vunpack.c.h.bf16 %v613
    %v629 = vunpack.c.l.bf16 %v614
    %v630 = vunpack.c.h.bf16 %v614
    %631 = vmatprep.subr.mxu0 %v616
    %632 = vmatpush1.msra.mxu0 %v615
    %633 = vmatprep.subr.mxu0 %v618
    %634 = vmatpush1.msra.mxu0 %v617
    %635 = vmatprep.subr.mxu0 %v620
    %636 = vmatpush1.msra.mxu0 %v619
    %637 = vmatprep.subr.mxu0 %v622
    %638 = vmatpush1.msra.mxu0 %v621
    %639 = vmatprep.subr.mxu0 %v624
    %640 = vmatpush1.msra.mxu0 %v623
    %641 = vmatprep.subr.mxu0 %v626
    %642 = vmatpush1.msra.mxu0 %v625
    %643 = vmatprep.subr.mxu0 %v628
    %644 = vmatpush1.msra.mxu0 %v627
    %645 = vmatprep.subr.mxu0 %v630
    %646 = vmatpush1.msra.mxu0 %v629
    %647 = vmatprep.subr.mxu0 0.0
    %648 = vmatpush1.msra.mxu0 0.0
    %649 = vmatprep.subr.mxu0 0.0
    %650 = vmatpush1.msra.mxu0 0.0
    %651 = vmatprep.subr.mxu0 0.0
    %652 = vmatpush1.msra.mxu0 0.0
    %653 = vmatprep.subr.mxu0 0.0
    %654 = vmatpush1.msra.mxu0 0.0
    %655 = vmatprep.subr.mxu0 0.0
    %656 = vmatpush1.msra.mxu0 0.0
    %657 = vmatprep.subr.mxu0 0.0
    %658 = vmatpush1.msra.mxu0 0.0
    %659 = vmatprep.subr.mxu0 0.0
    %660 = vmatpush1.msra.mxu0 0.0
    %661 = vmatprep.subr.mxu0 0.0
    %662 = vmatpush1.msra.mxu0 0.0
    %663 = vmatprep.subr.mxu0 0.0
    %664 = vmatpush1.msra.mxu0 0.0
    %665 = vmatprep.subr.mxu0 0.0
    %666 = vmatpush1.msra.mxu0 0.0
    %667 = vmatprep.subr.mxu0 0.0
    %668 = vmatpush1.msra.mxu0 0.0
    %669 = vmatprep.subr.mxu0 0.0
    %670 = vmatpush1.msra.mxu0 0.0
    %671 = vmatprep.subr.mxu0 0.0
    %672 = vmatpush1.msra.mxu0 0.0
    %673 = vmatprep.subr.mxu0 0.0
    %674 = vmatpush1.msra.mxu0 0.0
    %675 = vmatprep.subr.mxu0 0.0
    %676 = vmatpush1.msra.mxu0 0.0
    %677 = vmatprep.subr.mxu0 0.0
    %678 = vmatpush1.msra.mxu0 0.0
    %679 = vmatprep.subr.mxu0 0.0
    %680 = vmatpush1.msra.mxu0 0.0
    %681 = vmatprep.subr.mxu0 0.0
    %682 = vmatpush1.msra.mxu0 0.0
    %683 = vmatprep.subr.mxu0 0.0
    %684 = vmatpush1.msra.mxu0 0.0
    %685 = vmatprep.subr.mxu0 0.0
    %686 = vmatpush1.msra.mxu0 0.0
    %687 = vmatprep.subr.mxu0 0.0
    %688 = vmatpush1.msra.mxu0 0.0
    %689 = vmatprep.subr.mxu0 0.0
    %690 = vmatpush1.msra.mxu0 0.0
    %691 = vmatprep.subr.mxu0 0.0
    %692 = vmatpush1.msra.mxu0 0.0
    %693 = vmatprep.subr.mxu0 0.0
    %694 = vmatpush1.msra.mxu0 0.0
    %695 = vmatprep.mubr.f32.mxu0 0.0
    %696 = vmatmul.mubr.f32.gmra.mrb[0].mxu0 %v520
    %v697 = vpop.f32.mrb[0].mxu0
    %v698 = vadd.f32 0.0, %v697
    %v699 = vpop.f32.mrb[0].mxu0
    %v700 = vadd.f32 0.0, %v699
    %701 = vmatprep.mubr.f32.mxu0 0.0
    %702 = vmatmul.mubr.f32.gmra.mrb[0].mxu0 %v523
    %v703 = vpop.f32.mrb[0].mxu0
    %v704 = vadd.f32 0.0, %v703
    %v705 = vpop.f32.mrb[0].mxu0
    %v706 = vadd.f32 0.0, %v705
    %707 = vdwg.mxu0
    %708 = vst [vmem:[#allocation2 + $0x20] sm:$0xff] %v698
    %709 = vst [vmem:[#allocation2 + $0x28] sm:$0xff] %v700
    %710 = vst [vmem:[#allocation2 + $0x30] sm:$0xff] %v704
    %711 = vst [vmem:[#allocation2 + $0x38] sm:$0xff] %v706
    %s712 = scalar_lea.vmem %s5, 128
    %v713 = vld [vmem:[%s712] sm:$0xff]
    %v714 = vld [vmem:[%s712 + $0x8] sm:$0xff]
    %v715 = vld [vmem:[%s712 + $0x10] sm:$0xff]
    %v716 = vld [vmem:[%s712 + $0x18] sm:$0xff]
    %v717 = vld [vmem:[%s712 + $0x20] sm:$0xff]
    %v718 = vld [vmem:[%s712 + $0x28] sm:$0xff]
    %v719 = vld [vmem:[%s712 + $0x30] sm:$0xff]
    %v720 = vld [vmem:[%s712 + $0x38] sm:$0xff]
    %v721 = vunpack.c.l.bf16 %v713
    %v722 = vunpack.c.h.bf16 %v713
    %v723 = vunpack.c.l.bf16 %v714
    %v724 = vunpack.c.h.bf16 %v714
    %v725 = vunpack.c.l.bf16 %v715
    %v726 = vunpack.c.h.bf16 %v715
    %v727 = vunpack.c.l.bf16 %v716
    %v728 = vunpack.c.h.bf16 %v716
    %v729 = vunpack.c.l.bf16 %v717
    %v730 = vunpack.c.h.bf16 %v717
    %v731 = vunpack.c.l.bf16 %v718
    %v732 = vunpack.c.h.bf16 %v718
    %v733 = vunpack.c.l.bf16 %v719
    %v734 = vunpack.c.h.bf16 %v719
    %v735 = vunpack.c.l.bf16 %v720
    %v736 = vunpack.c.h.bf16 %v720
    %737 = vmatprep.subr.mxu0 %v722
    %738 = vmatpush1.msra.mxu0 %v721
    %739 = vmatprep.subr.mxu0 %v724
    %740 = vmatpush1.msra.mxu0 %v723
    %741 = vmatprep.subr.mxu0 %v726
    %742 = vmatpush1.msra.mxu0 %v725
    %743 = vmatprep.subr.mxu0 %v728
    %744 = vmatpush1.msra.mxu0 %v727
    %745 = vmatprep.subr.mxu0 %v730
    %746 = vmatpush1.msra.mxu0 %v729
    %747 = vmatprep.subr.mxu0 %v732
    %748 = vmatpush1.msra.mxu0 %v731
    %749 = vmatprep.subr.mxu0 %v734
    %750 = vmatpush1.msra.mxu0 %v733
    %751 = vmatprep.subr.mxu0 %v736
    %752 = vmatpush1.msra.mxu0 %v735
    %753 = vmatprep.subr.mxu0 0.0
    %754 = vmatpush1.msra.mxu0 0.0
    %755 = vmatprep.subr.mxu0 0.0
    %756 = vmatpush1.msra.mxu0 0.0
    %757 = vmatprep.subr.mxu0 0.0
    %758 = vmatpush1.msra.mxu0 0.0
    %759 = vmatprep.subr.mxu0 0.0
    %760 = vmatpush1.msra.mxu0 0.0
    %761 = vmatprep.subr.mxu0 0.0
    %762 = vmatpush1.msra.mxu0 0.0
    %763 = vmatprep.subr.mxu0 0.0
    %764 = vmatpush1.msra.mxu0 0.0
    %765 = vmatprep.subr.mxu0 0.0
    %766 = vmatpush1.msra.mxu0 0.0
    %767 = vmatprep.subr.mxu0 0.0
    %768 = vmatpush1.msra.mxu0 0.0
    %769 = vmatprep.subr.mxu0 0.0
    %770 = vmatpush1.msra.mxu0 0.0
    %771 = vmatprep.subr.mxu0 0.0
    %772 = vmatpush1.msra.mxu0 0.0
    %773 = vmatprep.subr.mxu0 0.0
    %774 = vmatpush1.msra.mxu0 0.0
    %775 = vmatprep.subr.mxu0 0.0
    %776 = vmatpush1.msra.mxu0 0.0
    %777 = vmatprep.subr.mxu0 0.0
    %778 = vmatpush1.msra.mxu0 0.0
    %779 = vmatprep.subr.mxu0 0.0
    %780 = vmatpush1.msra.mxu0 0.0
    %781 = vmatprep.subr.mxu0 0.0
    %782 = vmatpush1.msra.mxu0 0.0
    %783 = vmatprep.subr.mxu0 0.0
    %784 = vmatpush1.msra.mxu0 0.0
    %785 = vmatprep.subr.mxu0 0.0
    %786 = vmatpush1.msra.mxu0 0.0
    %787 = vmatprep.subr.mxu0 0.0
    %788 = vmatpush1.msra.mxu0 0.0
    %789 = vmatprep.subr.mxu0 0.0
    %790 = vmatpush1.msra.mxu0 0.0
    %791 = vmatprep.subr.mxu0 0.0
    %792 = vmatpush1.msra.mxu0 0.0
    %793 = vmatprep.subr.mxu0 0.0
    %794 = vmatpush1.msra.mxu0 0.0
    %795 = vmatprep.subr.mxu0 0.0
    %796 = vmatpush1.msra.mxu0 0.0
    %797 = vmatprep.subr.mxu0 0.0
    %798 = vmatpush1.msra.mxu0 0.0
    %799 = vmatprep.subr.mxu0 0.0
    %800 = vmatpush1.msra.mxu0 0.0
    %801 = vmatprep.mubr.f32.mxu0 0.0
    %802 = vmatmul.mubr.f32.gmra.mrb[0].mxu0 %v520
    %v803 = vpop.f32.mrb[0].mxu0
    %v804 = vadd.f32 0.0, %v803
    %v805 = vpop.f32.mrb[0].mxu0
    %v806 = vadd.f32 0.0, %v805
    %807 = vmatprep.mubr.f32.mxu0 0.0
    %808 = vmatmul.mubr.f32.gmra.mrb[0].mxu0 %v523
    %v809 = vpop.f32.mrb[0].mxu0
    %v810 = vadd.f32 0.0, %v809
    %v811 = vpop.f32.mrb[0].mxu0
    %v812 = vadd.f32 0.0, %v811
    %813 = vdwg.mxu0
    %814 = vst [vmem:[#allocation2 + $0x40] sm:$0xff] %v804
    %815 = vst [vmem:[#allocation2 + $0x48] sm:$0xff] %v806
    %816 = vst [vmem:[#allocation2 + $0x50] sm:$0xff] %v810
    %817 = vst [vmem:[#allocation2 + $0x58] sm:$0xff] %v812
    %s818 = scalar_lea.vmem %s5, 192
    %v819 = vld [vmem:[%s818] sm:$0xff]
    %v820 = vld [vmem:[%s818 + $0x8] sm:$0xff]
    %v821 = vld [vmem:[%s818 + $0x10] sm:$0xff]
    %v822 = vld [vmem:[%s818 + $0x18] sm:$0xff]
    %v823 = vld [vmem:[%s818 + $0x20] sm:$0xff]
    %v824 = vld [vmem:[%s818 + $0x28] sm:$0xff]
    %v825 = vld [vmem:[%s818 + $0x30] sm:$0xff]
    %v826 = vld [vmem:[%s818 + $0x38] sm:$0xff]
    %v827 = vunpack.c.l.bf16 %v819
    %v828 = vunpack.c.h.bf16 %v819
    %v829 = vunpack.c.l.bf16 %v820
    %v830 = vunpack.c.h.bf16 %v820
    %v831 = vunpack.c.l.bf16 %v821
    %v832 = vunpack.c.h.bf16 %v821
    %v833 = vunpack.c.l.bf16 %v822
    %v834 = vunpack.c.h.bf16 %v822
    %v835 = vunpack.c.l.bf16 %v823
    %v836 = vunpack.c.h.bf16 %v823
    %v837 = vunpack.c.l.bf16 %v824
    %v838 = vunpack.c.h.bf16 %v824
    %v839 = vunpack.c.l.bf16 %v825
    %v840 = vunpack.c.h.bf16 %v825
    %v841 = vunpack.c.l.bf16 %v826
    %v842 = vunpack.c.h.bf16 %v826
    %843 = vmatprep.subr.mxu0 %v828
    %844 = vmatpush1.msra.mxu0 %v827
    %845 = vmatprep.subr.mxu0 %v830
    %846 = vmatpush1.msra.mxu0 %v829
    %847 = vmatprep.subr.mxu0 %v832
    %848 = vmatpush1.msra.mxu0 %v831
    %849 = vmatprep.subr.mxu0 %v834
    %850 = vmatpush1.msra.mxu0 %v833
    %851 = vmatprep.subr.mxu0 %v836
    %852 = vmatpush1.msra.mxu0 %v835
    %853 = vmatprep.subr.mxu0 %v838
    %854 = vmatpush1.msra.mxu0 %v837
    %855 = vmatprep.subr.mxu0 %v840
    %856 = vmatpush1.msra.mxu0 %v839
    %857 = vmatprep.subr.mxu0 %v842
    %858 = vmatpush1.msra.mxu0 %v841
    %859 = vmatprep.subr.mxu0 0.0
    %860 = vmatpush1.msra.mxu0 0.0
    %861 = vmatprep.subr.mxu0 0.0
    %862 = vmatpush1.msra.mxu0 0.0
    %863 = vmatprep.subr.mxu0 0.0
    %864 = vmatpush1.msra.mxu0 0.0
    %865 = vmatprep.subr.mxu0 0.0
    %866 = vmatpush1.msra.mxu0 0.0
    %867 = vmatprep.subr.mxu0 0.0
    %868 = vmatpush1.msra.mxu0 0.0
    %869 = vmatprep.subr.mxu0 0.0
    %870 = vmatpush1.msra.mxu0 0.0
    %871 = vmatprep.subr.mxu0 0.0
    %872 = vmatpush1.msra.mxu0 0.0
    %873 = vmatprep.subr.mxu0 0.0
    %874 = vmatpush1.msra.mxu0 0.0
    %875 = vmatprep.subr.mxu0 0.0
    %876 = vmatpush1.msra.mxu0 0.0
    %877 = vmatprep.subr.mxu0 0.0
    %878 = vmatpush1.msra.mxu0 0.0
    %879 = vmatprep.subr.mxu0 0.0
    %880 = vmatpush1.msra.mxu0 0.0
    %881 = vmatprep.subr.mxu0 0.0
    %882 = vmatpush1.msra.mxu0 0.0
    %883 = vmatprep.subr.mxu0 0.0
    %884 = vmatpush1.msra.mxu0 0.0
    %885 = vmatprep.subr.mxu0 0.0
    %886 = vmatpush1.msra.mxu0 0.0
    %887 = vmatprep.subr.mxu0 0.0
    %888 = vmatpush1.msra.mxu0 0.0
    %889 = vmatprep.subr.mxu0 0.0
    %890 = vmatpush1.msra.mxu0 0.0
    %891 = vmatprep.subr.mxu0 0.0
    %892 = vmatpush1.msra.mxu0 0.0
    %893 = vmatprep.subr.mxu0 0.0
    %894 = vmatpush1.msra.mxu0 0.0
    %895 = vmatprep.subr.mxu0 0.0
    %896 = vmatpush1.msra.mxu0 0.0
    %897 = vmatprep.subr.mxu0 0.0
    %898 = vmatpush1.msra.mxu0 0.0
    %899 = vmatprep.subr.mxu0 0.0
    %900 = vmatpush1.msra.mxu0 0.0
    %901 = vmatprep.subr.mxu0 0.0
    %902 = vmatpush1.msra.mxu0 0.0
    %903 = vmatprep.subr.mxu0 0.0
    %904 = vmatpush1.msra.mxu0 0.0
    %905 = vmatprep.subr.mxu0 0.0
    %906 = vmatpush1.msra.mxu0 0.0
    %907 = vmatprep.mubr.f32.mxu0 0.0
    %908 = vmatmul.mubr.f32.gmra.mrb[0].mxu0 %v520
    %v909 = vpop.f32.mrb[0].mxu0
    %v910 = vadd.f32 0.0, %v909
    %v911 = vpop.f32.mrb[0].mxu0
    %v912 = vadd.f32 0.0, %v911
    %913 = vmatprep.mubr.f32.mxu0 0.0
    %914 = vmatmul.mubr.f32.gmra.mrb[0].mxu0 %v523
    %v915 = vpop.f32.mrb[0].mxu0
    %v916 = vadd.f32 0.0, %v915
    %v917 = vpop.f32.mrb[0].mxu0
    %v918 = vadd.f32 0.0, %v917
    %919 = vdwg.mxu0
    %920 = vst [vmem:[#allocation2 + $0x60] sm:$0xff] %v910
    %921 = vst [vmem:[#allocation2 + $0x68] sm:$0xff] %v912
    %922 = vst [vmem:[#allocation2 + $0x70] sm:$0xff] %v916
    %923 = vst [vmem:[#allocation2 + $0x78] sm:$0xff] %v918
    %s924 = scalar_lea.vmem %s5, 256
    %v925 = vld [vmem:[%s924] sm:$0xff]
    %v926 = vld [vmem:[%s924 + $0x8] sm:$0xff]
    %v927 = vld [vmem:[%s924 + $0x10] sm:$0xff]
    %v928 = vld [vmem:[%s924 + $0x18] sm:$0xff]
    %v929 = vld [vmem:[%s924 + $0x20] sm:$0xff]
    %v930 = vld [vmem:[%s924 + $0x28] sm:$0xff]
    %v931 = vld [vmem:[%s924 + $0x30] sm:$0xff]
    %v932 = vld [vmem:[%s924 + $0x38] sm:$0xff]
    %v933 = vunpack.c.l.bf16 %v925
    %v934 = vunpack.c.h.bf16 %v925
    %v935 = vunpack.c.l.bf16 %v926
    %v936 = vunpack.c.h.bf16 %v926
    %v937 = vunpack.c.l.bf16 %v927
    %v938 = vunpack.c.h.bf16 %v927
    %v939 = vunpack.c.l.bf16 %v928
    %v940 = vunpack.c.h.bf16 %v928
    %v941 = vunpack.c.l.bf16 %v929
    %v942 = vunpack.c.h.bf16 %v929
    %v943 = vunpack.c.l.bf16 %v930
    %v944 = vunpack.c.h.bf16 %v930
    %v945 = vunpack.c.l.bf16 %v931
    %v946 = vunpack.c.h.bf16 %v931
    %v947 = vunpack.c.l.bf16 %v932
    %v948 = vunpack.c.h.bf16 %v932
    %949 = vmatprep.subr.mxu0 %v934
    %950 = vmatpush1.msra.mxu0 %v933
    %951 = vmatprep.subr.mxu0 %v936
    %952 = vmatpush1.msra.mxu0 %v935
    %953 = vmatprep.subr.mxu0 %v938
    %954 = vmatpush1.msra.mxu0 %v937
    %955 = vmatprep.subr.mxu0 %v940
    %956 = vmatpush1.msra.mxu0 %v939
    %957 = vmatprep.subr.mxu0 %v942
    %958 = vmatpush1.msra.mxu0 %v941
    %959 = vmatprep.subr.mxu0 %v944
    %960 = vmatpush1.msra.mxu0 %v943
    %961 = vmatprep.subr.mxu0 %v946
    %962 = vmatpush1.msra.mxu0 %v945
    %963 = vmatprep.subr.mxu0 %v948
    %964 = vmatpush1.msra.mxu0 %v947
    %965 = vmatprep.subr.mxu0 0.0
    %966 = vmatpush1.msra.mxu0 0.0
    %967 = vmatprep.subr.mxu0 0.0
    %968 = vmatpush1.msra.mxu0 0.0
    %969 = vmatprep.subr.mxu0 0.0
    %970 = vmatpush1.msra.mxu0 0.0
    %971 = vmatprep.subr.mxu0 0.0
    %972 = vmatpush1.msra.mxu0 0.0
    %973 = vmatprep.subr.mxu0 0.0
    %974 = vmatpush1.msra.mxu0 0.0
    %975 = vmatprep.subr.mxu0 0.0
    %976 = vmatpush1.msra.mxu0 0.0
    %977 = vmatprep.subr.mxu0 0.0
    %978 = vmatpush1.msra.mxu0 0.0
    %979 = vmatprep.subr.mxu0 0.0
    %980 = vmatpush1.msra.mxu0 0.0
    %981 = vmatprep.subr.mxu0 0.0
    %982 = vmatpush1.msra.mxu0 0.0
    %983 = vmatprep.subr.mxu0 0.0
    %984 = vmatpush1.msra.mxu0 0.0
    %985 = vmatprep.subr.mxu0 0.0
    %986 = vmatpush1.msra.mxu0 0.0
    %987 = vmatprep.subr.mxu0 0.0
    %988 = vmatpush1.msra.mxu0 0.0
    %989 = vmatprep.subr.mxu0 0.0
    %990 = vmatpush1.msra.mxu0 0.0
    %991 = vmatprep.subr.mxu0 0.0
    %992 = vmatpush1.msra.mxu0 0.0
    %993 = vmatprep.subr.mxu0 0.0
    %994 = vmatpush1.msra.mxu0 0.0
    %995 = vmatprep.subr.mxu0 0.0
    %996 = vmatpush1.msra.mxu0 0.0
    %997 = vmatprep.subr.mxu0 0.0
    %998 = vmatpush1.msra.mxu0 0.0
    %999 = vmatprep.subr.mxu0 0.0
    %1000 = vmatpush1.msra.mxu0 0.0
    %1001 = vmatprep.subr.mxu0 0.0
    %1002 = vmatpush1.msra.mxu0 0.0
    %1003 = vmatprep.subr.mxu0 0.0
    %1004 = vmatpush1.msra.mxu0 0.0
    %1005 = vmatprep.subr.mxu0 0.0
    %1006 = vmatpush1.msra.mxu0 0.0
    %1007 = vmatprep.subr.mxu0 0.0
    %1008 = vmatpush1.msra.mxu0 0.0
    %1009 = vmatprep.subr.mxu0 0.0
    %1010 = vmatpush1.msra.mxu0 0.0
    %1011 = vmatprep.subr.mxu0 0.0
    %1012 = vmatpush1.msra.mxu0 0.0
    %1013 = vmatprep.mubr.f32.mxu0 0.0
    %1014 = vmatmul.mubr.f32.gmra.mrb[0].mxu0 %v520
    %v1015 = vpop.f32.mrb[0].mxu0
    %v1016 = vadd.f32 0.0, %v1015
    %v1017 = vpop.f32.mrb[0].mxu0
    %v1018 = vadd.f32 0.0, %v1017
    %1019 = vmatprep.mubr.f32.mxu0 0.0
    %1020 = vmatmul.mubr.f32.gmra.mrb[0].mxu0 %v523
    %v1021 = vpop.f32.mrb[0].mxu0
    %v1022 = vadd.f32 0.0, %v1021
    %v1023 = vpop.f32.mrb[0].mxu0
    %v1024 = vadd.f32 0.0, %v1023
    %1025 = vdwg.mxu0
    %1026 = vst [vmem:[#allocation2 + $0x80] sm:$0xff] %v1016
    %1027 = vst [vmem:[#allocation2 + $0x88] sm:$0xff] %v1018
    %1028 = vst [vmem:[#allocation2 + $0x90] sm:$0xff] %v1022
    %1029 = vst [vmem:[#allocation2 + $0x98] sm:$0xff] %v1024
    %s1030 = scalar_lea.vmem %s5, 320
    %v1031 = vld [vmem:[%s1030] sm:$0xff]
    %v1032 = vld [vmem:[%s1030 + $0x8] sm:$0xff]
    %v1033 = vld [vmem:[%s1030 + $0x10] sm:$0xff]
    %v1034 = vld [vmem:[%s1030 + $0x18] sm:$0xff]
    %v1035 = vld [vmem:[%s1030 + $0x20] sm:$0xff]
    %v1036 = vld [vmem:[%s1030 + $0x28] sm:$0xff]
    %v1037 = vld [vmem:[%s1030 + $0x30] sm:$0xff]
    %v1038 = vld [vmem:[%s1030 + $0x38] sm:$0xff]
    %v1039 = vunpack.c.l.bf16 %v1031
    %v1040 = vunpack.c.h.bf16 %v1031
    %v1041 = vunpack.c.l.bf16 %v1032
    %v1042 = vunpack.c.h.bf16 %v1032
    %v1043 = vunpack.c.l.bf16 %v1033
    %v1044 = vunpack.c.h.bf16 %v1033
    %v1045 = vunpack.c.l.bf16 %v1034
    %v1046 = vunpack.c.h.bf16 %v1034
    %v1047 = vunpack.c.l.bf16 %v1035
    %v1048 = vunpack.c.h.bf16 %v1035
    %v1049 = vunpack.c.l.bf16 %v1036
    %v1050 = vunpack.c.h.bf16 %v1036
    %v1051 = vunpack.c.l.bf16 %v1037
    %v1052 = vunpack.c.h.bf16 %v1037
    %v1053 = vunpack.c.l.bf16 %v1038
    %v1054 = vunpack.c.h.bf16 %v1038
    %1055 = vmatprep.subr.mxu0 %v1040
    %1056 = vmatpush1.msra.mxu0 %v1039
    %1057 = vmatprep.subr.mxu0 %v1042
    %1058 = vmatpush1.msra.mxu0 %v1041
    %1059 = vmatprep.subr.mxu0 %v1044
    %1060 = vmatpush1.msra.mxu0 %v1043
    %1061 = vmatprep.subr.mxu0 %v1046
    %1062 = vmatpush1.msra.mxu0 %v1045
    %1063 = vmatprep.subr.mxu0 %v1048
    %1064 = vmatpush1.msra.mxu0 %v1047
    %1065 = vmatprep.subr.mxu0 %v1050
    %1066 = vmatpush1.msra.mxu0 %v1049
    %1067 = vmatprep.subr.mxu0 %v1052
    %1068 = vmatpush1.msra.mxu0 %v1051
    %1069 = vmatprep.subr.mxu0 %v1054
    %1070 = vmatpush1.msra.mxu0 %v1053
    %1071 = vmatprep.subr.mxu0 0.0
    %1072 = vmatpush1.msra.mxu0 0.0
    %1073 = vmatprep.subr.mxu0 0.0
    %1074 = vmatpush1.msra.mxu0 0.0
    %1075 = vmatprep.subr.mxu0 0.0
    %1076 = vmatpush1.msra.mxu0 0.0
    %1077 = vmatprep.subr.mxu0 0.0
    %1078 = vmatpush1.msra.mxu0 0.0
    %1079 = vmatprep.subr.mxu0 0.0
    %1080 = vmatpush1.msra.mxu0 0.0
    %1081 = vmatprep.subr.mxu0 0.0
    %1082 = vmatpush1.msra.mxu0 0.0
    %1083 = vmatprep.subr.mxu0 0.0
    %1084 = vmatpush1.msra.mxu0 0.0
    %1085 = vmatprep.subr.mxu0 0.0
    %1086 = vmatpush1.msra.mxu0 0.0
    %1087 = vmatprep.subr.mxu0 0.0
    %1088 = vmatpush1.msra.mxu0 0.0
    %1089 = vmatprep.subr.mxu0 0.0
    %1090 = vmatpush1.msra.mxu0 0.0
    %1091 = vmatprep.subr.mxu0 0.0
    %1092 = vmatpush1.msra.mxu0 0.0
    %1093 = vmatprep.subr.mxu0 0.0
    %1094 = vmatpush1.msra.mxu0 0.0
    %1095 = vmatprep.subr.mxu0 0.0
    %1096 = vmatpush1.msra.mxu0 0.0
    %1097 = vmatprep.subr.mxu0 0.0
    %1098 = vmatpush1.msra.mxu0 0.0
    %1099 = vmatprep.subr.mxu0 0.0
    %1100 = vmatpush1.msra.mxu0 0.0
    %1101 = vmatprep.subr.mxu0 0.0
    %1102 = vmatpush1.msra.mxu0 0.0
    %1103 = vmatprep.subr.mxu0 0.0
    %1104 = vmatpush1.msra.mxu0 0.0
    %1105 = vmatprep.subr.mxu0 0.0
    %1106 = vmatpush1.msra.mxu0 0.0
    %1107 = vmatprep.subr.mxu0 0.0
    %1108 = vmatpush1.msra.mxu0 0.0
    %1109 = vmatprep.subr.mxu0 0.0
    %1110 = vmatpush1.msra.mxu0 0.0
    %1111 = vmatprep.subr.mxu0 0.0
    %1112 = vmatpush1.msra.mxu0 0.0
    %1113 = vmatprep.subr.mxu0 0.0
    %1114 = vmatpush1.msra.mxu0 0.0
    %1115 = vmatprep.subr.mxu0 0.0
    %1116 = vmatpush1.msra.mxu0 0.0
    %1117 = vmatprep.subr.mxu0 0.0
    %1118 = vmatpush1.msra.mxu0 0.0
    %1119 = vmatprep.mubr.f32.mxu0 0.0
    %1120 = vmatmul.mubr.f32.gmra.mrb[0].mxu0 %v520
    %v1121 = vpop.f32.mrb[0].mxu0
    %v1122 = vadd.f32 0.0, %v1121
    %v1123 = vpop.f32.mrb[0].mxu0
    %v1124 = vadd.f32 0.0, %v1123
    %1125 = vmatprep.mubr.f32.mxu0 0.0
    %1126 = vmatmul.mubr.f32.gmra.mrb[0].mxu0 %v523
    %v1127 = vpop.f32.mrb[0].mxu0
    %v1128 = vadd.f32 0.0, %v1127
    %v1129 = vpop.f32.mrb[0].mxu0
    %v1130 = vadd.f32 0.0, %v1129
    %1131 = vdwg.mxu0
    %1132 = vst [vmem:[#allocation2 + $0xa0] sm:$0xff] %v1122
    %1133 = vst [vmem:[#allocation2 + $0xa8] sm:$0xff] %v1124
    %1134 = vst [vmem:[#allocation2 + $0xb0] sm:$0xff] %v1128
    %1135 = vst [vmem:[#allocation2 + $0xb8] sm:$0xff] %v1130
    %s1136 = scalar_lea.vmem %s5, 384
    %v1137 = vld [vmem:[%s1136] sm:$0xff]
    %v1138 = vld [vmem:[%s1136 + $0x8] sm:$0xff]
    %v1139 = vld [vmem:[%s1136 + $0x10] sm:$0xff]
    %v1140 = vld [vmem:[%s1136 + $0x18] sm:$0xff]
    %v1141 = vld [vmem:[%s1136 + $0x20] sm:$0xff]
    %v1142 = vld [vmem:[%s1136 + $0x28] sm:$0xff]
    %v1143 = vld [vmem:[%s1136 + $0x30] sm:$0xff]
    %v1144 = vld [vmem:[%s1136 + $0x38] sm:$0xff]
    %v1145 = vunpack.c.l.bf16 %v1137
    %v1146 = vunpack.c.h.bf16 %v1137
    %v1147 = vunpack.c.l.bf16 %v1138
    %v1148 = vunpack.c.h.bf16 %v1138
    %v1149 = vunpack.c.l.bf16 %v1139
    %v1150 = vunpack.c.h.bf16 %v1139
    %v1151 = vunpack.c.l.bf16 %v1140
    %v1152 = vunpack.c.h.bf16 %v1140
    %v1153 = vunpack.c.l.bf16 %v1141
    %v1154 = vunpack.c.h.bf16 %v1141
    %v1155 = vunpack.c.l.bf16 %v1142
    %v1156 = vunpack.c.h.bf16 %v1142
    %v1157 = vunpack.c.l.bf16 %v1143
    %v1158 = vunpack.c.h.bf16 %v1143
    %v1159 = vunpack.c.l.bf16 %v1144
    %v1160 = vunpack.c.h.bf16 %v1144
    %1161 = vmatprep.subr.mxu0 %v1146
    %1162 = vmatpush1.msra.mxu0 %v1145
    %1163 = vmatprep.subr.mxu0 %v1148
    %1164 = vmatpush1.msra.mxu0 %v1147
    %1165 = vmatprep.subr.mxu0 %v1150
    %1166 = vmatpush1.msra.mxu0 %v1149
    %1167 = vmatprep.subr.mxu0 %v1152
    %1168 = vmatpush1.msra.mxu0 %v1151
    %1169 = vmatprep.subr.mxu0 %v1154
    %1170 = vmatpush1.msra.mxu0 %v1153
    %1171 = vmatprep.subr.mxu0 %v1156
    %1172 = vmatpush1.msra.mxu0 %v1155
    %1173 = vmatprep.subr.mxu0 %v1158
    %1174 = vmatpush1.msra.mxu0 %v1157
    %1175 = vmatprep.subr.mxu0 %v1160
    %1176 = vmatpush1.msra.mxu0 %v1159
    %1177 = vmatprep.subr.mxu0 0.0
    %1178 = vmatpush1.msra.mxu0 0.0
    %1179 = vmatprep.subr.mxu0 0.0
    %1180 = vmatpush1.msra.mxu0 0.0
    %1181 = vmatprep.subr.mxu0 0.0
    %1182 = vmatpush1.msra.mxu0 0.0
    %1183 = vmatprep.subr.mxu0 0.0
    %1184 = vmatpush1.msra.mxu0 0.0
    %1185 = vmatprep.subr.mxu0 0.0
    %1186 = vmatpush1.msra.mxu0 0.0
    %1187 = vmatprep.subr.mxu0 0.0
    %1188 = vmatpush1.msra.mxu0 0.0
    %1189 = vmatprep.subr.mxu0 0.0
    %1190 = vmatpush1.msra.mxu0 0.0
    %1191 = vmatprep.subr.mxu0 0.0
    %1192 = vmatpush1.msra.mxu0 0.0
    %1193 = vmatprep.subr.mxu0 0.0
    %1194 = vmatpush1.msra.mxu0 0.0
    %1195 = vmatprep.subr.mxu0 0.0
    %1196 = vmatpush1.msra.mxu0 0.0
    %1197 = vmatprep.subr.mxu0 0.0
    %1198 = vmatpush1.msra.mxu0 0.0
    %1199 = vmatprep.subr.mxu0 0.0
    %1200 = vmatpush1.msra.mxu0 0.0
    %1201 = vmatprep.subr.mxu0 0.0
    %1202 = vmatpush1.msra.mxu0 0.0
    %1203 = vmatprep.subr.mxu0 0.0
    %1204 = vmatpush1.msra.mxu0 0.0
    %1205 = vmatprep.subr.mxu0 0.0
    %1206 = vmatpush1.msra.mxu0 0.0
    %1207 = vmatprep.subr.mxu0 0.0
    %1208 = vmatpush1.msra.mxu0 0.0
    %1209 = vmatprep.subr.mxu0 0.0
    %1210 = vmatpush1.msra.mxu0 0.0
    %1211 = vmatprep.subr.mxu0 0.0
    %1212 = vmatpush1.msra.mxu0 0.0
    %1213 = vmatprep.subr.mxu0 0.0
    %1214 = vmatpush1.msra.mxu0 0.0
    %1215 = vmatprep.subr.mxu0 0.0
    %1216 = vmatpush1.msra.mxu0 0.0
    %1217 = vmatprep.subr.mxu0 0.0
    %1218 = vmatpush1.msra.mxu0 0.0
    %1219 = vmatprep.subr.mxu0 0.0
    %1220 = vmatpush1.msra.mxu0 0.0
    %1221 = vmatprep.subr.mxu0 0.0
    %1222 = vmatpush1.msra.mxu0 0.0
    %1223 = vmatprep.subr.mxu0 0.0
    %1224 = vmatpush1.msra.mxu0 0.0
    %1225 = vmatprep.mubr.f32.mxu0 0.0
    %1226 = vmatmul.mubr.f32.gmra.mrb[0].mxu0 %v520
    %v1227 = vpop.f32.mrb[0].mxu0
    %v1228 = vadd.f32 0.0, %v1227
    %v1229 = vpop.f32.mrb[0].mxu0
    %v1230 = vadd.f32 0.0, %v1229
    %1231 = vmatprep.mubr.f32.mxu0 0.0
    %1232 = vmatmul.mubr.f32.gmra.mrb[0].mxu0 %v523
    %v1233 = vpop.f32.mrb[0].mxu0
    %v1234 = vadd.f32 0.0, %v1233
    %v1235 = vpop.f32.mrb[0].mxu0
    %v1236 = vadd.f32 0.0, %v1235
    %1237 = vdwg.mxu0
    %1238 = vst [vmem:[#allocation2 + $0xc0] sm:$0xff] %v1228
    %1239 = vst [vmem:[#allocation2 + $0xc8] sm:$0xff] %v1230
    %1240 = vst [vmem:[#allocation2 + $0xd0] sm:$0xff] %v1234
    %1241 = vst [vmem:[#allocation2 + $0xd8] sm:$0xff] %v1236
    %s1242 = scalar_lea.vmem %s5, 448
    %v1243 = vld [vmem:[%s1242] sm:$0xff]
    %v1244 = vld [vmem:[%s1242 + $0x8] sm:$0xff]
    %v1245 = vld [vmem:[%s1242 + $0x10] sm:$0xff]
    %v1246 = vld [vmem:[%s1242 + $0x18] sm:$0xff]
    %v1247 = vld [vmem:[%s1242 + $0x20] sm:$0xff]
    %v1248 = vld [vmem:[%s1242 + $0x28] sm:$0xff]
    %v1249 = vld [vmem:[%s1242 + $0x30] sm:$0xff]
    %v1250 = vld [vmem:[%s1242 + $0x38] sm:$0xff]
    %v1251 = vunpack.c.l.bf16 %v1243
    %v1252 = vunpack.c.h.bf16 %v1243
    %v1253 = vunpack.c.l.bf16 %v1244
    %v1254 = vunpack.c.h.bf16 %v1244
    %v1255 = vunpack.c.l.bf16 %v1245
    %v1256 = vunpack.c.h.bf16 %v1245
    %v1257 = vunpack.c.l.bf16 %v1246
    %v1258 = vunpack.c.h.bf16 %v1246
    %v1259 = vunpack.c.l.bf16 %v1247
    %v1260 = vunpack.c.h.bf16 %v1247
    %v1261 = vunpack.c.l.bf16 %v1248
    %v1262 = vunpack.c.h.bf16 %v1248
    %v1263 = vunpack.c.l.bf16 %v1249
    %v1264 = vunpack.c.h.bf16 %v1249
    %v1265 = vunpack.c.l.bf16 %v1250
    %v1266 = vunpack.c.h.bf16 %v1250
    %1267 = vmatprep.subr.mxu0 %v1252
    %1268 = vmatpush1.msra.mxu0 %v1251
    %1269 = vmatprep.subr.mxu0 %v1254
    %1270 = vmatpush1.msra.mxu0 %v1253
    %1271 = vmatprep.subr.mxu0 %v1256
    %1272 = vmatpush1.msra.mxu0 %v1255
    %1273 = vmatprep.subr.mxu0 %v1258
    %1274 = vmatpush1.msra.mxu0 %v1257
    %1275 = vmatprep.subr.mxu0 %v1260
    %1276 = vmatpush1.msra.mxu0 %v1259
    %1277 = vmatprep.subr.mxu0 %v1262
    %1278 = vmatpush1.msra.mxu0 %v1261
    %1279 = vmatprep.subr.mxu0 %v1264
    %1280 = vmatpush1.msra.mxu0 %v1263
    %1281 = vmatprep.subr.mxu0 %v1266
    %1282 = vmatpush1.msra.mxu0 %v1265
    %1283 = vmatprep.subr.mxu0 0.0
    %1284 = vmatpush1.msra.mxu0 0.0
    %1285 = vmatprep.subr.mxu0 0.0
    %1286 = vmatpush1.msra.mxu0 0.0
    %1287 = vmatprep.subr.mxu0 0.0
    %1288 = vmatpush1.msra.mxu0 0.0
    %1289 = vmatprep.subr.mxu0 0.0
    %1290 = vmatpush1.msra.mxu0 0.0
    %1291 = vmatprep.subr.mxu0 0.0
    %1292 = vmatpush1.msra.mxu0 0.0
    %1293 = vmatprep.subr.mxu0 0.0
    %1294 = vmatpush1.msra.mxu0 0.0
    %1295 = vmatprep.subr.mxu0 0.0
    %1296 = vmatpush1.msra.mxu0 0.0
    %1297 = vmatprep.subr.mxu0 0.0
    %1298 = vmatpush1.msra.mxu0 0.0
    %1299 = vmatprep.subr.mxu0 0.0
    %1300 = vmatpush1.msra.mxu0 0.0
    %1301 = vmatprep.subr.mxu0 0.0
    %1302 = vmatpush1.msra.mxu0 0.0
    %1303 = vmatprep.subr.mxu0 0.0
    %1304 = vmatpush1.msra.mxu0 0.0
    %1305 = vmatprep.subr.mxu0 0.0
    %1306 = vmatpush1.msra.mxu0 0.0
    %1307 = vmatprep.subr.mxu0 0.0
    %1308 = vmatpush1.msra.mxu0 0.0
    %1309 = vmatprep.subr.mxu0 0.0
    %1310 = vmatpush1.msra.mxu0 0.0
    %1311 = vmatprep.subr.mxu0 0.0
    %1312 = vmatpush1.msra.mxu0 0.0
    %1313 = vmatprep.subr.mxu0 0.0
    %1314 = vmatpush1.msra.mxu0 0.0
    %1315 = vmatprep.subr.mxu0 0.0
    %1316 = vmatpush1.msra.mxu0 0.0
    %1317 = vmatprep.subr.mxu0 0.0
    %1318 = vmatpush1.msra.mxu0 0.0
    %1319 = vmatprep.subr.mxu0 0.0
    %1320 = vmatpush1.msra.mxu0 0.0
    %1321 = vmatprep.subr.mxu0 0.0
    %1322 = vmatpush1.msra.mxu0 0.0
    %1323 = vmatprep.subr.mxu0 0.0
    %1324 = vmatpush1.msra.mxu0 0.0
    %1325 = vmatprep.subr.mxu0 0.0
    %1326 = vmatpush1.msra.mxu0 0.0
    %1327 = vmatprep.subr.mxu0 0.0
    %1328 = vmatpush1.msra.mxu0 0.0
    %1329 = vmatprep.subr.mxu0 0.0
    %1330 = vmatpush1.msra.mxu0 0.0
    %1331 = vmatprep.mubr.f32.mxu0 0.0
    %1332 = vmatmul.mubr.f32.gmra.mrb[0].mxu0 %v520
    %v1333 = vpop.f32.mrb[0].mxu0
    %v1334 = vadd.f32 0.0, %v1333
    %v1335 = vpop.f32.mrb[0].mxu0
    %v1336 = vadd.f32 0.0, %v1335
    %1337 = vmatprep.mubr.f32.mxu0 0.0
    %1338 = vmatmul.mubr.f32.gmra.mrb[0].mxu0 %v523
    %v1339 = vpop.f32.mrb[0].mxu0
    %v1340 = vadd.f32 0.0, %v1339
    %v1341 = vpop.f32.mrb[0].mxu0
    %v1342 = vadd.f32 0.0, %v1341
    %1343 = vdwg.mxu0
    %1344 = vst [vmem:[#allocation2 + $0xe0] sm:$0xff] %v1334
    %1345 = vst [vmem:[#allocation2 + $0xe8] sm:$0xff] %v1336
    %1346 = vst [vmem:[#allocation2 + $0xf0] sm:$0xff] %v1340
    %1347 = vst [vmem:[#allocation2 + $0xf8] sm:$0xff] %v1342
    %s1348 = scalar_lea.vmem %s5, 512
    %v1349 = vld [vmem:[%s1348] sm:$0xff]
    %v1350 = vld [vmem:[%s1348 + $0x8] sm:$0xff]
    %v1351 = vld [vmem:[%s1348 + $0x10] sm:$0xff]
    %v1352 = vld [vmem:[%s1348 + $0x18] sm:$0xff]
    %v1353 = vld [vmem:[%s1348 + $0x20] sm:$0xff]
    %v1354 = vld [vmem:[%s1348 + $0x28] sm:$0xff]
    %v1355 = vld [vmem:[%s1348 + $0x30] sm:$0xff]
    %v1356 = vld [vmem:[%s1348 + $0x38] sm:$0xff]
    %v1357 = vunpack.c.l.bf16 %v1349
    %v1358 = vunpack.c.h.bf16 %v1349
    %v1359 = vunpack.c.l.bf16 %v1350
    %v1360 = vunpack.c.h.bf16 %v1350
    %v1361 = vunpack.c.l.bf16 %v1351
    %v1362 = vunpack.c.h.bf16 %v1351
    %v1363 = vunpack.c.l.bf16 %v1352
    %v1364 = vunpack.c.h.bf16 %v1352
    %v1365 = vunpack.c.l.bf16 %v1353
    %v1366 = vunpack.c.h.bf16 %v1353
    %v1367 = vunpack.c.l.bf16 %v1354
    %v1368 = vunpack.c.h.bf16 %v1354
    %v1369 = vunpack.c.l.bf16 %v1355
    %v1370 = vunpack.c.h.bf16 %v1355
    %v1371 = vunpack.c.l.bf16 %v1356
    %v1372 = vunpack.c.h.bf16 %v1356
    %1373 = vmatprep.subr.mxu0 %v1358
    %1374 = vmatpush1.msra.mxu0 %v1357
    %1375 = vmatprep.subr.mxu0 %v1360
    %1376 = vmatpush1.msra.mxu0 %v1359
    %1377 = vmatprep.subr.mxu0 %v1362
    %1378 = vmatpush1.msra.mxu0 %v1361
    %1379 = vmatprep.subr.mxu0 %v1364
    %1380 = vmatpush1.msra.mxu0 %v1363
    %1381 = vmatprep.subr.mxu0 %v1366
    %1382 = vmatpush1.msra.mxu0 %v1365
    %1383 = vmatprep.subr.mxu0 %v1368
    %1384 = vmatpush1.msra.mxu0 %v1367
    %1385 = vmatprep.subr.mxu0 %v1370
    %1386 = vmatpush1.msra.mxu0 %v1369
    %1387 = vmatprep.subr.mxu0 %v1372
    %1388 = vmatpush1.msra.mxu0 %v1371
    %1389 = vmatprep.subr.mxu0 0.0
    %1390 = vmatpush1.msra.mxu0 0.0
    %1391 = vmatprep.subr.mxu0 0.0
    %1392 = vmatpush1.msra.mxu0 0.0
    %1393 = vmatprep.subr.mxu0 0.0
    %1394 = vmatpush1.msra.mxu0 0.0
    %1395 = vmatprep.subr.mxu0 0.0
    %1396 = vmatpush1.msra.mxu0 0.0
    %1397 = vmatprep.subr.mxu0 0.0
    %1398 = vmatpush1.msra.mxu0 0.0
    %1399 = vmatprep.subr.mxu0 0.0
    %1400 = vmatpush1.msra.mxu0 0.0
    %1401 = vmatprep.subr.mxu0 0.0
    %1402 = vmatpush1.msra.mxu0 0.0
    %1403 = vmatprep.subr.mxu0 0.0
    %1404 = vmatpush1.msra.mxu0 0.0
    %1405 = vmatprep.subr.mxu0 0.0
    %1406 = vmatpush1.msra.mxu0 0.0
    %1407 = vmatprep.subr.mxu0 0.0
    %1408 = vmatpush1.msra.mxu0 0.0
    %1409 = vmatprep.subr.mxu0 0.0
    %1410 = vmatpush1.msra.mxu0 0.0
    %1411 = vmatprep.subr.mxu0 0.0
    %1412 = vmatpush1.msra.mxu0 0.0
    %1413 = vmatprep.subr.mxu0 0.0
    %1414 = vmatpush1.msra.mxu0 0.0
    %1415 = vmatprep.subr.mxu0 0.0
    %1416 = vmatpush1.msra.mxu0 0.0
    %1417 = vmatprep.subr.mxu0 0.0
    %1418 = vmatpush1.msra.mxu0 0.0
    %1419 = vmatprep.subr.mxu0 0.0
    %1420 = vmatpush1.msra.mxu0 0.0
    %1421 = vmatprep.subr.mxu0 0.0
    %1422 = vmatpush1.msra.mxu0 0.0
    %1423 = vmatprep.subr.mxu0 0.0
    %1424 = vmatpush1.msra.mxu0 0.0
    %1425 = vmatprep.subr.mxu0 0.0
    %1426 = vmatpush1.msra.mxu0 0.0
    %1427 = vmatprep.subr.mxu0 0.0
    %1428 = vmatpush1.msra.mxu0 0.0
    %1429 = vmatprep.subr.mxu0 0.0
    %1430 = vmatpush1.msra.mxu0 0.0
    %1431 = vmatprep.subr.mxu0 0.0
    %1432 = vmatpush1.msra.mxu0 0.0
    %1433 = vmatprep.subr.mxu0 0.0
    %1434 = vmatpush1.msra.mxu0 0.0
    %1435 = vmatprep.subr.mxu0 0.0
    %1436 = vmatpush1.msra.mxu0 0.0
    %1437 = vmatprep.mubr.f32.mxu0 0.0
    %1438 = vmatmul.mubr.f32.gmra.mrb[0].mxu0 %v520
    %v1439 = vpop.f32.mrb[0].mxu0
    %v1440 = vadd.f32 0.0, %v1439
    %v1441 = vpop.f32.mrb[0].mxu0
    %v1442 = vadd.f32 0.0, %v1441
    %1443 = vmatprep.mubr.f32.mxu0 0.0
    %1444 = vmatmul.mubr.f32.gmra.mrb[0].mxu0 %v523
    %v1445 = vpop.f32.mrb[0].mxu0
    %v1446 = vadd.f32 0.0, %v1445
    %v1447 = vpop.f32.mrb[0].mxu0
    %v1448 = vadd.f32 0.0, %v1447
    %1449 = vdwg.mxu0
    %1450 = vst [vmem:[#allocation2 + $0x100] sm:$0xff] %v1440
    %1451 = vst [vmem:[#allocation2 + $0x108] sm:$0xff] %v1442
    %1452 = vst [vmem:[#allocation2 + $0x110] sm:$0xff] %v1446
    %1453 = vst [vmem:[#allocation2 + $0x118] sm:$0xff] %v1448
    %v1454 = vld [vmem:[#allocation7] sm:$0xff]
    %v1455 = vld [vmem:[#allocation7 + $0x8] sm:$0xff]
    %v1456 = vld [vmem:[#allocation2] sm:$0xff]
    %v1457 = vld [vmem:[#allocation2 + $0x8] sm:$0xff]
    %v1458 = vld [vmem:[#allocation2 + $0x10] sm:$0xff]
    %v1459 = vld [vmem:[#allocation2 + $0x18] sm:$0xff]
    %v1460 = vld [vmem:[#allocation2 + $0x20] sm:$0xff]
    %v1461 = vld [vmem:[#allocation2 + $0x28] sm:$0xff]
    %v1462 = vld [vmem:[#allocation2 + $0x30] sm:$0xff]
    %v1463 = vld [vmem:[#allocation2 + $0x38] sm:$0xff]
    %v1464 = vld [vmem:[#allocation2 + $0x40] sm:$0xff]
    %v1465 = vld [vmem:[#allocation2 + $0x48] sm:$0xff]
    %v1466 = vld [vmem:[#allocation2 + $0x50] sm:$0xff]
    %v1467 = vld [vmem:[#allocation2 + $0x58] sm:$0xff]
    %v1468 = vld [vmem:[#allocation2 + $0x60] sm:$0xff]
    %v1469 = vld [vmem:[#allocation2 + $0x68] sm:$0xff]
    %v1470 = vld [vmem:[#allocation2 + $0x70] sm:$0xff]
    %v1471 = vld [vmem:[#allocation2 + $0x78] sm:$0xff]
    %v1472 = vld [vmem:[#allocation2 + $0x80] sm:$0xff]
    %v1473 = vld [vmem:[#allocation2 + $0x88] sm:$0xff]
    %v1474 = vld [vmem:[#allocation2 + $0x90] sm:$0xff]
    %v1475 = vld [vmem:[#allocation2 + $0x98] sm:$0xff]
    %v1476 = vld [vmem:[#allocation2 + $0xa0] sm:$0xff]
    %v1477 = vld [vmem:[#allocation2 + $0xa8] sm:$0xff]
    %v1478 = vld [vmem:[#allocation2 + $0xb0] sm:$0xff]
    %v1479 = vld [vmem:[#allocation2 + $0xb8] sm:$0xff]
    %v1480 = vld [vmem:[#allocation2 + $0xc0] sm:$0xff]
    %v1481 = vld [vmem:[#allocation2 + $0xc8] sm:$0xff]
    %v1482 = vld [vmem:[#allocation2 + $0xd0] sm:$0xff]
    %v1483 = vld [vmem:[#allocation2 + $0xd8] sm:$0xff]
    %v1484 = vld [vmem:[#allocation2 + $0xe0] sm:$0xff]
    %v1485 = vld [vmem:[#allocation2 + $0xe8] sm:$0xff]
    %v1486 = vld [vmem:[#allocation2 + $0xf0] sm:$0xff]
    %v1487 = vld [vmem:[#allocation2 + $0xf8] sm:$0xff]
    %v1488 = vld [vmem:[#allocation2 + $0x100] sm:$0xff]
    %v1489 = vld [vmem:[#allocation2 + $0x108] sm:$0xff]
    %v1490 = vld [vmem:[#allocation2 + $0x110] sm:$0xff]
    %v1491 = vld [vmem:[#allocation2 + $0x118] sm:$0xff]
    %v1492 = vld [vmem:[%s7] sm:$0xff]
    %1494 = vset.pattern.permute.xlu0 0
    %1495 = vperm.xlu0 %1494, %v1492
    %v1496 = vpop.permute.xlu0 %1495
    %vm1498 = vcmask 130048
    %v1500 = vsel %vm1498, %v1455, 0
    %1502 = vmatprep.subr.mxu0 %v1457
    %1503 = vmatpush1.msra.mxu0 %v1456
    %1504 = vmatprep.subr.mxu0 %v1459
    %1505 = vmatpush1.msra.mxu0 %v1458
    %1506 = vmatprep.subr.mxu0 %v1461
    %1507 = vmatpush1.msra.mxu0 %v1460
    %1508 = vmatprep.subr.mxu0 %v1463
    %1509 = vmatpush1.msra.mxu0 %v1462
    %1510 = vmatprep.subr.mxu0 %v1465
    %1511 = vmatpush1.msra.mxu0 %v1464
    %1512 = vmatprep.subr.mxu0 %v1467
    %1513 = vmatpush1.msra.mxu0 %v1466
    %1514 = vmatprep.subr.mxu0 %v1469
    %1515 = vmatpush1.msra.mxu0 %v1468
    %1516 = vmatprep.subr.mxu0 %v1471
    %1517 = vmatpush1.msra.mxu0 %v1470
    %1518 = vmatprep.subr.mxu0 %v1473
    %1519 = vmatpush1.msra.mxu0 %v1472
    %1520 = vmatprep.subr.mxu0 %v1475
    %1521 = vmatpush1.msra.mxu0 %v1474
    %1522 = vmatprep.subr.mxu0 %v1477
    %1523 = vmatpush1.msra.mxu0 %v1476
    %1524 = vmatprep.subr.mxu0 %v1479
    %1525 = vmatpush1.msra.mxu0 %v1478
    %1526 = vmatprep.subr.mxu0 %v1481
    %1527 = vmatpush1.msra.mxu0 %v1480
    %1528 = vmatprep.subr.mxu0 %v1483
    %1529 = vmatpush1.msra.mxu0 %v1482
    %1530 = vmatprep.subr.mxu0 %v1485
    %1531 = vmatpush1.msra.mxu0 %v1484
    %1532 = vmatprep.subr.mxu0 %v1487
    %1533 = vmatpush1.msra.mxu0 %v1486
    %1534 = vmatprep.subr.mxu0 %v1489
    %1535 = vmatpush1.msra.mxu0 %v1488
    %1536 = vmatprep.subr.mxu0 %v1491
    %1537 = vmatpush1.msra.mxu0 %v1490
    %1538 = vmatprep.subr.mxu0 0.0
    %1539 = vmatpush1.msra.mxu0 0.0
    %1540 = vmatprep.subr.mxu0 0.0
    %1541 = vmatpush1.msra.mxu0 0.0
    %1542 = vmatprep.subr.mxu0 0.0
    %1543 = vmatpush1.msra.mxu0 0.0
    %1544 = vmatprep.subr.mxu0 0.0
    %1545 = vmatpush1.msra.mxu0 0.0
    %1546 = vmatprep.subr.mxu0 0.0
    %1547 = vmatpush1.msra.mxu0 0.0
    %1548 = vmatprep.subr.mxu0 0.0
    %1549 = vmatpush1.msra.mxu0 0.0
    %1550 = vmatprep.subr.mxu0 0.0
    %1551 = vmatpush1.msra.mxu0 0.0
    %1552 = vmatprep.subr.mxu0 0.0
    %1553 = vmatpush1.msra.mxu0 0.0
    %1554 = vmatprep.subr.mxu0 0.0
    %1555 = vmatpush1.msra.mxu0 0.0
    %1556 = vmatprep.subr.mxu0 0.0
    %1557 = vmatpush1.msra.mxu0 0.0
    %1558 = vmatprep.subr.mxu0 0.0
    %1559 = vmatpush1.msra.mxu0 0.0
    %1560 = vmatprep.subr.mxu0 0.0
    %1561 = vmatpush1.msra.mxu0 0.0
    %1562 = vmatprep.subr.mxu0 0.0
    %1563 = vmatpush1.msra.mxu0 0.0
    %1564 = vmatprep.subr.mxu0 0.0
    %1565 = vmatpush1.msra.mxu0 0.0
    %1566 = vmatprep.mubr.f32.mxu0 %v1500
    %1567 = vmatmul.mubr.f32.gmra.mrb[0].mxu0 %v1454
    %v1568 = vpop.f32.mrb[0].mxu0
    %v1569 = vadd.f32 %v1496, %v1568
    %v1570 = vpop.f32.mrb[0].mxu0
    %v1571 = vadd.f32 %v1496, %v1570
    %1572 = vdwg.mxu0
    %vm1573 = vcmp.ge.f32.partialorder %v1569, 0.0
    %vm1574 = vcmp.ge.f32.partialorder %v1571, 0.0
    %v1575 = vmul.f32 %v1569, 0.2
    %v1576 = vmul.f32 %v1571, 0.2
    %v1577 = vsel %vm1573, %v1569, %v1575
    %v1578 = vsel %vm1574, %v1571, %v1576
    %1579 = vrot.lane.b32.xlu0 %v1577, 17
    %v1580 = vpop.permute.xlu0 %1579
    %1581 = vrot.lane.b32.xlu0 %v1578, 17
    %v1582 = vpop.permute.xlu0 %1581
    %vm1583 = vcmp.lt.s32.totalorder %v106, 17
    %v1584 = vsel %vm1583, %v1580, %v1582
    %v1585 = vsel %vm1583, %v1582, %v1580
    %v1586 = vsel %vm135, 1, 0
    %v1587 = vsel %vm136, 1, 0
    %vm1588 = vcmp.eq.s32.totalorder %v1586, 1
    %vm1589 = vcmp.eq.s32.totalorder %v1587, 1
    %v1590 = vsel %vm1588, %v1585, 0.0
    %v1591 = vsel %vm1589, %v1584, 0.0
    %1592 = vst [vmem:[#allocation2] sm:$0xff] %v1590
    %1593 = vst [vmem:[#allocation2 + $0x8] sm:$0xff] %v1591
    %1594 = vrot.lane.b32.xlu0 %v1577, 16
    %v1595 = vpop.permute.xlu0 %1594
    %1596 = vrot.lane.b32.xlu0 %v1578, 16
    %v1597 = vpop.permute.xlu0 %1596
    %vm1598 = vcmp.lt.s32.totalorder %v106, 16
    %v1599 = vsel %vm1598, %v1595, %v1597
    %v1600 = vsel %vm1598, %v1597, %v1595
    %v1601 = vsel %vm145, 1, 0
    %v1602 = vsel %vm146, 1, 0
    %vm1603 = vcmp.eq.s32.totalorder %v1601, 1
    %vm1604 = vcmp.eq.s32.totalorder %v1602, 1
    %v1605 = vsel %vm1603, %v1600, 0.0
    %v1606 = vsel %vm1604, %v1599, 0.0
    %1607 = vst [vmem:[#allocation2 + $0x10] sm:$0xff] %v1605
    %1608 = vst [vmem:[#allocation2 + $0x18] sm:$0xff] %v1606
    %1609 = vrot.lane.b32.xlu0 %v1577, 15
    %v1610 = vpop.permute.xlu0 %1609
    %1611 = vrot.lane.b32.xlu0 %v1578, 15
    %v1612 = vpop.permute.xlu0 %1611
    %vm1613 = vcmp.lt.s32.totalorder %v106, 15
    %v1614 = vsel %vm1613, %v1610, %v1612
    %v1615 = vsel %vm1613, %v1612, %v1610
    %v1616 = vsel %vm157, 1, 0
    %v1617 = vsel %vm158, 1, 0
    %vm1618 = vcmp.eq.s32.totalorder %v1616, 1
    %vm1619 = vcmp.eq.s32.totalorder %v1617, 1
    %v1620 = vsel %vm1618, %v1615, 0.0
    %v1621 = vsel %vm1619, %v1614, 0.0
    %1622 = vst [vmem:[#allocation2 + $0x20] sm:$0xff] %v1620
    %1623 = vst [vmem:[#allocation2 + $0x28] sm:$0xff] %v1621
    %1624 = vrot.lane.b32.xlu0 %v1577, 1
    %v1625 = vpop.permute.xlu0 %1624
    %1626 = vrot.lane.b32.xlu0 %v1578, 1
    %v1627 = vpop.permute.xlu0 %1626
    %vm1628 = vcmp.lt.s32.totalorder %v106, 1
    %v1629 = vsel %vm1628, %v1625, %v1627
    %v1630 = vsel %vm1628, %v1627, %v1625
    %v1631 = vsel %vm165, 1, 0
    %v1632 = vsel %vm166, 1, 0
    %vm1633 = vcmp.eq.s32.totalorder %v1631, 1
    %vm1634 = vcmp.eq.s32.totalorder %v1632, 1
    %v1635 = vsel %vm1633, %v1630, 0.0
    %v1636 = vsel %vm1634, %v1629, 0.0
    %1637 = vst [vmem:[#allocation2 + $0x30] sm:$0xff] %v1635
    %1638 = vst [vmem:[#allocation2 + $0x38] sm:$0xff] %v1636
    %v1639 = vsel %vm169, 1, 0
    %v1640 = vsel %vm170, 1, 0
    %vm1641 = vcmp.eq.s32.totalorder %v1639, 1
    %vm1642 = vcmp.eq.s32.totalorder %v1640, 1
    %v1643 = vsel %vm1641, %v1577, 0.0
    %v1644 = vsel %vm1642, %v1578, 0.0
    %1645 = vst [vmem:[#allocation2 + $0x40] sm:$0xff] %v1643
    %1646 = vst [vmem:[#allocation2 + $0x48] sm:$0xff] %v1644
    %1647 = vrot.lane.b32.xlu0 %v1577, 127
    %v1648 = vpop.permute.xlu0 %1647
    %1649 = vrot.lane.b32.xlu0 %v1578, 127
    %v1650 = vpop.permute.xlu0 %1649
    %vm1651 = vcmp.lt.s32.totalorder %v106, 127
    %v1652 = vsel %vm1651, %v1648, %v1650
    %v1653 = vsel %vm1651, %v1650, %v1648
    %v1654 = vsel %vm173, 1, 0
    %v1655 = vsel %vm174, 1, 0
    %vm1656 = vcmp.eq.s32.totalorder %v1654, 1
    %vm1657 = vcmp.eq.s32.totalorder %v1655, 1
    %v1658 = vsel %vm1656, %v1652, 0.0
    %v1659 = vsel %vm1657, %v1653, 0.0
    %1660 = vst [vmem:[#allocation2 + $0x50] sm:$0xff] %v1658
    %1661 = vst [vmem:[#allocation2 + $0x58] sm:$0xff] %v1659
    %1662 = vrot.lane.b32.xlu0 %v1577, 113
    %v1663 = vpop.permute.xlu0 %1662
    %1664 = vrot.lane.b32.xlu0 %v1578, 113
    %v1665 = vpop.permute.xlu0 %1664
    %vm1666 = vcmp.lt.s32.totalorder %v106, 113
    %v1667 = vsel %vm1666, %v1663, %v1665
    %v1668 = vsel %vm1666, %v1665, %v1663
    %v1669 = vsel %vm183, 1, 0
    %v1670 = vsel %vm184, 1, 0
    %vm1671 = vcmp.eq.s32.totalorder %v1669, 1
    %vm1672 = vcmp.eq.s32.totalorder %v1670, 1
    %v1673 = vsel %vm1671, %v1667, 0.0
    %v1674 = vsel %vm1672, %v1668, 0.0
    %1675 = vst [vmem:[#allocation2 + $0x60] sm:$0xff] %v1673
    %1676 = vst [vmem:[#allocation2 + $0x68] sm:$0xff] %v1674
    %1677 = vrot.lane.b32.xlu0 %v1577, 112
    %v1678 = vpop.permute.xlu0 %1677
    %1679 = vrot.lane.b32.xlu0 %v1578, 112
    %v1680 = vpop.permute.xlu0 %1679
    %vm1681 = vcmp.lt.s32.totalorder %v106, 112
    %v1682 = vsel %vm1681, %v1678, %v1680
    %v1683 = vsel %vm1681, %v1680, %v1678
    %v1684 = vsel %vm187, 1, 0
    %v1685 = vsel %vm188, 1, 0
    %vm1686 = vcmp.eq.s32.totalorder %v1684, 1
    %vm1687 = vcmp.eq.s32.totalorder %v1685, 1
    %v1688 = vsel %vm1686, %v1682, 0.0
    %v1689 = vsel %vm1687, %v1683, 0.0
    %1690 = vst [vmem:[#allocation2 + $0x70] sm:$0xff] %v1688
    %1691 = vst [vmem:[#allocation2 + $0x78] sm:$0xff] %v1689
    %1692 = vrot.lane.b32.xlu0 %v1577, 111
    %v1693 = vpop.permute.xlu0 %1692
    %1694 = vrot.lane.b32.xlu0 %v1578, 111
    %v1695 = vpop.permute.xlu0 %1694
    %vm1696 = vcmp.lt.s32.totalorder %v106, 111
    %v1697 = vsel %vm1696, %v1693, %v1695
    %v1698 = vsel %vm1696, %v1695, %v1693
    %v1699 = vsel %vm191, 1, 0
    %v1700 = vsel %vm192, 1, 0
    %vm1701 = vcmp.eq.s32.totalorder %v1699, 1
    %vm1702 = vcmp.eq.s32.totalorder %v1700, 1
    %v1703 = vsel %vm1701, %v1697, 0.0
    %v1704 = vsel %vm1702, %v1698, 0.0
    %1705 = vst [vmem:[#allocation2 + $0x80] sm:$0xff] %v1703
    %1706 = vst [vmem:[#allocation2 + $0x88] sm:$0xff] %v1704
    %v1707 = vld [vmem:[#allocation9] sm:$0xff]
    %v1708 = vld [vmem:[#allocation2] sm:$0xff]
    %v1709 = vld [vmem:[#allocation2 + $0x8] sm:$0xff]
    %v1710 = vld [vmem:[#allocation2 + $0x10] sm:$0xff]
    %v1711 = vld [vmem:[#allocation2 + $0x18] sm:$0xff]
    %v1712 = vld [vmem:[#allocation2 + $0x20] sm:$0xff]
    %v1713 = vld [vmem:[#allocation2 + $0x28] sm:$0xff]
    %v1714 = vld [vmem:[#allocation2 + $0x30] sm:$0xff]
    %v1715 = vld [vmem:[#allocation2 + $0x38] sm:$0xff]
    %v1716 = vld [vmem:[#allocation2 + $0x40] sm:$0xff]
    %v1717 = vld [vmem:[#allocation2 + $0x48] sm:$0xff]
    %v1718 = vld [vmem:[#allocation2 + $0x50] sm:$0xff]
    %v1719 = vld [vmem:[#allocation2 + $0x58] sm:$0xff]
    %v1720 = vld [vmem:[#allocation2 + $0x60] sm:$0xff]
    %v1721 = vld [vmem:[#allocation2 + $0x68] sm:$0xff]
    %v1722 = vld [vmem:[#allocation2 + $0x70] sm:$0xff]
    %v1723 = vld [vmem:[#allocation2 + $0x78] sm:$0xff]
    %v1724 = vld [vmem:[#allocation2 + $0x80] sm:$0xff]
    %v1725 = vld [vmem:[#allocation2 + $0x88] sm:$0xff]
    %v1726 = vld [vmem:[%s9] sm:$0xff]
    %1728 = vset.pattern.permute.xlu0 0
    %1729 = vperm.xlu0 %1728, %v1726
    %v1730 = vpop.permute.xlu0 %1729
    %vm1732 = vcmask 588800
    %v1734 = vsel %vm1732, %v1707, 0
    %1736 = vmatprep.subr.mxu0 %v1709
    %1737 = vmatpush1.msra.mxu0 %v1708
    %1738 = vmatprep.subr.mxu0 %v1711
    %1739 = vmatpush1.msra.mxu0 %v1710
    %1740 = vmatprep.subr.mxu0 %v1713
    %1741 = vmatpush1.msra.mxu0 %v1712
    %1742 = vmatprep.subr.mxu0 %v1715
    %1743 = vmatpush1.msra.mxu0 %v1714
    %1744 = vmatprep.subr.mxu0 %v1717
    %1745 = vmatpush1.msra.mxu0 %v1716
    %1746 = vmatprep.subr.mxu0 %v1719
    %1747 = vmatpush1.msra.mxu0 %v1718
    %1748 = vmatprep.subr.mxu0 %v1721
    %1749 = vmatpush1.msra.mxu0 %v1720
    %1750 = vmatprep.subr.mxu0 %v1723
    %1751 = vmatpush1.msra.mxu0 %v1722
    %1752 = vmatprep.subr.mxu0 %v1725
    %1753 = vmatpush1.msra.mxu0 %v1724
    %1754 = vmatprep.subr.mxu0 0.0
    %1755 = vmatpush1.msra.mxu0 0.0
    %1756 = vmatprep.subr.mxu0 0.0
    %1757 = vmatpush1.msra.mxu0 0.0
    %1758 = vmatprep.subr.mxu0 0.0
    %1759 = vmatpush1.msra.mxu0 0.0
    %1760 = vmatprep.subr.mxu0 0.0
    %1761 = vmatpush1.msra.mxu0 0.0
    %1762 = vmatprep.subr.mxu0 0.0
    %1763 = vmatpush1.msra.mxu0 0.0
    %1764 = vmatprep.subr.mxu0 0.0
    %1765 = vmatpush1.msra.mxu0 0.0
    %1766 = vmatprep.subr.mxu0 0.0
    %1767 = vmatpush1.msra.mxu0 0.0
    %1768 = vmatprep.subr.mxu0 0.0
    %1769 = vmatpush1.msra.mxu0 0.0
    %1770 = vmatprep.subr.mxu0 0.0
    %1771 = vmatpush1.msra.mxu0 0.0
    %1772 = vmatprep.subr.mxu0 0.0
    %1773 = vmatpush1.msra.mxu0 0.0
    %1774 = vmatprep.subr.mxu0 0.0
    %1775 = vmatpush1.msra.mxu0 0.0
    %1776 = vmatprep.subr.mxu0 0.0
    %1777 = vmatpush1.msra.mxu0 0.0
    %1778 = vmatprep.subr.mxu0 0.0
    %1779 = vmatpush1.msra.mxu0 0.0
    %1780 = vmatprep.subr.mxu0 0.0
    %1781 = vmatpush1.msra.mxu0 0.0
    %1782 = vmatprep.subr.mxu0 0.0
    %1783 = vmatpush1.msra.mxu0 0.0
    %1784 = vmatprep.subr.mxu0 0.0
    %1785 = vmatpush1.msra.mxu0 0.0
    %1786 = vmatprep.subr.mxu0 0.0
    %1787 = vmatpush1.msra.mxu0 0.0
    %1788 = vmatprep.subr.mxu0 0.0
    %1789 = vmatpush1.msra.mxu0 0.0
    %1790 = vmatprep.subr.mxu0 0.0
    %1791 = vmatpush1.msra.mxu0 0.0
    %1792 = vmatprep.subr.mxu0 0.0
    %1793 = vmatpush1.msra.mxu0 0.0
    %1794 = vmatprep.subr.mxu0 0.0
    %1795 = vmatpush1.msra.mxu0 0.0
    %1796 = vmatprep.subr.mxu0 0.0
    %1797 = vmatpush1.msra.mxu0 0.0
    %1798 = vmatprep.subr.mxu0 0.0
    %1799 = vmatpush1.msra.mxu0 0.0
    %1800 = vmatprep.mubr.f32.mxu0 0.0
    %1801 = vmatmul.mubr.f32.gmra.mrb[0].mxu0 %v1734
    %v1802 = vpop.f32.mrb[0].mxu0
    %v1803 = vadd.f32 %v1730, %v1802
    %v1804 = vpop.f32.mrb[0].mxu0
    %v1805 = vadd.f32 %v1730, %v1804
    %1806 = vdwg.mxu0
    %v1807 = vtanh.pop %v1803
    %v1808 = vtanh.pop %v1805
    %1809 = vst [vmem:[%s12] sm:$0xff] %v1807
    %1810 = vst [vmem:[%s12 + $0x8] sm:$0xff] %v1808
    %1811 = vrot.lane.b32.xlu0 %v1807, 17
    %v1812 = vpop.permute.xlu0 %1811
    %1813 = vrot.lane.b32.xlu0 %v1808, 17
    %v1814 = vpop.permute.xlu0 %1813
    %v1815 = vsel %vm1583, %v1812, %v1814
    %v1816 = vsel %vm1583, %v1814, %v1812
    %v1817 = vsel %vm1588, %v1816, 0.0
    %v1818 = vsel %vm1589, %v1815, 0.0
    %1819 = vst [vmem:[#allocation2] sm:$0xff] %v1817
    %1820 = vst [vmem:[#allocation2 + $0x8] sm:$0xff] %v1818
    %1821 = vrot.lane.b32.xlu0 %v1807, 16
    %v1822 = vpop.permute.xlu0 %1821
    %1823 = vrot.lane.b32.xlu0 %v1808, 16
    %v1824 = vpop.permute.xlu0 %1823
    %v1825 = vsel %vm1598, %v1822, %v1824
    %v1826 = vsel %vm1598, %v1824, %v1822
    %v1827 = vsel %vm1603, %v1826, 0.0
    %v1828 = vsel %vm1604, %v1825, 0.0
    %1829 = vst [vmem:[#allocation2 + $0x10] sm:$0xff] %v1827
    %1830 = vst [vmem:[#allocation2 + $0x18] sm:$0xff] %v1828
    %1831 = vrot.lane.b32.xlu0 %v1807, 15
    %v1832 = vpop.permute.xlu0 %1831
    %1833 = vrot.lane.b32.xlu0 %v1808, 15
    %v1834 = vpop.permute.xlu0 %1833
    %v1835 = vsel %vm1613, %v1832, %v1834
    %v1836 = vsel %vm1613, %v1834, %v1832
    %v1837 = vsel %vm1618, %v1836, 0.0
    %v1838 = vsel %vm1619, %v1835, 0.0
    %1839 = vst [vmem:[#allocation2 + $0x20] sm:$0xff] %v1837
    %1840 = vst [vmem:[#allocation2 + $0x28] sm:$0xff] %v1838
    %1841 = vrot.lane.b32.xlu0 %v1807, 1
    %v1842 = vpop.permute.xlu0 %1841
    %1843 = vrot.lane.b32.xlu0 %v1808, 1
    %v1844 = vpop.permute.xlu0 %1843
    %v1845 = vsel %vm1628, %v1842, %v1844
    %v1846 = vsel %vm1628, %v1844, %v1842
    %v1847 = vsel %vm1633, %v1846, 0.0
    %v1848 = vsel %vm1634, %v1845, 0.0
    %1849 = vst [vmem:[#allocation2 + $0x30] sm:$0xff] %v1847
    %1850 = vst [vmem:[#allocation2 + $0x38] sm:$0xff] %v1848
    %v1851 = vsel %vm1641, %v1807, 0.0
    %v1852 = vsel %vm1642, %v1808, 0.0
    %1853 = vst [vmem:[#allocation2 + $0x40] sm:$0xff] %v1851
    %1854 = vst [vmem:[#allocation2 + $0x48] sm:$0xff] %v1852
    %1855 = vrot.lane.b32.xlu0 %v1807, 127
    %v1856 = vpop.permute.xlu0 %1855
    %1857 = vrot.lane.b32.xlu0 %v1808, 127
    %v1858 = vpop.permute.xlu0 %1857
    %v1859 = vsel %vm1651, %v1856, %v1858
    %v1860 = vsel %vm1651, %v1858, %v1856
    %v1861 = vsel %vm1656, %v1859, 0.0
    %v1862 = vsel %vm1657, %v1860, 0.0
    %1863 = vst [vmem:[#allocation2 + $0x50] sm:$0xff] %v1861
    %1864 = vst [vmem:[#allocation2 + $0x58] sm:$0xff] %v1862
    %1865 = vrot.lane.b32.xlu0 %v1807, 113
    %v1866 = vpop.permute.xlu0 %1865
    %1867 = vrot.lane.b32.xlu0 %v1808, 113
    %v1868 = vpop.permute.xlu0 %1867
    %v1869 = vsel %vm1666, %v1866, %v1868
    %v1870 = vsel %vm1666, %v1868, %v1866
    %v1871 = vsel %vm1671, %v1869, 0.0
    %v1872 = vsel %vm1672, %v1870, 0.0
    %1873 = vst [vmem:[#allocation2 + $0x60] sm:$0xff] %v1871
    %1874 = vst [vmem:[#allocation2 + $0x68] sm:$0xff] %v1872
    %1875 = vrot.lane.b32.xlu0 %v1807, 112
    %v1876 = vpop.permute.xlu0 %1875
    %1877 = vrot.lane.b32.xlu0 %v1808, 112
    %v1878 = vpop.permute.xlu0 %1877
    %v1879 = vsel %vm1681, %v1876, %v1878
    %v1880 = vsel %vm1681, %v1878, %v1876
    %v1881 = vsel %vm1686, %v1879, 0.0
    %v1882 = vsel %vm1687, %v1880, 0.0
    %1883 = vst [vmem:[#allocation2 + $0x70] sm:$0xff] %v1881
    %1884 = vst [vmem:[#allocation2 + $0x78] sm:$0xff] %v1882
    %1885 = vrot.lane.b32.xlu0 %v1807, 111
    %v1886 = vpop.permute.xlu0 %1885
    %1887 = vrot.lane.b32.xlu0 %v1808, 111
    %v1888 = vpop.permute.xlu0 %1887
    %v1889 = vsel %vm1696, %v1886, %v1888
    %v1890 = vsel %vm1696, %v1888, %v1886
    %v1891 = vsel %vm1701, %v1889, 0.0
    %v1892 = vsel %vm1702, %v1890, 0.0
    %1893 = vst [vmem:[#allocation2 + $0x80] sm:$0xff] %v1891
    %1894 = vst [vmem:[#allocation2 + $0x88] sm:$0xff] %v1892
    %v1895 = vld [vmem:[#allocation10] sm:$0xff]
    %v1896 = vld [vmem:[#allocation10 + $0x8] sm:$0xf]
    %v1897 = vld [vmem:[#allocation2] sm:$0xff]
    %v1898 = vld [vmem:[#allocation2 + $0x8] sm:$0xff]
    %v1899 = vld [vmem:[#allocation2 + $0x10] sm:$0xff]
    %v1900 = vld [vmem:[#allocation2 + $0x18] sm:$0xff]
    %v1901 = vld [vmem:[#allocation2 + $0x20] sm:$0xff]
    %v1902 = vld [vmem:[#allocation2 + $0x28] sm:$0xff]
    %v1903 = vld [vmem:[#allocation2 + $0x30] sm:$0xff]
    %v1904 = vld [vmem:[#allocation2 + $0x38] sm:$0xff]
    %v1905 = vld [vmem:[#allocation2 + $0x40] sm:$0xff]
    %v1906 = vld [vmem:[#allocation2 + $0x48] sm:$0xff]
    %v1907 = vld [vmem:[#allocation2 + $0x50] sm:$0xff]
    %v1908 = vld [vmem:[#allocation2 + $0x58] sm:$0xff]
    %v1909 = vld [vmem:[#allocation2 + $0x60] sm:$0xff]
    %v1910 = vld [vmem:[#allocation2 + $0x68] sm:$0xff]
    %v1911 = vld [vmem:[#allocation2 + $0x70] sm:$0xff]
    %v1912 = vld [vmem:[#allocation2 + $0x78] sm:$0xff]
    %v1913 = vld [vmem:[#allocation2 + $0x80] sm:$0xff]
    %v1914 = vld [vmem:[#allocation2 + $0x88] sm:$0xff]
    %v1915 = vld [vmem:[%s11] sm:$0xff]
    %v1916 = vld [vmem:[%s11 + $0x8] sm:$0xf]
    %1918 = vset.pattern.permute.xlu0 0
    %1919 = vperm.xlu0 %1918, %v1915
    %v1920 = vpop.permute.xlu0 %1919
    %1923 = vset.pattern.permute.xlu0 0
    %1924 = vperm.xlu0 %1923, %v1916
    %v1925 = vpop.permute.xlu0 %1924
    %v1928 = vsel %vm1732, %v1895, 0
    %v1931 = vsel %vm1732, %v1896, 0
    %1933 = vmatprep.subr.mxu0 %v1898
    %1934 = vmatpush1.msra.mxu0 %v1897
    %1935 = vmatprep.subr.mxu0 %v1900
    %1936 = vmatpush1.msra.mxu0 %v1899
    %1937 = vmatprep.subr.mxu0 %v1902
    %1938 = vmatpush1.msra.mxu0 %v1901
    %1939 = vmatprep.subr.mxu0 %v1904
    %1940 = vmatpush1.msra.mxu0 %v1903
    %1941 = vmatprep.subr.mxu0 %v1906
    %1942 = vmatpush1.msra.mxu0 %v1905
    %1943 = vmatprep.subr.mxu0 %v1908
    %1944 = vmatpush1.msra.mxu0 %v1907
    %1945 = vmatprep.subr.mxu0 %v1910
    %1946 = vmatpush1.msra.mxu0 %v1909
    %1947 = vmatprep.subr.mxu0 %v1912
    %1948 = vmatpush1.msra.mxu0 %v1911
    %1949 = vmatprep.subr.mxu0 %v1914
    %1950 = vmatpush1.msra.mxu0 %v1913
    %1951 = vmatprep.subr.mxu0 0.0
    %1952 = vmatpush1.msra.mxu0 0.0
    %1953 = vmatprep.subr.mxu0 0.0
    %1954 = vmatpush1.msra.mxu0 0.0
    %1955 = vmatprep.subr.mxu0 0.0
    %1956 = vmatpush1.msra.mxu0 0.0
    %1957 = vmatprep.subr.mxu0 0.0
    %1958 = vmatpush1.msra.mxu0 0.0
    %1959 = vmatprep.subr.mxu0 0.0
    %1960 = vmatpush1.msra.mxu0 0.0
    %1961 = vmatprep.subr.mxu0 0.0
    %1962 = vmatpush1.msra.mxu0 0.0
    %1963 = vmatprep.subr.mxu0 0.0
    %1964 = vmatpush1.msra.mxu0 0.0
    %1965 = vmatprep.subr.mxu0 0.0
    %1966 = vmatpush1.msra.mxu0 0.0
    %1967 = vmatprep.subr.mxu0 0.0
    %1968 = vmatpush1.msra.mxu0 0.0
    %1969 = vmatprep.subr.mxu0 0.0
    %1970 = vmatpush1.msra.mxu0 0.0
    %1971 = vmatprep.subr.mxu0 0.0
    %1972 = vmatpush1.msra.mxu0 0.0
    %1973 = vmatprep.subr.mxu0 0.0
    %1974 = vmatpush1.msra.mxu0 0.0
    %1975 = vmatprep.subr.mxu0 0.0
    %1976 = vmatpush1.msra.mxu0 0.0
    %1977 = vmatprep.subr.mxu0 0.0
    %1978 = vmatpush1.msra.mxu0 0.0
    %1979 = vmatprep.subr.mxu0 0.0
    %1980 = vmatpush1.msra.mxu0 0.0
    %1981 = vmatprep.subr.mxu0 0.0
    %1982 = vmatpush1.msra.mxu0 0.0
    %1983 = vmatprep.subr.mxu0 0.0
    %1984 = vmatpush1.msra.mxu0 0.0
    %1985 = vmatprep.subr.mxu0 0.0
    %1986 = vmatpush1.msra.mxu0 0.0
    %1987 = vmatprep.subr.mxu0 0.0
    %1988 = vmatpush1.msra.mxu0 0.0
    %1989 = vmatprep.subr.mxu0 0.0
    %1990 = vmatpush1.msra.mxu0 0.0
    %1991 = vmatprep.subr.mxu0 0.0
    %1992 = vmatpush1.msra.mxu0 0.0
    %1993 = vmatprep.subr.mxu0 0.0
    %1994 = vmatpush1.msra.mxu0 0.0
    %1995 = vmatprep.subr.mxu0 0.0
    %1996 = vmatpush1.msra.mxu0 0.0
    %1997 = vmatprep.mubr.f32.mxu0 0.0
    %1998 = vmatmul.mubr.f32.gmra.mrb[0].mxu0 %v1928
    %v1999 = vpop.f32.mrb[0].mxu0
    %v2000 = vadd.f32 %v1920, %v1999
    %v2001 = vpop.f32.mrb[0].mxu0
    %v2002 = vadd.f32 %v1920, %v2001
    %2003 = vmatprep.mubr.f32.mxu0 0.0
    %2004 = vmatmul.mubr.f32.gmra.mrb[0].mxu0 %v1931
    %v2005 = vpop.f32.mrb[0].mxu0
    %v2006 = vadd.f32 %v1925, %v2005
    %v2007 = vpop.f32.mrb[0].mxu0
    %v2008 = vadd.f32 %v1925, %v2007
    %2009 = vdwg.mxu0
    %v2010 = vtanh.pop %v2000
    %v2011 = vtanh.pop %v2002
    %vm2012 = vcmask 1047555
    %v2013 = vsel %vm2012, %v2000, -inf
    %v2014 = vrot.slane %v2013, 4
    %v2015 = vmax.f32 %v2013, %v2014
    %v2016 = vrot.slane %v2015, 2
    %v2017 = vmax.f32 %v2015, %v2016
    %v2018 = vrot.slane %v2017, 1
    %v2019 = vmax.f32 %v2017, %v2018
    %v2020 = vsel %vm2012, %v2002, -inf
    %v2021 = vrot.slane %v2020, 4
    %v2022 = vmax.f32 %v2020, %v2021
    %v2023 = vrot.slane %v2022, 2
    %v2024 = vmax.f32 %v2022, %v2023
    %v2025 = vrot.slane %v2024, 1
    %v2026 = vmax.f32 %v2024, %v2025
    %v2027 = vsub.f32 %v2000, %v2019
    %v2028 = vsub.f32 %v2002, %v2026
    %v2029 = vmul.f32 %v2027, 1.442695
    %v2030 = vpow.pop %v2029
    %v2031 = vmul.f32 %v2028, 1.442695
    %v2032 = vpow.pop %v2031
    %v2035 = vrot.slane %v2030, 3
    %v2036 = vrot.slane %v2032, 3
    %vm2039 = vcmask 1044480
    %v2040 = vsel %vm2039, %v2035, 0.0
    %v2041 = vrot.slane %v2040, 4
    %v2042 = vadd.f32 %v2040, %v2041
    %v2043 = vrot.slane %v2042, 2
    %v2044 = vadd.f32 %v2042, %v2043
    %v2045 = vrot.slane %v2044, 1
    %v2046 = vadd.f32 %v2044, %v2045
    %v2047 = vsel %vm2039, %v2036, 0.0
    %v2048 = vrot.slane %v2047, 4
    %v2049 = vadd.f32 %v2047, %v2048
    %v2050 = vrot.slane %v2049, 2
    %v2051 = vadd.f32 %v2049, %v2050
    %v2052 = vrot.slane %v2051, 1
    %v2053 = vadd.f32 %v2051, %v2052
    %v2054 = vrcp.pop %v2046
    %v2055 = vmul.f32 %v2030, %v2054
    %v2056 = vrcp.pop %v2053
    %v2057 = vmul.f32 %v2032, %v2056
    %v2060 = vrot.slane %v2010, 1
    %v2061 = vrot.slane %v2011, 1
    %v2064 = vmul.f32 %v2055, %v2060
    %v2065 = vmul.f32 %v2057, %v2061
    %v2066 = vrot.slane %v2010, 2
    %v2067 = vrot.slane %v2011, 2
    %v2070 = vmul.f32 %v2055, %v2066
    %v2071 = vmul.f32 %v2057, %v2067
    %v2072 = vrot.slane %v2010, 3
    %v2073 = vrot.slane %v2011, 3
    %v2076 = vmul.f32 %v2055, %v2072
    %v2077 = vmul.f32 %v2057, %v2073
    %v2080 = vrot.slane %v2006, 5
    %v2081 = vrot.slane %v2008, 5
    %2084 = vst [vmem:[%s12 + $0x10] sm:$0x18] %v2080
    %2085 = vst [vmem:[%s12 + $0x18] sm:$0x18] %v2081
    %v2086 = vmul.f32 %v2006, 8.0
    %v2087 = vmul.f32 %v2008, 8.0
    %v2088 = vadd.f32 %v112, %v2086
    %v2089 = vadd.f32 %v113, %v2087
    %v2090 = vadd.f32 %v114, %v2086
    %v2091 = vadd.f32 %v115, %v2087
    %v2092 = vfloor.f32 %v2088
    %v2093 = vfloor.f32 %v2089
    %v2094 = vfloor.f32 %v2090
    %v2095 = vfloor.f32 %v2091
    %v2096 = vsub.f32 %v2088, %v2092
    %v2097 = vsub.f32 %v2089, %v2093
    %v2098 = vsub.f32 %v2090, %v2094
    %v2099 = vsub.f32 %v2091, %v2095
    %v2100 = vcvt.f32.s32.to.zero.pseudo %v2092
    %v2101 = vcvt.f32.s32.to.zero.pseudo %v2093
    %v2102 = vcvt.f32.s32.to.zero.pseudo %v2094
    %v2103 = vcvt.f32.s32.to.zero.pseudo %v2095
    %v2104 = vlaneseq
    %v2105 = vshrl.u32 %v2104, 7
    %v2106 = vsub.s32 0, %v2105
    %v2107 = vrot.slane %v2100, %v2106
    %v2108 = vlaneseq
    %v2109 = vshrl.u32 %v2108, 7
    %v2110 = vsub.s32 0, %v2109
    %v2111 = vrot.slane %v2101, %v2110
    %vm2112 = vcmp.eq.s32.totalorder %v117, %v2107
    %vm2113 = vcmp.eq.s32.totalorder %v117, %v2111
    %vm2114 = vcmp.eq.s32.totalorder %v118, %v2107
    %vm2115 = vcmp.eq.s32.totalorder %v118, %v2111
    %v2116 = vsub.f32 1.0, %v2096
    %v2117 = vsub.f32 1.0, %v2097
    %v2118 = vlaneseq
    %v2119 = vshrl.u32 %v2118, 7
    %v2120 = vsub.s32 0, %v2119
    %v2121 = vrot.slane %v2116, %v2120
    %v2122 = vlaneseq
    %v2123 = vshrl.u32 %v2122, 7
    %v2124 = vsub.s32 0, %v2123
    %v2125 = vrot.slane %v2117, %v2124
    %v2126 = vsel %vm2112, %v2121, 0.0
    %v2127 = vsel %vm2113, %v2125, 0.0
    %v2128 = vsel %vm2114, %v2121, 0.0
    %v2129 = vsel %vm2115, %v2125, 0.0
    %v2130 = vadd.s32 %v2100, 1
    %v2131 = vadd.s32 %v2101, 1
    %v2132 = vlaneseq
    %v2133 = vshrl.u32 %v2132, 7
    %v2134 = vsub.s32 0, %v2133
    %v2135 = vrot.slane %v2130, %v2134
    %v2136 = vlaneseq
    %v2137 = vshrl.u32 %v2136, 7
    %v2138 = vsub.s32 0, %v2137
    %v2139 = vrot.slane %v2131, %v2138
    %vm2140 = vcmp.eq.s32.totalorder %v117, %v2135
    %vm2141 = vcmp.eq.s32.totalorder %v117, %v2139
    %vm2142 = vcmp.eq.s32.totalorder %v118, %v2135
    %vm2143 = vcmp.eq.s32.totalorder %v118, %v2139
    %v2144 = vlaneseq
    %v2145 = vshrl.u32 %v2144, 7
    %v2146 = vsub.s32 0, %v2145
    %v2147 = vrot.slane %v2096, %v2146
    %v2148 = vlaneseq
    %v2149 = vshrl.u32 %v2148, 7
    %v2150 = vsub.s32 0, %v2149
    %v2151 = vrot.slane %v2097, %v2150
    %v2152 = vsel %vm2140, %v2147, 0.0
    %v2153 = vsel %vm2141, %v2151, 0.0
    %v2154 = vsel %vm2142, %v2147, 0.0
    %v2155 = vsel %vm2143, %v2151, 0.0
    %v2156 = vadd.f32 %v2126, %v2152
    %v2157 = vadd.f32 %v2127, %v2153
    %v2158 = vadd.f32 %v2128, %v2154
    %v2159 = vadd.f32 %v2129, %v2155
    %v2160 = vlaneseq
    %v2161 = vshrl.u32 %v2160, 7
    %v2162 = vsub.s32 1, %v2161
    %v2163 = vrot.slane %v2102, %v2162
    %v2164 = vlaneseq
    %v2165 = vshrl.u32 %v2164, 7
    %v2166 = vsub.s32 1, %v2165
    %v2167 = vrot.slane %v2103, %v2166
    %vm2168 = vcmp.eq.s32.totalorder %v117, %v2163
    %vm2169 = vcmp.eq.s32.totalorder %v117, %v2167
    %vm2170 = vcmp.eq.s32.totalorder %v118, %v2163
    %vm2171 = vcmp.eq.s32.totalorder %v118, %v2167
    %v2172 = vsub.f32 1.0, %v2098
    %v2173 = vsub.f32 1.0, %v2099
    %v2174 = vlaneseq
    %v2175 = vshrl.u32 %v2174, 7
    %v2176 = vsub.s32 1, %v2175
    %v2177 = vrot.slane %v2172, %v2176
    %v2178 = vlaneseq
    %v2179 = vshrl.u32 %v2178, 7
    %v2180 = vsub.s32 1, %v2179
    %v2181 = vrot.slane %v2173, %v2180
    %v2182 = vsel %vm2168, %v2177, 0.0
    %v2183 = vsel %vm2169, %v2181, 0.0
    %v2184 = vsel %vm2170, %v2177, 0.0
    %v2185 = vsel %vm2171, %v2181, 0.0
    %v2186 = vadd.s32 %v2102, 1
    %v2187 = vadd.s32 %v2103, 1
    %v2188 = vlaneseq
    %v2189 = vshrl.u32 %v2188, 7
    %v2190 = vsub.s32 1, %v2189
    %v2191 = vrot.slane %v2186, %v2190
    %v2192 = vlaneseq
    %v2193 = vshrl.u32 %v2192, 7
    %v2194 = vsub.s32 1, %v2193
    %v2195 = vrot.slane %v2187, %v2194
    %vm2196 = vcmp.eq.s32.totalorder %v117, %v2191
    %vm2197 = vcmp.eq.s32.totalorder %v117, %v2195
    %vm2198 = vcmp.eq.s32.totalorder %v118, %v2191
    %vm2199 = vcmp.eq.s32.totalorder %v118, %v2195
    %v2200 = vlaneseq
    %v2201 = vshrl.u32 %v2200, 7
    %v2202 = vsub.s32 1, %v2201
    %v2203 = vrot.slane %v2098, %v2202
    %v2204 = vlaneseq
    %v2205 = vshrl.u32 %v2204, 7
    %v2206 = vsub.s32 1, %v2205
    %v2207 = vrot.slane %v2099, %v2206
    %v2208 = vsel %vm2196, %v2203, 0.0
    %v2209 = vsel %vm2197, %v2207, 0.0
    %v2210 = vsel %vm2198, %v2203, 0.0
    %v2211 = vsel %vm2199, %v2207, 0.0
    %v2212 = vadd.f32 %v2182, %v2208
    %v2213 = vadd.f32 %v2183, %v2209
    %v2214 = vadd.f32 %v2184, %v2210
    %v2215 = vadd.f32 %v2185, %v2211
    %v2216 = vld [vmem:[%s1] sm:$0x77]
    %v2217 = vld [vmem:[%s2] sm:$0xff]
    %v2218 = vld [vmem:[%s2 + $0x8] sm:$0xff]
    %v2220 = vsel %vm1498, %v2217, 0
    %v2223 = vsel %vm1498, %v2218, 0
    %2225 = vmatprep.subr.mxu0 %v2157
    %2226 = vmatpush1.msra.mxu0 %v2156
    %2227 = vmatprep.subr.mxu0 %v2159
    %2228 = vmatpush1.msra.mxu0 %v2158
    %2229 = vmatprep.subr.mxu0 0.0
    %2230 = vmatpush1.msra.mxu0 0.0
    %2231 = vmatprep.subr.mxu0 0.0
    %2232 = vmatpush1.msra.mxu0 0.0
    %2233 = vmatprep.subr.mxu0 0.0
    %2234 = vmatpush1.msra.mxu0 0.0
    %2235 = vmatprep.subr.mxu0 0.0
    %2236 = vmatpush1.msra.mxu0 0.0
    %2237 = vmatprep.subr.mxu0 0.0
    %2238 = vmatpush1.msra.mxu0 0.0
    %2239 = vmatprep.subr.mxu0 0.0
    %2240 = vmatpush1.msra.mxu0 0.0
    %2241 = vmatprep.subr.mxu0 0.0
    %2242 = vmatpush1.msra.mxu0 0.0
    %2243 = vmatprep.subr.mxu0 0.0
    %2244 = vmatpush1.msra.mxu0 0.0
    %2245 = vmatprep.subr.mxu0 0.0
    %2246 = vmatpush1.msra.mxu0 0.0
    %2247 = vmatprep.subr.mxu0 0.0
    %2248 = vmatpush1.msra.mxu0 0.0
    %2249 = vmatprep.subr.mxu0 0.0
    %2250 = vmatpush1.msra.mxu0 0.0
    %2251 = vmatprep.subr.mxu0 0.0
    %2252 = vmatpush1.msra.mxu0 0.0
    %2253 = vmatprep.subr.mxu0 0.0
    %2254 = vmatpush1.msra.mxu0 0.0
    %2255 = vmatprep.subr.mxu0 0.0
    %2256 = vmatpush1.msra.mxu0 0.0
    %2257 = vmatprep.subr.mxu0 0.0
    %2258 = vmatpush1.msra.mxu0 0.0
    %2259 = vmatprep.subr.mxu0 0.0
    %2260 = vmatpush1.msra.mxu0 0.0
    %2261 = vmatprep.subr.mxu0 0.0
    %2262 = vmatpush1.msra.mxu0 0.0
    %2263 = vmatprep.subr.mxu0 0.0
    %2264 = vmatpush1.msra.mxu0 0.0
    %2265 = vmatprep.subr.mxu0 0.0
    %2266 = vmatpush1.msra.mxu0 0.0
    %2267 = vmatprep.subr.mxu0 0.0
    %2268 = vmatpush1.msra.mxu0 0.0
    %2269 = vmatprep.subr.mxu0 0.0
    %2270 = vmatpush1.msra.mxu0 0.0
    %2271 = vmatprep.subr.mxu0 0.0
    %2272 = vmatpush1.msra.mxu0 0.0
    %2273 = vmatprep.subr.mxu0 0.0
    %2274 = vmatpush1.msra.mxu0 0.0
    %2275 = vmatprep.subr.mxu0 0.0
    %2276 = vmatpush1.msra.mxu0 0.0
    %2277 = vmatprep.subr.mxu0 0.0
    %2278 = vmatpush1.msra.mxu0 0.0
    %2279 = vmatprep.subr.mxu0 0.0
    %2280 = vmatpush1.msra.mxu0 0.0
    %2281 = vmatprep.subr.mxu0 0.0
    %2282 = vmatpush1.msra.mxu0 0.0
    %2283 = vmatprep.subr.mxu0 0.0
    %2284 = vmatpush1.msra.mxu0 0.0
    %2285 = vmatprep.subr.mxu0 0.0
    %2286 = vmatpush1.msra.mxu0 0.0
    %2287 = vmatprep.subr.mxu0 0.0
    %2288 = vmatpush1.msra.mxu0 0.0
    %2289 = vmatprep.mubr.f32.mxu0 0.0
    %2290 = vmatmul.mubr.f32.gmra.mrb[0].mxu0 %v2220
    %v2291 = vpop.f32.mrb[0].mxu0
    %v2292 = vadd.f32 0.0, %v2291
    %v2293 = vpop.f32.mrb[0].mxu0
    %v2294 = vadd.f32 0.0, %v2293
    %2295 = vmatprep.mubr.f32.mxu0 0.0
    %2296 = vmatmul.mubr.f32.gmra.mrb[0].mxu0 %v2223
    %v2297 = vpop.f32.mrb[0].mxu0
    %v2298 = vadd.f32 0.0, %v2297
    %v2299 = vpop.f32.mrb[0].mxu0
    %v2300 = vadd.f32 0.0, %v2299
    %2301 = vdwg.mxu0
    %v2302 = vmul.f32 %v2212, %v2292
    %v2303 = vmul.f32 %v2213, %v2294
    %v2304 = vmul.f32 %v2214, %v2298
    %v2305 = vmul.f32 %v2215, %v2300
    %v2306 = vadd.f32 %v2302, %v2304
    %v2307 = vrot.slane %v2306, 4
    %v2308 = vadd.f32 %v2306, %v2307
    %v2309 = vrot.slane %v2308, 2
    %v2310 = vadd.f32 %v2308, %v2309
    %v2311 = vrot.slane %v2310, 1
    %v2312 = vadd.f32 %v2310, %v2311
    %v2313 = vadd.f32 %v2303, %v2305
    %v2314 = vrot.slane %v2313, 4
    %v2315 = vadd.f32 %v2313, %v2314
    %v2316 = vrot.slane %v2315, 2
    %v2317 = vadd.f32 %v2315, %v2316
    %v2318 = vrot.slane %v2317, 1
    %v2319 = vadd.f32 %v2317, %v2318
    %v2322 = vcombine.low %v2312, %v2319
    %v2324 = vunpack.c.l.s4 1966171168
    %v2325 = vunpack.c.0.s8 %v2324
    %v2326 = vlaneseq
    %v2327 = vshrl.u32 %v2326, 7
    %v2328 = vsub.s32 %v2325, %v2327
    %v2329 = vrot.slane %v2322, %v2328
    %v2331 = vunpack.c.l.s4 1966171168
    %v2332 = vunpack.c.0.s8 %v2331
    %v2333 = vlaneseq
    %v2334 = vshrl.u32 %v2333, 7
    %v2335 = vsub.s32 %v2332, %v2334
    %v2336 = vrot.slane %v2329, %v2335
    %v2338 = vlaneseq
    %vm2339 = vcmp.ge.s32.totalorder %v2338, 0
    %vm2340 = vcmp.lt.s32.totalorder %v2338, 256
    %vm2341 = vmand %vm2339, %vm2340
    %s2342 = scalar_lea.vmem %s12, 23
    %2343 = vst.msk [vmem:[%s2342] ss:$8 sm:$0x3] %vm2341, %v2336
    %2344 = vst.msk [vmem:[%s2342] ss:$8 sm:$0x0] %vm2341, %v2336
    %v2346 = vlaneseq
    %v2347 = vshrl.u32 %v2346, 7
    %v2348 = vsub.s32 0, %v2347
    %v2349 = vrot.slane %v2216, %v2348
    %v2350 = vlaneseq
    %v2351 = vshrl.u32 %v2350, 7
    %v2352 = vsub.s32 4, %v2351
    %v2353 = vrot.slane %v2216, %v2352
    %v2356 = vmul.f32 %v2055, %v2349
    %v2357 = vmul.f32 %v2057, %v2353
    %v2360 = vrot.slane %v2356, 4
    %v2361 = vrot.slane %v2357, 4
    %v2364 = vadd.f32 %v2064, %v2360
    %v2365 = vadd.f32 %v2065, %v2361
    %v2366 = vmul.f32 %v2055, %v2312
    %v2367 = vmul.f32 %v2057, %v2319
    %v2370 = vrot.slane %v2366, 6
    %v2371 = vrot.slane %v2367, 6
    %v2374 = vadd.f32 %v2364, %v2370
    %v2375 = vadd.f32 %v2365, %v2371
    %v2376 = vld [vmem:[%s2 + $0x10] sm:$0xff]
    %v2377 = vld [vmem:[%s2 + $0x18] sm:$0xff]
    %v2379 = vsel %vm1498, %v2376, 0
    %v2382 = vsel %vm1498, %v2377, 0
    %2384 = vmatprep.subr.mxu0 %v2157
    %2385 = vmatpush1.msra.mxu0 %v2156
    %2386 = vmatprep.subr.mxu0 %v2159
    %2387 = vmatpush1.msra.mxu0 %v2158
    %2388 = vmatprep.subr.mxu0 0.0
    %2389 = vmatpush1.msra.mxu0 0.0
    %2390 = vmatprep.subr.mxu0 0.0
    %2391 = vmatpush1.msra.mxu0 0.0
    %2392 = vmatprep.subr.mxu0 0.0
    %2393 = vmatpush1.msra.mxu0 0.0
    %2394 = vmatprep.subr.mxu0 0.0
    %2395 = vmatpush1.msra.mxu0 0.0
    %2396 = vmatprep.subr.mxu0 0.0
    %2397 = vmatpush1.msra.mxu0 0.0
    %2398 = vmatprep.subr.mxu0 0.0
    %2399 = vmatpush1.msra.mxu0 0.0
    %2400 = vmatprep.subr.mxu0 0.0
    %2401 = vmatpush1.msra.mxu0 0.0
    %2402 = vmatprep.subr.mxu0 0.0
    %2403 = vmatpush1.msra.mxu0 0.0
    %2404 = vmatprep.subr.mxu0 0.0
    %2405 = vmatpush1.msra.mxu0 0.0
    %2406 = vmatprep.subr.mxu0 0.0
    %2407 = vmatpush1.msra.mxu0 0.0
    %2408 = vmatprep.subr.mxu0 0.0
    %2409 = vmatpush1.msra.mxu0 0.0
    %2410 = vmatprep.subr.mxu0 0.0
    %2411 = vmatpush1.msra.mxu0 0.0
    %2412 = vmatprep.subr.mxu0 0.0
    %2413 = vmatpush1.msra.mxu0 0.0
    %2414 = vmatprep.subr.mxu0 0.0
    %2415 = vmatpush1.msra.mxu0 0.0
    %2416 = vmatprep.subr.mxu0 0.0
    %2417 = vmatpush1.msra.mxu0 0.0
    %2418 = vmatprep.subr.mxu0 0.0
    %2419 = vmatpush1.msra.mxu0 0.0
    %2420 = vmatprep.subr.mxu0 0.0
    %2421 = vmatpush1.msra.mxu0 0.0
    %2422 = vmatprep.subr.mxu0 0.0
    %2423 = vmatpush1.msra.mxu0 0.0
    %2424 = vmatprep.subr.mxu0 0.0
    %2425 = vmatpush1.msra.mxu0 0.0
    %2426 = vmatprep.subr.mxu0 0.0
    %2427 = vmatpush1.msra.mxu0 0.0
    %2428 = vmatprep.subr.mxu0 0.0
    %2429 = vmatpush1.msra.mxu0 0.0
    %2430 = vmatprep.subr.mxu0 0.0
    %2431 = vmatpush1.msra.mxu0 0.0
    %2432 = vmatprep.subr.mxu0 0.0
    %2433 = vmatpush1.msra.mxu0 0.0
    %2434 = vmatprep.subr.mxu0 0.0
    %2435 = vmatpush1.msra.mxu0 0.0
    %2436 = vmatprep.subr.mxu0 0.0
    %2437 = vmatpush1.msra.mxu0 0.0
    %2438 = vmatprep.subr.mxu0 0.0
    %2439 = vmatpush1.msra.mxu0 0.0
    %2440 = vmatprep.subr.mxu0 0.0
    %2441 = vmatpush1.msra.mxu0 0.0
    %2442 = vmatprep.subr.mxu0 0.0
    %2443 = vmatpush1.msra.mxu0 0.0
    %2444 = vmatprep.subr.mxu0 0.0
    %2445 = vmatpush1.msra.mxu0 0.0
    %2446 = vmatprep.subr.mxu0 0.0
    %2447 = vmatpush1.msra.mxu0 0.0
    %2448 = vmatprep.mubr.f32.mxu0 0.0
    %2449 = vmatmul.mubr.f32.gmra.mrb[0].mxu0 %v2379
    %v2450 = vpop.f32.mrb[0].mxu0
    %v2451 = vadd.f32 0.0, %v2450
    %v2452 = vpop.f32.mrb[0].mxu0
    %v2453 = vadd.f32 0.0, %v2452
    %2454 = vmatprep.mubr.f32.mxu0 0.0
    %2455 = vmatmul.mubr.f32.gmra.mrb[0].mxu0 %v2382
    %v2456 = vpop.f32.mrb[0].mxu0
    %v2457 = vadd.f32 0.0, %v2456
    %v2458 = vpop.f32.mrb[0].mxu0
    %v2459 = vadd.f32 0.0, %v2458
    %2460 = vdwg.mxu0
    %v2461 = vmul.f32 %v2212, %v2451
    %v2462 = vmul.f32 %v2213, %v2453
    %v2463 = vmul.f32 %v2214, %v2457
    %v2464 = vmul.f32 %v2215, %v2459
    %v2465 = vadd.f32 %v2461, %v2463
    %v2466 = vrot.slane %v2465, 4
    %v2467 = vadd.f32 %v2465, %v2466
    %v2468 = vrot.slane %v2467, 2
    %v2469 = vadd.f32 %v2467, %v2468
    %v2470 = vrot.slane %v2469, 1
    %v2471 = vadd.f32 %v2469, %v2470
    %v2472 = vadd.f32 %v2462, %v2464
    %v2473 = vrot.slane %v2472, 4
    %v2474 = vadd.f32 %v2472, %v2473
    %v2475 = vrot.slane %v2474, 2
    %v2476 = vadd.f32 %v2474, %v2475
    %v2477 = vrot.slane %v2476, 1
    %v2478 = vadd.f32 %v2476, %v2477
    %v2481 = vcombine.low %v2471, %v2478
    %v2483 = vunpack.c.l.s4 1966171168
    %v2484 = vunpack.c.0.s8 %v2483
    %v2485 = vlaneseq
    %v2486 = vshrl.u32 %v2485, 7
    %v2487 = vsub.s32 %v2484, %v2486
    %v2488 = vrot.slane %v2481, %v2487
    %v2490 = vunpack.c.l.s4 1966171168
    %v2491 = vunpack.c.0.s8 %v2490
    %v2492 = vlaneseq
    %v2493 = vshrl.u32 %v2492, 7
    %v2494 = vsub.s32 %v2491, %v2493
    %v2495 = vrot.slane %v2488, %v2494
    %s2497 = scalar_lea.vmem %s12, 32
    %2498 = vst.msk [vmem:[%s2497] ss:$8 sm:$0x3] %vm2341, %v2495
    %2499 = vst.msk [vmem:[%s2497] ss:$8 sm:$0x0] %vm2341, %v2495
    %v2500 = vlaneseq
    %v2501 = vshrl.u32 %v2500, 7
    %v2502 = vsub.s32 1, %v2501
    %v2503 = vrot.slane %v2216, %v2502
    %v2504 = vlaneseq
    %v2505 = vshrl.u32 %v2504, 7
    %v2506 = vsub.s32 5, %v2505
    %v2507 = vrot.slane %v2216, %v2506
    %v2510 = vmul.f32 %v2055, %v2503
    %v2511 = vmul.f32 %v2057, %v2507
    %v2514 = vrot.slane %v2510, 4
    %v2515 = vrot.slane %v2511, 4
    %v2518 = vadd.f32 %v2070, %v2514
    %v2519 = vadd.f32 %v2071, %v2515
    %v2520 = vmul.f32 %v2055, %v2471
    %v2521 = vmul.f32 %v2057, %v2478
    %v2524 = vrot.slane %v2520, 6
    %v2525 = vrot.slane %v2521, 6
    %v2528 = vadd.f32 %v2518, %v2524
    %v2529 = vadd.f32 %v2519, %v2525
    %v2530 = vld [vmem:[%s2 + $0x20] sm:$0xff]
    %v2531 = vld [vmem:[%s2 + $0x28] sm:$0xff]
    %v2533 = vsel %vm1498, %v2530, 0
    %v2536 = vsel %vm1498, %v2531, 0
    %2538 = vmatprep.subr.mxu0 %v2157
    %2539 = vmatpush1.msra.mxu0 %v2156
    %2540 = vmatprep.subr.mxu0 %v2159
    %2541 = vmatpush1.msra.mxu0 %v2158
    %2542 = vmatprep.subr.mxu0 0.0
    %2543 = vmatpush1.msra.mxu0 0.0
    %2544 = vmatprep.subr.mxu0 0.0
    %2545 = vmatpush1.msra.mxu0 0.0
    %2546 = vmatprep.subr.mxu0 0.0
    %2547 = vmatpush1.msra.mxu0 0.0
    %2548 = vmatprep.subr.mxu0 0.0
    %2549 = vmatpush1.msra.mxu0 0.0
    %2550 = vmatprep.subr.mxu0 0.0
    %2551 = vmatpush1.msra.mxu0 0.0
    %2552 = vmatprep.subr.mxu0 0.0
    %2553 = vmatpush1.msra.mxu0 0.0
    %2554 = vmatprep.subr.mxu0 0.0
    %2555 = vmatpush1.msra.mxu0 0.0
    %2556 = vmatprep.subr.mxu0 0.0
    %2557 = vmatpush1.msra.mxu0 0.0
    %2558 = vmatprep.subr.mxu0 0.0
    %2559 = vmatpush1.msra.mxu0 0.0
    %2560 = vmatprep.subr.mxu0 0.0
    %2561 = vmatpush1.msra.mxu0 0.0
    %2562 = vmatprep.subr.mxu0 0.0
    %2563 = vmatpush1.msra.mxu0 0.0
    %2564 = vmatprep.subr.mxu0 0.0
    %2565 = vmatpush1.msra.mxu0 0.0
    %2566 = vmatprep.subr.mxu0 0.0
    %2567 = vmatpush1.msra.mxu0 0.0
    %2568 = vmatprep.subr.mxu0 0.0
    %2569 = vmatpush1.msra.mxu0 0.0
    %2570 = vmatprep.subr.mxu0 0.0
    %2571 = vmatpush1.msra.mxu0 0.0
    %2572 = vmatprep.subr.mxu0 0.0
    %2573 = vmatpush1.msra.mxu0 0.0
    %2574 = vmatprep.subr.mxu0 0.0
    %2575 = vmatpush1.msra.mxu0 0.0
    %2576 = vmatprep.subr.mxu0 0.0
    %2577 = vmatpush1.msra.mxu0 0.0
    %2578 = vmatprep.subr.mxu0 0.0
    %2579 = vmatpush1.msra.mxu0 0.0
    %2580 = vmatprep.subr.mxu0 0.0
    %2581 = vmatpush1.msra.mxu0 0.0
    %2582 = vmatprep.subr.mxu0 0.0
    %2583 = vmatpush1.msra.mxu0 0.0
    %2584 = vmatprep.subr.mxu0 0.0
    %2585 = vmatpush1.msra.mxu0 0.0
    %2586 = vmatprep.subr.mxu0 0.0
    %2587 = vmatpush1.msra.mxu0 0.0
    %2588 = vmatprep.subr.mxu0 0.0
    %2589 = vmatpush1.msra.mxu0 0.0
    %2590 = vmatprep.subr.mxu0 0.0
    %2591 = vmatpush1.msra.mxu0 0.0
    %2592 = vmatprep.subr.mxu0 0.0
    %2593 = vmatpush1.msra.mxu0 0.0
    %2594 = vmatprep.subr.mxu0 0.0
    %2595 = vmatpush1.msra.mxu0 0.0
    %2596 = vmatprep.subr.mxu0 0.0
    %2597 = vmatpush1.msra.mxu0 0.0
    %2598 = vmatprep.subr.mxu0 0.0
    %2599 = vmatpush1.msra.mxu0 0.0
    %2600 = vmatprep.subr.mxu0 0.0
    %2601 = vmatpush1.msra.mxu0 0.0
    %2602 = vmatprep.mubr.f32.mxu0 0.0
    %2603 = vmatmul.mubr.f32.gmra.mrb[0].mxu0 %v2533
    %v2604 = vpop.f32.mrb[0].mxu0
    %v2605 = vadd.f32 0.0, %v2604
    %v2606 = vpop.f32.mrb[0].mxu0
    %v2607 = vadd.f32 0.0, %v2606
    %2608 = vmatprep.mubr.f32.mxu0 0.0
    %2609 = vmatmul.mubr.f32.gmra.mrb[0].mxu0 %v2536
    %v2610 = vpop.f32.mrb[0].mxu0
    %v2611 = vadd.f32 0.0, %v2610
    %v2612 = vpop.f32.mrb[0].mxu0
    %v2613 = vadd.f32 0.0, %v2612
    %2614 = vdwg.mxu0
    %v2615 = vmul.f32 %v2212, %v2605
    %v2616 = vmul.f32 %v2213, %v2607
    %v2617 = vmul.f32 %v2214, %v2611
    %v2618 = vmul.f32 %v2215, %v2613
    %v2619 = vadd.f32 %v2615, %v2617
    %v2620 = vrot.slane %v2619, 4
    %v2621 = vadd.f32 %v2619, %v2620
    %v2622 = vrot.slane %v2621, 2
    %v2623 = vadd.f32 %v2621, %v2622
    %v2624 = vrot.slane %v2623, 1
    %v2625 = vadd.f32 %v2623, %v2624
    %v2626 = vadd.f32 %v2616, %v2618
    %v2627 = vrot.slane %v2626, 4
    %v2628 = vadd.f32 %v2626, %v2627
    %v2629 = vrot.slane %v2628, 2
    %v2630 = vadd.f32 %v2628, %v2629
    %v2631 = vrot.slane %v2630, 1
    %v2632 = vadd.f32 %v2630, %v2631
    %v2635 = vcombine.low %v2625, %v2632
    %v2637 = vunpack.c.l.s4 1966171168
    %v2638 = vunpack.c.0.s8 %v2637
    %v2639 = vlaneseq
    %v2640 = vshrl.u32 %v2639, 7
    %v2641 = vsub.s32 %v2638, %v2640
    %v2642 = vrot.slane %v2635, %v2641
    %v2644 = vunpack.c.l.s4 1966171168
    %v2645 = vunpack.c.0.s8 %v2644
    %v2646 = vlaneseq
    %v2647 = vshrl.u32 %v2646, 7
    %v2648 = vsub.s32 %v2645, %v2647
    %v2649 = vrot.slane %v2642, %v2648
    %s2651 = scalar_lea.vmem %s12, 33
    %2652 = vst.msk [vmem:[%s2651] ss:$8 sm:$0x3] %vm2341, %v2649
    %2653 = vst.msk [vmem:[%s2651] ss:$8 sm:$0x0] %vm2341, %v2649
    %v2654 = vlaneseq
    %v2655 = vshrl.u32 %v2654, 7
    %v2656 = vsub.s32 2, %v2655
    %v2657 = vrot.slane %v2216, %v2656
    %v2658 = vlaneseq
    %v2659 = vshrl.u32 %v2658, 7
    %v2660 = vsub.s32 6, %v2659
    %v2661 = vrot.slane %v2216, %v2660
    %v2664 = vmul.f32 %v2055, %v2657
    %v2665 = vmul.f32 %v2057, %v2661
    %v2668 = vrot.slane %v2664, 4
    %v2669 = vrot.slane %v2665, 4
    %v2672 = vadd.f32 %v2076, %v2668
    %v2673 = vadd.f32 %v2077, %v2669
    %v2674 = vmul.f32 %v2055, %v2625
    %v2675 = vmul.f32 %v2057, %v2632
    %v2678 = vrot.slane %v2674, 6
    %v2679 = vrot.slane %v2675, 6
    %v2682 = vadd.f32 %v2672, %v2678
    %v2683 = vadd.f32 %v2673, %v2679
    %2684 = vst [vmem:[%s12 + $0x10] sm:$0x60] %v2080
    %2685 = vst [vmem:[%s12 + $0x18] sm:$0x60] %v2081
    %v2686 = vlaneseq
    %v2687 = vshrl.u32 %v2686, 7
    %v2688 = vsub.s32 2, %v2687
    %v2689 = vrot.slane %v2100, %v2688
    %v2690 = vlaneseq
    %v2691 = vshrl.u32 %v2690, 7
    %v2692 = vsub.s32 2, %v2691
    %v2693 = vrot.slane %v2101, %v2692
    %vm2694 = vcmp.eq.s32.totalorder %v117, %v2689
    %vm2695 = vcmp.eq.s32.totalorder %v117, %v2693
    %vm2696 = vcmp.eq.s32.totalorder %v118, %v2689
    %vm2697 = vcmp.eq.s32.totalorder %v118, %v2693
    %v2698 = vlaneseq
    %v2699 = vshrl.u32 %v2698, 7
    %v2700 = vsub.s32 2, %v2699
    %v2701 = vrot.slane %v2116, %v2700
    %v2702 = vlaneseq
    %v2703 = vshrl.u32 %v2702, 7
    %v2704 = vsub.s32 2, %v2703
    %v2705 = vrot.slane %v2117, %v2704
    %v2706 = vsel %vm2694, %v2701, 0.0
    %v2707 = vsel %vm2695, %v2705, 0.0
    %v2708 = vsel %vm2696, %v2701, 0.0
    %v2709 = vsel %vm2697, %v2705, 0.0
    %v2710 = vlaneseq
    %v2711 = vshrl.u32 %v2710, 7
    %v2712 = vsub.s32 2, %v2711
    %v2713 = vrot.slane %v2130, %v2712
    %v2714 = vlaneseq
    %v2715 = vshrl.u32 %v2714, 7
    %v2716 = vsub.s32 2, %v2715
    %v2717 = vrot.slane %v2131, %v2716
    %vm2718 = vcmp.eq.s32.totalorder %v117, %v2713
    %vm2719 = vcmp.eq.s32.totalorder %v117, %v2717
    %vm2720 = vcmp.eq.s32.totalorder %v118, %v2713
    %vm2721 = vcmp.eq.s32.totalorder %v118, %v2717
    %v2722 = vlaneseq
    %v2723 = vshrl.u32 %v2722, 7
    %v2724 = vsub.s32 2, %v2723
    %v2725 = vrot.slane %v2096, %v2724
    %v2726 = vlaneseq
    %v2727 = vshrl.u32 %v2726, 7
    %v2728 = vsub.s32 2, %v2727
    %v2729 = vrot.slane %v2097, %v2728
    %v2730 = vsel %vm2718, %v2725, 0.0
    %v2731 = vsel %vm2719, %v2729, 0.0
    %v2732 = vsel %vm2720, %v2725, 0.0
    %v2733 = vsel %vm2721, %v2729, 0.0
    %v2734 = vadd.f32 %v2706, %v2730
    %v2735 = vadd.f32 %v2707, %v2731
    %v2736 = vadd.f32 %v2708, %v2732
    %v2737 = vadd.f32 %v2709, %v2733
    %v2738 = vlaneseq
    %v2739 = vshrl.u32 %v2738, 7
    %v2740 = vsub.s32 3, %v2739
    %v2741 = vrot.slane %v2102, %v2740
    %v2742 = vlaneseq
    %v2743 = vshrl.u32 %v2742, 7
    %v2744 = vsub.s32 3, %v2743
    %v2745 = vrot.slane %v2103, %v2744
    %vm2746 = vcmp.eq.s32.totalorder %v117, %v2741
    %vm2747 = vcmp.eq.s32.totalorder %v117, %v2745
    %vm2748 = vcmp.eq.s32.totalorder %v118, %v2741
    %vm2749 = vcmp.eq.s32.totalorder %v118, %v2745
    %v2750 = vlaneseq
    %v2751 = vshrl.u32 %v2750, 7
    %v2752 = vsub.s32 3, %v2751
    %v2753 = vrot.slane %v2172, %v2752
    %v2754 = vlaneseq
    %v2755 = vshrl.u32 %v2754, 7
    %v2756 = vsub.s32 3, %v2755
    %v2757 = vrot.slane %v2173, %v2756
    %v2758 = vsel %vm2746, %v2753, 0.0
    %v2759 = vsel %vm2747, %v2757, 0.0
    %v2760 = vsel %vm2748, %v2753, 0.0
    %v2761 = vsel %vm2749, %v2757, 0.0
    %v2762 = vlaneseq
    %v2763 = vshrl.u32 %v2762, 7
    %v2764 = vsub.s32 3, %v2763
    %v2765 = vrot.slane %v2186, %v2764
    %v2766 = vlaneseq
    %v2767 = vshrl.u32 %v2766, 7
    %v2768 = vsub.s32 3, %v2767
    %v2769 = vrot.slane %v2187, %v2768
    %vm2770 = vcmp.eq.s32.totalorder %v117, %v2765
    %vm2771 = vcmp.eq.s32.totalorder %v117, %v2769
    %vm2772 = vcmp.eq.s32.totalorder %v118, %v2765
    %vm2773 = vcmp.eq.s32.totalorder %v118, %v2769
    %v2774 = vlaneseq
    %v2775 = vshrl.u32 %v2774, 7
    %v2776 = vsub.s32 3, %v2775
    %v2777 = vrot.slane %v2098, %v2776
    %v2778 = vlaneseq
    %v2779 = vshrl.u32 %v2778, 7
    %v2780 = vsub.s32 3, %v2779
    %v2781 = vrot.slane %v2099, %v2780
    %v2782 = vsel %vm2770, %v2777, 0.0
    %v2783 = vsel %vm2771, %v2781, 0.0
    %v2784 = vsel %vm2772, %v2777, 0.0
    %v2785 = vsel %vm2773, %v2781, 0.0
    %v2786 = vadd.f32 %v2758, %v2782
    %v2787 = vadd.f32 %v2759, %v2783
    %v2788 = vadd.f32 %v2760, %v2784
    %v2789 = vadd.f32 %v2761, %v2785
    %s2790 = scalar_lea.vmem %s1, 8
    %v2791 = vld [vmem:[%s2790] sm:$0x77]
    %s2792 = scalar_lea.vmem %s2, 48
    %v2793 = vld [vmem:[%s2792] sm:$0xff]
    %v2794 = vld [vmem:[%s2792 + $0x8] sm:$0xff]
    %v2796 = vsel %vm1498, %v2793, 0
    %v2799 = vsel %vm1498, %v2794, 0
    %2801 = vmatprep.subr.mxu0 %v2735
    %2802 = vmatpush1.msra.mxu0 %v2734
    %2803 = vmatprep.subr.mxu0 %v2737
    %2804 = vmatpush1.msra.mxu0 %v2736
    %2805 = vmatprep.subr.mxu0 0.0
    %2806 = vmatpush1.msra.mxu0 0.0
    %2807 = vmatprep.subr.mxu0 0.0
    %2808 = vmatpush1.msra.mxu0 0.0
    %2809 = vmatprep.subr.mxu0 0.0
    %2810 = vmatpush1.msra.mxu0 0.0
    %2811 = vmatprep.subr.mxu0 0.0
    %2812 = vmatpush1.msra.mxu0 0.0
    %2813 = vmatprep.subr.mxu0 0.0
    %2814 = vmatpush1.msra.mxu0 0.0
    %2815 = vmatprep.subr.mxu0 0.0
    %2816 = vmatpush1.msra.mxu0 0.0
    %2817 = vmatprep.subr.mxu0 0.0
    %2818 = vmatpush1.msra.mxu0 0.0
    %2819 = vmatprep.subr.mxu0 0.0
    %2820 = vmatpush1.msra.mxu0 0.0
    %2821 = vmatprep.subr.mxu0 0.0
    %2822 = vmatpush1.msra.mxu0 0.0
    %2823 = vmatprep.subr.mxu0 0.0
    %2824 = vmatpush1.msra.mxu0 0.0
    %2825 = vmatprep.subr.mxu0 0.0
    %2826 = vmatpush1.msra.mxu0 0.0
    %2827 = vmatprep.subr.mxu0 0.0
    %2828 = vmatpush1.msra.mxu0 0.0
    %2829 = vmatprep.subr.mxu0 0.0
    %2830 = vmatpush1.msra.mxu0 0.0
    %2831 = vmatprep.subr.mxu0 0.0
    %2832 = vmatpush1.msra.mxu0 0.0
    %2833 = vmatprep.subr.mxu0 0.0
    %2834 = vmatpush1.msra.mxu0 0.0
    %2835 = vmatprep.subr.mxu0 0.0
    %2836 = vmatpush1.msra.mxu0 0.0
    %2837 = vmatprep.subr.mxu0 0.0
    %2838 = vmatpush1.msra.mxu0 0.0
    %2839 = vmatprep.subr.mxu0 0.0
    %2840 = vmatpush1.msra.mxu0 0.0
    %2841 = vmatprep.subr.mxu0 0.0
    %2842 = vmatpush1.msra.mxu0 0.0
    %2843 = vmatprep.subr.mxu0 0.0
    %2844 = vmatpush1.msra.mxu0 0.0
    %2845 = vmatprep.subr.mxu0 0.0
    %2846 = vmatpush1.msra.mxu0 0.0
    %2847 = vmatprep.subr.mxu0 0.0
    %2848 = vmatpush1.msra.mxu0 0.0
    %2849 = vmatprep.subr.mxu0 0.0
    %2850 = vmatpush1.msra.mxu0 0.0
    %2851 = vmatprep.subr.mxu0 0.0
    %2852 = vmatpush1.msra.mxu0 0.0
    %2853 = vmatprep.subr.mxu0 0.0
    %2854 = vmatpush1.msra.mxu0 0.0
    %2855 = vmatprep.subr.mxu0 0.0
    %2856 = vmatpush1.msra.mxu0 0.0
    %2857 = vmatprep.subr.mxu0 0.0
    %2858 = vmatpush1.msra.mxu0 0.0
    %2859 = vmatprep.subr.mxu0 0.0
    %2860 = vmatpush1.msra.mxu0 0.0
    %2861 = vmatprep.subr.mxu0 0.0
    %2862 = vmatpush1.msra.mxu0 0.0
    %2863 = vmatprep.subr.mxu0 0.0
    %2864 = vmatpush1.msra.mxu0 0.0
    %2865 = vmatprep.mubr.f32.mxu0 0.0
    %2866 = vmatmul.mubr.f32.gmra.mrb[0].mxu0 %v2796
    %v2867 = vpop.f32.mrb[0].mxu0
    %v2868 = vadd.f32 0.0, %v2867
    %v2869 = vpop.f32.mrb[0].mxu0
    %v2870 = vadd.f32 0.0, %v2869
    %2871 = vmatprep.mubr.f32.mxu0 0.0
    %2872 = vmatmul.mubr.f32.gmra.mrb[0].mxu0 %v2799
    %v2873 = vpop.f32.mrb[0].mxu0
    %v2874 = vadd.f32 0.0, %v2873
    %v2875 = vpop.f32.mrb[0].mxu0
    %v2876 = vadd.f32 0.0, %v2875
    %2877 = vdwg.mxu0
    %v2878 = vmul.f32 %v2786, %v2868
    %v2879 = vmul.f32 %v2787, %v2870
    %v2880 = vmul.f32 %v2788, %v2874
    %v2881 = vmul.f32 %v2789, %v2876
    %v2882 = vadd.f32 %v2878, %v2880
    %v2883 = vrot.slane %v2882, 4
    %v2884 = vadd.f32 %v2882, %v2883
    %v2885 = vrot.slane %v2884, 2
    %v2886 = vadd.f32 %v2884, %v2885
    %v2887 = vrot.slane %v2886, 1
    %v2888 = vadd.f32 %v2886, %v2887
    %v2889 = vadd.f32 %v2879, %v2881
    %v2890 = vrot.slane %v2889, 4
    %v2891 = vadd.f32 %v2889, %v2890
    %v2892 = vrot.slane %v2891, 2
    %v2893 = vadd.f32 %v2891, %v2892
    %v2894 = vrot.slane %v2893, 1
    %v2895 = vadd.f32 %v2893, %v2894
    %v2898 = vcombine.low %v2888, %v2895
    %v2900 = vunpack.c.l.s4 1966171168
    %v2901 = vunpack.c.0.s8 %v2900
    %v2902 = vlaneseq
    %v2903 = vshrl.u32 %v2902, 7
    %v2904 = vsub.s32 %v2901, %v2903
    %v2905 = vrot.slane %v2898, %v2904
    %v2907 = vunpack.c.l.s4 1966171168
    %v2908 = vunpack.c.0.s8 %v2907
    %v2909 = vlaneseq
    %v2910 = vshrl.u32 %v2909, 7
    %v2911 = vsub.s32 %v2908, %v2910
    %v2912 = vrot.slane %v2905, %v2911
    %s2914 = scalar_lea.vmem %s12, 34
    %2915 = vst.msk [vmem:[%s2914] ss:$8 sm:$0x3] %vm2341, %v2912
    %2916 = vst.msk [vmem:[%s2914] ss:$8 sm:$0x0] %vm2341, %v2912
    %v2918 = vlaneseq
    %v2919 = vshrl.u32 %v2918, 7
    %v2920 = vsub.s32 0, %v2919
    %v2921 = vrot.slane %v2791, %v2920
    %v2922 = vlaneseq
    %v2923 = vshrl.u32 %v2922, 7
    %v2924 = vsub.s32 4, %v2923
    %v2925 = vrot.slane %v2791, %v2924
    %v2928 = vmul.f32 %v2055, %v2921
    %v2929 = vmul.f32 %v2057, %v2925
    %v2932 = vrot.slane %v2928, 5
    %v2933 = vrot.slane %v2929, 5
    %v2936 = vadd.f32 %v2374, %v2932
    %v2937 = vadd.f32 %v2375, %v2933
    %v2938 = vmul.f32 %v2055, %v2888
    %v2939 = vmul.f32 %v2057, %v2895
    %v2942 = vrot.slane %v2938, 7
    %v2943 = vrot.slane %v2939, 7
    %v2946 = vadd.f32 %v2936, %v2942
    %v2947 = vadd.f32 %v2937, %v2943
    %v2948 = vld [vmem:[%s2792 + $0x10] sm:$0xff]
    %v2949 = vld [vmem:[%s2792 + $0x18] sm:$0xff]
    %v2951 = vsel %vm1498, %v2948, 0
    %v2954 = vsel %vm1498, %v2949, 0
    %2956 = vmatprep.subr.mxu0 %v2735
    %2957 = vmatpush1.msra.mxu0 %v2734
    %2958 = vmatprep.subr.mxu0 %v2737
    %2959 = vmatpush1.msra.mxu0 %v2736
    %2960 = vmatprep.subr.mxu0 0.0
    %2961 = vmatpush1.msra.mxu0 0.0
    %2962 = vmatprep.subr.mxu0 0.0
    %2963 = vmatpush1.msra.mxu0 0.0
    %2964 = vmatprep.subr.mxu0 0.0
    %2965 = vmatpush1.msra.mxu0 0.0
    %2966 = vmatprep.subr.mxu0 0.0
    %2967 = vmatpush1.msra.mxu0 0.0
    %2968 = vmatprep.subr.mxu0 0.0
    %2969 = vmatpush1.msra.mxu0 0.0
    %2970 = vmatprep.subr.mxu0 0.0
    %2971 = vmatpush1.msra.mxu0 0.0
    %2972 = vmatprep.subr.mxu0 0.0
    %2973 = vmatpush1.msra.mxu0 0.0
    %2974 = vmatprep.subr.mxu0 0.0
    %2975 = vmatpush1.msra.mxu0 0.0
    %2976 = vmatprep.subr.mxu0 0.0
    %2977 = vmatpush1.msra.mxu0 0.0
    %2978 = vmatprep.subr.mxu0 0.0
    %2979 = vmatpush1.msra.mxu0 0.0
    %2980 = vmatprep.subr.mxu0 0.0
    %2981 = vmatpush1.msra.mxu0 0.0
    %2982 = vmatprep.subr.mxu0 0.0
    %2983 = vmatpush1.msra.mxu0 0.0
    %2984 = vmatprep.subr.mxu0 0.0
    %2985 = vmatpush1.msra.mxu0 0.0
    %2986 = vmatprep.subr.mxu0 0.0
    %2987 = vmatpush1.msra.mxu0 0.0
    %2988 = vmatprep.subr.mxu0 0.0
    %2989 = vmatpush1.msra.mxu0 0.0
    %2990 = vmatprep.subr.mxu0 0.0
    %2991 = vmatpush1.msra.mxu0 0.0
    %2992 = vmatprep.subr.mxu0 0.0
    %2993 = vmatpush1.msra.mxu0 0.0
    %2994 = vmatprep.subr.mxu0 0.0
    %2995 = vmatpush1.msra.mxu0 0.0
    %2996 = vmatprep.subr.mxu0 0.0
    %2997 = vmatpush1.msra.mxu0 0.0
    %2998 = vmatprep.subr.mxu0 0.0
    %2999 = vmatpush1.msra.mxu0 0.0
    %3000 = vmatprep.subr.mxu0 0.0
    %3001 = vmatpush1.msra.mxu0 0.0
    %3002 = vmatprep.subr.mxu0 0.0
    %3003 = vmatpush1.msra.mxu0 0.0
    %3004 = vmatprep.subr.mxu0 0.0
    %3005 = vmatpush1.msra.mxu0 0.0
    %3006 = vmatprep.subr.mxu0 0.0
    %3007 = vmatpush1.msra.mxu0 0.0
    %3008 = vmatprep.subr.mxu0 0.0
    %3009 = vmatpush1.msra.mxu0 0.0
    %3010 = vmatprep.subr.mxu0 0.0
    %3011 = vmatpush1.msra.mxu0 0.0
    %3012 = vmatprep.subr.mxu0 0.0
    %3013 = vmatpush1.msra.mxu0 0.0
    %3014 = vmatprep.subr.mxu0 0.0
    %3015 = vmatpush1.msra.mxu0 0.0
    %3016 = vmatprep.subr.mxu0 0.0
    %3017 = vmatpush1.msra.mxu0 0.0
    %3018 = vmatprep.subr.mxu0 0.0
    %3019 = vmatpush1.msra.mxu0 0.0
    %3020 = vmatprep.mubr.f32.mxu0 0.0
    %3021 = vmatmul.mubr.f32.gmra.mrb[0].mxu0 %v2951
    %v3022 = vpop.f32.mrb[0].mxu0
    %v3023 = vadd.f32 0.0, %v3022
    %v3024 = vpop.f32.mrb[0].mxu0
    %v3025 = vadd.f32 0.0, %v3024
    %3026 = vmatprep.mubr.f32.mxu0 0.0
    %3027 = vmatmul.mubr.f32.gmra.mrb[0].mxu0 %v2954
    %v3028 = vpop.f32.mrb[0].mxu0
    %v3029 = vadd.f32 0.0, %v3028
    %v3030 = vpop.f32.mrb[0].mxu0
    %v3031 = vadd.f32 0.0, %v3030
    %3032 = vdwg.mxu0
    %v3033 = vmul.f32 %v2786, %v3023
    %v3034 = vmul.f32 %v2787, %v3025
    %v3035 = vmul.f32 %v2788, %v3029
    %v3036 = vmul.f32 %v2789, %v3031
    %v3037 = vadd.f32 %v3033, %v3035
    %v3038 = vrot.slane %v3037, 4
    %v3039 = vadd.f32 %v3037, %v3038
    %v3040 = vrot.slane %v3039, 2
    %v3041 = vadd.f32 %v3039, %v3040
    %v3042 = vrot.slane %v3041, 1
    %v3043 = vadd.f32 %v3041, %v3042
    %v3044 = vadd.f32 %v3034, %v3036
    %v3045 = vrot.slane %v3044, 4
    %v3046 = vadd.f32 %v3044, %v3045
    %v3047 = vrot.slane %v3046, 2
    %v3048 = vadd.f32 %v3046, %v3047
    %v3049 = vrot.slane %v3048, 1
    %v3050 = vadd.f32 %v3048, %v3049
    %v3053 = vcombine.low %v3043, %v3050
    %v3055 = vunpack.c.l.s4 1966171168
    %v3056 = vunpack.c.0.s8 %v3055
    %v3057 = vlaneseq
    %v3058 = vshrl.u32 %v3057, 7
    %v3059 = vsub.s32 %v3056, %v3058
    %v3060 = vrot.slane %v3053, %v3059
    %v3062 = vunpack.c.l.s4 1966171168
    %v3063 = vunpack.c.0.s8 %v3062
    %v3064 = vlaneseq
    %v3065 = vshrl.u32 %v3064, 7
    %v3066 = vsub.s32 %v3063, %v3065
    %v3067 = vrot.slane %v3060, %v3066
    %s3069 = scalar_lea.vmem %s12, 35
    %3070 = vst.msk [vmem:[%s3069] ss:$8 sm:$0x3] %vm2341, %v3067
    %3071 = vst.msk [vmem:[%s3069] ss:$8 sm:$0x0] %vm2341, %v3067
    %v3072 = vlaneseq
    %v3073 = vshrl.u32 %v3072, 7
    %v3074 = vsub.s32 1, %v3073
    %v3075 = vrot.slane %v2791, %v3074
    %v3076 = vlaneseq
    %v3077 = vshrl.u32 %v3076, 7
    %v3078 = vsub.s32 5, %v3077
    %v3079 = vrot.slane %v2791, %v3078
    %v3082 = vmul.f32 %v2055, %v3075
    %v3083 = vmul.f32 %v2057, %v3079
    %v3086 = vrot.slane %v3082, 5
    %v3087 = vrot.slane %v3083, 5
    %v3090 = vadd.f32 %v2528, %v3086
    %v3091 = vadd.f32 %v2529, %v3087
    %v3092 = vmul.f32 %v2055, %v3043
    %v3093 = vmul.f32 %v2057, %v3050
    %v3096 = vrot.slane %v3092, 7
    %v3097 = vrot.slane %v3093, 7
    %v3100 = vadd.f32 %v3090, %v3096
    %v3101 = vadd.f32 %v3091, %v3097
    %v3102 = vld [vmem:[%s2792 + $0x20] sm:$0xff]
    %v3103 = vld [vmem:[%s2792 + $0x28] sm:$0xff]
    %v3105 = vsel %vm1498, %v3102, 0
    %v3108 = vsel %vm1498, %v3103, 0
    %3110 = vmatprep.subr.mxu0 %v2735
    %3111 = vmatpush1.msra.mxu0 %v2734
    %3112 = vmatprep.subr.mxu0 %v2737
    %3113 = vmatpush1.msra.mxu0 %v2736
    %3114 = vmatprep.subr.mxu0 0.0
    %3115 = vmatpush1.msra.mxu0 0.0
    %3116 = vmatprep.subr.mxu0 0.0
    %3117 = vmatpush1.msra.mxu0 0.0
    %3118 = vmatprep.subr.mxu0 0.0
    %3119 = vmatpush1.msra.mxu0 0.0
    %3120 = vmatprep.subr.mxu0 0.0
    %3121 = vmatpush1.msra.mxu0 0.0
    %3122 = vmatprep.subr.mxu0 0.0
    %3123 = vmatpush1.msra.mxu0 0.0
    %3124 = vmatprep.subr.mxu0 0.0
    %3125 = vmatpush1.msra.mxu0 0.0
    %3126 = vmatprep.subr.mxu0 0.0
    %3127 = vmatpush1.msra.mxu0 0.0
    %3128 = vmatprep.subr.mxu0 0.0
    %3129 = vmatpush1.msra.mxu0 0.0
    %3130 = vmatprep.subr.mxu0 0.0
    %3131 = vmatpush1.msra.mxu0 0.0
    %3132 = vmatprep.subr.mxu0 0.0
    %3133 = vmatpush1.msra.mxu0 0.0
    %3134 = vmatprep.subr.mxu0 0.0
    %3135 = vmatpush1.msra.mxu0 0.0
    %3136 = vmatprep.subr.mxu0 0.0
    %3137 = vmatpush1.msra.mxu0 0.0
    %3138 = vmatprep.subr.mxu0 0.0
    %3139 = vmatpush1.msra.mxu0 0.0
    %3140 = vmatprep.subr.mxu0 0.0
    %3141 = vmatpush1.msra.mxu0 0.0
    %3142 = vmatprep.subr.mxu0 0.0
    %3143 = vmatpush1.msra.mxu0 0.0
    %3144 = vmatprep.subr.mxu0 0.0
    %3145 = vmatpush1.msra.mxu0 0.0
    %3146 = vmatprep.subr.mxu0 0.0
    %3147 = vmatpush1.msra.mxu0 0.0
    %3148 = vmatprep.subr.mxu0 0.0
    %3149 = vmatpush1.msra.mxu0 0.0
    %3150 = vmatprep.subr.mxu0 0.0
    %3151 = vmatpush1.msra.mxu0 0.0
    %3152 = vmatprep.subr.mxu0 0.0
    %3153 = vmatpush1.msra.mxu0 0.0
    %3154 = vmatprep.subr.mxu0 0.0
    %3155 = vmatpush1.msra.mxu0 0.0
    %3156 = vmatprep.subr.mxu0 0.0
    %3157 = vmatpush1.msra.mxu0 0.0
    %3158 = vmatprep.subr.mxu0 0.0
    %3159 = vmatpush1.msra.mxu0 0.0
    %3160 = vmatprep.subr.mxu0 0.0
    %3161 = vmatpush1.msra.mxu0 0.0
    %3162 = vmatprep.subr.mxu0 0.0
    %3163 = vmatpush1.msra.mxu0 0.0
    %3164 = vmatprep.subr.mxu0 0.0
    %3165 = vmatpush1.msra.mxu0 0.0
    %3166 = vmatprep.subr.mxu0 0.0
    %3167 = vmatpush1.msra.mxu0 0.0
    %3168 = vmatprep.subr.mxu0 0.0
    %3169 = vmatpush1.msra.mxu0 0.0
    %3170 = vmatprep.subr.mxu0 0.0
    %3171 = vmatpush1.msra.mxu0 0.0
    %3172 = vmatprep.subr.mxu0 0.0
    %3173 = vmatpush1.msra.mxu0 0.0
    %3174 = vmatprep.mubr.f32.mxu0 0.0
    %3175 = vmatmul.mubr.f32.gmra.mrb[0].mxu0 %v3105
    %v3176 = vpop.f32.mrb[0].mxu0
    %v3177 = vadd.f32 0.0, %v3176
    %v3178 = vpop.f32.mrb[0].mxu0
    %v3179 = vadd.f32 0.0, %v3178
    %3180 = vmatprep.mubr.f32.mxu0 0.0
    %3181 = vmatmul.mubr.f32.gmra.mrb[0].mxu0 %v3108
    %v3182 = vpop.f32.mrb[0].mxu0
    %v3183 = vadd.f32 0.0, %v3182
    %v3184 = vpop.f32.mrb[0].mxu0
    %v3185 = vadd.f32 0.0, %v3184
    %3186 = vdwg.mxu0
    %v3187 = vmul.f32 %v2786, %v3177
    %v3188 = vmul.f32 %v2787, %v3179
    %v3189 = vmul.f32 %v2788, %v3183
    %v3190 = vmul.f32 %v2789, %v3185
    %v3191 = vadd.f32 %v3187, %v3189
    %v3192 = vrot.slane %v3191, 4
    %v3193 = vadd.f32 %v3191, %v3192
    %v3194 = vrot.slane %v3193, 2
    %v3195 = vadd.f32 %v3193, %v3194
    %v3196 = vrot.slane %v3195, 1
    %v3197 = vadd.f32 %v3195, %v3196
    %v3198 = vadd.f32 %v3188, %v3190
    %v3199 = vrot.slane %v3198, 4
    %v3200 = vadd.f32 %v3198, %v3199
    %v3201 = vrot.slane %v3200, 2
    %v3202 = vadd.f32 %v3200, %v3201
    %v3203 = vrot.slane %v3202, 1
    %v3204 = vadd.f32 %v3202, %v3203
    %v3207 = vcombine.low %v3197, %v3204
    %v3209 = vunpack.c.l.s4 1966171168
    %v3210 = vunpack.c.0.s8 %v3209
    %v3211 = vlaneseq
    %v3212 = vshrl.u32 %v3211, 7
    %v3213 = vsub.s32 %v3210, %v3212
    %v3214 = vrot.slane %v3207, %v3213
    %v3216 = vunpack.c.l.s4 1966171168
    %v3217 = vunpack.c.0.s8 %v3216
    %v3218 = vlaneseq
    %v3219 = vshrl.u32 %v3218, 7
    %v3220 = vsub.s32 %v3217, %v3219
    %v3221 = vrot.slane %v3214, %v3220
    %s3223 = scalar_lea.vmem %s12, 36
    %3224 = vst.msk [vmem:[%s3223] ss:$8 sm:$0x3] %vm2341, %v3221
    %3225 = vst.msk [vmem:[%s3223] ss:$8 sm:$0x0] %vm2341, %v3221
    %v3226 = vlaneseq
    %v3227 = vshrl.u32 %v3226, 7
    %v3228 = vsub.s32 2, %v3227
    %v3229 = vrot.slane %v2791, %v3228
    %v3230 = vlaneseq
    %v3231 = vshrl.u32 %v3230, 7
    %v3232 = vsub.s32 6, %v3231
    %v3233 = vrot.slane %v2791, %v3232
    %v3236 = vmul.f32 %v2055, %v3229
    %v3237 = vmul.f32 %v2057, %v3233
    %v3240 = vrot.slane %v3236, 5
    %v3241 = vrot.slane %v3237, 5
    %v3244 = vadd.f32 %v2682, %v3240
    %v3245 = vadd.f32 %v2683, %v3241
    %v3246 = vmul.f32 %v2055, %v3197
    %v3247 = vmul.f32 %v2057, %v3204
    %v3250 = vrot.slane %v3246, 7
    %v3251 = vrot.slane %v3247, 7
    %v3254 = vadd.f32 %v3244, %v3250
    %v3255 = vadd.f32 %v3245, %v3251
    %v3258 = vcombine.high %v2946, %v2947
    %v3260 = vunpack.c.l.s4 1966171168
    %v3261 = vunpack.c.0.s8 %v3260
    %v3262 = vlaneseq
    %v3263 = vshrl.u32 %v3262, 7
    %v3264 = vsub.s32 %v3261, %v3263
    %v3265 = vrot.slane %v3258, %v3264
    %v3266 = vcombine.high %v3265, %v3265
    %v3268 = vunpack.c.l.s4 1966171168
    %v3269 = vunpack.c.0.s8 %v3268
    %v3270 = vlaneseq
    %v3271 = vshrl.u32 %v3270, 7
    %v3272 = vsub.s32 %v3269, %v3271
    %v3273 = vrot.slane %v3266, %v3272
    %v3274 = vcombine.high %v3273, %v3273
    %s3276 = scalar_lea.vmem %s12, 16
    %3277 = vst.msk [vmem:[%s3276] ss:$8 sm:$0x3] %vm2341, %v3274
    %3278 = vst.msk [vmem:[%s3276] ss:$8 sm:$0x0] %vm2341, %v3274
    %v3281 = vcombine.high %v3100, %v3101
    %v3283 = vunpack.c.l.s4 1966171168
    %v3284 = vunpack.c.0.s8 %v3283
    %v3285 = vlaneseq
    %v3286 = vshrl.u32 %v3285, 7
    %v3287 = vsub.s32 %v3284, %v3286
    %v3288 = vrot.slane %v3281, %v3287
    %v3289 = vcombine.high %v3288, %v3288
    %v3291 = vunpack.c.l.s4 1966171168
    %v3292 = vunpack.c.0.s8 %v3291
    %v3293 = vlaneseq
    %v3294 = vshrl.u32 %v3293, 7
    %v3295 = vsub.s32 %v3292, %v3294
    %v3296 = vrot.slane %v3289, %v3295
    %v3297 = vcombine.high %v3296, %v3296
    %s3299 = scalar_lea.vmem %s12, 17
    %3300 = vst.msk [vmem:[%s3299] ss:$8 sm:$0x3] %vm2341, %v3297
    %3301 = vst.msk [vmem:[%s3299] ss:$8 sm:$0x0] %vm2341, %v3297
    %v3304 = vcombine.high %v3254, %v3255
    %v3306 = vunpack.c.l.s4 1966171168
    %v3307 = vunpack.c.0.s8 %v3306
    %v3308 = vlaneseq
    %v3309 = vshrl.u32 %v3308, 7
    %v3310 = vsub.s32 %v3307, %v3309
    %v3311 = vrot.slane %v3304, %v3310
    %v3312 = vcombine.high %v3311, %v3311
    %v3314 = vunpack.c.l.s4 1966171168
    %v3315 = vunpack.c.0.s8 %v3314
    %v3316 = vlaneseq
    %v3317 = vshrl.u32 %v3316, 7
    %v3318 = vsub.s32 %v3315, %v3317
    %v3319 = vrot.slane %v3312, %v3318
    %v3320 = vcombine.high %v3319, %v3319
    %s3322 = scalar_lea.vmem %s12, 18
    %3323 = vst.msk [vmem:[%s3322] ss:$8 sm:$0x3] %vm2341, %v3320
    %3324 = vst.msk [vmem:[%s3322] ss:$8 sm:$0x0] %vm2341, %v3320
    %v3325 = vld [vmem:[#allocation6] sm:$0xff]
    %v3326 = vld [vmem:[#allocation6 + $0x8] sm:$0xff]
    %s3327 = sld [smem:[#allocation3 + $0x80]]
    %v3328 = vld [vmem:[%s3] sm:$0xff]
    %v3329 = vld [vmem:[%s3 + $0x8] sm:$0xff]
    %v3330 = vstv %s3327
    %v3331 = vmul.f32 %v3330, %v3328
    %v3332 = vmul.f32 %v3330, %v3329
    %v3333 = vadd.f32 %v3325, %v3331
    %v3334 = vadd.f32 %v3326, %v3332
    %s3335 = sld [smem:[#allocation3 + $0x81]]
    %v3336 = vld [vmem:[%s204] sm:$0xff]
    %v3337 = vld [vmem:[%s204 + $0x8] sm:$0xff]
    %v3338 = vstv %s3335
    %v3339 = vmul.f32 %v3338, %v3336
    %v3340 = vmul.f32 %v3338, %v3337
    %v3341 = vadd.f32 %v3339, 0.0
    %v3342 = vadd.f32 %v3340, 0.0
    %s3343 = sld [smem:[#allocation3 + $0x82]]
    %v3344 = vld [vmem:[%s213] sm:$0xff]
    %v3345 = vld [vmem:[%s213 + $0x8] sm:$0xff]
    %v3346 = vstv %s3343
    %v3347 = vmul.f32 %v3346, %v3344
    %v3348 = vmul.f32 %v3346, %v3345
    %v3349 = vadd.f32 %v3347, 0.0
    %v3350 = vadd.f32 %v3348, 0.0
    %s3351 = sld [smem:[#allocation3 + $0x83]]
    %v3352 = vld [vmem:[%s222] sm:$0xff]
    %v3353 = vld [vmem:[%s222 + $0x8] sm:$0xff]
    %v3354 = vstv %s3351
    %v3355 = vmul.f32 %v3354, %v3352
    %v3356 = vmul.f32 %v3354, %v3353
    %v3357 = vadd.f32 %v3355, 0.0
    %v3358 = vadd.f32 %v3356, 0.0
    %s3359 = sld [smem:[#allocation3 + $0x84]]
    %v3360 = vld [vmem:[%s231] sm:$0xff]
    %v3361 = vld [vmem:[%s231 + $0x8] sm:$0xff]
    %v3362 = vstv %s3359
    %v3363 = vmul.f32 %v3362, %v3360
    %v3364 = vmul.f32 %v3362, %v3361
    %v3365 = vadd.f32 %v3333, %v3363
    %v3366 = vadd.f32 %v3334, %v3364
    %s3367 = sld [smem:[#allocation3 + $0x85]]
    %v3368 = vld [vmem:[%s240] sm:$0xff]
    %v3369 = vld [vmem:[%s240 + $0x8] sm:$0xff]
    %v3370 = vstv %s3367
    %v3371 = vmul.f32 %v3370, %v3368
    %v3372 = vmul.f32 %v3370, %v3369
    %v3373 = vadd.f32 %v3341, %v3371
    %v3374 = vadd.f32 %v3342, %v3372
    %s3375 = sld [smem:[#allocation3 + $0x86]]
    %v3376 = vld [vmem:[%s249] sm:$0xff]
    %v3377 = vld [vmem:[%s249 + $0x8] sm:$0xff]
    %v3378 = vstv %s3375
    %v3379 = vmul.f32 %v3378, %v3376
    %v3380 = vmul.f32 %v3378, %v3377
    %v3381 = vadd.f32 %v3349, %v3379
    %v3382 = vadd.f32 %v3350, %v3380
    %s3383 = sld [smem:[#allocation3 + $0x87]]
    %v3384 = vld [vmem:[%s258] sm:$0xff]
    %v3385 = vld [vmem:[%s258 + $0x8] sm:$0xff]
    %v3386 = vstv %s3383
    %v3387 = vmul.f32 %v3386, %v3384
    %v3388 = vmul.f32 %v3386, %v3385
    %v3389 = vadd.f32 %v3357, %v3387
    %v3390 = vadd.f32 %v3358, %v3388
    %s3391 = sld [smem:[#allocation3 + $0x88]]
    %v3392 = vld [vmem:[%s267] sm:$0xff]
    %v3393 = vld [vmem:[%s267 + $0x8] sm:$0xff]
    %v3394 = vstv %s3391
    %v3395 = vmul.f32 %v3394, %v3392
    %v3396 = vmul.f32 %v3394, %v3393
    %v3397 = vadd.f32 %v3365, %v3395
    %v3398 = vadd.f32 %v3366, %v3396
    %s3399 = sld [smem:[#allocation3 + $0x89]]
    %v3400 = vld [vmem:[%s276] sm:$0xff]
    %v3401 = vld [vmem:[%s276 + $0x8] sm:$0xff]
    %v3402 = vstv %s3399
    %v3403 = vmul.f32 %v3402, %v3400
    %v3404 = vmul.f32 %v3402, %v3401
    %v3405 = vadd.f32 %v3373, %v3403
    %v3406 = vadd.f32 %v3374, %v3404
    %s3407 = sld [smem:[#allocation3 + $0x8a]]
    %v3408 = vld [vmem:[%s285] sm:$0xff]
    %v3409 = vld [vmem:[%s285 + $0x8] sm:$0xff]
    %v3410 = vstv %s3407
    %v3411 = vmul.f32 %v3410, %v3408
    %v3412 = vmul.f32 %v3410, %v3409
    %v3413 = vadd.f32 %v3381, %v3411
    %v3414 = vadd.f32 %v3382, %v3412
    %s3415 = sld [smem:[#allocation3 + $0x8b]]
    %v3416 = vld [vmem:[%s294] sm:$0xff]
    %v3417 = vld [vmem:[%s294 + $0x8] sm:$0xff]
    %v3418 = vstv %s3415
    %v3419 = vmul.f32 %v3418, %v3416
    %v3420 = vmul.f32 %v3418, %v3417
    %v3421 = vadd.f32 %v3389, %v3419
    %v3422 = vadd.f32 %v3390, %v3420
    %s3423 = sld [smem:[#allocation3 + $0x8c]]
    %v3424 = vld [vmem:[%s303] sm:$0xff]
    %v3425 = vld [vmem:[%s303 + $0x8] sm:$0xff]
    %v3426 = vstv %s3423
    %v3427 = vmul.f32 %v3426, %v3424
    %v3428 = vmul.f32 %v3426, %v3425
    %v3429 = vadd.f32 %v3397, %v3427
    %v3430 = vadd.f32 %v3398, %v3428
    %s3431 = sld [smem:[#allocation3 + $0x8d]]
    %v3432 = vld [vmem:[%s312] sm:$0xff]
    %v3433 = vld [vmem:[%s312 + $0x8] sm:$0xff]
    %v3434 = vstv %s3431
    %v3435 = vmul.f32 %v3434, %v3432
    %v3436 = vmul.f32 %v3434, %v3433
    %v3437 = vadd.f32 %v3405, %v3435
    %v3438 = vadd.f32 %v3406, %v3436
    %s3439 = sld [smem:[#allocation3 + $0x8e]]
    %v3440 = vld [vmem:[%s321] sm:$0xff]
    %v3441 = vld [vmem:[%s321 + $0x8] sm:$0xff]
    %v3442 = vstv %s3439
    %v3443 = vmul.f32 %v3442, %v3440
    %v3444 = vmul.f32 %v3442, %v3441
    %v3445 = vadd.f32 %v3413, %v3443
    %v3446 = vadd.f32 %v3414, %v3444
    %s3447 = sld [smem:[#allocation3 + $0x8f]]
    %v3448 = vld [vmem:[%s330] sm:$0xff]
    %v3449 = vld [vmem:[%s330 + $0x8] sm:$0xff]
    %v3450 = vstv %s3447
    %v3451 = vmul.f32 %v3450, %v3448
    %v3452 = vmul.f32 %v3450, %v3449
    %v3453 = vadd.f32 %v3421, %v3451
    %v3454 = vadd.f32 %v3422, %v3452
    %s3455 = sld [smem:[#allocation3 + $0x90]]
    %v3456 = vld [vmem:[%s339] sm:$0xff]
    %v3457 = vld [vmem:[%s339 + $0x8] sm:$0xff]
    %v3458 = vstv %s3455
    %v3459 = vmul.f32 %v3458, %v3456
    %v3460 = vmul.f32 %v3458, %v3457
    %v3461 = vadd.f32 %v3429, %v3459
    %v3462 = vadd.f32 %v3430, %v3460
    %s3463 = sld [smem:[#allocation3 + $0x91]]
    %v3464 = vld [vmem:[%s348] sm:$0xff]
    %v3465 = vld [vmem:[%s348 + $0x8] sm:$0xff]
    %v3466 = vstv %s3463
    %v3467 = vmul.f32 %v3466, %v3464
    %v3468 = vmul.f32 %v3466, %v3465
    %v3469 = vadd.f32 %v3437, %v3467
    %v3470 = vadd.f32 %v3438, %v3468
    %s3471 = sld [smem:[#allocation3 + $0x92]]
    %v3472 = vld [vmem:[%s357] sm:$0xff]
    %v3473 = vld [vmem:[%s357 + $0x8] sm:$0xff]
    %v3474 = vstv %s3471
    %v3475 = vmul.f32 %v3474, %v3472
    %v3476 = vmul.f32 %v3474, %v3473
    %v3477 = vadd.f32 %v3445, %v3475
    %v3478 = vadd.f32 %v3446, %v3476
    %s3479 = sld [smem:[#allocation3 + $0x93]]
    %v3480 = vld [vmem:[%s366] sm:$0xff]
    %v3481 = vld [vmem:[%s366 + $0x8] sm:$0xff]
    %v3482 = vstv %s3479
    %v3483 = vmul.f32 %v3482, %v3480
    %v3484 = vmul.f32 %v3482, %v3481
    %v3485 = vadd.f32 %v3453, %v3483
    %v3486 = vadd.f32 %v3454, %v3484
    %s3487 = sld [smem:[#allocation3 + $0x94]]
    %v3488 = vld [vmem:[%s375] sm:$0xff]
    %v3489 = vld [vmem:[%s375 + $0x8] sm:$0xff]
    %v3490 = vstv %s3487
    %v3491 = vmul.f32 %v3490, %v3488
    %v3492 = vmul.f32 %v3490, %v3489
    %v3493 = vadd.f32 %v3461, %v3491
    %v3494 = vadd.f32 %v3462, %v3492
    %s3495 = sld [smem:[#allocation3 + $0x95]]
    %v3496 = vld [vmem:[%s384] sm:$0xff]
    %v3497 = vld [vmem:[%s384 + $0x8] sm:$0xff]
    %v3498 = vstv %s3495
    %v3499 = vmul.f32 %v3498, %v3496
    %v3500 = vmul.f32 %v3498, %v3497
    %v3501 = vadd.f32 %v3469, %v3499
    %v3502 = vadd.f32 %v3470, %v3500
    %s3503 = sld [smem:[#allocation3 + $0x96]]
    %v3504 = vld [vmem:[%s393] sm:$0xff]
    %v3505 = vld [vmem:[%s393 + $0x8] sm:$0xff]
    %v3506 = vstv %s3503
    %v3507 = vmul.f32 %v3506, %v3504
    %v3508 = vmul.f32 %v3506, %v3505
    %v3509 = vadd.f32 %v3477, %v3507
    %v3510 = vadd.f32 %v3478, %v3508
    %s3511 = sld [smem:[#allocation3 + $0x97]]
    %v3512 = vld [vmem:[%s402] sm:$0xff]
    %v3513 = vld [vmem:[%s402 + $0x8] sm:$0xff]
    %v3514 = vstv %s3511
    %v3515 = vmul.f32 %v3514, %v3512
    %v3516 = vmul.f32 %v3514, %v3513
    %v3517 = vadd.f32 %v3485, %v3515
    %v3518 = vadd.f32 %v3486, %v3516
    %s3519 = sld [smem:[#allocation3 + $0x98]]
    %v3520 = vld [vmem:[%s411] sm:$0xff]
    %v3521 = vld [vmem:[%s411 + $0x8] sm:$0xff]
    %v3522 = vstv %s3519
    %v3523 = vmul.f32 %v3522, %v3520
    %v3524 = vmul.f32 %v3522, %v3521
    %v3525 = vadd.f32 %v3493, %v3523
    %v3526 = vadd.f32 %v3494, %v3524
    %s3527 = sld [smem:[#allocation3 + $0x99]]
    %v3528 = vld [vmem:[%s420] sm:$0xff]
    %v3529 = vld [vmem:[%s420 + $0x8] sm:$0xff]
    %v3530 = vstv %s3527
    %v3531 = vmul.f32 %v3530, %v3528
    %v3532 = vmul.f32 %v3530, %v3529
    %v3533 = vadd.f32 %v3501, %v3531
    %v3534 = vadd.f32 %v3502, %v3532
    %s3535 = sld [smem:[#allocation3 + $0x9a]]
    %v3536 = vld [vmem:[%s429] sm:$0xff]
    %v3537 = vld [vmem:[%s429 + $0x8] sm:$0xff]
    %v3538 = vstv %s3535
    %v3539 = vmul.f32 %v3538, %v3536
    %v3540 = vmul.f32 %v3538, %v3537
    %v3541 = vadd.f32 %v3509, %v3539
    %v3542 = vadd.f32 %v3510, %v3540
    %s3543 = sld [smem:[#allocation3 + $0x9b]]
    %v3544 = vld [vmem:[%s438] sm:$0xff]
    %v3545 = vld [vmem:[%s438 + $0x8] sm:$0xff]
    %v3546 = vstv %s3543
    %v3547 = vmul.f32 %v3546, %v3544
    %v3548 = vmul.f32 %v3546, %v3545
    %v3549 = vadd.f32 %v3517, %v3547
    %v3550 = vadd.f32 %v3518, %v3548
    %s3551 = sld [smem:[#allocation3 + $0x9c]]
    %v3552 = vld [vmem:[%s447] sm:$0xff]
    %v3553 = vld [vmem:[%s447 + $0x8] sm:$0xff]
    %v3554 = vstv %s3551
    %v3555 = vmul.f32 %v3554, %v3552
    %v3556 = vmul.f32 %v3554, %v3553
    %v3557 = vadd.f32 %v3525, %v3555
    %v3558 = vadd.f32 %v3526, %v3556
    %s3559 = sld [smem:[#allocation3 + $0x9d]]
    %v3560 = vld [vmem:[%s456] sm:$0xff]
    %v3561 = vld [vmem:[%s456 + $0x8] sm:$0xff]
    %v3562 = vstv %s3559
    %v3563 = vmul.f32 %v3562, %v3560
    %v3564 = vmul.f32 %v3562, %v3561
    %v3565 = vadd.f32 %v3533, %v3563
    %v3566 = vadd.f32 %v3534, %v3564
    %s3567 = sld [smem:[#allocation3 + $0x9e]]
    %v3568 = vld [vmem:[%s465] sm:$0xff]
    %v3569 = vld [vmem:[%s465 + $0x8] sm:$0xff]
    %v3570 = vstv %s3567
    %v3571 = vmul.f32 %v3570, %v3568
    %v3572 = vmul.f32 %v3570, %v3569
    %v3573 = vadd.f32 %v3541, %v3571
    %v3574 = vadd.f32 %v3542, %v3572
    %s3575 = sld [smem:[#allocation3 + $0x9f]]
    %v3576 = vld [vmem:[%s474] sm:$0xff]
    %v3577 = vld [vmem:[%s474 + $0x8] sm:$0xff]
    %v3578 = vstv %s3575
    %v3579 = vmul.f32 %v3578, %v3576
    %v3580 = vmul.f32 %v3578, %v3577
    %v3581 = vadd.f32 %v3549, %v3579
    %v3582 = vadd.f32 %v3550, %v3580
    %v3583 = vadd.f32 %v3557, %v3565
    %v3584 = vadd.f32 %v3558, %v3566
    %v3585 = vadd.f32 %v3573, %v3581
    %v3586 = vadd.f32 %v3574, %v3582
    %v3587 = vadd.f32 %v3583, %v3585
    %v3588 = vadd.f32 %v3584, %v3586
    %vm3589 = vcmp.ge.f32.partialorder %v3587, 0.0
    %vm3590 = vcmp.ge.f32.partialorder %v3588, 0.0
    %v3591 = vmul.f32 %v3587, 0.2
    %v3592 = vmul.f32 %v3588, 0.2
    %v3593 = vsel %vm3589, %v3587, %v3591
    %v3594 = vsel %vm3590, %v3588, %v3592
    %v3595 = vld [vmem:[%s5] sm:$0xff]
    %v3596 = vld [vmem:[%s5 + $0x8] sm:$0xff]
    %v3597 = vld [vmem:[%s5 + $0x10] sm:$0xff]
    %v3598 = vld [vmem:[%s5 + $0x18] sm:$0xff]
    %v3599 = vld [vmem:[%s5 + $0x20] sm:$0xff]
    %v3600 = vld [vmem:[%s5 + $0x28] sm:$0xff]
    %v3601 = vld [vmem:[%s5 + $0x30] sm:$0xff]
    %v3602 = vld [vmem:[%s5 + $0x38] sm:$0xff]
    %v3603 = vunpack.c.l.bf16 %v3595
    %v3604 = vunpack.c.h.bf16 %v3595
    %v3605 = vunpack.c.l.bf16 %v3596
    %v3606 = vunpack.c.h.bf16 %v3596
    %v3607 = vunpack.c.l.bf16 %v3597
    %v3608 = vunpack.c.h.bf16 %v3597
    %v3609 = vunpack.c.l.bf16 %v3598
    %v3610 = vunpack.c.h.bf16 %v3598
    %v3611 = vunpack.c.l.bf16 %v3599
    %v3612 = vunpack.c.h.bf16 %v3599
    %v3613 = vunpack.c.l.bf16 %v3600
    %v3614 = vunpack.c.h.bf16 %v3600
    %v3615 = vunpack.c.l.bf16 %v3601
    %v3616 = vunpack.c.h.bf16 %v3601
    %v3617 = vunpack.c.l.bf16 %v3602
    %v3618 = vunpack.c.h.bf16 %v3602
    %v3620 = vsel %vm518, %v3593, 0
    %v3623 = vsel %vm518, %v3594, 0
    %3625 = vmatprep.subr.mxu0 %v3604
    %3626 = vmatpush1.msra.mxu0 %v3603
    %3627 = vmatprep.subr.mxu0 %v3606
    %3628 = vmatpush1.msra.mxu0 %v3605
    %3629 = vmatprep.subr.mxu0 %v3608
    %3630 = vmatpush1.msra.mxu0 %v3607
    %3631 = vmatprep.subr.mxu0 %v3610
    %3632 = vmatpush1.msra.mxu0 %v3609
    %3633 = vmatprep.subr.mxu0 %v3612
    %3634 = vmatpush1.msra.mxu0 %v3611
    %3635 = vmatprep.subr.mxu0 %v3614
    %3636 = vmatpush1.msra.mxu0 %v3613
    %3637 = vmatprep.subr.mxu0 %v3616
    %3638 = vmatpush1.msra.mxu0 %v3615
    %3639 = vmatprep.subr.mxu0 %v3618
    %3640 = vmatpush1.msra.mxu0 %v3617
    %3641 = vmatprep.subr.mxu0 0.0
    %3642 = vmatpush1.msra.mxu0 0.0
    %3643 = vmatprep.subr.mxu0 0.0
    %3644 = vmatpush1.msra.mxu0 0.0
    %3645 = vmatprep.subr.mxu0 0.0
    %3646 = vmatpush1.msra.mxu0 0.0
    %3647 = vmatprep.subr.mxu0 0.0
    %3648 = vmatpush1.msra.mxu0 0.0
    %3649 = vmatprep.subr.mxu0 0.0
    %3650 = vmatpush1.msra.mxu0 0.0
    %3651 = vmatprep.subr.mxu0 0.0
    %3652 = vmatpush1.msra.mxu0 0.0
    %3653 = vmatprep.subr.mxu0 0.0
    %3654 = vmatpush1.msra.mxu0 0.0
    %3655 = vmatprep.subr.mxu0 0.0
    %3656 = vmatpush1.msra.mxu0 0.0
    %3657 = vmatprep.subr.mxu0 0.0
    %3658 = vmatpush1.msra.mxu0 0.0
    %3659 = vmatprep.subr.mxu0 0.0
    %3660 = vmatpush1.msra.mxu0 0.0
    %3661 = vmatprep.subr.mxu0 0.0
    %3662 = vmatpush1.msra.mxu0 0.0
    %3663 = vmatprep.subr.mxu0 0.0
    %3664 = vmatpush1.msra.mxu0 0.0
    %3665 = vmatprep.subr.mxu0 0.0
    %3666 = vmatpush1.msra.mxu0 0.0
    %3667 = vmatprep.subr.mxu0 0.0
    %3668 = vmatpush1.msra.mxu0 0.0
    %3669 = vmatprep.subr.mxu0 0.0
    %3670 = vmatpush1.msra.mxu0 0.0
    %3671 = vmatprep.subr.mxu0 0.0
    %3672 = vmatpush1.msra.mxu0 0.0
    %3673 = vmatprep.subr.mxu0 0.0
    %3674 = vmatpush1.msra.mxu0 0.0
    %3675 = vmatprep.subr.mxu0 0.0
    %3676 = vmatpush1.msra.mxu0 0.0
    %3677 = vmatprep.subr.mxu0 0.0
    %3678 = vmatpush1.msra.mxu0 0.0
    %3679 = vmatprep.subr.mxu0 0.0
    %3680 = vmatpush1.msra.mxu0 0.0
    %3681 = vmatprep.subr.mxu0 0.0
    %3682 = vmatpush1.msra.mxu0 0.0
    %3683 = vmatprep.subr.mxu0 0.0
    %3684 = vmatpush1.msra.mxu0 0.0
    %3685 = vmatprep.subr.mxu0 0.0
    %3686 = vmatpush1.msra.mxu0 0.0
    %3687 = vmatprep.subr.mxu0 0.0
    %3688 = vmatpush1.msra.mxu0 0.0
    %3689 = vmatprep.mubr.f32.mxu0 0.0
    %3690 = vmatmul.mubr.f32.gmra.mrb[0].mxu0 %v3620
    %v3691 = vpop.f32.mrb[0].mxu0
    %v3692 = vadd.f32 0.0, %v3691
    %v3693 = vpop.f32.mrb[0].mxu0
    %v3694 = vadd.f32 0.0, %v3693
    %3695 = vmatprep.mubr.f32.mxu0 0.0
    %3696 = vmatmul.mubr.f32.gmra.mrb[0].mxu0 %v3623
    %v3697 = vpop.f32.mrb[0].mxu0
    %v3698 = vadd.f32 0.0, %v3697
    %v3699 = vpop.f32.mrb[0].mxu0
    %v3700 = vadd.f32 0.0, %v3699
    %3701 = vdwg.mxu0
    %3702 = vst [vmem:[#allocation2] sm:$0xff] %v3692
    %3703 = vst [vmem:[#allocation2 + $0x8] sm:$0xff] %v3694
    %3704 = vst [vmem:[#allocation2 + $0x10] sm:$0xff] %v3698
    %3705 = vst [vmem:[#allocation2 + $0x18] sm:$0xff] %v3700
    %v3706 = vld [vmem:[%s606] sm:$0xff]
    %v3707 = vld [vmem:[%s606 + $0x8] sm:$0xff]
    %v3708 = vld [vmem:[%s606 + $0x10] sm:$0xff]
    %v3709 = vld [vmem:[%s606 + $0x18] sm:$0xff]
    %v3710 = vld [vmem:[%s606 + $0x20] sm:$0xff]
    %v3711 = vld [vmem:[%s606 + $0x28] sm:$0xff]
    %v3712 = vld [vmem:[%s606 + $0x30] sm:$0xff]
    %v3713 = vld [vmem:[%s606 + $0x38] sm:$0xff]
    %v3714 = vunpack.c.l.bf16 %v3706
    %v3715 = vunpack.c.h.bf16 %v3706
    %v3716 = vunpack.c.l.bf16 %v3707
    %v3717 = vunpack.c.h.bf16 %v3707
    %v3718 = vunpack.c.l.bf16 %v3708
    %v3719 = vunpack.c.h.bf16 %v3708
    %v3720 = vunpack.c.l.bf16 %v3709
    %v3721 = vunpack.c.h.bf16 %v3709
    %v3722 = vunpack.c.l.bf16 %v3710
    %v3723 = vunpack.c.h.bf16 %v3710
    %v3724 = vunpack.c.l.bf16 %v3711
    %v3725 = vunpack.c.h.bf16 %v3711
    %v3726 = vunpack.c.l.bf16 %v3712
    %v3727 = vunpack.c.h.bf16 %v3712
    %v3728 = vunpack.c.l.bf16 %v3713
    %v3729 = vunpack.c.h.bf16 %v3713
    %3730 = vmatprep.subr.mxu0 %v3715
    %3731 = vmatpush1.msra.mxu0 %v3714
    %3732 = vmatprep.subr.mxu0 %v3717
    %3733 = vmatpush1.msra.mxu0 %v3716
    %3734 = vmatprep.subr.mxu0 %v3719
    %3735 = vmatpush1.msra.mxu0 %v3718
    %3736 = vmatprep.subr.mxu0 %v3721
    %3737 = vmatpush1.msra.mxu0 %v3720
    %3738 = vmatprep.subr.mxu0 %v3723
    %3739 = vmatpush1.msra.mxu0 %v3722
    %3740 = vmatprep.subr.mxu0 %v3725
    %3741 = vmatpush1.msra.mxu0 %v3724
    %3742 = vmatprep.subr.mxu0 %v3727
    %3743 = vmatpush1.msra.mxu0 %v3726
    %3744 = vmatprep.subr.mxu0 %v3729
    %3745 = vmatpush1.msra.mxu0 %v3728
    %3746 = vmatprep.subr.mxu0 0.0
    %3747 = vmatpush1.msra.mxu0 0.0
    %3748 = vmatprep.subr.mxu0 0.0
    %3749 = vmatpush1.msra.mxu0 0.0
    %3750 = vmatprep.subr.mxu0 0.0
    %3751 = vmatpush1.msra.mxu0 0.0
    %3752 = vmatprep.subr.mxu0 0.0
    %3753 = vmatpush1.msra.mxu0 0.0
    %3754 = vmatprep.subr.mxu0 0.0
    %3755 = vmatpush1.msra.mxu0 0.0
    %3756 = vmatprep.subr.mxu0 0.0
    %3757 = vmatpush1.msra.mxu0 0.0
    %3758 = vmatprep.subr.mxu0 0.0
    %3759 = vmatpush1.msra.mxu0 0.0
    %3760 = vmatprep.subr.mxu0 0.0
    %3761 = vmatpush1.msra.mxu0 0.0
    %3762 = vmatprep.subr.mxu0 0.0
    %3763 = vmatpush1.msra.mxu0 0.0
    %3764 = vmatprep.subr.mxu0 0.0
    %3765 = vmatpush1.msra.mxu0 0.0
    %3766 = vmatprep.subr.mxu0 0.0
    %3767 = vmatpush1.msra.mxu0 0.0
    %3768 = vmatprep.subr.mxu0 0.0
    %3769 = vmatpush1.msra.mxu0 0.0
    %3770 = vmatprep.subr.mxu0 0.0
    %3771 = vmatpush1.msra.mxu0 0.0
    %3772 = vmatprep.subr.mxu0 0.0
    %3773 = vmatpush1.msra.mxu0 0.0
    %3774 = vmatprep.subr.mxu0 0.0
    %3775 = vmatpush1.msra.mxu0 0.0
    %3776 = vmatprep.subr.mxu0 0.0
    %3777 = vmatpush1.msra.mxu0 0.0
    %3778 = vmatprep.subr.mxu0 0.0
    %3779 = vmatpush1.msra.mxu0 0.0
    %3780 = vmatprep.subr.mxu0 0.0
    %3781 = vmatpush1.msra.mxu0 0.0
    %3782 = vmatprep.subr.mxu0 0.0
    %3783 = vmatpush1.msra.mxu0 0.0
    %3784 = vmatprep.subr.mxu0 0.0
    %3785 = vmatpush1.msra.mxu0 0.0
    %3786 = vmatprep.subr.mxu0 0.0
    %3787 = vmatpush1.msra.mxu0 0.0
    %3788 = vmatprep.subr.mxu0 0.0
    %3789 = vmatpush1.msra.mxu0 0.0
    %3790 = vmatprep.subr.mxu0 0.0
    %3791 = vmatpush1.msra.mxu0 0.0
    %3792 = vmatprep.subr.mxu0 0.0
    %3793 = vmatpush1.msra.mxu0 0.0
    %3794 = vmatprep.mubr.f32.mxu0 0.0
    %3795 = vmatmul.mubr.f32.gmra.mrb[0].mxu0 %v3620
    %v3796 = vpop.f32.mrb[0].mxu0
    %v3797 = vadd.f32 0.0, %v3796
    %v3798 = vpop.f32.mrb[0].mxu0
    %v3799 = vadd.f32 0.0, %v3798
    %3800 = vmatprep.mubr.f32.mxu0 0.0
    %3801 = vmatmul.mubr.f32.gmra.mrb[0].mxu0 %v3623
    %v3802 = vpop.f32.mrb[0].mxu0
    %v3803 = vadd.f32 0.0, %v3802
    %v3804 = vpop.f32.mrb[0].mxu0
    %v3805 = vadd.f32 0.0, %v3804
    %3806 = vdwg.mxu0
    %3807 = vst [vmem:[#allocation2 + $0x20] sm:$0xff] %v3797
    %3808 = vst [vmem:[#allocation2 + $0x28] sm:$0xff] %v3799
    %3809 = vst [vmem:[#allocation2 + $0x30] sm:$0xff] %v3803
    %3810 = vst [vmem:[#allocation2 + $0x38] sm:$0xff] %v3805
    %v3811 = vld [vmem:[%s712] sm:$0xff]
    %v3812 = vld [vmem:[%s712 + $0x8] sm:$0xff]
    %v3813 = vld [vmem:[%s712 + $0x10] sm:$0xff]
    %v3814 = vld [vmem:[%s712 + $0x18] sm:$0xff]
    %v3815 = vld [vmem:[%s712 + $0x20] sm:$0xff]
    %v3816 = vld [vmem:[%s712 + $0x28] sm:$0xff]
    %v3817 = vld [vmem:[%s712 + $0x30] sm:$0xff]
    %v3818 = vld [vmem:[%s712 + $0x38] sm:$0xff]
    %v3819 = vunpack.c.l.bf16 %v3811
    %v3820 = vunpack.c.h.bf16 %v3811
    %v3821 = vunpack.c.l.bf16 %v3812
    %v3822 = vunpack.c.h.bf16 %v3812
    %v3823 = vunpack.c.l.bf16 %v3813
    %v3824 = vunpack.c.h.bf16 %v3813
    %v3825 = vunpack.c.l.bf16 %v3814
    %v3826 = vunpack.c.h.bf16 %v3814
    %v3827 = vunpack.c.l.bf16 %v3815
    %v3828 = vunpack.c.h.bf16 %v3815
    %v3829 = vunpack.c.l.bf16 %v3816
    %v3830 = vunpack.c.h.bf16 %v3816
    %v3831 = vunpack.c.l.bf16 %v3817
    %v3832 = vunpack.c.h.bf16 %v3817
    %v3833 = vunpack.c.l.bf16 %v3818
    %v3834 = vunpack.c.h.bf16 %v3818
    %3835 = vmatprep.subr.mxu0 %v3820
    %3836 = vmatpush1.msra.mxu0 %v3819
    %3837 = vmatprep.subr.mxu0 %v3822
    %3838 = vmatpush1.msra.mxu0 %v3821
    %3839 = vmatprep.subr.mxu0 %v3824
    %3840 = vmatpush1.msra.mxu0 %v3823
    %3841 = vmatprep.subr.mxu0 %v3826
    %3842 = vmatpush1.msra.mxu0 %v3825
    %3843 = vmatprep.subr.mxu0 %v3828
    %3844 = vmatpush1.msra.mxu0 %v3827
    %3845 = vmatprep.subr.mxu0 %v3830
    %3846 = vmatpush1.msra.mxu0 %v3829
    %3847 = vmatprep.subr.mxu0 %v3832
    %3848 = vmatpush1.msra.mxu0 %v3831
    %3849 = vmatprep.subr.mxu0 %v3834
    %3850 = vmatpush1.msra.mxu0 %v3833
    %3851 = vmatprep.subr.mxu0 0.0
    %3852 = vmatpush1.msra.mxu0 0.0
    %3853 = vmatprep.subr.mxu0 0.0
    %3854 = vmatpush1.msra.mxu0 0.0
    %3855 = vmatprep.subr.mxu0 0.0
    %3856 = vmatpush1.msra.mxu0 0.0
    %3857 = vmatprep.subr.mxu0 0.0
    %3858 = vmatpush1.msra.mxu0 0.0
    %3859 = vmatprep.subr.mxu0 0.0
    %3860 = vmatpush1.msra.mxu0 0.0
    %3861 = vmatprep.subr.mxu0 0.0
    %3862 = vmatpush1.msra.mxu0 0.0
    %3863 = vmatprep.subr.mxu0 0.0
    %3864 = vmatpush1.msra.mxu0 0.0
    %3865 = vmatprep.subr.mxu0 0.0
    %3866 = vmatpush1.msra.mxu0 0.0
    %3867 = vmatprep.subr.mxu0 0.0
    %3868 = vmatpush1.msra.mxu0 0.0
    %3869 = vmatprep.subr.mxu0 0.0
    %3870 = vmatpush1.msra.mxu0 0.0
    %3871 = vmatprep.subr.mxu0 0.0
    %3872 = vmatpush1.msra.mxu0 0.0
    %3873 = vmatprep.subr.mxu0 0.0
    %3874 = vmatpush1.msra.mxu0 0.0
    %3875 = vmatprep.subr.mxu0 0.0
    %3876 = vmatpush1.msra.mxu0 0.0
    %3877 = vmatprep.subr.mxu0 0.0
    %3878 = vmatpush1.msra.mxu0 0.0
    %3879 = vmatprep.subr.mxu0 0.0
    %3880 = vmatpush1.msra.mxu0 0.0
    %3881 = vmatprep.subr.mxu0 0.0
    %3882 = vmatpush1.msra.mxu0 0.0
    %3883 = vmatprep.subr.mxu0 0.0
    %3884 = vmatpush1.msra.mxu0 0.0
    %3885 = vmatprep.subr.mxu0 0.0
    %3886 = vmatpush1.msra.mxu0 0.0
    %3887 = vmatprep.subr.mxu0 0.0
    %3888 = vmatpush1.msra.mxu0 0.0
    %3889 = vmatprep.subr.mxu0 0.0
    %3890 = vmatpush1.msra.mxu0 0.0
    %3891 = vmatprep.subr.mxu0 0.0
    %3892 = vmatpush1.msra.mxu0 0.0
    %3893 = vmatprep.subr.mxu0 0.0
    %3894 = vmatpush1.msra.mxu0 0.0
    %3895 = vmatprep.subr.mxu0 0.0
    %3896 = vmatpush1.msra.mxu0 0.0
    %3897 = vmatprep.subr.mxu0 0.0
    %3898 = vmatpush1.msra.mxu0 0.0
    %3899 = vmatprep.mubr.f32.mxu0 0.0
    %3900 = vmatmul.mubr.f32.gmra.mrb[0].mxu0 %v3620
    %v3901 = vpop.f32.mrb[0].mxu0
    %v3902 = vadd.f32 0.0, %v3901
    %v3903 = vpop.f32.mrb[0].mxu0
    %v3904 = vadd.f32 0.0, %v3903
    %3905 = vmatprep.mubr.f32.mxu0 0.0
    %3906 = vmatmul.mubr.f32.gmra.mrb[0].mxu0 %v3623
    %v3907 = vpop.f32.mrb[0].mxu0
    %v3908 = vadd.f32 0.0, %v3907
    %v3909 = vpop.f32.mrb[0].mxu0
    %v3910 = vadd.f32 0.0, %v3909
    %3911 = vdwg.mxu0
    %3912 = vst [vmem:[#allocation2 + $0x40] sm:$0xff] %v3902
    %3913 = vst [vmem:[#allocation2 + $0x48] sm:$0xff] %v3904
    %3914 = vst [vmem:[#allocation2 + $0x50] sm:$0xff] %v3908
    %3915 = vst [vmem:[#allocation2 + $0x58] sm:$0xff] %v3910
    %v3916 = vld [vmem:[%s818] sm:$0xff]
    %v3917 = vld [vmem:[%s818 + $0x8] sm:$0xff]
    %v3918 = vld [vmem:[%s818 + $0x10] sm:$0xff]
    %v3919 = vld [vmem:[%s818 + $0x18] sm:$0xff]
    %v3920 = vld [vmem:[%s818 + $0x20] sm:$0xff]
    %v3921 = vld [vmem:[%s818 + $0x28] sm:$0xff]
    %v3922 = vld [vmem:[%s818 + $0x30] sm:$0xff]
    %v3923 = vld [vmem:[%s818 + $0x38] sm:$0xff]
    %v3924 = vunpack.c.l.bf16 %v3916
    %v3925 = vunpack.c.h.bf16 %v3916
    %v3926 = vunpack.c.l.bf16 %v3917
    %v3927 = vunpack.c.h.bf16 %v3917
    %v3928 = vunpack.c.l.bf16 %v3918
    %v3929 = vunpack.c.h.bf16 %v3918
    %v3930 = vunpack.c.l.bf16 %v3919
    %v3931 = vunpack.c.h.bf16 %v3919
    %v3932 = vunpack.c.l.bf16 %v3920
    %v3933 = vunpack.c.h.bf16 %v3920
    %v3934 = vunpack.c.l.bf16 %v3921
    %v3935 = vunpack.c.h.bf16 %v3921
    %v3936 = vunpack.c.l.bf16 %v3922
    %v3937 = vunpack.c.h.bf16 %v3922
    %v3938 = vunpack.c.l.bf16 %v3923
    %v3939 = vunpack.c.h.bf16 %v3923
    %3940 = vmatprep.subr.mxu0 %v3925
    %3941 = vmatpush1.msra.mxu0 %v3924
    %3942 = vmatprep.subr.mxu0 %v3927
    %3943 = vmatpush1.msra.mxu0 %v3926
    %3944 = vmatprep.subr.mxu0 %v3929
    %3945 = vmatpush1.msra.mxu0 %v3928
    %3946 = vmatprep.subr.mxu0 %v3931
    %3947 = vmatpush1.msra.mxu0 %v3930
    %3948 = vmatprep.subr.mxu0 %v3933
    %3949 = vmatpush1.msra.mxu0 %v3932
    %3950 = vmatprep.subr.mxu0 %v3935
    %3951 = vmatpush1.msra.mxu0 %v3934
    %3952 = vmatprep.subr.mxu0 %v3937
    %3953 = vmatpush1.msra.mxu0 %v3936
    %3954 = vmatprep.subr.mxu0 %v3939
    %3955 = vmatpush1.msra.mxu0 %v3938
    %3956 = vmatprep.subr.mxu0 0.0
    %3957 = vmatpush1.msra.mxu0 0.0
    %3958 = vmatprep.subr.mxu0 0.0
    %3959 = vmatpush1.msra.mxu0 0.0
    %3960 = vmatprep.subr.mxu0 0.0
    %3961 = vmatpush1.msra.mxu0 0.0
    %3962 = vmatprep.subr.mxu0 0.0
    %3963 = vmatpush1.msra.mxu0 0.0
    %3964 = vmatprep.subr.mxu0 0.0
    %3965 = vmatpush1.msra.mxu0 0.0
    %3966 = vmatprep.subr.mxu0 0.0
    %3967 = vmatpush1.msra.mxu0 0.0
    %3968 = vmatprep.subr.mxu0 0.0
    %3969 = vmatpush1.msra.mxu0 0.0
    %3970 = vmatprep.subr.mxu0 0.0
    %3971 = vmatpush1.msra.mxu0 0.0
    %3972 = vmatprep.subr.mxu0 0.0
    %3973 = vmatpush1.msra.mxu0 0.0
    %3974 = vmatprep.subr.mxu0 0.0
    %3975 = vmatpush1.msra.mxu0 0.0
    %3976 = vmatprep.subr.mxu0 0.0
    %3977 = vmatpush1.msra.mxu0 0.0
    %3978 = vmatprep.subr.mxu0 0.0
    %3979 = vmatpush1.msra.mxu0 0.0
    %3980 = vmatprep.subr.mxu0 0.0
    %3981 = vmatpush1.msra.mxu0 0.0
    %3982 = vmatprep.subr.mxu0 0.0
    %3983 = vmatpush1.msra.mxu0 0.0
    %3984 = vmatprep.subr.mxu0 0.0
    %3985 = vmatpush1.msra.mxu0 0.0
    %3986 = vmatprep.subr.mxu0 0.0
    %3987 = vmatpush1.msra.mxu0 0.0
    %3988 = vmatprep.subr.mxu0 0.0
    %3989 = vmatpush1.msra.mxu0 0.0
    %3990 = vmatprep.subr.mxu0 0.0
    %3991 = vmatpush1.msra.mxu0 0.0
    %3992 = vmatprep.subr.mxu0 0.0
    %3993 = vmatpush1.msra.mxu0 0.0
    %3994 = vmatprep.subr.mxu0 0.0
    %3995 = vmatpush1.msra.mxu0 0.0
    %3996 = vmatprep.subr.mxu0 0.0
    %3997 = vmatpush1.msra.mxu0 0.0
    %3998 = vmatprep.subr.mxu0 0.0
    %3999 = vmatpush1.msra.mxu0 0.0
    %4000 = vmatprep.subr.mxu0 0.0
    %4001 = vmatpush1.msra.mxu0 0.0
    %4002 = vmatprep.subr.mxu0 0.0
    %4003 = vmatpush1.msra.mxu0 0.0
    %4004 = vmatprep.mubr.f32.mxu0 0.0
    %4005 = vmatmul.mubr.f32.gmra.mrb[0].mxu0 %v3620
    %v4006 = vpop.f32.mrb[0].mxu0
    %v4007 = vadd.f32 0.0, %v4006
    %v4008 = vpop.f32.mrb[0].mxu0
    %v4009 = vadd.f32 0.0, %v4008
    %4010 = vmatprep.mubr.f32.mxu0 0.0
    %4011 = vmatmul.mubr.f32.gmra.mrb[0].mxu0 %v3623
    %v4012 = vpop.f32.mrb[0].mxu0
    %v4013 = vadd.f32 0.0, %v4012
    %v4014 = vpop.f32.mrb[0].mxu0
    %v4015 = vadd.f32 0.0, %v4014
    %4016 = vdwg.mxu0
    %4017 = vst [vmem:[#allocation2 + $0x60] sm:$0xff] %v4007
    %4018 = vst [vmem:[#allocation2 + $0x68] sm:$0xff] %v4009
    %4019 = vst [vmem:[#allocation2 + $0x70] sm:$0xff] %v4013
    %4020 = vst [vmem:[#allocation2 + $0x78] sm:$0xff] %v4015
    %v4021 = vld [vmem:[%s924] sm:$0xff]
    %v4022 = vld [vmem:[%s924 + $0x8] sm:$0xff]
    %v4023 = vld [vmem:[%s924 + $0x10] sm:$0xff]
    %v4024 = vld [vmem:[%s924 + $0x18] sm:$0xff]
    %v4025 = vld [vmem:[%s924 + $0x20] sm:$0xff]
    %v4026 = vld [vmem:[%s924 + $0x28] sm:$0xff]
    %v4027 = vld [vmem:[%s924 + $0x30] sm:$0xff]
    %v4028 = vld [vmem:[%s924 + $0x38] sm:$0xff]
    %v4029 = vunpack.c.l.bf16 %v4021
    %v4030 = vunpack.c.h.bf16 %v4021
    %v4031 = vunpack.c.l.bf16 %v4022
    %v4032 = vunpack.c.h.bf16 %v4022
    %v4033 = vunpack.c.l.bf16 %v4023
    %v4034 = vunpack.c.h.bf16 %v4023
    %v4035 = vunpack.c.l.bf16 %v4024
    %v4036 = vunpack.c.h.bf16 %v4024
    %v4037 = vunpack.c.l.bf16 %v4025
    %v4038 = vunpack.c.h.bf16 %v4025
    %v4039 = vunpack.c.l.bf16 %v4026
    %v4040 = vunpack.c.h.bf16 %v4026
    %v4041 = vunpack.c.l.bf16 %v4027
    %v4042 = vunpack.c.h.bf16 %v4027
    %v4043 = vunpack.c.l.bf16 %v4028
    %v4044 = vunpack.c.h.bf16 %v4028
    %4045 = vmatprep.subr.mxu0 %v4030
    %4046 = vmatpush1.msra.mxu0 %v4029
    %4047 = vmatprep.subr.mxu0 %v4032
    %4048 = vmatpush1.msra.mxu0 %v4031
    %4049 = vmatprep.subr.mxu0 %v4034
    %4050 = vmatpush1.msra.mxu0 %v4033
    %4051 = vmatprep.subr.mxu0 %v4036
    %4052 = vmatpush1.msra.mxu0 %v4035
    %4053 = vmatprep.subr.mxu0 %v4038
    %4054 = vmatpush1.msra.mxu0 %v4037
    %4055 = vmatprep.subr.mxu0 %v4040
    %4056 = vmatpush1.msra.mxu0 %v4039
    %4057 = vmatprep.subr.mxu0 %v4042
    %4058 = vmatpush1.msra.mxu0 %v4041
    %4059 = vmatprep.subr.mxu0 %v4044
    %4060 = vmatpush1.msra.mxu0 %v4043
    %4061 = vmatprep.subr.mxu0 0.0
    %4062 = vmatpush1.msra.mxu0 0.0
    %4063 = vmatprep.subr.mxu0 0.0
    %4064 = vmatpush1.msra.mxu0 0.0
    %4065 = vmatprep.subr.mxu0 0.0
    %4066 = vmatpush1.msra.mxu0 0.0
    %4067 = vmatprep.subr.mxu0 0.0
    %4068 = vmatpush1.msra.mxu0 0.0
    %4069 = vmatprep.subr.mxu0 0.0
    %4070 = vmatpush1.msra.mxu0 0.0
    %4071 = vmatprep.subr.mxu0 0.0
    %4072 = vmatpush1.msra.mxu0 0.0
    %4073 = vmatprep.subr.mxu0 0.0
    %4074 = vmatpush1.msra.mxu0 0.0
    %4075 = vmatprep.subr.mxu0 0.0
    %4076 = vmatpush1.msra.mxu0 0.0
    %4077 = vmatprep.subr.mxu0 0.0
    %4078 = vmatpush1.msra.mxu0 0.0
    %4079 = vmatprep.subr.mxu0 0.0
    %4080 = vmatpush1.msra.mxu0 0.0
    %4081 = vmatprep.subr.mxu0 0.0
    %4082 = vmatpush1.msra.mxu0 0.0
    %4083 = vmatprep.subr.mxu0 0.0
    %4084 = vmatpush1.msra.mxu0 0.0
    %4085 = vmatprep.subr.mxu0 0.0
    %4086 = vmatpush1.msra.mxu0 0.0
    %4087 = vmatprep.subr.mxu0 0.0
    %4088 = vmatpush1.msra.mxu0 0.0
    %4089 = vmatprep.subr.mxu0 0.0
    %4090 = vmatpush1.msra.mxu0 0.0
    %4091 = vmatprep.subr.mxu0 0.0
    %4092 = vmatpush1.msra.mxu0 0.0
    %4093 = vmatprep.subr.mxu0 0.0
    %4094 = vmatpush1.msra.mxu0 0.0
    %4095 = vmatprep.subr.mxu0 0.0
    %4096 = vmatpush1.msra.mxu0 0.0
    %4097 = vmatprep.subr.mxu0 0.0
    %4098 = vmatpush1.msra.mxu0 0.0
    %4099 = vmatprep.subr.mxu0 0.0
    %4100 = vmatpush1.msra.mxu0 0.0
    %4101 = vmatprep.subr.mxu0 0.0
    %4102 = vmatpush1.msra.mxu0 0.0
    %4103 = vmatprep.subr.mxu0 0.0
    %4104 = vmatpush1.msra.mxu0 0.0
    %4105 = vmatprep.subr.mxu0 0.0
    %4106 = vmatpush1.msra.mxu0 0.0
    %4107 = vmatprep.subr.mxu0 0.0
    %4108 = vmatpush1.msra.mxu0 0.0
    %4109 = vmatprep.mubr.f32.mxu0 0.0
    %4110 = vmatmul.mubr.f32.gmra.mrb[0].mxu0 %v3620
    %v4111 = vpop.f32.mrb[0].mxu0
    %v4112 = vadd.f32 0.0, %v4111
    %v4113 = vpop.f32.mrb[0].mxu0
    %v4114 = vadd.f32 0.0, %v4113
    %4115 = vmatprep.mubr.f32.mxu0 0.0
    %4116 = vmatmul.mubr.f32.gmra.mrb[0].mxu0 %v3623
    %v4117 = vpop.f32.mrb[0].mxu0
    %v4118 = vadd.f32 0.0, %v4117
    %v4119 = vpop.f32.mrb[0].mxu0
    %v4120 = vadd.f32 0.0, %v4119
    %4121 = vdwg.mxu0
    %4122 = vst [vmem:[#allocation2 + $0x80] sm:$0xff] %v4112
    %4123 = vst [vmem:[#allocation2 + $0x88] sm:$0xff] %v4114
    %4124 = vst [vmem:[#allocation2 + $0x90] sm:$0xff] %v4118
    %4125 = vst [vmem:[#allocation2 + $0x98] sm:$0xff] %v4120
    %v4126 = vld [vmem:[%s1030] sm:$0xff]
    %v4127 = vld [vmem:[%s1030 + $0x8] sm:$0xff]
    %v4128 = vld [vmem:[%s1030 + $0x10] sm:$0xff]
    %v4129 = vld [vmem:[%s1030 + $0x18] sm:$0xff]
    %v4130 = vld [vmem:[%s1030 + $0x20] sm:$0xff]
    %v4131 = vld [vmem:[%s1030 + $0x28] sm:$0xff]
    %v4132 = vld [vmem:[%s1030 + $0x30] sm:$0xff]
    %v4133 = vld [vmem:[%s1030 + $0x38] sm:$0xff]
    %v4134 = vunpack.c.l.bf16 %v4126
    %v4135 = vunpack.c.h.bf16 %v4126
    %v4136 = vunpack.c.l.bf16 %v4127
    %v4137 = vunpack.c.h.bf16 %v4127
    %v4138 = vunpack.c.l.bf16 %v4128
    %v4139 = vunpack.c.h.bf16 %v4128
    %v4140 = vunpack.c.l.bf16 %v4129
    %v4141 = vunpack.c.h.bf16 %v4129
    %v4142 = vunpack.c.l.bf16 %v4130
    %v4143 = vunpack.c.h.bf16 %v4130
    %v4144 = vunpack.c.l.bf16 %v4131
    %v4145 = vunpack.c.h.bf16 %v4131
    %v4146 = vunpack.c.l.bf16 %v4132
    %v4147 = vunpack.c.h.bf16 %v4132
    %v4148 = vunpack.c.l.bf16 %v4133
    %v4149 = vunpack.c.h.bf16 %v4133
    %4150 = vmatprep.subr.mxu0 %v4135
    %4151 = vmatpush1.msra.mxu0 %v4134
    %4152 = vmatprep.subr.mxu0 %v4137
    %4153 = vmatpush1.msra.mxu0 %v4136
    %4154 = vmatprep.subr.mxu0 %v4139
    %4155 = vmatpush1.msra.mxu0 %v4138
    %4156 = vmatprep.subr.mxu0 %v4141
    %4157 = vmatpush1.msra.mxu0 %v4140
    %4158 = vmatprep.subr.mxu0 %v4143
    %4159 = vmatpush1.msra.mxu0 %v4142
    %4160 = vmatprep.subr.mxu0 %v4145
    %4161 = vmatpush1.msra.mxu0 %v4144
    %4162 = vmatprep.subr.mxu0 %v4147
    %4163 = vmatpush1.msra.mxu0 %v4146
    %4164 = vmatprep.subr.mxu0 %v4149
    %4165 = vmatpush1.msra.mxu0 %v4148
    %4166 = vmatprep.subr.mxu0 0.0
    %4167 = vmatpush1.msra.mxu0 0.0
    %4168 = vmatprep.subr.mxu0 0.0
    %4169 = vmatpush1.msra.mxu0 0.0
    %4170 = vmatprep.subr.mxu0 0.0
    %4171 = vmatpush1.msra.mxu0 0.0
    %4172 = vmatprep.subr.mxu0 0.0
    %4173 = vmatpush1.msra.mxu0 0.0
    %4174 = vmatprep.subr.mxu0 0.0
    %4175 = vmatpush1.msra.mxu0 0.0
    %4176 = vmatprep.subr.mxu0 0.0
    %4177 = vmatpush1.msra.mxu0 0.0
    %4178 = vmatprep.subr.mxu0 0.0
    %4179 = vmatpush1.msra.mxu0 0.0
    %4180 = vmatprep.subr.mxu0 0.0
    %4181 = vmatpush1.msra.mxu0 0.0
    %4182 = vmatprep.subr.mxu0 0.0
    %4183 = vmatpush1.msra.mxu0 0.0
    %4184 = vmatprep.subr.mxu0 0.0
    %4185 = vmatpush1.msra.mxu0 0.0
    %4186 = vmatprep.subr.mxu0 0.0
    %4187 = vmatpush1.msra.mxu0 0.0
    %4188 = vmatprep.subr.mxu0 0.0
    %4189 = vmatpush1.msra.mxu0 0.0
    %4190 = vmatprep.subr.mxu0 0.0
    %4191 = vmatpush1.msra.mxu0 0.0
    %4192 = vmatprep.subr.mxu0 0.0
    %4193 = vmatpush1.msra.mxu0 0.0
    %4194 = vmatprep.subr.mxu0 0.0
    %4195 = vmatpush1.msra.mxu0 0.0
    %4196 = vmatprep.subr.mxu0 0.0
    %4197 = vmatpush1.msra.mxu0 0.0
    %4198 = vmatprep.subr.mxu0 0.0
    %4199 = vmatpush1.msra.mxu0 0.0
    %4200 = vmatprep.subr.mxu0 0.0
    %4201 = vmatpush1.msra.mxu0 0.0
    %4202 = vmatprep.subr.mxu0 0.0
    %4203 = vmatpush1.msra.mxu0 0.0
    %4204 = vmatprep.subr.mxu0 0.0
    %4205 = vmatpush1.msra.mxu0 0.0
    %4206 = vmatprep.subr.mxu0 0.0
    %4207 = vmatpush1.msra.mxu0 0.0
    %4208 = vmatprep.subr.mxu0 0.0
    %4209 = vmatpush1.msra.mxu0 0.0
    %4210 = vmatprep.subr.mxu0 0.0
    %4211 = vmatpush1.msra.mxu0 0.0
    %4212 = vmatprep.subr.mxu0 0.0
    %4213 = vmatpush1.msra.mxu0 0.0
    %4214 = vmatprep.mubr.f32.mxu0 0.0
    %4215 = vmatmul.mubr.f32.gmra.mrb[0].mxu0 %v3620
    %v4216 = vpop.f32.mrb[0].mxu0
    %v4217 = vadd.f32 0.0, %v4216
    %v4218 = vpop.f32.mrb[0].mxu0
    %v4219 = vadd.f32 0.0, %v4218
    %4220 = vmatprep.mubr.f32.mxu0 0.0
    %4221 = vmatmul.mubr.f32.gmra.mrb[0].mxu0 %v3623
    %v4222 = vpop.f32.mrb[0].mxu0
    %v4223 = vadd.f32 0.0, %v4222
    %v4224 = vpop.f32.mrb[0].mxu0
    %v4225 = vadd.f32 0.0, %v4224
    %4226 = vdwg.mxu0
    %4227 = vst [vmem:[#allocation2 + $0xa0] sm:$0xff] %v4217
    %4228 = vst [vmem:[#allocation2 + $0xa8] sm:$0xff] %v4219
    %4229 = vst [vmem:[#allocation2 + $0xb0] sm:$0xff] %v4223
    %4230 = vst [vmem:[#allocation2 + $0xb8] sm:$0xff] %v4225
    %v4231 = vld [vmem:[%s1136] sm:$0xff]
    %v4232 = vld [vmem:[%s1136 + $0x8] sm:$0xff]
    %v4233 = vld [vmem:[%s1136 + $0x10] sm:$0xff]
    %v4234 = vld [vmem:[%s1136 + $0x18] sm:$0xff]
    %v4235 = vld [vmem:[%s1136 + $0x20] sm:$0xff]
    %v4236 = vld [vmem:[%s1136 + $0x28] sm:$0xff]
    %v4237 = vld [vmem:[%s1136 + $0x30] sm:$0xff]
    %v4238 = vld [vmem:[%s1136 + $0x38] sm:$0xff]
    %v4239 = vunpack.c.l.bf16 %v4231
    %v4240 = vunpack.c.h.bf16 %v4231
    %v4241 = vunpack.c.l.bf16 %v4232
    %v4242 = vunpack.c.h.bf16 %v4232
    %v4243 = vunpack.c.l.bf16 %v4233
    %v4244 = vunpack.c.h.bf16 %v4233
    %v4245 = vunpack.c.l.bf16 %v4234
    %v4246 = vunpack.c.h.bf16 %v4234
    %v4247 = vunpack.c.l.bf16 %v4235
    %v4248 = vunpack.c.h.bf16 %v4235
    %v4249 = vunpack.c.l.bf16 %v4236
    %v4250 = vunpack.c.h.bf16 %v4236
    %v4251 = vunpack.c.l.bf16 %v4237
    %v4252 = vunpack.c.h.bf16 %v4237
    %v4253 = vunpack.c.l.bf16 %v4238
    %v4254 = vunpack.c.h.bf16 %v4238
    %4255 = vmatprep.subr.mxu0 %v4240
    %4256 = vmatpush1.msra.mxu0 %v4239
    %4257 = vmatprep.subr.mxu0 %v4242
    %4258 = vmatpush1.msra.mxu0 %v4241
    %4259 = vmatprep.subr.mxu0 %v4244
    %4260 = vmatpush1.msra.mxu0 %v4243
    %4261 = vmatprep.subr.mxu0 %v4246
    %4262 = vmatpush1.msra.mxu0 %v4245
    %4263 = vmatprep.subr.mxu0 %v4248
    %4264 = vmatpush1.msra.mxu0 %v4247
    %4265 = vmatprep.subr.mxu0 %v4250
    %4266 = vmatpush1.msra.mxu0 %v4249
    %4267 = vmatprep.subr.mxu0 %v4252
    %4268 = vmatpush1.msra.mxu0 %v4251
    %4269 = vmatprep.subr.mxu0 %v4254
    %4270 = vmatpush1.msra.mxu0 %v4253
    %4271 = vmatprep.subr.mxu0 0.0
    %4272 = vmatpush1.msra.mxu0 0.0
    %4273 = vmatprep.subr.mxu0 0.0
    %4274 = vmatpush1.msra.mxu0 0.0
    %4275 = vmatprep.subr.mxu0 0.0
    %4276 = vmatpush1.msra.mxu0 0.0
    %4277 = vmatprep.subr.mxu0 0.0
    %4278 = vmatpush1.msra.mxu0 0.0
    %4279 = vmatprep.subr.mxu0 0.0
    %4280 = vmatpush1.msra.mxu0 0.0
    %4281 = vmatprep.subr.mxu0 0.0
    %4282 = vmatpush1.msra.mxu0 0.0
    %4283 = vmatprep.subr.mxu0 0.0
    %4284 = vmatpush1.msra.mxu0 0.0
    %4285 = vmatprep.subr.mxu0 0.0
    %4286 = vmatpush1.msra.mxu0 0.0
    %4287 = vmatprep.subr.mxu0 0.0
    %4288 = vmatpush1.msra.mxu0 0.0
    %4289 = vmatprep.subr.mxu0 0.0
    %4290 = vmatpush1.msra.mxu0 0.0
    %4291 = vmatprep.subr.mxu0 0.0
    %4292 = vmatpush1.msra.mxu0 0.0
    %4293 = vmatprep.subr.mxu0 0.0
    %4294 = vmatpush1.msra.mxu0 0.0
    %4295 = vmatprep.subr.mxu0 0.0
    %4296 = vmatpush1.msra.mxu0 0.0
    %4297 = vmatprep.subr.mxu0 0.0
    %4298 = vmatpush1.msra.mxu0 0.0
    %4299 = vmatprep.subr.mxu0 0.0
    %4300 = vmatpush1.msra.mxu0 0.0
    %4301 = vmatprep.subr.mxu0 0.0
    %4302 = vmatpush1.msra.mxu0 0.0
    %4303 = vmatprep.subr.mxu0 0.0
    %4304 = vmatpush1.msra.mxu0 0.0
    %4305 = vmatprep.subr.mxu0 0.0
    %4306 = vmatpush1.msra.mxu0 0.0
    %4307 = vmatprep.subr.mxu0 0.0
    %4308 = vmatpush1.msra.mxu0 0.0
    %4309 = vmatprep.subr.mxu0 0.0
    %4310 = vmatpush1.msra.mxu0 0.0
    %4311 = vmatprep.subr.mxu0 0.0
    %4312 = vmatpush1.msra.mxu0 0.0
    %4313 = vmatprep.subr.mxu0 0.0
    %4314 = vmatpush1.msra.mxu0 0.0
    %4315 = vmatprep.subr.mxu0 0.0
    %4316 = vmatpush1.msra.mxu0 0.0
    %4317 = vmatprep.subr.mxu0 0.0
    %4318 = vmatpush1.msra.mxu0 0.0
    %4319 = vmatprep.mubr.f32.mxu0 0.0
    %4320 = vmatmul.mubr.f32.gmra.mrb[0].mxu0 %v3620
    %v4321 = vpop.f32.mrb[0].mxu0
    %v4322 = vadd.f32 0.0, %v4321
    %v4323 = vpop.f32.mrb[0].mxu0
    %v4324 = vadd.f32 0.0, %v4323
    %4325 = vmatprep.mubr.f32.mxu0 0.0
    %4326 = vmatmul.mubr.f32.gmra.mrb[0].mxu0 %v3623
    %v4327 = vpop.f32.mrb[0].mxu0
    %v4328 = vadd.f32 0.0, %v4327
    %v4329 = vpop.f32.mrb[0].mxu0
    %v4330 = vadd.f32 0.0, %v4329
    %4331 = vdwg.mxu0
    %4332 = vst [vmem:[#allocation2 + $0xc0] sm:$0xff] %v4322
    %4333 = vst [vmem:[#allocation2 + $0xc8] sm:$0xff] %v4324
    %4334 = vst [vmem:[#allocation2 + $0xd0] sm:$0xff] %v4328
    %4335 = vst [vmem:[#allocation2 + $0xd8] sm:$0xff] %v4330
    %v4336 = vld [vmem:[%s1242] sm:$0xff]
    %v4337 = vld [vmem:[%s1242 + $0x8] sm:$0xff]
    %v4338 = vld [vmem:[%s1242 + $0x10] sm:$0xff]
    %v4339 = vld [vmem:[%s1242 + $0x18] sm:$0xff]
    %v4340 = vld [vmem:[%s1242 + $0x20] sm:$0xff]
    %v4341 = vld [vmem:[%s1242 + $0x28] sm:$0xff]
    %v4342 = vld [vmem:[%s1242 + $0x30] sm:$0xff]
    %v4343 = vld [vmem:[%s1242 + $0x38] sm:$0xff]
    %v4344 = vunpack.c.l.bf16 %v4336
    %v4345 = vunpack.c.h.bf16 %v4336
    %v4346 = vunpack.c.l.bf16 %v4337
    %v4347 = vunpack.c.h.bf16 %v4337
    %v4348 = vunpack.c.l.bf16 %v4338
    %v4349 = vunpack.c.h.bf16 %v4338
    %v4350 = vunpack.c.l.bf16 %v4339
    %v4351 = vunpack.c.h.bf16 %v4339
    %v4352 = vunpack.c.l.bf16 %v4340
    %v4353 = vunpack.c.h.bf16 %v4340
    %v4354 = vunpack.c.l.bf16 %v4341
    %v4355 = vunpack.c.h.bf16 %v4341
    %v4356 = vunpack.c.l.bf16 %v4342
    %v4357 = vunpack.c.h.bf16 %v4342
    %v4358 = vunpack.c.l.bf16 %v4343
    %v4359 = vunpack.c.h.bf16 %v4343
    %4360 = vmatprep.subr.mxu0 %v4345
    %4361 = vmatpush1.msra.mxu0 %v4344
    %4362 = vmatprep.subr.mxu0 %v4347
    %4363 = vmatpush1.msra.mxu0 %v4346
    %4364 = vmatprep.subr.mxu0 %v4349
    %4365 = vmatpush1.msra.mxu0 %v4348
    %4366 = vmatprep.subr.mxu0 %v4351
    %4367 = vmatpush1.msra.mxu0 %v4350
    %4368 = vmatprep.subr.mxu0 %v4353
    %4369 = vmatpush1.msra.mxu0 %v4352
    %4370 = vmatprep.subr.mxu0 %v4355
    %4371 = vmatpush1.msra.mxu0 %v4354
    %4372 = vmatprep.subr.mxu0 %v4357
    %4373 = vmatpush1.msra.mxu0 %v4356
    %4374 = vmatprep.subr.mxu0 %v4359
    %4375 = vmatpush1.msra.mxu0 %v4358
    %4376 = vmatprep.subr.mxu0 0.0
    %4377 = vmatpush1.msra.mxu0 0.0
    %4378 = vmatprep.subr.mxu0 0.0
    %4379 = vmatpush1.msra.mxu0 0.0
    %4380 = vmatprep.subr.mxu0 0.0
    %4381 = vmatpush1.msra.mxu0 0.0
    %4382 = vmatprep.subr.mxu0 0.0
    %4383 = vmatpush1.msra.mxu0 0.0
    %4384 = vmatprep.subr.mxu0 0.0
    %4385 = vmatpush1.msra.mxu0 0.0
    %4386 = vmatprep.subr.mxu0 0.0
    %4387 = vmatpush1.msra.mxu0 0.0
    %4388 = vmatprep.subr.mxu0 0.0
    %4389 = vmatpush1.msra.mxu0 0.0
    %4390 = vmatprep.subr.mxu0 0.0
    %4391 = vmatpush1.msra.mxu0 0.0
    %4392 = vmatprep.subr.mxu0 0.0
    %4393 = vmatpush1.msra.mxu0 0.0
    %4394 = vmatprep.subr.mxu0 0.0
    %4395 = vmatpush1.msra.mxu0 0.0
    %4396 = vmatprep.subr.mxu0 0.0
    %4397 = vmatpush1.msra.mxu0 0.0
    %4398 = vmatprep.subr.mxu0 0.0
    %4399 = vmatpush1.msra.mxu0 0.0
    %4400 = vmatprep.subr.mxu0 0.0
    %4401 = vmatpush1.msra.mxu0 0.0
    %4402 = vmatprep.subr.mxu0 0.0
    %4403 = vmatpush1.msra.mxu0 0.0
    %4404 = vmatprep.subr.mxu0 0.0
    %4405 = vmatpush1.msra.mxu0 0.0
    %4406 = vmatprep.subr.mxu0 0.0
    %4407 = vmatpush1.msra.mxu0 0.0
    %4408 = vmatprep.subr.mxu0 0.0
    %4409 = vmatpush1.msra.mxu0 0.0
    %4410 = vmatprep.subr.mxu0 0.0
    %4411 = vmatpush1.msra.mxu0 0.0
    %4412 = vmatprep.subr.mxu0 0.0
    %4413 = vmatpush1.msra.mxu0 0.0
    %4414 = vmatprep.subr.mxu0 0.0
    %4415 = vmatpush1.msra.mxu0 0.0
    %4416 = vmatprep.subr.mxu0 0.0
    %4417 = vmatpush1.msra.mxu0 0.0
    %4418 = vmatprep.subr.mxu0 0.0
    %4419 = vmatpush1.msra.mxu0 0.0
    %4420 = vmatprep.subr.mxu0 0.0
    %4421 = vmatpush1.msra.mxu0 0.0
    %4422 = vmatprep.subr.mxu0 0.0
    %4423 = vmatpush1.msra.mxu0 0.0
    %4424 = vmatprep.mubr.f32.mxu0 0.0
    %4425 = vmatmul.mubr.f32.gmra.mrb[0].mxu0 %v3620
    %v4426 = vpop.f32.mrb[0].mxu0
    %v4427 = vadd.f32 0.0, %v4426
    %v4428 = vpop.f32.mrb[0].mxu0
    %v4429 = vadd.f32 0.0, %v4428
    %4430 = vmatprep.mubr.f32.mxu0 0.0
    %4431 = vmatmul.mubr.f32.gmra.mrb[0].mxu0 %v3623
    %v4432 = vpop.f32.mrb[0].mxu0
    %v4433 = vadd.f32 0.0, %v4432
    %v4434 = vpop.f32.mrb[0].mxu0
    %v4435 = vadd.f32 0.0, %v4434
    %4436 = vdwg.mxu0
    %4437 = vst [vmem:[#allocation2 + $0xe0] sm:$0xff] %v4427
    %4438 = vst [vmem:[#allocation2 + $0xe8] sm:$0xff] %v4429
    %4439 = vst [vmem:[#allocation2 + $0xf0] sm:$0xff] %v4433
    %4440 = vst [vmem:[#allocation2 + $0xf8] sm:$0xff] %v4435
    %v4441 = vld [vmem:[%s1348] sm:$0xff]
    %v4442 = vld [vmem:[%s1348 + $0x8] sm:$0xff]
    %v4443 = vld [vmem:[%s1348 + $0x10] sm:$0xff]
    %v4444 = vld [vmem:[%s1348 + $0x18] sm:$0xff]
    %v4445 = vld [vmem:[%s1348 + $0x20] sm:$0xff]
    %v4446 = vld [vmem:[%s1348 + $0x28] sm:$0xff]
    %v4447 = vld [vmem:[%s1348 + $0x30] sm:$0xff]
    %v4448 = vld [vmem:[%s1348 + $0x38] sm:$0xff]
    %v4449 = vunpack.c.l.bf16 %v4441
    %v4450 = vunpack.c.h.bf16 %v4441
    %v4451 = vunpack.c.l.bf16 %v4442
    %v4452 = vunpack.c.h.bf16 %v4442
    %v4453 = vunpack.c.l.bf16 %v4443
    %v4454 = vunpack.c.h.bf16 %v4443
    %v4455 = vunpack.c.l.bf16 %v4444
    %v4456 = vunpack.c.h.bf16 %v4444
    %v4457 = vunpack.c.l.bf16 %v4445
    %v4458 = vunpack.c.h.bf16 %v4445
    %v4459 = vunpack.c.l.bf16 %v4446
    %v4460 = vunpack.c.h.bf16 %v4446
    %v4461 = vunpack.c.l.bf16 %v4447
    %v4462 = vunpack.c.h.bf16 %v4447
    %v4463 = vunpack.c.l.bf16 %v4448
    %v4464 = vunpack.c.h.bf16 %v4448
    %4465 = vmatprep.subr.mxu0 %v4450
    %4466 = vmatpush1.msra.mxu0 %v4449
    %4467 = vmatprep.subr.mxu0 %v4452
    %4468 = vmatpush1.msra.mxu0 %v4451
    %4469 = vmatprep.subr.mxu0 %v4454
    %4470 = vmatpush1.msra.mxu0 %v4453
    %4471 = vmatprep.subr.mxu0 %v4456
    %4472 = vmatpush1.msra.mxu0 %v4455
    %4473 = vmatprep.subr.mxu0 %v4458
    %4474 = vmatpush1.msra.mxu0 %v4457
    %4475 = vmatprep.subr.mxu0 %v4460
    %4476 = vmatpush1.msra.mxu0 %v4459
    %4477 = vmatprep.subr.mxu0 %v4462
    %4478 = vmatpush1.msra.mxu0 %v4461
    %4479 = vmatprep.subr.mxu0 %v4464
    %4480 = vmatpush1.msra.mxu0 %v4463
    %4481 = vmatprep.subr.mxu0 0.0
    %4482 = vmatpush1.msra.mxu0 0.0
    %4483 = vmatprep.subr.mxu0 0.0
    %4484 = vmatpush1.msra.mxu0 0.0
    %4485 = vmatprep.subr.mxu0 0.0
    %4486 = vmatpush1.msra.mxu0 0.0
    %4487 = vmatprep.subr.mxu0 0.0
    %4488 = vmatpush1.msra.mxu0 0.0
    %4489 = vmatprep.subr.mxu0 0.0
    %4490 = vmatpush1.msra.mxu0 0.0
    %4491 = vmatprep.subr.mxu0 0.0
    %4492 = vmatpush1.msra.mxu0 0.0
    %4493 = vmatprep.subr.mxu0 0.0
    %4494 = vmatpush1.msra.mxu0 0.0
    %4495 = vmatprep.subr.mxu0 0.0
    %4496 = vmatpush1.msra.mxu0 0.0
    %4497 = vmatprep.subr.mxu0 0.0
    %4498 = vmatpush1.msra.mxu0 0.0
    %4499 = vmatprep.subr.mxu0 0.0
    %4500 = vmatpush1.msra.mxu0 0.0
    %4501 = vmatprep.subr.mxu0 0.0
    %4502 = vmatpush1.msra.mxu0 0.0
    %4503 = vmatprep.subr.mxu0 0.0
    %4504 = vmatpush1.msra.mxu0 0.0
    %4505 = vmatprep.subr.mxu0 0.0
    %4506 = vmatpush1.msra.mxu0 0.0
    %4507 = vmatprep.subr.mxu0 0.0
    %4508 = vmatpush1.msra.mxu0 0.0
    %4509 = vmatprep.subr.mxu0 0.0
    %4510 = vmatpush1.msra.mxu0 0.0
    %4511 = vmatprep.subr.mxu0 0.0
    %4512 = vmatpush1.msra.mxu0 0.0
    %4513 = vmatprep.subr.mxu0 0.0
    %4514 = vmatpush1.msra.mxu0 0.0
    %4515 = vmatprep.subr.mxu0 0.0
    %4516 = vmatpush1.msra.mxu0 0.0
    %4517 = vmatprep.subr.mxu0 0.0
    %4518 = vmatpush1.msra.mxu0 0.0
    %4519 = vmatprep.subr.mxu0 0.0
    %4520 = vmatpush1.msra.mxu0 0.0
    %4521 = vmatprep.subr.mxu0 0.0
    %4522 = vmatpush1.msra.mxu0 0.0
    %4523 = vmatprep.subr.mxu0 0.0
    %4524 = vmatpush1.msra.mxu0 0.0
    %4525 = vmatprep.subr.mxu0 0.0
    %4526 = vmatpush1.msra.mxu0 0.0
    %4527 = vmatprep.subr.mxu0 0.0
    %4528 = vmatpush1.msra.mxu0 0.0
    %4529 = vmatprep.mubr.f32.mxu0 0.0
    %4530 = vmatmul.mubr.f32.gmra.mrb[0].mxu0 %v3620
    %v4531 = vpop.f32.mrb[0].mxu0
    %v4532 = vadd.f32 0.0, %v4531
    %v4533 = vpop.f32.mrb[0].mxu0
    %v4534 = vadd.f32 0.0, %v4533
    %4535 = vmatprep.mubr.f32.mxu0 0.0
    %4536 = vmatmul.mubr.f32.gmra.mrb[0].mxu0 %v3623
    %v4537 = vpop.f32.mrb[0].mxu0
    %v4538 = vadd.f32 0.0, %v4537
    %v4539 = vpop.f32.mrb[0].mxu0
    %v4540 = vadd.f32 0.0, %v4539
    %4541 = vdwg.mxu0
    %4542 = vst [vmem:[#allocation2 + $0x100] sm:$0xff] %v4532
    %4543 = vst [vmem:[#allocation2 + $0x108] sm:$0xff] %v4534
    %4544 = vst [vmem:[#allocation2 + $0x110] sm:$0xff] %v4538
    %4545 = vst [vmem:[#allocation2 + $0x118] sm:$0xff] %v4540
    %v4546 = vld [vmem:[#allocation7] sm:$0xff]
    %v4547 = vld [vmem:[#allocation7 + $0x8] sm:$0xff]
    %v4548 = vld [vmem:[#allocation2] sm:$0xff]
    %v4549 = vld [vmem:[#allocation2 + $0x8] sm:$0xff]
    %v4550 = vld [vmem:[#allocation2 + $0x10] sm:$0xff]
    %v4551 = vld [vmem:[#allocation2 + $0x18] sm:$0xff]
    %v4552 = vld [vmem:[#allocation2 + $0x20] sm:$0xff]
    %v4553 = vld [vmem:[#allocation2 + $0x28] sm:$0xff]
    %v4554 = vld [vmem:[#allocation2 + $0x30] sm:$0xff]
    %v4555 = vld [vmem:[#allocation2 + $0x38] sm:$0xff]
    %v4556 = vld [vmem:[#allocation2 + $0x40] sm:$0xff]
    %v4557 = vld [vmem:[#allocation2 + $0x48] sm:$0xff]
    %v4558 = vld [vmem:[#allocation2 + $0x50] sm:$0xff]
    %v4559 = vld [vmem:[#allocation2 + $0x58] sm:$0xff]
    %v4560 = vld [vmem:[#allocation2 + $0x60] sm:$0xff]
    %v4561 = vld [vmem:[#allocation2 + $0x68] sm:$0xff]
    %v4562 = vld [vmem:[#allocation2 + $0x70] sm:$0xff]
    %v4563 = vld [vmem:[#allocation2 + $0x78] sm:$0xff]
    %v4564 = vld [vmem:[#allocation2 + $0x80] sm:$0xff]
    %v4565 = vld [vmem:[#allocation2 + $0x88] sm:$0xff]
    %v4566 = vld [vmem:[#allocation2 + $0x90] sm:$0xff]
    %v4567 = vld [vmem:[#allocation2 + $0x98] sm:$0xff]
    %v4568 = vld [vmem:[#allocation2 + $0xa0] sm:$0xff]
    %v4569 = vld [vmem:[#allocation2 + $0xa8] sm:$0xff]
    %v4570 = vld [vmem:[#allocation2 + $0xb0] sm:$0xff]
    %v4571 = vld [vmem:[#allocation2 + $0xb8] sm:$0xff]
    %v4572 = vld [vmem:[#allocation2 + $0xc0] sm:$0xff]
    %v4573 = vld [vmem:[#allocation2 + $0xc8] sm:$0xff]
    %v4574 = vld [vmem:[#allocation2 + $0xd0] sm:$0xff]
    %v4575 = vld [vmem:[#allocation2 + $0xd8] sm:$0xff]
    %v4576 = vld [vmem:[#allocation2 + $0xe0] sm:$0xff]
    %v4577 = vld [vmem:[#allocation2 + $0xe8] sm:$0xff]
    %v4578 = vld [vmem:[#allocation2 + $0xf0] sm:$0xff]
    %v4579 = vld [vmem:[#allocation2 + $0xf8] sm:$0xff]
    %v4580 = vld [vmem:[#allocation2 + $0x100] sm:$0xff]
    %v4581 = vld [vmem:[#allocation2 + $0x108] sm:$0xff]
    %v4582 = vld [vmem:[#allocation2 + $0x110] sm:$0xff]
    %v4583 = vld [vmem:[#allocation2 + $0x118] sm:$0xff]
    %v4584 = vld [vmem:[%s7] sm:$0xff]
    %4586 = vset.pattern.permute.xlu0 0
    %4587 = vperm.xlu0 %4586, %v4584
    %v4588 = vpop.permute.xlu0 %4587
    %v4591 = vsel %vm1498, %v4547, 0
    %4593 = vmatprep.subr.mxu0 %v4549
    %4594 = vmatpush1.msra.mxu0 %v4548
    %4595 = vmatprep.subr.mxu0 %v4551
    %4596 = vmatpush1.msra.mxu0 %v4550
    %4597 = vmatprep.subr.mxu0 %v4553
    %4598 = vmatpush1.msra.mxu0 %v4552
    %4599 = vmatprep.subr.mxu0 %v4555
    %4600 = vmatpush1.msra.mxu0 %v4554
    %4601 = vmatprep.subr.mxu0 %v4557
    %4602 = vmatpush1.msra.mxu0 %v4556
    %4603 = vmatprep.subr.mxu0 %v4559
    %4604 = vmatpush1.msra.mxu0 %v4558
    %4605 = vmatprep.subr.mxu0 %v4561
    %4606 = vmatpush1.msra.mxu0 %v4560
    %4607 = vmatprep.subr.mxu0 %v4563
    %4608 = vmatpush1.msra.mxu0 %v4562
    %4609 = vmatprep.subr.mxu0 %v4565
    %4610 = vmatpush1.msra.mxu0 %v4564
    %4611 = vmatprep.subr.mxu0 %v4567
    %4612 = vmatpush1.msra.mxu0 %v4566
    %4613 = vmatprep.subr.mxu0 %v4569
    %4614 = vmatpush1.msra.mxu0 %v4568
    %4615 = vmatprep.subr.mxu0 %v4571
    %4616 = vmatpush1.msra.mxu0 %v4570
    %4617 = vmatprep.subr.mxu0 %v4573
    %4618 = vmatpush1.msra.mxu0 %v4572
    %4619 = vmatprep.subr.mxu0 %v4575
    %4620 = vmatpush1.msra.mxu0 %v4574
    %4621 = vmatprep.subr.mxu0 %v4577
    %4622 = vmatpush1.msra.mxu0 %v4576
    %4623 = vmatprep.subr.mxu0 %v4579
    %4624 = vmatpush1.msra.mxu0 %v4578
    %4625 = vmatprep.subr.mxu0 %v4581
    %4626 = vmatpush1.msra.mxu0 %v4580
    %4627 = vmatprep.subr.mxu0 %v4583
    %4628 = vmatpush1.msra.mxu0 %v4582
    %4629 = vmatprep.subr.mxu0 0.0
    %4630 = vmatpush1.msra.mxu0 0.0
    %4631 = vmatprep.subr.mxu0 0.0
    %4632 = vmatpush1.msra.mxu0 0.0
    %4633 = vmatprep.subr.mxu0 0.0
    %4634 = vmatpush1.msra.mxu0 0.0
    %4635 = vmatprep.subr.mxu0 0.0
    %4636 = vmatpush1.msra.mxu0 0.0
    %4637 = vmatprep.subr.mxu0 0.0
    %4638 = vmatpush1.msra.mxu0 0.0
    %4639 = vmatprep.subr.mxu0 0.0
    %4640 = vmatpush1.msra.mxu0 0.0
    %4641 = vmatprep.subr.mxu0 0.0
    %4642 = vmatpush1.msra.mxu0 0.0
    %4643 = vmatprep.subr.mxu0 0.0
    %4644 = vmatpush1.msra.mxu0 0.0
    %4645 = vmatprep.subr.mxu0 0.0
    %4646 = vmatpush1.msra.mxu0 0.0
    %4647 = vmatprep.subr.mxu0 0.0
    %4648 = vmatpush1.msra.mxu0 0.0
    %4649 = vmatprep.subr.mxu0 0.0
    %4650 = vmatpush1.msra.mxu0 0.0
    %4651 = vmatprep.subr.mxu0 0.0
    %4652 = vmatpush1.msra.mxu0 0.0
    %4653 = vmatprep.subr.mxu0 0.0
    %4654 = vmatpush1.msra.mxu0 0.0
    %4655 = vmatprep.subr.mxu0 0.0
    %4656 = vmatpush1.msra.mxu0 0.0
    %4657 = vmatprep.mubr.f32.mxu0 %v4591
    %4658 = vmatmul.mubr.f32.gmra.mrb[0].mxu0 %v4546
    %v4659 = vpop.f32.mrb[0].mxu0
    %v4660 = vadd.f32 %v4588, %v4659
    %v4661 = vpop.f32.mrb[0].mxu0
    %v4662 = vadd.f32 %v4588, %v4661
    %4663 = vdwg.mxu0
    %vm4664 = vcmp.ge.f32.partialorder %v4660, 0.0
    %vm4665 = vcmp.ge.f32.partialorder %v4662, 0.0
    %v4666 = vmul.f32 %v4660, 0.2
    %v4667 = vmul.f32 %v4662, 0.2
    %v4668 = vsel %vm4664, %v4660, %v4666
    %v4669 = vsel %vm4665, %v4662, %v4667
    %4670 = vrot.lane.b32.xlu0 %v4668, 17
    %v4671 = vpop.permute.xlu0 %4670
    %4672 = vrot.lane.b32.xlu0 %v4669, 17
    %v4673 = vpop.permute.xlu0 %4672
    %v4674 = vsel %vm1583, %v4671, %v4673
    %v4675 = vsel %vm1583, %v4673, %v4671
    %v4676 = vsel %vm1588, %v4675, 0.0
    %v4677 = vsel %vm1589, %v4674, 0.0
    %4678 = vst [vmem:[#allocation2] sm:$0xff] %v4676
    %4679 = vst [vmem:[#allocation2 + $0x8] sm:$0xff] %v4677
    %4680 = vrot.lane.b32.xlu0 %v4668, 16
    %v4681 = vpop.permute.xlu0 %4680
    %4682 = vrot.lane.b32.xlu0 %v4669, 16
    %v4683 = vpop.permute.xlu0 %4682
    %v4684 = vsel %vm1598, %v4681, %v4683
    %v4685 = vsel %vm1598, %v4683, %v4681
    %v4686 = vsel %vm1603, %v4685, 0.0
    %v4687 = vsel %vm1604, %v4684, 0.0
    %4688 = vst [vmem:[#allocation2 + $0x10] sm:$0xff] %v4686
    %4689 = vst [vmem:[#allocation2 + $0x18] sm:$0xff] %v4687
    %4690 = vrot.lane.b32.xlu0 %v4668, 15
    %v4691 = vpop.permute.xlu0 %4690
    %4692 = vrot.lane.b32.xlu0 %v4669, 15
    %v4693 = vpop.permute.xlu0 %4692
    %v4694 = vsel %vm1613, %v4691, %v4693
    %v4695 = vsel %vm1613, %v4693, %v4691
    %v4696 = vsel %vm1618, %v4695, 0.0
    %v4697 = vsel %vm1619, %v4694, 0.0
    %4698 = vst [vmem:[#allocation2 + $0x20] sm:$0xff] %v4696
    %4699 = vst [vmem:[#allocation2 + $0x28] sm:$0xff] %v4697
    %4700 = vrot.lane.b32.xlu0 %v4668, 1
    %v4701 = vpop.permute.xlu0 %4700
    %4702 = vrot.lane.b32.xlu0 %v4669, 1
    %v4703 = vpop.permute.xlu0 %4702
    %v4704 = vsel %vm1628, %v4701, %v4703
    %v4705 = vsel %vm1628, %v4703, %v4701
    %v4706 = vsel %vm1633, %v4705, 0.0
    %v4707 = vsel %vm1634, %v4704, 0.0
    %4708 = vst [vmem:[#allocation2 + $0x30] sm:$0xff] %v4706
    %4709 = vst [vmem:[#allocation2 + $0x38] sm:$0xff] %v4707
    %v4710 = vsel %vm1641, %v4668, 0.0
    %v4711 = vsel %vm1642, %v4669, 0.0
    %4712 = vst [vmem:[#allocation2 + $0x40] sm:$0xff] %v4710
    %4713 = vst [vmem:[#allocation2 + $0x48] sm:$0xff] %v4711
    %4714 = vrot.lane.b32.xlu0 %v4668, 127
    %v4715 = vpop.permute.xlu0 %4714
    %4716 = vrot.lane.b32.xlu0 %v4669, 127
    %v4717 = vpop.permute.xlu0 %4716
    %v4718 = vsel %vm1651, %v4715, %v4717
    %v4719 = vsel %vm1651, %v4717, %v4715
    %v4720 = vsel %vm1656, %v4718, 0.0
    %v4721 = vsel %vm1657, %v4719, 0.0
    %4722 = vst [vmem:[#allocation2 + $0x50] sm:$0xff] %v4720
    %4723 = vst [vmem:[#allocation2 + $0x58] sm:$0xff] %v4721
    %4724 = vrot.lane.b32.xlu0 %v4668, 113
    %v4725 = vpop.permute.xlu0 %4724
    %4726 = vrot.lane.b32.xlu0 %v4669, 113
    %v4727 = vpop.permute.xlu0 %4726
    %v4728 = vsel %vm1666, %v4725, %v4727
    %v4729 = vsel %vm1666, %v4727, %v4725
    %v4730 = vsel %vm1671, %v4728, 0.0
    %v4731 = vsel %vm1672, %v4729, 0.0
    %4732 = vst [vmem:[#allocation2 + $0x60] sm:$0xff] %v4730
    %4733 = vst [vmem:[#allocation2 + $0x68] sm:$0xff] %v4731
    %4734 = vrot.lane.b32.xlu0 %v4668, 112
    %v4735 = vpop.permute.xlu0 %4734
    %4736 = vrot.lane.b32.xlu0 %v4669, 112
    %v4737 = vpop.permute.xlu0 %4736
    %v4738 = vsel %vm1681, %v4735, %v4737
    %v4739 = vsel %vm1681, %v4737, %v4735
    %v4740 = vsel %vm1686, %v4738, 0.0
    %v4741 = vsel %vm1687, %v4739, 0.0
    %4742 = vst [vmem:[#allocation2 + $0x70] sm:$0xff] %v4740
    %4743 = vst [vmem:[#allocation2 + $0x78] sm:$0xff] %v4741
    %4744 = vrot.lane.b32.xlu0 %v4668, 111
    %v4745 = vpop.permute.xlu0 %4744
    %4746 = vrot.lane.b32.xlu0 %v4669, 111
    %v4747 = vpop.permute.xlu0 %4746
    %v4748 = vsel %vm1696, %v4745, %v4747
    %v4749 = vsel %vm1696, %v4747, %v4745
    %v4750 = vsel %vm1701, %v4748, 0.0
    %v4751 = vsel %vm1702, %v4749, 0.0
    %4752 = vst [vmem:[#allocation2 + $0x80] sm:$0xff] %v4750
    %4753 = vst [vmem:[#allocation2 + $0x88] sm:$0xff] %v4751
    %v4754 = vld [vmem:[#allocation9] sm:$0xff]
    %v4755 = vld [vmem:[#allocation2] sm:$0xff]
    %v4756 = vld [vmem:[#allocation2 + $0x8] sm:$0xff]
    %v4757 = vld [vmem:[#allocation2 + $0x10] sm:$0xff]
    %v4758 = vld [vmem:[#allocation2 + $0x18] sm:$0xff]
    %v4759 = vld [vmem:[#allocation2 + $0x20] sm:$0xff]
    %v4760 = vld [vmem:[#allocation2 + $0x28] sm:$0xff]
    %v4761 = vld [vmem:[#allocation2 + $0x30] sm:$0xff]
    %v4762 = vld [vmem:[#allocation2 + $0x38] sm:$0xff]
    %v4763 = vld [vmem:[#allocation2 + $0x40] sm:$0xff]
    %v4764 = vld [vmem:[#allocation2 + $0x48] sm:$0xff]
    %v4765 = vld [vmem:[#allocation2 + $0x50] sm:$0xff]
    %v4766 = vld [vmem:[#allocation2 + $0x58] sm:$0xff]
    %v4767 = vld [vmem:[#allocation2 + $0x60] sm:$0xff]
    %v4768 = vld [vmem:[#allocation2 + $0x68] sm:$0xff]
    %v4769 = vld [vmem:[#allocation2 + $0x70] sm:$0xff]
    %v4770 = vld [vmem:[#allocation2 + $0x78] sm:$0xff]
    %v4771 = vld [vmem:[#allocation2 + $0x80] sm:$0xff]
    %v4772 = vld [vmem:[#allocation2 + $0x88] sm:$0xff]
    %v4773 = vld [vmem:[%s9] sm:$0xff]
    %4775 = vset.pattern.permute.xlu0 0
    %4776 = vperm.xlu0 %4775, %v4773
    %v4777 = vpop.permute.xlu0 %4776
    %v4780 = vsel %vm1732, %v4754, 0
    %4782 = vmatprep.subr.mxu0 %v4756
    %4783 = vmatpush1.msra.mxu0 %v4755
    %4784 = vmatprep.subr.mxu0 %v4758
    %4785 = vmatpush1.msra.mxu0 %v4757
    %4786 = vmatprep.subr.mxu0 %v4760
    %4787 = vmatpush1.msra.mxu0 %v4759
    %4788 = vmatprep.subr.mxu0 %v4762
    %4789 = vmatpush1.msra.mxu0 %v4761
    %4790 = vmatprep.subr.mxu0 %v4764
    %4791 = vmatpush1.msra.mxu0 %v4763
    %4792 = vmatprep.subr.mxu0 %v4766
    %4793 = vmatpush1.msra.mxu0 %v4765
    %4794 = vmatprep.subr.mxu0 %v4768
    %4795 = vmatpush1.msra.mxu0 %v4767
    %4796 = vmatprep.subr.mxu0 %v4770
    %4797 = vmatpush1.msra.mxu0 %v4769
    %4798 = vmatprep.subr.mxu0 %v4772
    %4799 = vmatpush1.msra.mxu0 %v4771
    %4800 = vmatprep.subr.mxu0 0.0
    %4801 = vmatpush1.msra.mxu0 0.0
    %4802 = vmatprep.subr.mxu0 0.0
    %4803 = vmatpush1.msra.mxu0 0.0
    %4804 = vmatprep.subr.mxu0 0.0
    %4805 = vmatpush1.msra.mxu0 0.0
    %4806 = vmatprep.subr.mxu0 0.0
    %4807 = vmatpush1.msra.mxu0 0.0
    %4808 = vmatprep.subr.mxu0 0.0
    %4809 = vmatpush1.msra.mxu0 0.0
    %4810 = vmatprep.subr.mxu0 0.0
    %4811 = vmatpush1.msra.mxu0 0.0
    %4812 = vmatprep.subr.mxu0 0.0
    %4813 = vmatpush1.msra.mxu0 0.0
    %4814 = vmatprep.subr.mxu0 0.0
    %4815 = vmatpush1.msra.mxu0 0.0
    %4816 = vmatprep.subr.mxu0 0.0
    %4817 = vmatpush1.msra.mxu0 0.0
    %4818 = vmatprep.subr.mxu0 0.0
    %4819 = vmatpush1.msra.mxu0 0.0
    %4820 = vmatprep.subr.mxu0 0.0
    %4821 = vmatpush1.msra.mxu0 0.0
    %4822 = vmatprep.subr.mxu0 0.0
    %4823 = vmatpush1.msra.mxu0 0.0
    %4824 = vmatprep.subr.mxu0 0.0
    %4825 = vmatpush1.msra.mxu0 0.0
    %4826 = vmatprep.subr.mxu0 0.0
    %4827 = vmatpush1.msra.mxu0 0.0
    %4828 = vmatprep.subr.mxu0 0.0
    %4829 = vmatpush1.msra.mxu0 0.0
    %4830 = vmatprep.subr.mxu0 0.0
    %4831 = vmatpush1.msra.mxu0 0.0
    %4832 = vmatprep.subr.mxu0 0.0
    %4833 = vmatpush1.msra.mxu0 0.0
    %4834 = vmatprep.subr.mxu0 0.0
    %4835 = vmatpush1.msra.mxu0 0.0
    %4836 = vmatprep.subr.mxu0 0.0
    %4837 = vmatpush1.msra.mxu0 0.0
    %4838 = vmatprep.subr.mxu0 0.0
    %4839 = vmatpush1.msra.mxu0 0.0
    %4840 = vmatprep.subr.mxu0 0.0
    %4841 = vmatpush1.msra.mxu0 0.0
    %4842 = vmatprep.subr.mxu0 0.0
    %4843 = vmatpush1.msra.mxu0 0.0
    %4844 = vmatprep.subr.mxu0 0.0
    %4845 = vmatpush1.msra.mxu0 0.0
    %4846 = vmatprep.mubr.f32.mxu0 0.0
    %4847 = vmatmul.mubr.f32.gmra.mrb[0].mxu0 %v4780
    %v4848 = vpop.f32.mrb[0].mxu0
    %v4849 = vadd.f32 %v4777, %v4848
    %v4850 = vpop.f32.mrb[0].mxu0
    %v4851 = vadd.f32 %v4777, %v4850
    %4852 = vdwg.mxu0
    %v4853 = vtanh.pop %v4849
    %v4854 = vtanh.pop %v4851
    %s4855 = scalar_lea.vmem %s12, 48
    %4856 = vst [vmem:[%s4855] sm:$0xff] %v4853
    %4857 = vst [vmem:[%s4855 + $0x8] sm:$0xff] %v4854
    %4858 = vrot.lane.b32.xlu0 %v4853, 17
    %v4859 = vpop.permute.xlu0 %4858
    %4860 = vrot.lane.b32.xlu0 %v4854, 17
    %v4861 = vpop.permute.xlu0 %4860
    %v4862 = vsel %vm1583, %v4859, %v4861
    %v4863 = vsel %vm1583, %v4861, %v4859
    %v4864 = vsel %vm1588, %v4863, 0.0
    %v4865 = vsel %vm1589, %v4862, 0.0
    %4866 = vst [vmem:[#allocation2] sm:$0xff] %v4864
    %4867 = vst [vmem:[#allocation2 + $0x8] sm:$0xff] %v4865
    %4868 = vrot.lane.b32.xlu0 %v4853, 16
    %v4869 = vpop.permute.xlu0 %4868
    %4870 = vrot.lane.b32.xlu0 %v4854, 16
    %v4871 = vpop.permute.xlu0 %4870
    %v4872 = vsel %vm1598, %v4869, %v4871
    %v4873 = vsel %vm1598, %v4871, %v4869
    %v4874 = vsel %vm1603, %v4873, 0.0
    %v4875 = vsel %vm1604, %v4872, 0.0
    %4876 = vst [vmem:[#allocation2 + $0x10] sm:$0xff] %v4874
    %4877 = vst [vmem:[#allocation2 + $0x18] sm:$0xff] %v4875
    %4878 = vrot.lane.b32.xlu0 %v4853, 15
    %v4879 = vpop.permute.xlu0 %4878
    %4880 = vrot.lane.b32.xlu0 %v4854, 15
    %v4881 = vpop.permute.xlu0 %4880
    %v4882 = vsel %vm1613, %v4879, %v4881
    %v4883 = vsel %vm1613, %v4881, %v4879
    %v4884 = vsel %vm1618, %v4883, 0.0
    %v4885 = vsel %vm1619, %v4882, 0.0
    %4886 = vst [vmem:[#allocation2 + $0x20] sm:$0xff] %v4884
    %4887 = vst [vmem:[#allocation2 + $0x28] sm:$0xff] %v4885
    %4888 = vrot.lane.b32.xlu0 %v4853, 1
    %v4889 = vpop.permute.xlu0 %4888
    %4890 = vrot.lane.b32.xlu0 %v4854, 1
    %v4891 = vpop.permute.xlu0 %4890
    %v4892 = vsel %vm1628, %v4889, %v4891
    %v4893 = vsel %vm1628, %v4891, %v4889
    %v4894 = vsel %vm1633, %v4893, 0.0
    %v4895 = vsel %vm1634, %v4892, 0.0
    %4896 = vst [vmem:[#allocation2 + $0x30] sm:$0xff] %v4894
    %4897 = vst [vmem:[#allocation2 + $0x38] sm:$0xff] %v4895
    %v4898 = vsel %vm1641, %v4853, 0.0
    %v4899 = vsel %vm1642, %v4854, 0.0
    %4900 = vst [vmem:[#allocation2 + $0x40] sm:$0xff] %v4898
    %4901 = vst [vmem:[#allocation2 + $0x48] sm:$0xff] %v4899
    %4902 = vrot.lane.b32.xlu0 %v4853, 127
    %v4903 = vpop.permute.xlu0 %4902
    %4904 = vrot.lane.b32.xlu0 %v4854, 127
    %v4905 = vpop.permute.xlu0 %4904
    %v4906 = vsel %vm1651, %v4903, %v4905
    %v4907 = vsel %vm1651, %v4905, %v4903
    %v4908 = vsel %vm1656, %v4906, 0.0
    %v4909 = vsel %vm1657, %v4907, 0.0
    %4910 = vst [vmem:[#allocation2 + $0x50] sm:$0xff] %v4908
    %4911 = vst [vmem:[#allocation2 + $0x58] sm:$0xff] %v4909
    %4912 = vrot.lane.b32.xlu0 %v4853, 113
    %v4913 = vpop.permute.xlu0 %4912
    %4914 = vrot.lane.b32.xlu0 %v4854, 113
    %v4915 = vpop.permute.xlu0 %4914
    %v4916 = vsel %vm1666, %v4913, %v4915
    %v4917 = vsel %vm1666, %v4915, %v4913
    %v4918 = vsel %vm1671, %v4916, 0.0
    %v4919 = vsel %vm1672, %v4917, 0.0
    %4920 = vst [vmem:[#allocation2 + $0x60] sm:$0xff] %v4918
    %4921 = vst [vmem:[#allocation2 + $0x68] sm:$0xff] %v4919
    %4922 = vrot.lane.b32.xlu0 %v4853, 112
    %v4923 = vpop.permute.xlu0 %4922
    %4924 = vrot.lane.b32.xlu0 %v4854, 112
    %v4925 = vpop.permute.xlu0 %4924
    %v4926 = vsel %vm1681, %v4923, %v4925
    %v4927 = vsel %vm1681, %v4925, %v4923
    %v4928 = vsel %vm1686, %v4926, 0.0
    %v4929 = vsel %vm1687, %v4927, 0.0
    %4930 = vst [vmem:[#allocation2 + $0x70] sm:$0xff] %v4928
    %4931 = vst [vmem:[#allocation2 + $0x78] sm:$0xff] %v4929
    %4932 = vrot.lane.b32.xlu0 %v4853, 111
    %v4933 = vpop.permute.xlu0 %4932
    %4934 = vrot.lane.b32.xlu0 %v4854, 111
    %v4935 = vpop.permute.xlu0 %4934
    %v4936 = vsel %vm1696, %v4933, %v4935
    %v4937 = vsel %vm1696, %v4935, %v4933
    %v4938 = vsel %vm1701, %v4936, 0.0
    %v4939 = vsel %vm1702, %v4937, 0.0
    %4940 = vst [vmem:[#allocation2 + $0x80] sm:$0xff] %v4938
    %4941 = vst [vmem:[#allocation2 + $0x88] sm:$0xff] %v4939
    %v4942 = vld [vmem:[#allocation10] sm:$0xff]
    %v4943 = vld [vmem:[#allocation10 + $0x8] sm:$0xf]
    %v4944 = vld [vmem:[#allocation2] sm:$0xff]
    %v4945 = vld [vmem:[#allocation2 + $0x8] sm:$0xff]
    %v4946 = vld [vmem:[#allocation2 + $0x10] sm:$0xff]
    %v4947 = vld [vmem:[#allocation2 + $0x18] sm:$0xff]
    %v4948 = vld [vmem:[#allocation2 + $0x20] sm:$0xff]
    %v4949 = vld [vmem:[#allocation2 + $0x28] sm:$0xff]
    %v4950 = vld [vmem:[#allocation2 + $0x30] sm:$0xff]
    %v4951 = vld [vmem:[#allocation2 + $0x38] sm:$0xff]
    %v4952 = vld [vmem:[#allocation2 + $0x40] sm:$0xff]
    %v4953 = vld [vmem:[#allocation2 + $0x48] sm:$0xff]
    %v4954 = vld [vmem:[#allocation2 + $0x50] sm:$0xff]
    %v4955 = vld [vmem:[#allocation2 + $0x58] sm:$0xff]
    %v4956 = vld [vmem:[#allocation2 + $0x60] sm:$0xff]
    %v4957 = vld [vmem:[#allocation2 + $0x68] sm:$0xff]
    %v4958 = vld [vmem:[#allocation2 + $0x70] sm:$0xff]
    %v4959 = vld [vmem:[#allocation2 + $0x78] sm:$0xff]
    %v4960 = vld [vmem:[#allocation2 + $0x80] sm:$0xff]
    %v4961 = vld [vmem:[#allocation2 + $0x88] sm:$0xff]
    %v4962 = vld [vmem:[%s11] sm:$0xff]
    %v4963 = vld [vmem:[%s11 + $0x8] sm:$0xf]
    %4965 = vset.pattern.permute.xlu0 0
    %4966 = vperm.xlu0 %4965, %v4962
    %v4967 = vpop.permute.xlu0 %4966
    %4970 = vset.pattern.permute.xlu0 0
    %4971 = vperm.xlu0 %4970, %v4963
    %v4972 = vpop.permute.xlu0 %4971
    %v4975 = vsel %vm1732, %v4942, 0
    %v4978 = vsel %vm1732, %v4943, 0
    %4980 = vmatprep.subr.mxu0 %v4945
    %4981 = vmatpush1.msra.mxu0 %v4944
    %4982 = vmatprep.subr.mxu0 %v4947
    %4983 = vmatpush1.msra.mxu0 %v4946
    %4984 = vmatprep.subr.mxu0 %v4949
    %4985 = vmatpush1.msra.mxu0 %v4948
    %4986 = vmatprep.subr.mxu0 %v4951
    %4987 = vmatpush1.msra.mxu0 %v4950
    %4988 = vmatprep.subr.mxu0 %v4953
    %4989 = vmatpush1.msra.mxu0 %v4952
    %4990 = vmatprep.subr.mxu0 %v4955
    %4991 = vmatpush1.msra.mxu0 %v4954
    %4992 = vmatprep.subr.mxu0 %v4957
    %4993 = vmatpush1.msra.mxu0 %v4956
    %4994 = vmatprep.subr.mxu0 %v4959
    %4995 = vmatpush1.msra.mxu0 %v4958
    %4996 = vmatprep.subr.mxu0 %v4961
    %4997 = vmatpush1.msra.mxu0 %v4960
    %4998 = vmatprep.subr.mxu0 0.0
    %4999 = vmatpush1.msra.mxu0 0.0
    %5000 = vmatprep.subr.mxu0 0.0
    %5001 = vmatpush1.msra.mxu0 0.0
    %5002 = vmatprep.subr.mxu0 0.0
    %5003 = vmatpush1.msra.mxu0 0.0
    %5004 = vmatprep.subr.mxu0 0.0
    %5005 = vmatpush1.msra.mxu0 0.0
    %5006 = vmatprep.subr.mxu0 0.0
    %5007 = vmatpush1.msra.mxu0 0.0
    %5008 = vmatprep.subr.mxu0 0.0
    %5009 = vmatpush1.msra.mxu0 0.0
    %5010 = vmatprep.subr.mxu0 0.0
    %5011 = vmatpush1.msra.mxu0 0.0
    %5012 = vmatprep.subr.mxu0 0.0
    %5013 = vmatpush1.msra.mxu0 0.0
    %5014 = vmatprep.subr.mxu0 0.0
    %5015 = vmatpush1.msra.mxu0 0.0
    %5016 = vmatprep.subr.mxu0 0.0
    %5017 = vmatpush1.msra.mxu0 0.0
    %5018 = vmatprep.subr.mxu0 0.0
    %5019 = vmatpush1.msra.mxu0 0.0
    %5020 = vmatprep.subr.mxu0 0.0
    %5021 = vmatpush1.msra.mxu0 0.0
    %5022 = vmatprep.subr.mxu0 0.0
    %5023 = vmatpush1.msra.mxu0 0.0
    %5024 = vmatprep.subr.mxu0 0.0
    %5025 = vmatpush1.msra.mxu0 0.0
    %5026 = vmatprep.subr.mxu0 0.0
    %5027 = vmatpush1.msra.mxu0 0.0
    %5028 = vmatprep.subr.mxu0 0.0
    %5029 = vmatpush1.msra.mxu0 0.0
    %5030 = vmatprep.subr.mxu0 0.0
    %5031 = vmatpush1.msra.mxu0 0.0
    %5032 = vmatprep.subr.mxu0 0.0
    %5033 = vmatpush1.msra.mxu0 0.0
    %5034 = vmatprep.subr.mxu0 0.0
    %5035 = vmatpush1.msra.mxu0 0.0
    %5036 = vmatprep.subr.mxu0 0.0
    %5037 = vmatpush1.msra.mxu0 0.0
    %5038 = vmatprep.subr.mxu0 0.0
    %5039 = vmatpush1.msra.mxu0 0.0
    %5040 = vmatprep.subr.mxu0 0.0
    %5041 = vmatpush1.msra.mxu0 0.0
    %5042 = vmatprep.subr.mxu0 0.0
    %5043 = vmatpush1.msra.mxu0 0.0
    %5044 = vmatprep.mubr.f32.mxu0 0.0
    %5045 = vmatmul.mubr.f32.gmra.mrb[0].mxu0 %v4975
    %v5046 = vpop.f32.mrb[0].mxu0
    %v5047 = vadd.f32 %v4967, %v5046
    %v5048 = vpop.f32.mrb[0].mxu0
    %v5049 = vadd.f32 %v4967, %v5048
    %5050 = vmatprep.mubr.f32.mxu0 0.0
    %5051 = vmatmul.mubr.f32.gmra.mrb[0].mxu0 %v4978
    %v5052 = vpop.f32.mrb[0].mxu0
    %v5053 = vadd.f32 %v4972, %v5052
    %v5054 = vpop.f32.mrb[0].mxu0
    %v5055 = vadd.f32 %v4972, %v5054
    %5056 = vdwg.mxu0
    %v5057 = vtanh.pop %v5047
    %v5058 = vtanh.pop %v5049
    %v5059 = vsel %vm2012, %v5047, -inf
    %v5060 = vrot.slane %v5059, 4
    %v5061 = vmax.f32 %v5059, %v5060
    %v5062 = vrot.slane %v5061, 2
    %v5063 = vmax.f32 %v5061, %v5062
    %v5064 = vrot.slane %v5063, 1
    %v5065 = vmax.f32 %v5063, %v5064
    %v5066 = vsel %vm2012, %v5049, -inf
    %v5067 = vrot.slane %v5066, 4
    %v5068 = vmax.f32 %v5066, %v5067
    %v5069 = vrot.slane %v5068, 2
    %v5070 = vmax.f32 %v5068, %v5069
    %v5071 = vrot.slane %v5070, 1
    %v5072 = vmax.f32 %v5070, %v5071
    %v5073 = vsub.f32 %v5047, %v5065
    %v5074 = vsub.f32 %v5049, %v5072
    %v5075 = vmul.f32 %v5073, 1.442695
    %v5076 = vpow.pop %v5075
    %v5077 = vmul.f32 %v5074, 1.442695
    %v5078 = vpow.pop %v5077
    %v5081 = vrot.slane %v5076, 3
    %v5082 = vrot.slane %v5078, 3
    %v5085 = vsel %vm2039, %v5081, 0.0
    %v5086 = vrot.slane %v5085, 4
    %v5087 = vadd.f32 %v5085, %v5086
    %v5088 = vrot.slane %v5087, 2
    %v5089 = vadd.f32 %v5087, %v5088
    %v5090 = vrot.slane %v5089, 1
    %v5091 = vadd.f32 %v5089, %v5090
    %v5092 = vsel %vm2039, %v5082, 0.0
    %v5093 = vrot.slane %v5092, 4
    %v5094 = vadd.f32 %v5092, %v5093
    %v5095 = vrot.slane %v5094, 2
    %v5096 = vadd.f32 %v5094, %v5095
    %v5097 = vrot.slane %v5096, 1
    %v5098 = vadd.f32 %v5096, %v5097
    %v5099 = vrcp.pop %v5091
    %v5100 = vmul.f32 %v5076, %v5099
    %v5101 = vrcp.pop %v5098
    %v5102 = vmul.f32 %v5078, %v5101
    %v5105 = vrot.slane %v5057, 1
    %v5106 = vrot.slane %v5058, 1
    %v5109 = vmul.f32 %v5100, %v5105
    %v5110 = vmul.f32 %v5102, %v5106
    %v5111 = vrot.slane %v5057, 2
    %v5112 = vrot.slane %v5058, 2
    %v5115 = vmul.f32 %v5100, %v5111
    %v5116 = vmul.f32 %v5102, %v5112
    %v5117 = vrot.slane %v5057, 3
    %v5118 = vrot.slane %v5058, 3
    %v5121 = vmul.f32 %v5100, %v5117
    %v5122 = vmul.f32 %v5102, %v5118
    %v5125 = vrot.slane %v5053, 5
    %v5126 = vrot.slane %v5055, 5
    %5129 = vst [vmem:[%s4855 + $0x10] sm:$0x18] %v5125
    %5130 = vst [vmem:[%s4855 + $0x18] sm:$0x18] %v5126
    %v5131 = vmul.f32 %v5053, 8.0
    %v5132 = vmul.f32 %v5055, 8.0
    %v5133 = vadd.f32 %v112, %v5131
    %v5134 = vadd.f32 %v113, %v5132
    %v5135 = vadd.f32 %v114, %v5131
    %v5136 = vadd.f32 %v115, %v5132
    %v5137 = vfloor.f32 %v5133
    %v5138 = vfloor.f32 %v5134
    %v5139 = vfloor.f32 %v5135
    %v5140 = vfloor.f32 %v5136
    %v5141 = vsub.f32 %v5133, %v5137
    %v5142 = vsub.f32 %v5134, %v5138
    %v5143 = vsub.f32 %v5135, %v5139
    %v5144 = vsub.f32 %v5136, %v5140
    %v5145 = vcvt.f32.s32.to.zero.pseudo %v5137
    %v5146 = vcvt.f32.s32.to.zero.pseudo %v5138
    %v5147 = vcvt.f32.s32.to.zero.pseudo %v5139
    %v5148 = vcvt.f32.s32.to.zero.pseudo %v5140
    %v5149 = vlaneseq
    %v5150 = vshrl.u32 %v5149, 7
    %v5151 = vsub.s32 0, %v5150
    %v5152 = vrot.slane %v5145, %v5151
    %v5153 = vlaneseq
    %v5154 = vshrl.u32 %v5153, 7
    %v5155 = vsub.s32 0, %v5154
    %v5156 = vrot.slane %v5146, %v5155
    %vm5157 = vcmp.eq.s32.totalorder %v117, %v5152
    %vm5158 = vcmp.eq.s32.totalorder %v117, %v5156
    %vm5159 = vcmp.eq.s32.totalorder %v118, %v5152
    %vm5160 = vcmp.eq.s32.totalorder %v118, %v5156
    %v5161 = vsub.f32 1.0, %v5141
    %v5162 = vsub.f32 1.0, %v5142
    %v5163 = vlaneseq
    %v5164 = vshrl.u32 %v5163, 7
    %v5165 = vsub.s32 0, %v5164
    %v5166 = vrot.slane %v5161, %v5165
    %v5167 = vlaneseq
    %v5168 = vshrl.u32 %v5167, 7
    %v5169 = vsub.s32 0, %v5168
    %v5170 = vrot.slane %v5162, %v5169
    %v5171 = vsel %vm5157, %v5166, 0.0
    %v5172 = vsel %vm5158, %v5170, 0.0
    %v5173 = vsel %vm5159, %v5166, 0.0
    %v5174 = vsel %vm5160, %v5170, 0.0
    %v5175 = vadd.s32 %v5145, 1
    %v5176 = vadd.s32 %v5146, 1
    %v5177 = vlaneseq
    %v5178 = vshrl.u32 %v5177, 7
    %v5179 = vsub.s32 0, %v5178
    %v5180 = vrot.slane %v5175, %v5179
    %v5181 = vlaneseq
    %v5182 = vshrl.u32 %v5181, 7
    %v5183 = vsub.s32 0, %v5182
    %v5184 = vrot.slane %v5176, %v5183
    %vm5185 = vcmp.eq.s32.totalorder %v117, %v5180
    %vm5186 = vcmp.eq.s32.totalorder %v117, %v5184
    %vm5187 = vcmp.eq.s32.totalorder %v118, %v5180
    %vm5188 = vcmp.eq.s32.totalorder %v118, %v5184
    %v5189 = vlaneseq
    %v5190 = vshrl.u32 %v5189, 7
    %v5191 = vsub.s32 0, %v5190
    %v5192 = vrot.slane %v5141, %v5191
    %v5193 = vlaneseq
    %v5194 = vshrl.u32 %v5193, 7
    %v5195 = vsub.s32 0, %v5194
    %v5196 = vrot.slane %v5142, %v5195
    %v5197 = vsel %vm5185, %v5192, 0.0
    %v5198 = vsel %vm5186, %v5196, 0.0
    %v5199 = vsel %vm5187, %v5192, 0.0
    %v5200 = vsel %vm5188, %v5196, 0.0
    %v5201 = vadd.f32 %v5171, %v5197
    %v5202 = vadd.f32 %v5172, %v5198
    %v5203 = vadd.f32 %v5173, %v5199
    %v5204 = vadd.f32 %v5174, %v5200
    %v5205 = vlaneseq
    %v5206 = vshrl.u32 %v5205, 7
    %v5207 = vsub.s32 1, %v5206
    %v5208 = vrot.slane %v5147, %v5207
    %v5209 = vlaneseq
    %v5210 = vshrl.u32 %v5209, 7
    %v5211 = vsub.s32 1, %v5210
    %v5212 = vrot.slane %v5148, %v5211
    %vm5213 = vcmp.eq.s32.totalorder %v117, %v5208
    %vm5214 = vcmp.eq.s32.totalorder %v117, %v5212
    %vm5215 = vcmp.eq.s32.totalorder %v118, %v5208
    %vm5216 = vcmp.eq.s32.totalorder %v118, %v5212
    %v5217 = vsub.f32 1.0, %v5143
    %v5218 = vsub.f32 1.0, %v5144
    %v5219 = vlaneseq
    %v5220 = vshrl.u32 %v5219, 7
    %v5221 = vsub.s32 1, %v5220
    %v5222 = vrot.slane %v5217, %v5221
    %v5223 = vlaneseq
    %v5224 = vshrl.u32 %v5223, 7
    %v5225 = vsub.s32 1, %v5224
    %v5226 = vrot.slane %v5218, %v5225
    %v5227 = vsel %vm5213, %v5222, 0.0
    %v5228 = vsel %vm5214, %v5226, 0.0
    %v5229 = vsel %vm5215, %v5222, 0.0
    %v5230 = vsel %vm5216, %v5226, 0.0
    %v5231 = vadd.s32 %v5147, 1
    %v5232 = vadd.s32 %v5148, 1
    %v5233 = vlaneseq
    %v5234 = vshrl.u32 %v5233, 7
    %v5235 = vsub.s32 1, %v5234
    %v5236 = vrot.slane %v5231, %v5235
    %v5237 = vlaneseq
    %v5238 = vshrl.u32 %v5237, 7
    %v5239 = vsub.s32 1, %v5238
    %v5240 = vrot.slane %v5232, %v5239
    %vm5241 = vcmp.eq.s32.totalorder %v117, %v5236
    %vm5242 = vcmp.eq.s32.totalorder %v117, %v5240
    %vm5243 = vcmp.eq.s32.totalorder %v118, %v5236
    %vm5244 = vcmp.eq.s32.totalorder %v118, %v5240
    %v5245 = vlaneseq
    %v5246 = vshrl.u32 %v5245, 7
    %v5247 = vsub.s32 1, %v5246
    %v5248 = vrot.slane %v5143, %v5247
    %v5249 = vlaneseq
    %v5250 = vshrl.u32 %v5249, 7
    %v5251 = vsub.s32 1, %v5250
    %v5252 = vrot.slane %v5144, %v5251
    %v5253 = vsel %vm5241, %v5248, 0.0
    %v5254 = vsel %vm5242, %v5252, 0.0
    %v5255 = vsel %vm5243, %v5248, 0.0
    %v5256 = vsel %vm5244, %v5252, 0.0
    %v5257 = vadd.f32 %v5227, %v5253
    %v5258 = vadd.f32 %v5228, %v5254
    %v5259 = vadd.f32 %v5229, %v5255
    %v5260 = vadd.f32 %v5230, %v5256
    %s5261 = scalar_lea.vmem %s1, 16
    %v5262 = vld [vmem:[%s5261] sm:$0x77]
    %s5263 = scalar_lea.vmem %s2, 96
    %v5264 = vld [vmem:[%s5263] sm:$0xff]
    %v5265 = vld [vmem:[%s5263 + $0x8] sm:$0xff]
    %v5267 = vsel %vm1498, %v5264, 0
    %v5270 = vsel %vm1498, %v5265, 0
    %5272 = vmatprep.subr.mxu0 %v5202
    %5273 = vmatpush1.msra.mxu0 %v5201
    %5274 = vmatprep.subr.mxu0 %v5204
    %5275 = vmatpush1.msra.mxu0 %v5203
    %5276 = vmatprep.subr.mxu0 0.0
    %5277 = vmatpush1.msra.mxu0 0.0
    %5278 = vmatprep.subr.mxu0 0.0
    %5279 = vmatpush1.msra.mxu0 0.0
    %5280 = vmatprep.subr.mxu0 0.0
    %5281 = vmatpush1.msra.mxu0 0.0
    %5282 = vmatprep.subr.mxu0 0.0
    %5283 = vmatpush1.msra.mxu0 0.0
    %5284 = vmatprep.subr.mxu0 0.0
    %5285 = vmatpush1.msra.mxu0 0.0
    %5286 = vmatprep.subr.mxu0 0.0
    %5287 = vmatpush1.msra.mxu0 0.0
    %5288 = vmatprep.subr.mxu0 0.0
    %5289 = vmatpush1.msra.mxu0 0.0
    %5290 = vmatprep.subr.mxu0 0.0
    %5291 = vmatpush1.msra.mxu0 0.0
    %5292 = vmatprep.subr.mxu0 0.0
    %5293 = vmatpush1.msra.mxu0 0.0
    %5294 = vmatprep.subr.mxu0 0.0
    %5295 = vmatpush1.msra.mxu0 0.0
    %5296 = vmatprep.subr.mxu0 0.0
    %5297 = vmatpush1.msra.mxu0 0.0
    %5298 = vmatprep.subr.mxu0 0.0
    %5299 = vmatpush1.msra.mxu0 0.0
    %5300 = vmatprep.subr.mxu0 0.0
    %5301 = vmatpush1.msra.mxu0 0.0
    %5302 = vmatprep.subr.mxu0 0.0
    %5303 = vmatpush1.msra.mxu0 0.0
    %5304 = vmatprep.subr.mxu0 0.0
    %5305 = vmatpush1.msra.mxu0 0.0
    %5306 = vmatprep.subr.mxu0 0.0
    %5307 = vmatpush1.msra.mxu0 0.0
    %5308 = vmatprep.subr.mxu0 0.0
    %5309 = vmatpush1.msra.mxu0 0.0
    %5310 = vmatprep.subr.mxu0 0.0
    %5311 = vmatpush1.msra.mxu0 0.0
    %5312 = vmatprep.subr.mxu0 0.0
    %5313 = vmatpush1.msra.mxu0 0.0
    %5314 = vmatprep.subr.mxu0 0.0
    %5315 = vmatpush1.msra.mxu0 0.0
    %5316 = vmatprep.subr.mxu0 0.0
    %5317 = vmatpush1.msra.mxu0 0.0
    %5318 = vmatprep.subr.mxu0 0.0
    %5319 = vmatpush1.msra.mxu0 0.0
    %5320 = vmatprep.subr.mxu0 0.0
    %5321 = vmatpush1.msra.mxu0 0.0
    %5322 = vmatprep.subr.mxu0 0.0
    %5323 = vmatpush1.msra.mxu0 0.0
    %5324 = vmatprep.subr.mxu0 0.0
    %5325 = vmatpush1.msra.mxu0 0.0
    %5326 = vmatprep.subr.mxu0 0.0
    %5327 = vmatpush1.msra.mxu0 0.0
    %5328 = vmatprep.subr.mxu0 0.0
    %5329 = vmatpush1.msra.mxu0 0.0
    %5330 = vmatprep.subr.mxu0 0.0
    %5331 = vmatpush1.msra.mxu0 0.0
    %5332 = vmatprep.subr.mxu0 0.0
    %5333 = vmatpush1.msra.mxu0 0.0
    %5334 = vmatprep.subr.mxu0 0.0
    %5335 = vmatpush1.msra.mxu0 0.0
    %5336 = vmatprep.mubr.f32.mxu0 0.0
    %5337 = vmatmul.mubr.f32.gmra.mrb[0].mxu0 %v5267
    %v5338 = vpop.f32.mrb[0].mxu0
    %v5339 = vadd.f32 0.0, %v5338
    %v5340 = vpop.f32.mrb[0].mxu0
    %v5341 = vadd.f32 0.0, %v5340
    %5342 = vmatprep.mubr.f32.mxu0 0.0
    %5343 = vmatmul.mubr.f32.gmra.mrb[0].mxu0 %v5270
    %v5344 = vpop.f32.mrb[0].mxu0
    %v5345 = vadd.f32 0.0, %v5344
    %v5346 = vpop.f32.mrb[0].mxu0
    %v5347 = vadd.f32 0.0, %v5346
    %5348 = vdwg.mxu0
    %v5349 = vmul.f32 %v5257, %v5339
    %v5350 = vmul.f32 %v5258, %v5341
    %v5351 = vmul.f32 %v5259, %v5345
    %v5352 = vmul.f32 %v5260, %v5347
    %v5353 = vadd.f32 %v5349, %v5351
    %v5354 = vrot.slane %v5353, 4
    %v5355 = vadd.f32 %v5353, %v5354
    %v5356 = vrot.slane %v5355, 2
    %v5357 = vadd.f32 %v5355, %v5356
    %v5358 = vrot.slane %v5357, 1
    %v5359 = vadd.f32 %v5357, %v5358
    %v5360 = vadd.f32 %v5350, %v5352
    %v5361 = vrot.slane %v5360, 4
    %v5362 = vadd.f32 %v5360, %v5361
    %v5363 = vrot.slane %v5362, 2
    %v5364 = vadd.f32 %v5362, %v5363
    %v5365 = vrot.slane %v5364, 1
    %v5366 = vadd.f32 %v5364, %v5365
    %v5369 = vcombine.low %v5359, %v5366
    %v5371 = vunpack.c.l.s4 1966171168
    %v5372 = vunpack.c.0.s8 %v5371
    %v5373 = vlaneseq
    %v5374 = vshrl.u32 %v5373, 7
    %v5375 = vsub.s32 %v5372, %v5374
    %v5376 = vrot.slane %v5369, %v5375
    %v5378 = vunpack.c.l.s4 1966171168
    %v5379 = vunpack.c.0.s8 %v5378
    %v5380 = vlaneseq
    %v5381 = vshrl.u32 %v5380, 7
    %v5382 = vsub.s32 %v5379, %v5381
    %v5383 = vrot.slane %v5376, %v5382
    %s5385 = scalar_lea.vmem %s4855, 23
    %5386 = vst.msk [vmem:[%s5385] ss:$8 sm:$0x3] %vm2341, %v5383
    %5387 = vst.msk [vmem:[%s5385] ss:$8 sm:$0x0] %vm2341, %v5383
    %v5389 = vlaneseq
    %v5390 = vshrl.u32 %v5389, 7
    %v5391 = vsub.s32 0, %v5390
    %v5392 = vrot.slane %v5262, %v5391
    %v5393 = vlaneseq
    %v5394 = vshrl.u32 %v5393, 7
    %v5395 = vsub.s32 4, %v5394
    %v5396 = vrot.slane %v5262, %v5395
    %v5399 = vmul.f32 %v5100, %v5392
    %v5400 = vmul.f32 %v5102, %v5396
    %v5403 = vrot.slane %v5399, 4
    %v5404 = vrot.slane %v5400, 4
    %v5407 = vadd.f32 %v5109, %v5403
    %v5408 = vadd.f32 %v5110, %v5404
    %v5409 = vmul.f32 %v5100, %v5359
    %v5410 = vmul.f32 %v5102, %v5366
    %v5413 = vrot.slane %v5409, 6
    %v5414 = vrot.slane %v5410, 6
    %v5417 = vadd.f32 %v5407, %v5413
    %v5418 = vadd.f32 %v5408, %v5414
    %v5419 = vld [vmem:[%s5263 + $0x10] sm:$0xff]
    %v5420 = vld [vmem:[%s5263 + $0x18] sm:$0xff]
    %v5422 = vsel %vm1498, %v5419, 0
    %v5425 = vsel %vm1498, %v5420, 0
    %5427 = vmatprep.subr.mxu0 %v5202
    %5428 = vmatpush1.msra.mxu0 %v5201
    %5429 = vmatprep.subr.mxu0 %v5204
    %5430 = vmatpush1.msra.mxu0 %v5203
    %5431 = vmatprep.subr.mxu0 0.0
    %5432 = vmatpush1.msra.mxu0 0.0
    %5433 = vmatprep.subr.mxu0 0.0
    %5434 = vmatpush1.msra.mxu0 0.0
    %5435 = vmatprep.subr.mxu0 0.0
    %5436 = vmatpush1.msra.mxu0 0.0
    %5437 = vmatprep.subr.mxu0 0.0
    %5438 = vmatpush1.msra.mxu0 0.0
    %5439 = vmatprep.subr.mxu0 0.0
    %5440 = vmatpush1.msra.mxu0 0.0
    %5441 = vmatprep.subr.mxu0 0.0
    %5442 = vmatpush1.msra.mxu0 0.0
    %5443 = vmatprep.subr.mxu0 0.0
    %5444 = vmatpush1.msra.mxu0 0.0
    %5445 = vmatprep.subr.mxu0 0.0
    %5446 = vmatpush1.msra.mxu0 0.0
    %5447 = vmatprep.subr.mxu0 0.0
    %5448 = vmatpush1.msra.mxu0 0.0
    %5449 = vmatprep.subr.mxu0 0.0
    %5450 = vmatpush1.msra.mxu0 0.0
    %5451 = vmatprep.subr.mxu0 0.0
    %5452 = vmatpush1.msra.mxu0 0.0
    %5453 = vmatprep.subr.mxu0 0.0
    %5454 = vmatpush1.msra.mxu0 0.0
    %5455 = vmatprep.subr.mxu0 0.0
    %5456 = vmatpush1.msra.mxu0 0.0
    %5457 = vmatprep.subr.mxu0 0.0
    %5458 = vmatpush1.msra.mxu0 0.0
    %5459 = vmatprep.subr.mxu0 0.0
    %5460 = vmatpush1.msra.mxu0 0.0
    %5461 = vmatprep.subr.mxu0 0.0
    %5462 = vmatpush1.msra.mxu0 0.0
    %5463 = vmatprep.subr.mxu0 0.0
    %5464 = vmatpush1.msra.mxu0 0.0
    %5465 = vmatprep.subr.mxu0 0.0
    %5466 = vmatpush1.msra.mxu0 0.0
    %5467 = vmatprep.subr.mxu0 0.0
    %5468 = vmatpush1.msra.mxu0 0.0
    %5469 = vmatprep.subr.mxu0 0.0
    %5470 = vmatpush1.msra.mxu0 0.0
    %5471 = vmatprep.subr.mxu0 0.0
    %5472 = vmatpush1.msra.mxu0 0.0
    %5473 = vmatprep.subr.mxu0 0.0
    %5474 = vmatpush1.msra.mxu0 0.0
    %5475 = vmatprep.subr.mxu0 0.0
    %5476 = vmatpush1.msra.mxu0 0.0
    %5477 = vmatprep.subr.mxu0 0.0
    %5478 = vmatpush1.msra.mxu0 0.0
    %5479 = vmatprep.subr.mxu0 0.0
    %5480 = vmatpush1.msra.mxu0 0.0
    %5481 = vmatprep.subr.mxu0 0.0
    %5482 = vmatpush1.msra.mxu0 0.0
    %5483 = vmatprep.subr.mxu0 0.0
    %5484 = vmatpush1.msra.mxu0 0.0
    %5485 = vmatprep.subr.mxu0 0.0
    %5486 = vmatpush1.msra.mxu0 0.0
    %5487 = vmatprep.subr.mxu0 0.0
    %5488 = vmatpush1.msra.mxu0 0.0
    %5489 = vmatprep.subr.mxu0 0.0
    %5490 = vmatpush1.msra.mxu0 0.0
    %5491 = vmatprep.mubr.f32.mxu0 0.0
    %5492 = vmatmul.mubr.f32.gmra.mrb[0].mxu0 %v5422
    %v5493 = vpop.f32.mrb[0].mxu0
    %v5494 = vadd.f32 0.0, %v5493
    %v5495 = vpop.f32.mrb[0].mxu0
    %v5496 = vadd.f32 0.0, %v5495
    %5497 = vmatprep.mubr.f32.mxu0 0.0
    %5498 = vmatmul.mubr.f32.gmra.mrb[0].mxu0 %v5425
    %v5499 = vpop.f32.mrb[0].mxu0
    %v5500 = vadd.f32 0.0, %v5499
    %v5501 = vpop.f32.mrb[0].mxu0
    %v5502 = vadd.f32 0.0, %v5501
    %5503 = vdwg.mxu0
    %v5504 = vmul.f32 %v5257, %v5494
    %v5505 = vmul.f32 %v5258, %v5496
    %v5506 = vmul.f32 %v5259, %v5500
    %v5507 = vmul.f32 %v5260, %v5502
    %v5508 = vadd.f32 %v5504, %v5506
    %v5509 = vrot.slane %v5508, 4
    %v5510 = vadd.f32 %v5508, %v5509
    %v5511 = vrot.slane %v5510, 2
    %v5512 = vadd.f32 %v5510, %v5511
    %v5513 = vrot.slane %v5512, 1
    %v5514 = vadd.f32 %v5512, %v5513
    %v5515 = vadd.f32 %v5505, %v5507
    %v5516 = vrot.slane %v5515, 4
    %v5517 = vadd.f32 %v5515, %v5516
    %v5518 = vrot.slane %v5517, 2
    %v5519 = vadd.f32 %v5517, %v5518
    %v5520 = vrot.slane %v5519, 1
    %v5521 = vadd.f32 %v5519, %v5520
    %v5524 = vcombine.low %v5514, %v5521
    %v5526 = vunpack.c.l.s4 1966171168
    %v5527 = vunpack.c.0.s8 %v5526
    %v5528 = vlaneseq
    %v5529 = vshrl.u32 %v5528, 7
    %v5530 = vsub.s32 %v5527, %v5529
    %v5531 = vrot.slane %v5524, %v5530
    %v5533 = vunpack.c.l.s4 1966171168
    %v5534 = vunpack.c.0.s8 %v5533
    %v5535 = vlaneseq
    %v5536 = vshrl.u32 %v5535, 7
    %v5537 = vsub.s32 %v5534, %v5536
    %v5538 = vrot.slane %v5531, %v5537
    %s5540 = scalar_lea.vmem %s4855, 32
    %5541 = vst.msk [vmem:[%s5540] ss:$8 sm:$0x3] %vm2341, %v5538
    %5542 = vst.msk [vmem:[%s5540] ss:$8 sm:$0x0] %vm2341, %v5538
    %v5543 = vlaneseq
    %v5544 = vshrl.u32 %v5543, 7
    %v5545 = vsub.s32 1, %v5544
    %v5546 = vrot.slane %v5262, %v5545
    %v5547 = vlaneseq
    %v5548 = vshrl.u32 %v5547, 7
    %v5549 = vsub.s32 5, %v5548
    %v5550 = vrot.slane %v5262, %v5549
    %v5553 = vmul.f32 %v5100, %v5546
    %v5554 = vmul.f32 %v5102, %v5550
    %v5557 = vrot.slane %v5553, 4
    %v5558 = vrot.slane %v5554, 4
    %v5561 = vadd.f32 %v5115, %v5557
    %v5562 = vadd.f32 %v5116, %v5558
    %v5563 = vmul.f32 %v5100, %v5514
    %v5564 = vmul.f32 %v5102, %v5521
    %v5567 = vrot.slane %v5563, 6
    %v5568 = vrot.slane %v5564, 6
    %v5571 = vadd.f32 %v5561, %v5567
    %v5572 = vadd.f32 %v5562, %v5568
    %v5573 = vld [vmem:[%s5263 + $0x20] sm:$0xff]
    %v5574 = vld [vmem:[%s5263 + $0x28] sm:$0xff]
    %v5576 = vsel %vm1498, %v5573, 0
    %v5579 = vsel %vm1498, %v5574, 0
    %5581 = vmatprep.subr.mxu0 %v5202
    %5582 = vmatpush1.msra.mxu0 %v5201
    %5583 = vmatprep.subr.mxu0 %v5204
    %5584 = vmatpush1.msra.mxu0 %v5203
    %5585 = vmatprep.subr.mxu0 0.0
    %5586 = vmatpush1.msra.mxu0 0.0
    %5587 = vmatprep.subr.mxu0 0.0
    %5588 = vmatpush1.msra.mxu0 0.0
    %5589 = vmatprep.subr.mxu0 0.0
    %5590 = vmatpush1.msra.mxu0 0.0
    %5591 = vmatprep.subr.mxu0 0.0
    %5592 = vmatpush1.msra.mxu0 0.0
    %5593 = vmatprep.subr.mxu0 0.0
    %5594 = vmatpush1.msra.mxu0 0.0
    %5595 = vmatprep.subr.mxu0 0.0
    %5596 = vmatpush1.msra.mxu0 0.0
    %5597 = vmatprep.subr.mxu0 0.0
    %5598 = vmatpush1.msra.mxu0 0.0
    %5599 = vmatprep.subr.mxu0 0.0
    %5600 = vmatpush1.msra.mxu0 0.0
    %5601 = vmatprep.subr.mxu0 0.0
    %5602 = vmatpush1.msra.mxu0 0.0
    %5603 = vmatprep.subr.mxu0 0.0
    %5604 = vmatpush1.msra.mxu0 0.0
    %5605 = vmatprep.subr.mxu0 0.0
    %5606 = vmatpush1.msra.mxu0 0.0
    %5607 = vmatprep.subr.mxu0 0.0
    %5608 = vmatpush1.msra.mxu0 0.0
    %5609 = vmatprep.subr.mxu0 0.0
    %5610 = vmatpush1.msra.mxu0 0.0
    %5611 = vmatprep.subr.mxu0 0.0
    %5612 = vmatpush1.msra.mxu0 0.0
    %5613 = vmatprep.subr.mxu0 0.0
    %5614 = vmatpush1.msra.mxu0 0.0
    %5615 = vmatprep.subr.mxu0 0.0
    %5616 = vmatpush1.msra.mxu0 0.0
    %5617 = vmatprep.subr.mxu0 0.0
    %5618 = vmatpush1.msra.mxu0 0.0
    %5619 = vmatprep.subr.mxu0 0.0
    %5620 = vmatpush1.msra.mxu0 0.0
    %5621 = vmatprep.subr.mxu0 0.0
    %5622 = vmatpush1.msra.mxu0 0.0
    %5623 = vmatprep.subr.mxu0 0.0
    %5624 = vmatpush1.msra.mxu0 0.0
    %5625 = vmatprep.subr.mxu0 0.0
    %5626 = vmatpush1.msra.mxu0 0.0
    %5627 = vmatprep.subr.mxu0 0.0
    %5628 = vmatpush1.msra.mxu0 0.0
    %5629 = vmatprep.subr.mxu0 0.0
    %5630 = vmatpush1.msra.mxu0 0.0
    %5631 = vmatprep.subr.mxu0 0.0
    %5632 = vmatpush1.msra.mxu0 0.0
    %5633 = vmatprep.subr.mxu0 0.0
    %5634 = vmatpush1.msra.mxu0 0.0
    %5635 = vmatprep.subr.mxu0 0.0
    %5636 = vmatpush1.msra.mxu0 0.0
    %5637 = vmatprep.subr.mxu0 0.0
    %5638 = vmatpush1.msra.mxu0 0.0
    %5639 = vmatprep.subr.mxu0 0.0
    %5640 = vmatpush1.msra.mxu0 0.0
    %5641 = vmatprep.subr.mxu0 0.0
    %5642 = vmatpush1.msra.mxu0 0.0
    %5643 = vmatprep.subr.mxu0 0.0
    %5644 = vmatpush1.msra.mxu0 0.0
    %5645 = vmatprep.mubr.f32.mxu0 0.0
    %5646 = vmatmul.mubr.f32.gmra.mrb[0].mxu0 %v5576
    %v5647 = vpop.f32.mrb[0].mxu0
    %v5648 = vadd.f32 0.0, %v5647
    %v5649 = vpop.f32.mrb[0].mxu0
    %v5650 = vadd.f32 0.0, %v5649
    %5651 = vmatprep.mubr.f32.mxu0 0.0
    %5652 = vmatmul.mubr.f32.gmra.mrb[0].mxu0 %v5579
    %v5653 = vpop.f32.mrb[0].mxu0
    %v5654 = vadd.f32 0.0, %v5653
    %v5655 = vpop.f32.mrb[0].mxu0
    %v5656 = vadd.f32 0.0, %v5655
    %5657 = vdwg.mxu0
    %v5658 = vmul.f32 %v5257, %v5648
    %v5659 = vmul.f32 %v5258, %v5650
    %v5660 = vmul.f32 %v5259, %v5654
    %v5661 = vmul.f32 %v5260, %v5656
    %v5662 = vadd.f32 %v5658, %v5660
    %v5663 = vrot.slane %v5662, 4
    %v5664 = vadd.f32 %v5662, %v5663
    %v5665 = vrot.slane %v5664, 2
    %v5666 = vadd.f32 %v5664, %v5665
    %v5667 = vrot.slane %v5666, 1
    %v5668 = vadd.f32 %v5666, %v5667
    %v5669 = vadd.f32 %v5659, %v5661
    %v5670 = vrot.slane %v5669, 4
    %v5671 = vadd.f32 %v5669, %v5670
    %v5672 = vrot.slane %v5671, 2
    %v5673 = vadd.f32 %v5671, %v5672
    %v5674 = vrot.slane %v5673, 1
    %v5675 = vadd.f32 %v5673, %v5674
    %v5678 = vcombine.low %v5668, %v5675
    %v5680 = vunpack.c.l.s4 1966171168
    %v5681 = vunpack.c.0.s8 %v5680
    %v5682 = vlaneseq
    %v5683 = vshrl.u32 %v5682, 7
    %v5684 = vsub.s32 %v5681, %v5683
    %v5685 = vrot.slane %v5678, %v5684
    %v5687 = vunpack.c.l.s4 1966171168
    %v5688 = vunpack.c.0.s8 %v5687
    %v5689 = vlaneseq
    %v5690 = vshrl.u32 %v5689, 7
    %v5691 = vsub.s32 %v5688, %v5690
    %v5692 = vrot.slane %v5685, %v5691
    %s5694 = scalar_lea.vmem %s4855, 33
    %5695 = vst.msk [vmem:[%s5694] ss:$8 sm:$0x3] %vm2341, %v5692
    %5696 = vst.msk [vmem:[%s5694] ss:$8 sm:$0x0] %vm2341, %v5692
    %v5697 = vlaneseq
    %v5698 = vshrl.u32 %v5697, 7
    %v5699 = vsub.s32 2, %v5698
    %v5700 = vrot.slane %v5262, %v5699
    %v5701 = vlaneseq
    %v5702 = vshrl.u32 %v5701, 7
    %v5703 = vsub.s32 6, %v5702
    %v5704 = vrot.slane %v5262, %v5703
    %v5707 = vmul.f32 %v5100, %v5700
    %v5708 = vmul.f32 %v5102, %v5704
    %v5711 = vrot.slane %v5707, 4
    %v5712 = vrot.slane %v5708, 4
    %v5715 = vadd.f32 %v5121, %v5711
    %v5716 = vadd.f32 %v5122, %v5712
    %v5717 = vmul.f32 %v5100, %v5668
    %v5718 = vmul.f32 %v5102, %v5675
    %v5721 = vrot.slane %v5717, 6
    %v5722 = vrot.slane %v5718, 6
    %v5725 = vadd.f32 %v5715, %v5721
    %v5726 = vadd.f32 %v5716, %v5722
    %5727 = vst [vmem:[%s4855 + $0x10] sm:$0x60] %v5125
    %5728 = vst [vmem:[%s4855 + $0x18] sm:$0x60] %v5126
    %v5729 = vlaneseq
    %v5730 = vshrl.u32 %v5729, 7
    %v5731 = vsub.s32 2, %v5730
    %v5732 = vrot.slane %v5145, %v5731
    %v5733 = vlaneseq
    %v5734 = vshrl.u32 %v5733, 7
    %v5735 = vsub.s32 2, %v5734
    %v5736 = vrot.slane %v5146, %v5735
    %vm5737 = vcmp.eq.s32.totalorder %v117, %v5732
    %vm5738 = vcmp.eq.s32.totalorder %v117, %v5736
    %vm5739 = vcmp.eq.s32.totalorder %v118, %v5732
    %vm5740 = vcmp.eq.s32.totalorder %v118, %v5736
    %v5741 = vlaneseq
    %v5742 = vshrl.u32 %v5741, 7
    %v5743 = vsub.s32 2, %v5742
    %v5744 = vrot.slane %v5161, %v5743
    %v5745 = vlaneseq
    %v5746 = vshrl.u32 %v5745, 7
    %v5747 = vsub.s32 2, %v5746
    %v5748 = vrot.slane %v5162, %v5747
    %v5749 = vsel %vm5737, %v5744, 0.0
    %v5750 = vsel %vm5738, %v5748, 0.0
    %v5751 = vsel %vm5739, %v5744, 0.0
    %v5752 = vsel %vm5740, %v5748, 0.0
    %v5753 = vlaneseq
    %v5754 = vshrl.u32 %v5753, 7
    %v5755 = vsub.s32 2, %v5754
    %v5756 = vrot.slane %v5175, %v5755
    %v5757 = vlaneseq
    %v5758 = vshrl.u32 %v5757, 7
    %v5759 = vsub.s32 2, %v5758
    %v5760 = vrot.slane %v5176, %v5759
    %vm5761 = vcmp.eq.s32.totalorder %v117, %v5756
    %vm5762 = vcmp.eq.s32.totalorder %v117, %v5760
    %vm5763 = vcmp.eq.s32.totalorder %v118, %v5756
    %vm5764 = vcmp.eq.s32.totalorder %v118, %v5760
    %v5765 = vlaneseq
    %v5766 = vshrl.u32 %v5765, 7
    %v5767 = vsub.s32 2, %v5766
    %v5768 = vrot.slane %v5141, %v5767
    %v5769 = vlaneseq
    %v5770 = vshrl.u32 %v5769, 7
    %v5771 = vsub.s32 2, %v5770
    %v5772 = vrot.slane %v5142, %v5771
    %v5773 = vsel %vm5761, %v5768, 0.0
    %v5774 = vsel %vm5762, %v5772, 0.0
    %v5775 = vsel %vm5763, %v5768, 0.0
    %v5776 = vsel %vm5764, %v5772, 0.0
    %v5777 = vadd.f32 %v5749, %v5773
    %v5778 = vadd.f32 %v5750, %v5774
    %v5779 = vadd.f32 %v5751, %v5775
    %v5780 = vadd.f32 %v5752, %v5776
    %v5781 = vlaneseq
    %v5782 = vshrl.u32 %v5781, 7
    %v5783 = vsub.s32 3, %v5782
    %v5784 = vrot.slane %v5147, %v5783
    %v5785 = vlaneseq
    %v5786 = vshrl.u32 %v5785, 7
    %v5787 = vsub.s32 3, %v5786
    %v5788 = vrot.slane %v5148, %v5787
    %vm5789 = vcmp.eq.s32.totalorder %v117, %v5784
    %vm5790 = vcmp.eq.s32.totalorder %v117, %v5788
    %vm5791 = vcmp.eq.s32.totalorder %v118, %v5784
    %vm5792 = vcmp.eq.s32.totalorder %v118, %v5788
    %v5793 = vlaneseq
    %v5794 = vshrl.u32 %v5793, 7
    %v5795 = vsub.s32 3, %v5794
    %v5796 = vrot.slane %v5217, %v5795
    %v5797 = vlaneseq
    %v5798 = vshrl.u32 %v5797, 7
    %v5799 = vsub.s32 3, %v5798
    %v5800 = vrot.slane %v5218, %v5799
    %v5801 = vsel %vm5789, %v5796, 0.0
    %v5802 = vsel %vm5790, %v5800, 0.0
    %v5803 = vsel %vm5791, %v5796, 0.0
    %v5804 = vsel %vm5792, %v5800, 0.0
    %v5805 = vlaneseq
    %v5806 = vshrl.u32 %v5805, 7
    %v5807 = vsub.s32 3, %v5806
    %v5808 = vrot.slane %v5231, %v5807
    %v5809 = vlaneseq
    %v5810 = vshrl.u32 %v5809, 7
    %v5811 = vsub.s32 3, %v5810
    %v5812 = vrot.slane %v5232, %v5811
    %vm5813 = vcmp.eq.s32.totalorder %v117, %v5808
    %vm5814 = vcmp.eq.s32.totalorder %v117, %v5812
    %vm5815 = vcmp.eq.s32.totalorder %v118, %v5808
    %vm5816 = vcmp.eq.s32.totalorder %v118, %v5812
    %v5817 = vlaneseq
    %v5818 = vshrl.u32 %v5817, 7
    %v5819 = vsub.s32 3, %v5818
    %v5820 = vrot.slane %v5143, %v5819
    %v5821 = vlaneseq
    %v5822 = vshrl.u32 %v5821, 7
    %v5823 = vsub.s32 3, %v5822
    %v5824 = vrot.slane %v5144, %v5823
    %v5825 = vsel %vm5813, %v5820, 0.0
    %v5826 = vsel %vm5814, %v5824, 0.0
    %v5827 = vsel %vm5815, %v5820, 0.0
    %v5828 = vsel %vm5816, %v5824, 0.0
    %v5829 = vadd.f32 %v5801, %v5825
    %v5830 = vadd.f32 %v5802, %v5826
    %v5831 = vadd.f32 %v5803, %v5827
    %v5832 = vadd.f32 %v5804, %v5828
    %s5833 = scalar_lea.vmem %s1, 24
    %v5834 = vld [vmem:[%s5833] sm:$0x77]
    %s5835 = scalar_lea.vmem %s2, 144
    %v5836 = vld [vmem:[%s5835] sm:$0xff]
    %v5837 = vld [vmem:[%s5835 + $0x8] sm:$0xff]
    %v5839 = vsel %vm1498, %v5836, 0
    %v5842 = vsel %vm1498, %v5837, 0
    %5844 = vmatprep.subr.mxu0 %v5778
    %5845 = vmatpush1.msra.mxu0 %v5777
    %5846 = vmatprep.subr.mxu0 %v5780
    %5847 = vmatpush1.msra.mxu0 %v5779
    %5848 = vmatprep.subr.mxu0 0.0
    %5849 = vmatpush1.msra.mxu0 0.0
    %5850 = vmatprep.subr.mxu0 0.0
    %5851 = vmatpush1.msra.mxu0 0.0
    %5852 = vmatprep.subr.mxu0 0.0
    %5853 = vmatpush1.msra.mxu0 0.0
    %5854 = vmatprep.subr.mxu0 0.0
    %5855 = vmatpush1.msra.mxu0 0.0
    %5856 = vmatprep.subr.mxu0 0.0
    %5857 = vmatpush1.msra.mxu0 0.0
    %5858 = vmatprep.subr.mxu0 0.0
    %5859 = vmatpush1.msra.mxu0 0.0
    %5860 = vmatprep.subr.mxu0 0.0
    %5861 = vmatpush1.msra.mxu0 0.0
    %5862 = vmatprep.subr.mxu0 0.0
    %5863 = vmatpush1.msra.mxu0 0.0
    %5864 = vmatprep.subr.mxu0 0.0
    %5865 = vmatpush1.msra.mxu0 0.0
    %5866 = vmatprep.subr.mxu0 0.0
    %5867 = vmatpush1.msra.mxu0 0.0
    %5868 = vmatprep.subr.mxu0 0.0
    %5869 = vmatpush1.msra.mxu0 0.0
    %5870 = vmatprep.subr.mxu0 0.0
    %5871 = vmatpush1.msra.mxu0 0.0
    %5872 = vmatprep.subr.mxu0 0.0
    %5873 = vmatpush1.msra.mxu0 0.0
    %5874 = vmatprep.subr.mxu0 0.0
    %5875 = vmatpush1.msra.mxu0 0.0
    %5876 = vmatprep.subr.mxu0 0.0
    %5877 = vmatpush1.msra.mxu0 0.0
    %5878 = vmatprep.subr.mxu0 0.0
    %5879 = vmatpush1.msra.mxu0 0.0
    %5880 = vmatprep.subr.mxu0 0.0
    %5881 = vmatpush1.msra.mxu0 0.0
    %5882 = vmatprep.subr.mxu0 0.0
    %5883 = vmatpush1.msra.mxu0 0.0
    %5884 = vmatprep.subr.mxu0 0.0
    %5885 = vmatpush1.msra.mxu0 0.0
    %5886 = vmatprep.subr.mxu0 0.0
    %5887 = vmatpush1.msra.mxu0 0.0
    %5888 = vmatprep.subr.mxu0 0.0
    %5889 = vmatpush1.msra.mxu0 0.0
    %5890 = vmatprep.subr.mxu0 0.0
    %5891 = vmatpush1.msra.mxu0 0.0
    %5892 = vmatprep.subr.mxu0 0.0
    %5893 = vmatpush1.msra.mxu0 0.0
    %5894 = vmatprep.subr.mxu0 0.0
    %5895 = vmatpush1.msra.mxu0 0.0
    %5896 = vmatprep.subr.mxu0 0.0
    %5897 = vmatpush1.msra.mxu0 0.0
    %5898 = vmatprep.subr.mxu0 0.0
    %5899 = vmatpush1.msra.mxu0 0.0
    %5900 = vmatprep.subr.mxu0 0.0
    %5901 = vmatpush1.msra.mxu0 0.0
    %5902 = vmatprep.subr.mxu0 0.0
    %5903 = vmatpush1.msra.mxu0 0.0
    %5904 = vmatprep.subr.mxu0 0.0
    %5905 = vmatpush1.msra.mxu0 0.0
    %5906 = vmatprep.subr.mxu0 0.0
    %5907 = vmatpush1.msra.mxu0 0.0
    %5908 = vmatprep.mubr.f32.mxu0 0.0
    %5909 = vmatmul.mubr.f32.gmra.mrb[0].mxu0 %v5839
    %v5910 = vpop.f32.mrb[0].mxu0
    %v5911 = vadd.f32 0.0, %v5910
    %v5912 = vpop.f32.mrb[0].mxu0
    %v5913 = vadd.f32 0.0, %v5912
    %5914 = vmatprep.mubr.f32.mxu0 0.0
    %5915 = vmatmul.mubr.f32.gmra.mrb[0].mxu0 %v5842
    %v5916 = vpop.f32.mrb[0].mxu0
    %v5917 = vadd.f32 0.0, %v5916
    %v5918 = vpop.f32.mrb[0].mxu0
    %v5919 = vadd.f32 0.0, %v5918
    %5920 = vdwg.mxu0
    %v5921 = vmul.f32 %v5829, %v5911
    %v5922 = vmul.f32 %v5830, %v5913
    %v5923 = vmul.f32 %v5831, %v5917
    %v5924 = vmul.f32 %v5832, %v5919
    %v5925 = vadd.f32 %v5921, %v5923
    %v5926 = vrot.slane %v5925, 4
    %v5927 = vadd.f32 %v5925, %v5926
    %v5928 = vrot.slane %v5927, 2
    %v5929 = vadd.f32 %v5927, %v5928
    %v5930 = vrot.slane %v5929, 1
    %v5931 = vadd.f32 %v5929, %v5930
    %v5932 = vadd.f32 %v5922, %v5924
    %v5933 = vrot.slane %v5932, 4
    %v5934 = vadd.f32 %v5932, %v5933
    %v5935 = vrot.slane %v5934, 2
    %v5936 = vadd.f32 %v5934, %v5935
    %v5937 = vrot.slane %v5936, 1
    %v5938 = vadd.f32 %v5936, %v5937
    %v5941 = vcombine.low %v5931, %v5938
    %v5943 = vunpack.c.l.s4 1966171168
    %v5944 = vunpack.c.0.s8 %v5943
    %v5945 = vlaneseq
    %v5946 = vshrl.u32 %v5945, 7
    %v5947 = vsub.s32 %v5944, %v5946
    %v5948 = vrot.slane %v5941, %v5947
    %v5950 = vunpack.c.l.s4 1966171168
    %v5951 = vunpack.c.0.s8 %v5950
    %v5952 = vlaneseq
    %v5953 = vshrl.u32 %v5952, 7
    %v5954 = vsub.s32 %v5951, %v5953
    %v5955 = vrot.slane %v5948, %v5954
    %s5957 = scalar_lea.vmem %s4855, 34
    %5958 = vst.msk [vmem:[%s5957] ss:$8 sm:$0x3] %vm2341, %v5955
    %5959 = vst.msk [vmem:[%s5957] ss:$8 sm:$0x0] %vm2341, %v5955
    %v5961 = vlaneseq
    %v5962 = vshrl.u32 %v5961, 7
    %v5963 = vsub.s32 0, %v5962
    %v5964 = vrot.slane %v5834, %v5963
    %v5965 = vlaneseq
    %v5966 = vshrl.u32 %v5965, 7
    %v5967 = vsub.s32 4, %v5966
    %v5968 = vrot.slane %v5834, %v5967
    %v5971 = vmul.f32 %v5100, %v5964
    %v5972 = vmul.f32 %v5102, %v5968
    %v5975 = vrot.slane %v5971, 5
    %v5976 = vrot.slane %v5972, 5
    %v5979 = vadd.f32 %v5417, %v5975
    %v5980 = vadd.f32 %v5418, %v5976
    %v5981 = vmul.f32 %v5100, %v5931
    %v5982 = vmul.f32 %v5102, %v5938
    %v5985 = vrot.slane %v5981, 7
    %v5986 = vrot.slane %v5982, 7
    %v5989 = vadd.f32 %v5979, %v5985
    %v5990 = vadd.f32 %v5980, %v5986
    %v5991 = vld [vmem:[%s5835 + $0x10] sm:$0xff]
    %v5992 = vld [vmem:[%s5835 + $0x18] sm:$0xff]
    %v5994 = vsel %vm1498, %v5991, 0
    %v5997 = vsel %vm1498, %v5992, 0
    %5999 = vmatprep.subr.mxu0 %v5778
    %6000 = vmatpush1.msra.mxu0 %v5777
    %6001 = vmatprep.subr.mxu0 %v5780
    %6002 = vmatpush1.msra.mxu0 %v5779
    %6003 = vmatprep.subr.mxu0 0.0
    %6004 = vmatpush1.msra.mxu0 0.0
    %6005 = vmatprep.subr.mxu0 0.0
    %6006 = vmatpush1.msra.mxu0 0.0
    %6007 = vmatprep.subr.mxu0 0.0
    %6008 = vmatpush1.msra.mxu0 0.0
    %6009 = vmatprep.subr.mxu0 0.0
    %6010 = vmatpush1.msra.mxu0 0.0
    %6011 = vmatprep.subr.mxu0 0.0
    %6012 = vmatpush1.msra.mxu0 0.0
    %6013 = vmatprep.subr.mxu0 0.0
    %6014 = vmatpush1.msra.mxu0 0.0
    %6015 = vmatprep.subr.mxu0 0.0
    %6016 = vmatpush1.msra.mxu0 0.0
    %6017 = vmatprep.subr.mxu0 0.0
    %6018 = vmatpush1.msra.mxu0 0.0
    %6019 = vmatprep.subr.mxu0 0.0
    %6020 = vmatpush1.msra.mxu0 0.0
    %6021 = vmatprep.subr.mxu0 0.0
    %6022 = vmatpush1.msra.mxu0 0.0
    %6023 = vmatprep.subr.mxu0 0.0
    %6024 = vmatpush1.msra.mxu0 0.0
    %6025 = vmatprep.subr.mxu0 0.0
    %6026 = vmatpush1.msra.mxu0 0.0
    %6027 = vmatprep.subr.mxu0 0.0
    %6028 = vmatpush1.msra.mxu0 0.0
    %6029 = vmatprep.subr.mxu0 0.0
    %6030 = vmatpush1.msra.mxu0 0.0
    %6031 = vmatprep.subr.mxu0 0.0
    %6032 = vmatpush1.msra.mxu0 0.0
    %6033 = vmatprep.subr.mxu0 0.0
    %6034 = vmatpush1.msra.mxu0 0.0
    %6035 = vmatprep.subr.mxu0 0.0
    %6036 = vmatpush1.msra.mxu0 0.0
    %6037 = vmatprep.subr.mxu0 0.0
    %6038 = vmatpush1.msra.mxu0 0.0
    %6039 = vmatprep.subr.mxu0 0.0
    %6040 = vmatpush1.msra.mxu0 0.0
    %6041 = vmatprep.subr.mxu0 0.0
    %6042 = vmatpush1.msra.mxu0 0.0
    %6043 = vmatprep.subr.mxu0 0.0
    %6044 = vmatpush1.msra.mxu0 0.0
    %6045 = vmatprep.subr.mxu0 0.0
    %6046 = vmatpush1.msra.mxu0 0.0
    %6047 = vmatprep.subr.mxu0 0.0
    %6048 = vmatpush1.msra.mxu0 0.0
    %6049 = vmatprep.subr.mxu0 0.0
    %6050 = vmatpush1.msra.mxu0 0.0
    %6051 = vmatprep.subr.mxu0 0.0
    %6052 = vmatpush1.msra.mxu0 0.0
    %6053 = vmatprep.subr.mxu0 0.0
    %6054 = vmatpush1.msra.mxu0 0.0
    %6055 = vmatprep.subr.mxu0 0.0
    %6056 = vmatpush1.msra.mxu0 0.0
    %6057 = vmatprep.subr.mxu0 0.0
    %6058 = vmatpush1.msra.mxu0 0.0
    %6059 = vmatprep.subr.mxu0 0.0
    %6060 = vmatpush1.msra.mxu0 0.0
    %6061 = vmatprep.subr.mxu0 0.0
    %6062 = vmatpush1.msra.mxu0 0.0
    %6063 = vmatprep.mubr.f32.mxu0 0.0
    %6064 = vmatmul.mubr.f32.gmra.mrb[0].mxu0 %v5994
    %v6065 = vpop.f32.mrb[0].mxu0
    %v6066 = vadd.f32 0.0, %v6065
    %v6067 = vpop.f32.mrb[0].mxu0
    %v6068 = vadd.f32 0.0, %v6067
    %6069 = vmatprep.mubr.f32.mxu0 0.0
    %6070 = vmatmul.mubr.f32.gmra.mrb[0].mxu0 %v5997
    %v6071 = vpop.f32.mrb[0].mxu0
    %v6072 = vadd.f32 0.0, %v6071
    %v6073 = vpop.f32.mrb[0].mxu0
    %v6074 = vadd.f32 0.0, %v6073
    %6075 = vdwg.mxu0
    %v6076 = vmul.f32 %v5829, %v6066
    %v6077 = vmul.f32 %v5830, %v6068
    %v6078 = vmul.f32 %v5831, %v6072
    %v6079 = vmul.f32 %v5832, %v6074
    %v6080 = vadd.f32 %v6076, %v6078
    %v6081 = vrot.slane %v6080, 4
    %v6082 = vadd.f32 %v6080, %v6081
    %v6083 = vrot.slane %v6082, 2
    %v6084 = vadd.f32 %v6082, %v6083
    %v6085 = vrot.slane %v6084, 1
    %v6086 = vadd.f32 %v6084, %v6085
    %v6087 = vadd.f32 %v6077, %v6079
    %v6088 = vrot.slane %v6087, 4
    %v6089 = vadd.f32 %v6087, %v6088
    %v6090 = vrot.slane %v6089, 2
    %v6091 = vadd.f32 %v6089, %v6090
    %v6092 = vrot.slane %v6091, 1
    %v6093 = vadd.f32 %v6091, %v6092
    %v6096 = vcombine.low %v6086, %v6093
    %v6098 = vunpack.c.l.s4 1966171168
    %v6099 = vunpack.c.0.s8 %v6098
    %v6100 = vlaneseq
    %v6101 = vshrl.u32 %v6100, 7
    %v6102 = vsub.s32 %v6099, %v6101
    %v6103 = vrot.slane %v6096, %v6102
    %v6105 = vunpack.c.l.s4 1966171168
    %v6106 = vunpack.c.0.s8 %v6105
    %v6107 = vlaneseq
    %v6108 = vshrl.u32 %v6107, 7
    %v6109 = vsub.s32 %v6106, %v6108
    %v6110 = vrot.slane %v6103, %v6109
    %s6112 = scalar_lea.vmem %s4855, 35
    %6113 = vst.msk [vmem:[%s6112] ss:$8 sm:$0x3] %vm2341, %v6110
    %6114 = vst.msk [vmem:[%s6112] ss:$8 sm:$0x0] %vm2341, %v6110
    %v6115 = vlaneseq
    %v6116 = vshrl.u32 %v6115, 7
    %v6117 = vsub.s32 1, %v6116
    %v6118 = vrot.slane %v5834, %v6117
    %v6119 = vlaneseq
    %v6120 = vshrl.u32 %v6119, 7
    %v6121 = vsub.s32 5, %v6120
    %v6122 = vrot.slane %v5834, %v6121
    %v6125 = vmul.f32 %v5100, %v6118
    %v6126 = vmul.f32 %v5102, %v6122
    %v6129 = vrot.slane %v6125, 5
    %v6130 = vrot.slane %v6126, 5
    %v6133 = vadd.f32 %v5571, %v6129
    %v6134 = vadd.f32 %v5572, %v6130
    %v6135 = vmul.f32 %v5100, %v6086
    %v6136 = vmul.f32 %v5102, %v6093
    %v6139 = vrot.slane %v6135, 7
    %v6140 = vrot.slane %v6136, 7
    %v6143 = vadd.f32 %v6133, %v6139
    %v6144 = vadd.f32 %v6134, %v6140
    %v6145 = vld [vmem:[%s5835 + $0x20] sm:$0xff]
    %v6146 = vld [vmem:[%s5835 + $0x28] sm:$0xff]
    %v6148 = vsel %vm1498, %v6145, 0
    %v6151 = vsel %vm1498, %v6146, 0
    %6153 = vmatprep.subr.mxu0 %v5778
    %6154 = vmatpush1.msra.mxu0 %v5777
    %6155 = vmatprep.subr.mxu0 %v5780
    %6156 = vmatpush1.msra.mxu0 %v5779
    %6157 = vmatprep.subr.mxu0 0.0
    %6158 = vmatpush1.msra.mxu0 0.0
    %6159 = vmatprep.subr.mxu0 0.0
    %6160 = vmatpush1.msra.mxu0 0.0
    %6161 = vmatprep.subr.mxu0 0.0
    %6162 = vmatpush1.msra.mxu0 0.0
    %6163 = vmatprep.subr.mxu0 0.0
    %6164 = vmatpush1.msra.mxu0 0.0
    %6165 = vmatprep.subr.mxu0 0.0
    %6166 = vmatpush1.msra.mxu0 0.0
    %6167 = vmatprep.subr.mxu0 0.0
    %6168 = vmatpush1.msra.mxu0 0.0
    %6169 = vmatprep.subr.mxu0 0.0
    %6170 = vmatpush1.msra.mxu0 0.0
    %6171 = vmatprep.subr.mxu0 0.0
    %6172 = vmatpush1.msra.mxu0 0.0
    %6173 = vmatprep.subr.mxu0 0.0
    %6174 = vmatpush1.msra.mxu0 0.0
    %6175 = vmatprep.subr.mxu0 0.0
    %6176 = vmatpush1.msra.mxu0 0.0
    %6177 = vmatprep.subr.mxu0 0.0
    %6178 = vmatpush1.msra.mxu0 0.0
    %6179 = vmatprep.subr.mxu0 0.0
    %6180 = vmatpush1.msra.mxu0 0.0
    %6181 = vmatprep.subr.mxu0 0.0
    %6182 = vmatpush1.msra.mxu0 0.0
    %6183 = vmatprep.subr.mxu0 0.0
    %6184 = vmatpush1.msra.mxu0 0.0
    %6185 = vmatprep.subr.mxu0 0.0
    %6186 = vmatpush1.msra.mxu0 0.0
    %6187 = vmatprep.subr.mxu0 0.0
    %6188 = vmatpush1.msra.mxu0 0.0
    %6189 = vmatprep.subr.mxu0 0.0
    %6190 = vmatpush1.msra.mxu0 0.0
    %6191 = vmatprep.subr.mxu0 0.0
    %6192 = vmatpush1.msra.mxu0 0.0
    %6193 = vmatprep.subr.mxu0 0.0
    %6194 = vmatpush1.msra.mxu0 0.0
    %6195 = vmatprep.subr.mxu0 0.0
    %6196 = vmatpush1.msra.mxu0 0.0
    %6197 = vmatprep.subr.mxu0 0.0
    %6198 = vmatpush1.msra.mxu0 0.0
    %6199 = vmatprep.subr.mxu0 0.0
    %6200 = vmatpush1.msra.mxu0 0.0
    %6201 = vmatprep.subr.mxu0 0.0
    %6202 = vmatpush1.msra.mxu0 0.0
    %6203 = vmatprep.subr.mxu0 0.0
    %6204 = vmatpush1.msra.mxu0 0.0
    %6205 = vmatprep.subr.mxu0 0.0
    %6206 = vmatpush1.msra.mxu0 0.0
    %6207 = vmatprep.subr.mxu0 0.0
    %6208 = vmatpush1.msra.mxu0 0.0
    %6209 = vmatprep.subr.mxu0 0.0
    %6210 = vmatpush1.msra.mxu0 0.0
    %6211 = vmatprep.subr.mxu0 0.0
    %6212 = vmatpush1.msra.mxu0 0.0
    %6213 = vmatprep.subr.mxu0 0.0
    %6214 = vmatpush1.msra.mxu0 0.0
    %6215 = vmatprep.subr.mxu0 0.0
    %6216 = vmatpush1.msra.mxu0 0.0
    %6217 = vmatprep.mubr.f32.mxu0 0.0
    %6218 = vmatmul.mubr.f32.gmra.mrb[0].mxu0 %v6148
    %v6219 = vpop.f32.mrb[0].mxu0
    %v6220 = vadd.f32 0.0, %v6219
    %v6221 = vpop.f32.mrb[0].mxu0
    %v6222 = vadd.f32 0.0, %v6221
    %6223 = vmatprep.mubr.f32.mxu0 0.0
    %6224 = vmatmul.mubr.f32.gmra.mrb[0].mxu0 %v6151
    %v6225 = vpop.f32.mrb[0].mxu0
    %v6226 = vadd.f32 0.0, %v6225
    %v6227 = vpop.f32.mrb[0].mxu0
    %v6228 = vadd.f32 0.0, %v6227
    %6229 = vdwg.mxu0
    %v6230 = vmul.f32 %v5829, %v6220
    %v6231 = vmul.f32 %v5830, %v6222
    %v6232 = vmul.f32 %v5831, %v6226
    %v6233 = vmul.f32 %v5832, %v6228
    %v6234 = vadd.f32 %v6230, %v6232
    %v6235 = vrot.slane %v6234, 4
    %v6236 = vadd.f32 %v6234, %v6235
    %v6237 = vrot.slane %v6236, 2
    %v6238 = vadd.f32 %v6236, %v6237
    %v6239 = vrot.slane %v6238, 1
    %v6240 = vadd.f32 %v6238, %v6239
    %v6241 = vadd.f32 %v6231, %v6233
    %v6242 = vrot.slane %v6241, 4
    %v6243 = vadd.f32 %v6241, %v6242
    %v6244 = vrot.slane %v6243, 2
    %v6245 = vadd.f32 %v6243, %v6244
    %v6246 = vrot.slane %v6245, 1
    %v6247 = vadd.f32 %v6245, %v6246
    %v6250 = vcombine.low %v6240, %v6247
    %v6252 = vunpack.c.l.s4 1966171168
    %v6253 = vunpack.c.0.s8 %v6252
    %v6254 = vlaneseq
    %v6255 = vshrl.u32 %v6254, 7
    %v6256 = vsub.s32 %v6253, %v6255
    %v6257 = vrot.slane %v6250, %v6256
    %v6259 = vunpack.c.l.s4 1966171168
    %v6260 = vunpack.c.0.s8 %v6259
    %v6261 = vlaneseq
    %v6262 = vshrl.u32 %v6261, 7
    %v6263 = vsub.s32 %v6260, %v6262
    %v6264 = vrot.slane %v6257, %v6263
    %s6266 = scalar_lea.vmem %s4855, 36
    %6267 = vst.msk [vmem:[%s6266] ss:$8 sm:$0x3] %vm2341, %v6264
    %6268 = vst.msk [vmem:[%s6266] ss:$8 sm:$0x0] %vm2341, %v6264
    %v6269 = vlaneseq
    %v6270 = vshrl.u32 %v6269, 7
    %v6271 = vsub.s32 2, %v6270
    %v6272 = vrot.slane %v5834, %v6271
    %v6273 = vlaneseq
    %v6274 = vshrl.u32 %v6273, 7
    %v6275 = vsub.s32 6, %v6274
    %v6276 = vrot.slane %v5834, %v6275
    %v6279 = vmul.f32 %v5100, %v6272
    %v6280 = vmul.f32 %v5102, %v6276
    %v6283 = vrot.slane %v6279, 5
    %v6284 = vrot.slane %v6280, 5
    %v6287 = vadd.f32 %v5725, %v6283
    %v6288 = vadd.f32 %v5726, %v6284
    %v6289 = vmul.f32 %v5100, %v6240
    %v6290 = vmul.f32 %v5102, %v6247
    %v6293 = vrot.slane %v6289, 7
    %v6294 = vrot.slane %v6290, 7
    %v6297 = vadd.f32 %v6287, %v6293
    %v6298 = vadd.f32 %v6288, %v6294
    %v6301 = vcombine.high %v5989, %v5990
    %v6303 = vunpack.c.l.s4 1966171168
    %v6304 = vunpack.c.0.s8 %v6303
    %v6305 = vlaneseq
    %v6306 = vshrl.u32 %v6305, 7
    %v6307 = vsub.s32 %v6304, %v6306
    %v6308 = vrot.slane %v6301, %v6307
    %v6309 = vcombine.high %v6308, %v6308
    %v6311 = vunpack.c.l.s4 1966171168
    %v6312 = vunpack.c.0.s8 %v6311
    %v6313 = vlaneseq
    %v6314 = vshrl.u32 %v6313, 7
    %v6315 = vsub.s32 %v6312, %v6314
    %v6316 = vrot.slane %v6309, %v6315
    %v6317 = vcombine.high %v6316, %v6316
    %s6319 = scalar_lea.vmem %s4855, 16
    %6320 = vst.msk [vmem:[%s6319] ss:$8 sm:$0x3] %vm2341, %v6317
    %6321 = vst.msk [vmem:[%s6319] ss:$8 sm:$0x0] %vm2341, %v6317
    %v6324 = vcombine.high %v6143, %v6144
    %v6326 = vunpack.c.l.s4 1966171168
    %v6327 = vunpack.c.0.s8 %v6326
    %v6328 = vlaneseq
    %v6329 = vshrl.u32 %v6328, 7
    %v6330 = vsub.s32 %v6327, %v6329
    %v6331 = vrot.slane %v6324, %v6330
    %v6332 = vcombine.high %v6331, %v6331
    %v6334 = vunpack.c.l.s4 1966171168
    %v6335 = vunpack.c.0.s8 %v6334
    %v6336 = vlaneseq
    %v6337 = vshrl.u32 %v6336, 7
    %v6338 = vsub.s32 %v6335, %v6337
    %v6339 = vrot.slane %v6332, %v6338
    %v6340 = vcombine.high %v6339, %v6339
    %s6342 = scalar_lea.vmem %s4855, 17
    %6343 = vst.msk [vmem:[%s6342] ss:$8 sm:$0x3] %vm2341, %v6340
    %6344 = vst.msk [vmem:[%s6342] ss:$8 sm:$0x0] %vm2341, %v6340
    %v6347 = vcombine.high %v6297, %v6298
    %v6349 = vunpack.c.l.s4 1966171168
    %v6350 = vunpack.c.0.s8 %v6349
    %v6351 = vlaneseq
    %v6352 = vshrl.u32 %v6351, 7
    %v6353 = vsub.s32 %v6350, %v6352
    %v6354 = vrot.slane %v6347, %v6353
    %v6355 = vcombine.high %v6354, %v6354
    %v6357 = vunpack.c.l.s4 1966171168
    %v6358 = vunpack.c.0.s8 %v6357
    %v6359 = vlaneseq
    %v6360 = vshrl.u32 %v6359, 7
    %v6361 = vsub.s32 %v6358, %v6360
    %v6362 = vrot.slane %v6355, %v6361
    %v6363 = vcombine.high %v6362, %v6362
    %s6365 = scalar_lea.vmem %s4855, 18
    %6366 = vst.msk [vmem:[%s6365] ss:$8 sm:$0x3] %vm2341, %v6363
    %6367 = vst.msk [vmem:[%s6365] ss:$8 sm:$0x0] %vm2341, %v6363
    // Predicated region
    $region70: #{pixel_shift_decoder_forward.1} parent=1 // pred_check
      _
    $region71: #{pixel_shift_decoder_forward.1} parent=1 // pred_check_branch
      %6369 = sbr.rel (0) target = $region73
    $region72: #{pixel_shift_decoder_forward.1} parent=1 // pred_region
      _
    $region73: #{pixel_shift_decoder_forward.1} parent=1 // pred_fallthru
      _
    // Predicated region
    $region74: #{pixel_shift_decoder_forward.1} parent=1 // pred_check
      _
    $region75: #{pixel_shift_decoder_forward.1} parent=1 // pred_check_branch
      %6371 = sbr.rel (0) target = $region77
    $region76: #{pixel_shift_decoder_forward.1} parent=1 // pred_region
      _
    $region77: #{pixel_shift_decoder_forward.1} parent=1 // pred_fallthru
      _
    %6372 = vsyncpa [#allocation4], 1
    %6373 = vsyncpa [#allocation8], 1
    %6374 = vsyncpa [#allocation11], 1
    %6375 = vsyncpa [#allocation5], 1

</llo_original>
